<compile_context>
chip_gen: v5e
topology: v5e:2x2
jax: 0.10.0
libtpu: 0.0.40
codegen_flags: <defaults>
</compile_context>

<pallas_src>
import math
import numpy as np
import jax
import jax.numpy as jnp
from jax.experimental import pallas as pl
from jax.experimental.pallas import tpu as pltpu

EMBED_DIMS = [32, 64, 160, 256]   # config 'v0'
IN_CHANS = 3
NUM_CLASSES = 21


def _pick_vmem_limit():
    # v7x has 64 MiB/TC, v5e/v6e have 128 MiB; use ~3/4 of physical, capped.
    try:
        cap = int(getattr(pltpu.get_tpu_info(), "vmem_capacity_bytes"))
        return max(32 << 20, min((3 * cap) // 4, 96 << 20))
    except Exception:
        return 48 << 20


_VMEM_LIMIT = _pick_vmem_limit()


# ----------------------------- Pallas kernels ------------------------------

def _make_mm_kernel(n_pre: int, n_bcast: int, has_bias: bool, has_post: bool):
    """out = (x + sum(pre) + sum(pre_bcast)) @ w [+ b] [+ post]; f32 accumulation."""
    n_add = n_pre + n_bcast

    def kernel(*refs):
        idx = 0
        x = refs[idx][...]
        idx += 1
        if n_add:
            xf = x.astype(jnp.float32)          # f32 adds (v5e has no bf16 VALU)
            for _ in range(n_add):
                xf = xf + refs[idx][...].astype(jnp.float32)
                idx += 1
            x = xf.astype(jnp.bfloat16)
        w = refs[idx][...]
        idx += 1
        acc = jnp.dot(x, w, preferred_element_type=jnp.float32)
        if has_bias:
            acc = acc + refs[idx][...]          # (1, N) f32
            idx += 1
        if has_post:
            acc = acc + refs[idx][...].astype(jnp.float32)
            idx += 1
        refs[idx][...] = acc.astype(refs[idx].dtype)

    return kernel


def fused_matmul(x, w, b=None, pre=(), pre_bcast=(), post=None,
                 out_dtype=jnp.bfloat16, tile_m=2048, batch=1):
    """Row-tiled Pallas matmul with fused pre/post adds.

    x / pre[i] / post: (M, ...) with M = batch * rows; pre_bcast[i]: (rows, K)
    broadcast over the batch via the BlockSpec index_map (no tiling in HBM).
    Grid is (batch, row-tiles); ragged last tile is handled by Pallas masking
    (no explicit pad / slice passes).
    """
    M, K = x.shape
    N = w.shape[1]
    assert M % batch == 0
    rows = M // batch
    tm = rows if rows <= tile_m else tile_m
    nt = pl.cdiv(rows, tm)

    def prep(a):                                    # (M, C) -> (batch, rows, C) bf16
        return a.astype(jnp.bfloat16).reshape(batch, rows, a.shape[-1])

    operands = [prep(x)]
    in_specs = [pl.BlockSpec((None, tm, K), lambda bb, i: (bb, i, 0))]
    for p_arr in pre:
        operands.append(prep(p_arr))
        in_specs.append(pl.BlockSpec((None, tm, K), lambda bb, i: (bb, i, 0)))
    for p_arr in pre_bcast:                         # per-batch broadcast operand
        operands.append(p_arr.astype(jnp.bfloat16))
        in_specs.append(pl.BlockSpec((tm, K), lambda bb, i: (i, 0)))
    operands.append(w.astype(jnp.bfloat16))
    in_specs.append(pl.BlockSpec((K, N), lambda bb, i: (0, 0)))
    if b is not None:
        operands.append(b.astype(jnp.float32).reshape(1, N))
        in_specs.append(pl.BlockSpec((1, N), lambda bb, i: (0, 0)))
    if post is not None:
        operands.append(prep(post))
        in_specs.append(pl.BlockSpec((None, tm, N), lambda bb, i: (bb, i, 0)))

    out = pl.pallas_call(
        _make_mm_kernel(len(pre), len(pre_bcast), b is not None, post is not None),
        out_shape=jax.ShapeDtypeStruct((batch, rows, N), out_dtype),
        grid=(batch, nt),
        in_specs=in_specs,
        out_specs=pl.BlockSpec((None, tm, N), lambda bb, i: (bb, i, 0)),
        compiler_params=pltpu.CompilerParams(
            dimension_semantics=("parallel", "parallel"),
            vmem_limit_bytes=_VMEM_LIMIT),
    )(*operands)
    # TODO(synk): lane-dense repack of narrow-N (<128) outputs skipped; re-check
    # masked-store cost if these stages show up in profiles.
    return out.reshape(M, N)


def _head_kernel(s_ref, mh_ref, mw_ref, o_ref, zw_ref):
    """Fused bilinear resize (f32, separable) + channel softmax, NCHW output.

    s_ref : (21*H4, W4) channel-major low-res logits for this batch element
    mh_ref: (th, H4)    H-interp rows for this output-row tile
    mw_ref: (W4, W)     W-interp matrix (full)
    o_ref : (21, th, W) output block
    zw_ref: (21*H4, W)  scratch: W-interpolated logits (computed once per batch)
    """
    ch4, _ = s_ref.shape
    h4 = ch4 // NUM_CLASSES

    @pl.when(pl.program_id(1) == 0)
    def _():
        zw_ref[...] = jnp.dot(s_ref[...], mw_ref[...],
                              preferred_element_type=jnp.float32)

    mh = mh_ref[...]                                       # (th, H4)
    logit = [jnp.dot(mh, zw_ref[pl.ds(c * h4, h4), :],
                     preferred_element_type=jnp.float32)   # (th, W)
             for c in range(NUM_CLASSES)]
    m = logit[0]
    for c in range(1, NUM_CLASSES):
        m = jnp.maximum(m, logit[c])
    e = [jnp.exp(l - m) for l in logit]
    tot = e[0]
    for c in range(1, NUM_CLASSES):
        tot = tot + e[c]
    r = pl.reciprocal(tot, approx=True)
    r = r * (2.0 - tot * r)                                # Newton refine
    for c in range(NUM_CLASSES):
        o_ref[c] = e[c] * r


def resize_softmax_head(s_cm, mh_t, mw, B, H, W):
    """s_cm: (B, 21*H4, W4) f32 channel-major logits -> (B, 21, H, W) f32 probs."""
    ch4, w4 = s_cm.shape[1], s_cm.shape[2]
    h4 = ch4 // NUM_CLASSES
    th = math.gcd(H, 64)
    return pl.pallas_call(
        _head_kernel,
        out_shape=jax.ShapeDtypeStruct((B, NUM_CLASSES, H, W), jnp.float32),
        grid=(B, H // th),
        in_specs=[
            pl.BlockSpec((None, ch4, w4), lambda b, t: (b, 0, 0)),
            pl.BlockSpec((th, h4), lambda b, t: (t, 0)),
            pl.BlockSpec((w4, W), lambda b, t: (0, 0)),
        ],
        out_specs=pl.BlockSpec((None, NUM_CLASSES, th, W), lambda b, t: (b, 0, t, 0)),
        scratch_shapes=[pltpu.VMEM((ch4, W), jnp.float32)],
        compiler_params=pltpu.CompilerParams(
            dimension_semantics=("parallel", "arbitrary"),
            vmem_limit_bytes=_VMEM_LIMIT),
    )(s_cm, mh_t, mw)


# ------------------------------- glue ops -----------------------------------
# TODO(synk): patch extraction / pooling / nearest-2x expansion are small XLA
# rearrangements on low-res tensors; they could be folded into the consumer's
# BlockSpecs (4-D blocks + in-kernel repeat) for one fewer HBM pass per stage.

def patch_rows_from_nchw(x, p):
    """NCHW -> patch rows (B*Hp*Wp, p*p*C), flatten order (dy, dx, c)."""
    B, C, H, W = x.shape
    Hp, Wp = H // p, W // p
    x = x.reshape(B, C, Hp, p, Wp, p)
    x = jnp.transpose(x, (0, 2, 4, 3, 5, 1))
    return x.reshape(B * Hp * Wp, p * p * C)


def patch_rows_from_rows(x_rows, B, H, W, p):
    """pixel rows at (H, W) -> patch rows (B*Hp*Wp, p*p*C), order (dy, dx, c)."""
    C = x_rows.shape[1]
    Hp, Wp = H // p, W // p
    x = x_rows.reshape(B, Hp, p, Wp, p, C)
    x = jnp.transpose(x, (0, 1, 3, 2, 4, 5))
    return x.reshape(B * Hp * Wp, p * p * C)


def avg_pool_rows(x_rows, B, H, W, k):
    C = x_rows.shape[1]
    x = x_rows.astype(jnp.float32).reshape(B, H // k, k, W // k, k, C)
    return x.mean(axis=(2, 4)).reshape(B * (H // k) * (W // k), C).astype(x_rows.dtype)


def upsample2x_rows(x_rows, B, H, W):
    """Nearest-neighbor 2x on pixel rows (applied AFTER the 1x1 conv)."""
    C = x_rows.shape[1]
    x = x_rows.reshape(B, H, W, C)
    x = jnp.repeat(jnp.repeat(x, 2, axis=1), 2, axis=2)
    return x.reshape(B * 2 * H * 2 * W, C)


def _interp_matrix(in_size, out_size):
    """PyTorch bilinear (align_corners=False) interpolation as an (in,out) matrix."""
    scale = in_size / out_size
    o = np.arange(out_size)
    src = np.maximum((o + 0.5) * scale - 0.5, 0.0)
    i0 = np.minimum(np.floor(src).astype(np.int64), in_size - 1)
    i1 = np.minimum(i0 + 1, in_size - 1)
    l1 = (src - i0).astype(np.float32)
    l0 = (1.0 - l1).astype(np.float32)
    M = np.zeros((in_size, out_size), np.float32)
    M[i0, o] += l0
    M[i1, o] += l1
    return jnp.asarray(M)


# ------------------------------- parameters ---------------------------------

def init_params(key, input_size):
    # NOTE: patch-embed weights use the (dy, dx, c) flatten order of the helpers
    # above; loading real PyTorch conv weights would require a matching permute.
    # Weights are stored pre-cast to bf16 (kernel operand dtype), biases in f32.
    H, W = input_size
    ks = iter(jax.random.split(key, 32))
    C0, C1, C2, C3 = EMBED_DIMS

    def nrm(shape, scale=0.05, dtype=jnp.bfloat16):
        return (jax.random.normal(next(ks), shape, jnp.float32) * scale).astype(dtype)

    p = {}
    p["input_pos_embed"] = nrm((1, IN_CHANS, H, W), 1.0, jnp.float32)
    p["bi_pos_embed"] = nrm((1, C0, H // 4, W // 4), 1.0, jnp.float32)
    # encoder patch-embed projections (strides 4, 2, 2, 2)
    p["enc1_w"], p["enc1_b"] = nrm((IN_CHANS * 16, C0)), jnp.zeros((C0,), jnp.float32)
    p["enc2_w"], p["enc2_b"] = nrm((C0 * 4, C1)), jnp.zeros((C1,), jnp.float32)
    p["enc3_w"], p["enc3_b"] = nrm((C1 * 4, C2)), jnp.zeros((C2,), jnp.float32)
    p["enc4_w"], p["enc4_b"] = nrm((C2 * 4, C3)), jnp.zeros((C3,), jnp.float32)
    # fusion module
    p["fuse_w"], p["fuse_b"] = nrm((C1 + C2 + C3, C3)), jnp.zeros((C3,), jnp.float32)
    # bi-directional attention stand-in
    p["ba_p1_w"], p["ba_p1_b"] = nrm((C0, C0)), jnp.zeros((C0,), jnp.float32)
    p["ba_p4_w"], p["ba_p4_b"] = nrm((C3, C3)), jnp.zeros((C3,), jnp.float32)
    # decoder ladder
    p["dec3_w"], p["dec3_b"] = nrm((C3, C2)), jnp.zeros((C2,), jnp.float32)
    p["dec2_w"], p["dec2_b"] = nrm((C2, C1)), jnp.zeros((C1,), jnp.float32)
    p["dec1_w"], p["dec1_b"] = nrm((C1, C0)), jnp.zeros((C0,), jnp.float32)
    # output_to_classes (Conv2d C0 -> num_classes, kernel 1)
    p["out_w"], p["out_b"] = nrm((C0, NUM_CLASSES)), jnp.zeros((NUM_CLASSES,), jnp.float32)
    return p


# --------------------------------- forward ----------------------------------

def net_forward(params, x):
    B, _, H, W = x.shape
    C0, C1, C2, C3 = EMBED_DIMS
    H4, W4 = H // 4, W // 4
    H8, W8 = H // 8, W // 8
    H16, W16 = H // 16, W // 16
    H32, W32 = H // 32, W // 32

    # ---- TransformerEncoder ----
    # TODO(synk): attention/MLP block internals were not provided; only the
    # hierarchical patch-embedding projections (strides 4/8/16/32) are implemented.
    # input_pos_embed add is folded through the (linear) patch projection as a
    # per-batch broadcast pre-add: patch(x + pos) @ W = (patch(x) + patch(pos)) @ W.
    x_rows = patch_rows_from_nchw(x, 4)                                   # (B*H4*W4, 48)
    pos1_rows = patch_rows_from_nchw(params["input_pos_embed"], 4)        # (H4*W4, 48)
    f1 = fused_matmul(x_rows, params["enc1_w"], params["enc1_b"],
                      pre_bcast=(pos1_rows,), batch=B, tile_m=2048)       # (B*H4*W4, C0)
    f2 = fused_matmul(patch_rows_from_rows(f1, B, H4, W4, 2),
                      params["enc2_w"], params["enc2_b"],
                      batch=B, tile_m=2048)                               # (B*H8*W8, C1)
    f3 = fused_matmul(patch_rows_from_rows(f2, B, H8, W8, 2),
                      params["enc3_w"], params["enc3_b"],
                      batch=B, tile_m=1024)                               # (B*H16*W16, C2)
    f4 = fused_matmul(patch_rows_from_rows(f3, B, H16, W16, 2),
                      params["enc4_w"], params["enc4_b"],
                      batch=B, tile_m=1024)                               # (B*H32*W32, C3)

    # ---- BiDirectionalAttentionModule ----
    # TODO(synk): cross-attention internals not provided; approximated with
    # pos-embed add + learned 1x1 projections (pos add is a broadcast pre-add).
    bipos_rows = jnp.transpose(params["bi_pos_embed"], (0, 2, 3, 1)).reshape(H4 * W4, C0)
    p1 = fused_matmul(f1, params["ba_p1_w"], params["ba_p1_b"],
                      pre_bcast=(bipos_rows,), batch=B, tile_m=2048)      # (B*H4*W4, C0)
    P4 = fused_matmul(f4, params["ba_p4_w"], params["ba_p4_b"], batch=B)  # (B*H32*W32, C3)

    # ---- FeatureFusionModule(f2, f3, f4) ----
    # TODO(synk): internals not provided; pool to f4 resolution, concat,
    # 1x1-project; the "+ P4_feature_map" rides in the matmul epilogue.
    g2 = avg_pool_rows(f2, B, H8, W8, H8 // H32)
    g3 = avg_pool_rows(f3, B, H16, W16, H16 // H32)
    fusion = fused_matmul(jnp.concatenate([g2, g3, f4], axis=1),
                          params["fuse_w"], params["fuse_b"],
                          post=P4, batch=B)                               # (B*H32*W32, C3)

    # ---- UpsampleDecoder ----
    # TODO(synk): internals not provided; 1x1 projection + nearest-2x + skip-add
    # ladder.  1x1 conv is applied at LOW resolution (commutes with nearest 2x)
    # and each skip-add is fused into the next matmul's pre-add.
    y3 = fused_matmul(fusion, params["dec3_w"], params["dec3_b"], batch=B)          # s32, C2
    u3 = upsample2x_rows(y3, B, H32, W32)                                           # s16
    y2 = fused_matmul(u3, params["dec2_w"], params["dec2_b"], pre=(f3,),
                      batch=B, tile_m=1024)                                         # (u3+f3)@W
    u2 = upsample2x_rows(y2, B, H16, W16)                                           # s8
    y1 = fused_matmul(u2, params["dec1_w"], params["dec1_b"], pre=(f2,),
                      batch=B, tile_m=2048)                                         # (u2+f2)@W
    u1 = upsample2x_rows(y1, B, H8, W8)                                             # s4, C0

    # ---- head ----
    # Classifier 1x1 conv BEFORE the bilinear resize (exactly equivalent: a 1x1
    # conv+bias commutes with bilinear interp since interp rows sum to 1); then a
    # single fused Pallas kernel does the separable f32 resize + channel softmax
    # and writes the full-resolution NCHW output exactly once.
    logits_low = fused_matmul(u1, params["out_w"], params["out_b"],
                              pre=(f1, p1), batch=B, tile_m=2048,
                              out_dtype=jnp.float32)                      # (B*H4*W4, 21) f32
    s_cm = jnp.transpose(logits_low.reshape(B, H4, W4, NUM_CLASSES), (0, 3, 1, 2))
    s_cm = s_cm.reshape(B, NUM_CLASSES * H4, W4)                          # cheap low-res transpose
    mh_t = _interp_matrix(H4, H).T                                        # (H, H4) f32
    mw = _interp_matrix(W4, W)                                            # (W4, W) f32
    return resize_softmax_head(s_cm, mh_t, mw, B, H, W)                   # (B,21,H,W) f32


if __name__ == "__main__":
    B, H, W = 2, 64, 64   # small shapes; H, W must be multiples of 32
    key = jax.random.PRNGKey(0)
    kx, kp = jax.random.split(key)
    x = jax.random.normal(kx, (B, IN_CHANS, H, W), jnp.float32)
    params = init_params(kp, (H, W))

    out = jax.jit(net_forward)(params, x)
    out = jax.block_until_ready(out)

    assert out.shape == (B, NUM_CLASSES, H, W), out.shape
    s = jnp.sum(out, axis=1)
    assert bool(jnp.allclose(s, 1.0, atol=2e-3)), float(jnp.max(jnp.abs(s - 1.0)))
    print("KERNEL_OK")
</pallas_src>

<mosaic_0001>
module attributes {stable_mosaic.version = 11 : i64} {
  func.func @kernel(%arg0: i32, %arg1: i32, %arg2: memref<1x256x48xbf16, #tpu.memory_space<vmem>>, %arg3: memref<256x48xbf16, #tpu.memory_space<vmem>>, %arg4: memref<48x32xbf16, #tpu.memory_space<vmem>>, %arg5: memref<1x32xf32, #tpu.memory_space<vmem>>, %arg6: memref<1x256x32xbf16, #tpu.memory_space<vmem>>) attributes {dimension_semantics = [#tpu.dimension_semantics<parallel>, #tpu.dimension_semantics<parallel>], iteration_bounds = array<i64: 2, 1>, scalar_prefetch = 0 : i64, scratch_operands = 0 : i64, tpu.core_type = #tpu.core_type<tc>, window_params = [{transform_indices = @transform_0, window_bounds = array<i64: 1, 256, 48>}, {transform_indices = @transform_1, window_bounds = array<i64: 256, 48>}, {pipeline_mode = #tpu.pipeline_mode<synchronous>, transform_indices = @transform_2, window_bounds = array<i64: 48, 32>}, {pipeline_mode = #tpu.pipeline_mode<synchronous>, transform_indices = @transform_3, window_bounds = array<i64: 1, 32>}, {transform_indices = @transform_4, window_bounds = array<i64: 1, 256, 32>}]} {
    %c0 = arith.constant 0 : index
    %c0_0 = arith.constant 0 : index
    %c0_1 = arith.constant 0 : index
    %0 = vector.load %arg2[%c0, %c0_0, %c0_1] : memref<1x256x48xbf16, #tpu.memory_space<vmem>>, vector<1x256x48xbf16>
    %1 = vector.shape_cast %0 : vector<1x256x48xbf16> to vector<256x48xbf16>
    %2 = arith.extf %1 : vector<256x48xbf16> to vector<256x48xf32>
    %c0_2 = arith.constant 0 : index
    %c0_3 = arith.constant 0 : index
    %3 = vector.load %arg3[%c0_2, %c0_3] : memref<256x48xbf16, #tpu.memory_space<vmem>>, vector<256x48xbf16>
    %4 = arith.extf %3 : vector<256x48xbf16> to vector<256x48xf32>
    %5 = arith.addf %2, %4 : vector<256x48xf32>
    %6 = arith.truncf %5 : vector<256x48xf32> to vector<256x48xbf16>
    %c0_4 = arith.constant 0 : index
    %c0_5 = arith.constant 0 : index
    %7 = vector.load %arg4[%c0_4, %c0_5] : memref<48x32xbf16, #tpu.memory_space<vmem>>, vector<48x32xbf16>
    %cst = arith.constant dense<0.000000e+00> : vector<256x32xf32>
    %8 = tpu.matmul %6, %7, %cst {dimension_numbers = #tpu.dot_dimension_numbers<[1], [0], [0], [1], [0, 0, 1, 1], [], []>} : vector<256x48xbf16>, vector<48x32xbf16>, vector<256x32xf32> -> vector<256x32xf32>
    %c0_6 = arith.constant 0 : index
    %c0_7 = arith.constant 0 : index
    %9 = vector.load %arg5[%c0_6, %c0_7] : memref<1x32xf32, #tpu.memory_space<vmem>>, vector<1x32xf32>
    %10 = vector.broadcast %9 : vector<1x32xf32> to vector<256x32xf32>
    %11 = arith.addf %8, %10 : vector<256x32xf32>
    %12 = arith.truncf %11 : vector<256x32xf32> to vector<256x32xbf16>
    %c0_8 = arith.constant 0 : index
    %c0_9 = arith.constant 0 : index
    %c0_10 = arith.constant 0 : index
    %13 = vector.load %arg6[%c0_8, %c0_9, %c0_10] : memref<1x256x32xbf16, #tpu.memory_space<vmem>>, vector<1x256x32xbf16>
    %14 = vector.shape_cast %13 : vector<1x256x32xbf16> to vector<256x32xbf16>
    %15 = vector.shape_cast %12 : vector<256x32xbf16> to vector<1x256x32xbf16>
    tpu.vector_store %arg6[%c0_8, %c0_9, %c0_10], %15 {strides = array<i32>} : memref<1x256x32xbf16, #tpu.memory_space<vmem>>, vector<1x256x32xbf16>,
    return
  }
  func.func @transform_0(%arg0: i32, %arg1: i32) -> (i32, i32, i32) {
    %c0_i32 = arith.constant 0 : i32
    %c0_i32_0 = arith.constant 0 : i32
    return %arg0, %arg1, %c0_i32 : i32, i32, i32
  }
  func.func @transform_1(%arg0: i32, %arg1: i32) -> (i32, i32) {
    %c0_i32 = arith.constant 0 : i32
    %c0_i32_0 = arith.constant 0 : i32
    return %arg1, %c0_i32 : i32, i32
  }
  func.func @transform_2(%arg0: i32, %arg1: i32) -> (i32, i32) {
    %c0_i32 = arith.constant 0 : i32
    %c0_i32_0 = arith.constant 0 : i32
    %c0_i32_1 = arith.constant 0 : i32
    return %c0_i32, %c0_i32_0 : i32, i32
  }
  func.func @transform_3(%arg0: i32, %arg1: i32) -> (i32, i32) {
    %c0_i32 = arith.constant 0 : i32
    %c0_i32_0 = arith.constant 0 : i32
    %c0_i32_1 = arith.constant 0 : i32
    return %c0_i32, %c0_i32_0 : i32, i32
  }
  func.func @transform_4(%arg0: i32, %arg1: i32) -> (i32, i32, i32) {
    %c0_i32 = arith.constant 0 : i32
    %c0_i32_0 = arith.constant 0 : i32
    return %arg0, %arg1, %c0_i32 : i32, i32, i32
  }
}

module attributes {stable_mosaic.version = 11 : i64} {
  func.func @kernel(%arg0: i32, %arg1: i32, %arg2: memref<1x64x128xbf16, #tpu.memory_space<vmem>>, %arg3: memref<128x64xbf16, #tpu.memory_space<vmem>>, %arg4: memref<1x64xf32, #tpu.memory_space<vmem>>, %arg5: memref<1x64x64xbf16, #tpu.memory_space<vmem>>) attributes {dimension_semantics = [#tpu.dimension_semantics<parallel>, #tpu.dimension_semantics<parallel>], iteration_bounds = array<i64: 2, 1>, scalar_prefetch = 0 : i64, scratch_operands = 0 : i64, tpu.core_type = #tpu.core_type<tc>, window_params = [{transform_indices = @transform_0, window_bounds = array<i64: 1, 64, 128>}, {pipeline_mode = #tpu.pipeline_mode<synchronous>, transform_indices = @transform_1, window_bounds = array<i64: 128, 64>}, {pipeline_mode = #tpu.pipeline_mode<synchronous>, transform_indices = @transform_2, window_bounds = array<i64: 1, 64>}, {transform_indices = @transform_3, window_bounds = array<i64: 1, 64, 64>}]} {
    %c0 = arith.constant 0 : index
    %c0_0 = arith.constant 0 : index
    %c0_1 = arith.constant 0 : index
    %0 = vector.load %arg2[%c0, %c0_0, %c0_1] : memref<1x64x128xbf16, #tpu.memory_space<vmem>>, vector<1x64x128xbf16>
    %1 = vector.shape_cast %0 : vector<1x64x128xbf16> to vector<64x128xbf16>
    %c0_2 = arith.constant 0 : index
    %c0_3 = arith.constant 0 : index
    %2 = vector.load %arg3[%c0_2, %c0_3] : memref<128x64xbf16, #tpu.memory_space<vmem>>, vector<128x64xbf16>
    %cst = arith.constant dense<0.000000e+00> : vector<64x64xf32>
    %3 = tpu.matmul %1, %2, %cst {dimension_numbers = #tpu.dot_dimension_numbers<[1], [0], [0], [1], [0, 0, 1, 1], [], []>} : vector<64x128xbf16>, vector<128x64xbf16>, vector<64x64xf32> -> vector<64x64xf32>
    %c0_4 = arith.constant 0 : index
    %c0_5 = arith.constant 0 : index
    %4 = vector.load %arg4[%c0_4, %c0_5] : memref<1x64xf32, #tpu.memory_space<vmem>>, vector<1x64xf32>
    %5 = vector.broadcast %4 : vector<1x64xf32> to vector<64x64xf32>
    %6 = arith.addf %3, %5 : vector<64x64xf32>
    %7 = arith.truncf %6 : vector<64x64xf32> to vector<64x64xbf16>
    %c0_6 = arith.constant 0 : index
    %c0_7 = arith.constant 0 : index
    %c0_8 = arith.constant 0 : index
    %8 = vector.load %arg5[%c0_6, %c0_7, %c0_8] : memref<1x64x64xbf16, #tpu.memory_space<vmem>>, vector<1x64x64xbf16>
    %9 = vector.shape_cast %8 : vector<1x64x64xbf16> to vector<64x64xbf16>
    %10 = vector.shape_cast %7 : vector<64x64xbf16> to vector<1x64x64xbf16>
    tpu.vector_store %arg5[%c0_6, %c0_7, %c0_8], %10 {strides = array<i32>} : memref<1x64x64xbf16, #tpu.memory_space<vmem>>, vector<1x64x64xbf16>,
    return
  }
  func.func @transform_0(%arg0: i32, %arg1: i32) -> (i32, i32, i32) {
    %c0_i32 = arith.constant 0 : i32
    %c0_i32_0 = arith.constant 0 : i32
    return %arg0, %arg1, %c0_i32 : i32, i32, i32
  }
  func.func @transform_1(%arg0: i32, %arg1: i32) -> (i32, i32) {
    %c0_i32 = arith.constant 0 : i32
    %c0_i32_0 = arith.constant 0 : i32
    %c0_i32_1 = arith.constant 0 : i32
    return %c0_i32, %c0_i32_0 : i32, i32
  }
  func.func @transform_2(%arg0: i32, %arg1: i32) -> (i32, i32) {
    %c0_i32 = arith.constant 0 : i32
    %c0_i32_0 = arith.constant 0 : i32
    %c0_i32_1 = arith.constant 0 : i32
    return %c0_i32, %c0_i32_0 : i32, i32
  }
  func.func @transform_3(%arg0: i32, %arg1: i32) -> (i32, i32, i32) {
    %c0_i32 = arith.constant 0 : i32
    %c0_i32_0 = arith.constant 0 : i32
    return %arg0, %arg1, %c0_i32 : i32, i32, i32
  }
}

module attributes {stable_mosaic.version = 11 : i64} {
  func.func @kernel(%arg0: i32, %arg1: i32, %arg2: memref<1x16x256xbf16, #tpu.memory_space<vmem>>, %arg3: memref<256x160xbf16, #tpu.memory_space<vmem>>, %arg4: memref<1x160xf32, #tpu.memory_space<vmem>>, %arg5: memref<1x16x160xbf16, #tpu.memory_space<vmem>>) attributes {dimension_semantics = [#tpu.dimension_semantics<parallel>, #tpu.dimension_semantics<parallel>], iteration_bounds = array<i64: 2, 1>, scalar_prefetch = 0 : i64, scratch_operands = 0 : i64, tpu.core_type = #tpu.core_type<tc>, window_params = [{transform_indices = @transform_0, window_bounds = array<i64: 1, 16, 256>}, {pipeline_mode = #tpu.pipeline_mode<synchronous>, transform_indices = @transform_1, window_bounds = array<i64: 256, 160>}, {pipeline_mode = #tpu.pipeline_mode<synchronous>, transform_indices = @transform_2, window_bounds = array<i64: 1, 160>}, {transform_indices = @transform_3, window_bounds = array<i64: 1, 16, 160>}]} {
    %c0 = arith.constant 0 : index
    %c0_0 = arith.constant 0 : index
    %c0_1 = arith.constant 0 : index
    %0 = vector.load %arg2[%c0, %c0_0, %c0_1] : memref<1x16x256xbf16, #tpu.memory_space<vmem>>, vector<1x16x256xbf16>
    %1 = vector.shape_cast %0 : vector<1x16x256xbf16> to vector<16x256xbf16>
    %c0_2 = arith.constant 0 : index
    %c0_3 = arith.constant 0 : index
    %2 = vector.load %arg3[%c0_2, %c0_3] : memref<256x160xbf16, #tpu.memory_space<vmem>>, vector<256x160xbf16>
    %cst = arith.constant dense<0.000000e+00> : vector<16x160xf32>
    %3 = tpu.matmul %1, %2, %cst {dimension_numbers = #tpu.dot_dimension_numbers<[1], [0], [0], [1], [0, 0, 1, 1], [], []>} : vector<16x256xbf16>, vector<256x160xbf16>, vector<16x160xf32> -> vector<16x160xf32>
    %c0_4 = arith.constant 0 : index
    %c0_5 = arith.constant 0 : index
    %4 = vector.load %arg4[%c0_4, %c0_5] : memref<1x160xf32, #tpu.memory_space<vmem>>, vector<1x160xf32>
    %5 = vector.broadcast %4 : vector<1x160xf32> to vector<16x160xf32>
    %6 = arith.addf %3, %5 : vector<16x160xf32>
    %7 = arith.truncf %6 : vector<16x160xf32> to vector<16x160xbf16>
    %c0_6 = arith.constant 0 : index
    %c0_7 = arith.constant 0 : index
    %c0_8 = arith.constant 0 : index
    %8 = vector.load %arg5[%c0_6, %c0_7, %c0_8] : memref<1x16x160xbf16, #tpu.memory_space<vmem>>, vector<1x16x160xbf16>
    %9 = vector.shape_cast %8 : vector<1x16x160xbf16> to vector<16x160xbf16>
    %10 = vector.shape_cast %7 : vector<16x160xbf16> to vector<1x16x160xbf16>
    tpu.vector_store %arg5[%c0_6, %c0_7, %c0_8], %10 {strides = array<i32>} : memref<1x16x160xbf16, #tpu.memory_space<vmem>>, vector<1x16x160xbf16>,
    return
  }
  func.func @transform_0(%arg0: i32, %arg1: i32) -> (i32, i32, i32) {
    %c0_i32 = arith.constant 0 : i32
    %c0_i32_0 = arith.constant 0 : i32
    return %arg0, %arg1, %c0_i32 : i32, i32, i32
  }
  func.func @transform_1(%arg0: i32, %arg1: i32) -> (i32, i32) {
    %c0_i32 = arith.constant 0 : i32
    %c0_i32_0 = arith.constant 0 : i32
    %c0_i32_1 = arith.constant 0 : i32
    return %c0_i32, %c0_i32_0 : i32, i32
  }
  func.func @transform_2(%arg0: i32, %arg1: i32) -> (i32, i32) {
    %c0_i32 = arith.constant 0 : i32
    %c0_i32_0 = arith.constant 0 : i32
    %c0_i32_1 = arith.constant 0 : i32
    return %c0_i32, %c0_i32_0 : i32, i32
  }
  func.func @transform_3(%arg0: i32, %arg1: i32) -> (i32, i32, i32) {
    %c0_i32 = arith.constant 0 : i32
    %c0_i32_0 = arith.constant 0 : i32
    return %arg0, %arg1, %c0_i32 : i32, i32, i32
  }
}

module attributes {stable_mosaic.version = 11 : i64} {
  func.func @kernel(%arg0: i32, %arg1: i32, %arg2: memref<1x4x640xbf16, #tpu.memory_space<vmem>>, %arg3: memref<640x256xbf16, #tpu.memory_space<vmem>>, %arg4: memref<1x256xf32, #tpu.memory_space<vmem>>, %arg5: memref<1x4x256xbf16, #tpu.memory_space<vmem>>) attributes {dimension_semantics = [#tpu.dimension_semantics<parallel>, #tpu.dimension_semantics<parallel>], iteration_bounds = array<i64: 2, 1>, scalar_prefetch = 0 : i64, scratch_operands = 0 : i64, tpu.core_type = #tpu.core_type<tc>, window_params = [{transform_indices = @transform_0, window_bounds = array<i64: 1, 4, 640>}, {pipeline_mode = #tpu.pipeline_mode<synchronous>, transform_indices = @transform_1, window_bounds = array<i64: 640, 256>}, {pipeline_mode = #tpu.pipeline_mode<synchronous>, transform_indices = @transform_2, window_bounds = array<i64: 1, 256>}, {transform_indices = @transform_3, window_bounds = array<i64: 1, 4, 256>}]} {
    %c0 = arith.constant 0 : index
    %c0_0 = arith.constant 0 : index
    %c0_1 = arith.constant 0 : index
    %0 = vector.load %arg2[%c0, %c0_0, %c0_1] : memref<1x4x640xbf16, #tpu.memory_space<vmem>>, vector<1x4x640xbf16>
    %1 = vector.shape_cast %0 : vector<1x4x640xbf16> to vector<4x640xbf16>
    %c0_2 = arith.constant 0 : index
    %c0_3 = arith.constant 0 : index
    %2 = vector.load %arg3[%c0_2, %c0_3] : memref<640x256xbf16, #tpu.memory_space<vmem>>, vector<640x256xbf16>
    %cst = arith.constant dense<0.000000e+00> : vector<4x256xf32>
    %3 = tpu.matmul %1, %2, %cst {dimension_numbers = #tpu.dot_dimension_numbers<[1], [0], [0], [1], [0, 0, 1, 1], [], []>} : vector<4x640xbf16>, vector<640x256xbf16>, vector<4x256xf32> -> vector<4x256xf32>
    %c0_4 = arith.constant 0 : index
    %c0_5 = arith.constant 0 : index
    %4 = vector.load %arg4[%c0_4, %c0_5] : memref<1x256xf32, #tpu.memory_space<vmem>>, vector<1x256xf32>
    %5 = vector.broadcast %4 : vector<1x256xf32> to vector<4x256xf32>
    %6 = arith.addf %3, %5 : vector<4x256xf32>
    %7 = arith.truncf %6 : vector<4x256xf32> to vector<4x256xbf16>
    %c0_6 = arith.constant 0 : index
    %c0_7 = arith.constant 0 : index
    %c0_8 = arith.constant 0 : index
    %8 = vector.load %arg5[%c0_6, %c0_7, %c0_8] : memref<1x4x256xbf16, #tpu.memory_space<vmem>>, vector<1x4x256xbf16>
    %9 = vector.shape_cast %8 : vector<1x4x256xbf16> to vector<4x256xbf16>
    %10 = vector.shape_cast %7 : vector<4x256xbf16> to vector<1x4x256xbf16>
    tpu.vector_store %arg5[%c0_6, %c0_7, %c0_8], %10 {strides = array<i32>} : memref<1x4x256xbf16, #tpu.memory_space<vmem>>, vector<1x4x256xbf16>,
    return
  }
  func.func @transform_0(%arg0: i32, %arg1: i32) -> (i32, i32, i32) {
    %c0_i32 = arith.constant 0 : i32
    %c0_i32_0 = arith.constant 0 : i32
    return %arg0, %arg1, %c0_i32 : i32, i32, i32
  }
  func.func @transform_1(%arg0: i32, %arg1: i32) -> (i32, i32) {
    %c0_i32 = arith.constant 0 : i32
    %c0_i32_0 = arith.constant 0 : i32
    %c0_i32_1 = arith.constant 0 : i32
    return %c0_i32, %c0_i32_0 : i32, i32
  }
  func.func @transform_2(%arg0: i32, %arg1: i32) -> (i32, i32) {
    %c0_i32 = arith.constant 0 : i32
    %c0_i32_0 = arith.constant 0 : i32
    %c0_i32_1 = arith.constant 0 : i32
    return %c0_i32, %c0_i32_0 : i32, i32
  }
  func.func @transform_3(%arg0: i32, %arg1: i32) -> (i32, i32, i32) {
    %c0_i32 = arith.constant 0 : i32
    %c0_i32_0 = arith.constant 0 : i32
    return %arg0, %arg1, %c0_i32 : i32, i32, i32
  }
}

module attributes {stable_mosaic.version = 11 : i64} {
  func.func @kernel(%arg0: i32, %arg1: i32, %arg2: memref<1x4x256xbf16, #tpu.memory_space<vmem>>, %arg3: memref<256x160xbf16, #tpu.memory_space<vmem>>, %arg4: memref<1x160xf32, #tpu.memory_space<vmem>>, %arg5: memref<1x4x160xbf16, #tpu.memory_space<vmem>>) attributes {dimension_semantics = [#tpu.dimension_semantics<parallel>, #tpu.dimension_semantics<parallel>], iteration_bounds = array<i64: 2, 1>, scalar_prefetch = 0 : i64, scratch_operands = 0 : i64, tpu.core_type = #tpu.core_type<tc>, window_params = [{transform_indices = @transform_0, window_bounds = array<i64: 1, 4, 256>}, {pipeline_mode = #tpu.pipeline_mode<synchronous>, transform_indices = @transform_1, window_bounds = array<i64: 256, 160>}, {pipeline_mode = #tpu.pipeline_mode<synchronous>, transform_indices = @transform_2, window_bounds = array<i64: 1, 160>}, {transform_indices = @transform_3, window_bounds = array<i64: 1, 4, 160>}]} {
    %c0 = arith.constant 0 : index
    %c0_0 = arith.constant 0 : index
    %c0_1 = arith.constant 0 : index
    %0 = vector.load %arg2[%c0, %c0_0, %c0_1] : memref<1x4x256xbf16, #tpu.memory_space<vmem>>, vector<1x4x256xbf16>
    %1 = vector.shape_cast %0 : vector<1x4x256xbf16> to vector<4x256xbf16>
    %c0_2 = arith.constant 0 : index
    %c0_3 = arith.constant 0 : index
    %2 = vector.load %arg3[%c0_2, %c0_3] : memref<256x160xbf16, #tpu.memory_space<vmem>>, vector<256x160xbf16>
    %cst = arith.constant dense<0.000000e+00> : vector<4x160xf32>
    %3 = tpu.matmul %1, %2, %cst {dimension_numbers = #tpu.dot_dimension_numbers<[1], [0], [0], [1], [0, 0, 1, 1], [], []>} : vector<4x256xbf16>, vector<256x160xbf16>, vector<4x160xf32> -> vector<4x160xf32>
    %c0_4 = arith.constant 0 : index
    %c0_5 = arith.constant 0 : index
    %4 = vector.load %arg4[%c0_4, %c0_5] : memref<1x160xf32, #tpu.memory_space<vmem>>, vector<1x160xf32>
    %5 = vector.broadcast %4 : vector<1x160xf32> to vector<4x160xf32>
    %6 = arith.addf %3, %5 : vector<4x160xf32>
    %7 = arith.truncf %6 : vector<4x160xf32> to vector<4x160xbf16>
    %c0_6 = arith.constant 0 : index
    %c0_7 = arith.constant 0 : index
    %c0_8 = arith.constant 0 : index
    %8 = vector.load %arg5[%c0_6, %c0_7, %c0_8] : memref<1x4x160xbf16, #tpu.memory_space<vmem>>, vector<1x4x160xbf16>
    %9 = vector.shape_cast %8 : vector<1x4x160xbf16> to vector<4x160xbf16>
    %10 = vector.shape_cast %7 : vector<4x160xbf16> to vector<1x4x160xbf16>
    tpu.vector_store %arg5[%c0_6, %c0_7, %c0_8], %10 {strides = array<i32>} : memref<1x4x160xbf16, #tpu.memory_space<vmem>>, vector<1x4x160xbf16>,
    return
  }
  func.func @transform_0(%arg0: i32, %arg1: i32) -> (i32, i32, i32) {
    %c0_i32 = arith.constant 0 : i32
    %c0_i32_0 = arith.constant 0 : i32
    return %arg0, %arg1, %c0_i32 : i32, i32, i32
  }
  func.func @transform_1(%arg0: i32, %arg1: i32) -> (i32, i32) {
    %c0_i32 = arith.constant 0 : i32
    %c0_i32_0 = arith.constant 0 : i32
    %c0_i32_1 = arith.constant 0 : i32
    return %c0_i32, %c0_i32_0 : i32, i32
  }
  func.func @transform_2(%arg0: i32, %arg1: i32) -> (i32, i32) {
    %c0_i32 = arith.constant 0 : i32
    %c0_i32_0 = arith.constant 0 : i32
    %c0_i32_1 = arith.constant 0 : i32
    return %c0_i32, %c0_i32_0 : i32, i32
  }
  func.func @transform_3(%arg0: i32, %arg1: i32) -> (i32, i32, i32) {
    %c0_i32 = arith.constant 0 : i32
    %c0_i32_0 = arith.constant 0 : i32
    return %arg0, %arg1, %c0_i32 : i32, i32, i32
  }
}

module attributes {stable_mosaic.version = 11 : i64} {
  func.func @kernel(%arg0: i32, %arg1: i32, %arg2: memref<1x4x256xbf16, #tpu.memory_space<vmem>>, %arg3: memref<256x256xbf16, #tpu.memory_space<vmem>>, %arg4: memref<1x256xf32, #tpu.memory_space<vmem>>, %arg5: memref<1x4x256xbf16, #tpu.memory_space<vmem>>) attributes {dimension_semantics = [#tpu.dimension_semantics<parallel>, #tpu.dimension_semantics<parallel>], iteration_bounds = array<i64: 2, 1>, scalar_prefetch = 0 : i64, scratch_operands = 0 : i64, tpu.core_type = #tpu.core_type<tc>, window_params = [{transform_indices = @transform_0, window_bounds = array<i64: 1, 4, 256>}, {pipeline_mode = #tpu.pipeline_mode<synchronous>, transform_indices = @transform_1, window_bounds = array<i64: 256, 256>}, {pipeline_mode = #tpu.pipeline_mode<synchronous>, transform_indices = @transform_2, window_bounds = array<i64: 1, 256>}, {transform_indices = @transform_3, window_bounds = array<i64: 1, 4, 256>}]} {
    %c0 = arith.constant 0 : index
    %c0_0 = arith.constant 0 : index
    %c0_1 = arith.constant 0 : index
    %0 = vector.load %arg2[%c0, %c0_0, %c0_1] : memref<1x4x256xbf16, #tpu.memory_space<vmem>>, vector<1x4x256xbf16>
    %1 = vector.shape_cast %0 : vector<1x4x256xbf16> to vector<4x256xbf16>
    %c0_2 = arith.constant 0 : index
    %c0_3 = arith.constant 0 : index
    %2 = vector.load %arg3[%c0_2, %c0_3] : memref<256x256xbf16, #tpu.memory_space<vmem>>, vector<256x256xbf16>
    %cst = arith.constant dense<0.000000e+00> : vector<4x256xf32>
    %3 = tpu.matmul %1, %2, %cst {dimension_numbers = #tpu.dot_dimension_numbers<[1], [0], [0], [1], [0, 0, 1, 1], [], []>} : vector<4x256xbf16>, vector<256x256xbf16>, vector<4x256xf32> -> vector<4x256xf32>
    %c0_4 = arith.constant 0 : index
    %c0_5 = arith.constant 0 : index
    %4 = vector.load %arg4[%c0_4, %c0_5] : memref<1x256xf32, #tpu.memory_space<vmem>>, vector<1x256xf32>
    %5 = vector.broadcast %4 : vector<1x256xf32> to vector<4x256xf32>
    %6 = arith.addf %3, %5 : vector<4x256xf32>
    %7 = arith.truncf %6 : vector<4x256xf32> to vector<4x256xbf16>
    %c0_6 = arith.constant 0 : index
    %c0_7 = arith.constant 0 : index
    %c0_8 = arith.constant 0 : index
    %8 = vector.load %arg5[%c0_6, %c0_7, %c0_8] : memref<1x4x256xbf16, #tpu.memory_space<vmem>>, vector<1x4x256xbf16>
    %9 = vector.shape_cast %8 : vector<1x4x256xbf16> to vector<4x256xbf16>
    %10 = vector.shape_cast %7 : vector<4x256xbf16> to vector<1x4x256xbf16>
    tpu.vector_store %arg5[%c0_6, %c0_7, %c0_8], %10 {strides = array<i32>} : memref<1x4x256xbf16, #tpu.memory_space<vmem>>, vector<1x4x256xbf16>,
    return
  }
  func.func @transform_0(%arg0: i32, %arg1: i32) -> (i32, i32, i32) {
    %c0_i32 = arith.constant 0 : i32
    %c0_i32_0 = arith.constant 0 : i32
    return %arg0, %arg1, %c0_i32 : i32, i32, i32
  }
  func.func @transform_1(%arg0: i32, %arg1: i32) -> (i32, i32) {
    %c0_i32 = arith.constant 0 : i32
    %c0_i32_0 = arith.constant 0 : i32
    %c0_i32_1 = arith.constant 0 : i32
    return %c0_i32, %c0_i32_0 : i32, i32
  }
  func.func @transform_2(%arg0: i32, %arg1: i32) -> (i32, i32) {
    %c0_i32 = arith.constant 0 : i32
    %c0_i32_0 = arith.constant 0 : i32
    %c0_i32_1 = arith.constant 0 : i32
    return %c0_i32, %c0_i32_0 : i32, i32
  }
  func.func @transform_3(%arg0: i32, %arg1: i32) -> (i32, i32, i32) {
    %c0_i32 = arith.constant 0 : i32
    %c0_i32_0 = arith.constant 0 : i32
    return %arg0, %arg1, %c0_i32 : i32, i32, i32
  }
}

module attributes {stable_mosaic.version = 11 : i64} {
  func.func @kernel(%arg0: i32, %arg1: i32, %arg2: memref<1x4x480xbf16, #tpu.memory_space<vmem>>, %arg3: memref<480x256xbf16, #tpu.memory_space<vmem>>, %arg4: memref<1x256xf32, #tpu.memory_space<vmem>>, %arg5: memref<1x4x256xbf16, #tpu.memory_space<vmem>>, %arg6: memref<1x4x256xbf16, #tpu.memory_space<vmem>>) attributes {dimension_semantics = [#tpu.dimension_semantics<parallel>, #tpu.dimension_semantics<parallel>], iteration_bounds = array<i64: 2, 1>, scalar_prefetch = 0 : i64, scratch_operands = 0 : i64, tpu.core_type = #tpu.core_type<tc>, window_params = [{transform_indices = @transform_0, window_bounds = array<i64: 1, 4, 480>}, {pipeline_mode = #tpu.pipeline_mode<synchronous>, transform_indices = @transform_1, window_bounds = array<i64: 480, 256>}, {pipeline_mode = #tpu.pipeline_mode<synchronous>, transform_indices = @transform_2, window_bounds = array<i64: 1, 256>}, {transform_indices = @transform_3, window_bounds = array<i64: 1, 4, 256>}, {transform_indices = @transform_4, window_bounds = array<i64: 1, 4, 256>}]} {
    %c0 = arith.constant 0 : index
    %c0_0 = arith.constant 0 : index
    %c0_1 = arith.constant 0 : index
    %0 = vector.load %arg2[%c0, %c0_0, %c0_1] : memref<1x4x480xbf16, #tpu.memory_space<vmem>>, vector<1x4x480xbf16>
    %1 = vector.shape_cast %0 : vector<1x4x480xbf16> to vector<4x480xbf16>
    %c0_2 = arith.constant 0 : index
    %c0_3 = arith.constant 0 : index
    %2 = vector.load %arg3[%c0_2, %c0_3] : memref<480x256xbf16, #tpu.memory_space<vmem>>, vector<480x256xbf16>
    %cst = arith.constant dense<0.000000e+00> : vector<4x256xf32>
    %3 = tpu.matmul %1, %2, %cst {dimension_numbers = #tpu.dot_dimension_numbers<[1], [0], [0], [1], [0, 0, 1, 1], [], []>} : vector<4x480xbf16>, vector<480x256xbf16>, vector<4x256xf32> -> vector<4x256xf32>
    %c0_4 = arith.constant 0 : index
    %c0_5 = arith.constant 0 : index
    %4 = vector.load %arg4[%c0_4, %c0_5] : memref<1x256xf32, #tpu.memory_space<vmem>>, vector<1x256xf32>
    %5 = vector.broadcast %4 : vector<1x256xf32> to vector<4x256xf32>
    %6 = arith.addf %3, %5 : vector<4x256xf32>
    %c0_6 = arith.constant 0 : index
    %c0_7 = arith.constant 0 : index
    %c0_8 = arith.constant 0 : index
    %7 = vector.load %arg5[%c0_6, %c0_7, %c0_8] : memref<1x4x256xbf16, #tpu.memory_space<vmem>>, vector<1x4x256xbf16>
    %8 = vector.shape_cast %7 : vector<1x4x256xbf16> to vector<4x256xbf16>
    %9 = arith.extf %8 : vector<4x256xbf16> to vector<4x256xf32>
    %10 = arith.addf %6, %9 : vector<4x256xf32>
    %11 = arith.truncf %10 : vector<4x256xf32> to vector<4x256xbf16>
    %c0_9 = arith.constant 0 : index
    %c0_10 = arith.constant 0 : index
    %c0_11 = arith.constant 0 : index
    %12 = vector.load %arg6[%c0_9, %c0_10, %c0_11] : memref<1x4x256xbf16, #tpu.memory_space<vmem>>, vector<1x4x256xbf16>
    %13 = vector.shape_cast %12 : vector<1x4x256xbf16> to vector<4x256xbf16>
    %14 = vector.shape_cast %11 : vector<4x256xbf16> to vector<1x4x256xbf16>
    tpu.vector_store %arg6[%c0_9, %c0_10, %c0_11], %14 {strides = array<i32>} : memref<1x4x256xbf16, #tpu.memory_space<vmem>>, vector<1x4x256xbf16>,
    return
  }
  func.func @transform_0(%arg0: i32, %arg1: i32) -> (i32, i32, i32) {
    %c0_i32 = arith.constant 0 : i32
    %c0_i32_0 = arith.constant 0 : i32
    return %arg0, %arg1, %c0_i32 : i32, i32, i32
  }
  func.func @transform_1(%arg0: i32, %arg1: i32) -> (i32, i32) {
    %c0_i32 = arith.constant 0 : i32
    %c0_i32_0 = arith.constant 0 : i32
    %c0_i32_1 = arith.constant 0 : i32
    return %c0_i32, %c0_i32_0 : i32, i32
  }
  func.func @transform_2(%arg0: i32, %arg1: i32) -> (i32, i32) {
    %c0_i32 = arith.constant 0 : i32
    %c0_i32_0 = arith.constant 0 : i32
    %c0_i32_1 = arith.constant 0 : i32
    return %c0_i32, %c0_i32_0 : i32, i32
  }
  func.func @transform_3(%arg0: i32, %arg1: i32) -> (i32, i32, i32) {
    %c0_i32 = arith.constant 0 : i32
    %c0_i32_0 = arith.constant 0 : i32
    return %arg0, %arg1, %c0_i32 : i32, i32, i32
  }
  func.func @transform_4(%arg0: i32, %arg1: i32) -> (i32, i32, i32) {
    %c0_i32 = arith.constant 0 : i32
    %c0_i32_0 = arith.constant 0 : i32
    return %arg0, %arg1, %c0_i32 : i32, i32, i32
  }
}

module attributes {stable_mosaic.version = 11 : i64} {
  func.func @kernel(%arg0: i32, %arg1: i32, %arg2: memref<1x16x160xbf16, #tpu.memory_space<vmem>>, %arg3: memref<1x16x160xbf16, #tpu.memory_space<vmem>>, %arg4: memref<160x64xbf16, #tpu.memory_space<vmem>>, %arg5: memref<1x64xf32, #tpu.memory_space<vmem>>, %arg6: memref<1x16x64xbf16, #tpu.memory_space<vmem>>) attributes {dimension_semantics = [#tpu.dimension_semantics<parallel>, #tpu.dimension_semantics<parallel>], iteration_bounds = array<i64: 2, 1>, scalar_prefetch = 0 : i64, scratch_operands = 0 : i64, tpu.core_type = #tpu.core_type<tc>, window_params = [{transform_indices = @transform_0, window_bounds = array<i64: 1, 16, 160>}, {transform_indices = @transform_1, window_bounds = array<i64: 1, 16, 160>}, {pipeline_mode = #tpu.pipeline_mode<synchronous>, transform_indices = @transform_2, window_bounds = array<i64: 160, 64>}, {pipeline_mode = #tpu.pipeline_mode<synchronous>, transform_indices = @transform_3, window_bounds = array<i64: 1, 64>}, {transform_indices = @transform_4, window_bounds = array<i64: 1, 16, 64>}]} {
    %c0 = arith.constant 0 : index
    %c0_0 = arith.constant 0 : index
    %c0_1 = arith.constant 0 : index
    %0 = vector.load %arg2[%c0, %c0_0, %c0_1] : memref<1x16x160xbf16, #tpu.memory_space<vmem>>, vector<1x16x160xbf16>
    %1 = vector.shape_cast %0 : vector<1x16x160xbf16> to vector<16x160xbf16>
    %2 = arith.extf %1 : vector<16x160xbf16> to vector<16x160xf32>
    %c0_2 = arith.constant 0 : index
    %c0_3 = arith.constant 0 : index
    %c0_4 = arith.constant 0 : index
    %3 = vector.load %arg3[%c0_2, %c0_3, %c0_4] : memref<1x16x160xbf16, #tpu.memory_space<vmem>>, vector<1x16x160xbf16>
    %4 = vector.shape_cast %3 : vector<1x16x160xbf16> to vector<16x160xbf16>
    %5 = arith.extf %4 : vector<16x160xbf16> to vector<16x160xf32>
    %6 = arith.addf %2, %5 : vector<16x160xf32>
    %7 = arith.truncf %6 : vector<16x160xf32> to vector<16x160xbf16>
    %c0_5 = arith.constant 0 : index
    %c0_6 = arith.constant 0 : index
    %8 = vector.load %arg4[%c0_5, %c0_6] : memref<160x64xbf16, #tpu.memory_space<vmem>>, vector<160x64xbf16>
    %cst = arith.constant dense<0.000000e+00> : vector<16x64xf32>
    %9 = tpu.matmul %7, %8, %cst {dimension_numbers = #tpu.dot_dimension_numbers<[1], [0], [0], [1], [0, 0, 1, 1], [], []>} : vector<16x160xbf16>, vector<160x64xbf16>, vector<16x64xf32> -> vector<16x64xf32>
    %c0_7 = arith.constant 0 : index
    %c0_8 = arith.constant 0 : index
    %10 = vector.load %arg5[%c0_7, %c0_8] : memref<1x64xf32, #tpu.memory_space<vmem>>, vector<1x64xf32>
    %11 = vector.broadcast %10 : vector<1x64xf32> to vector<16x64xf32>
    %12 = arith.addf %9, %11 : vector<16x64xf32>
    %13 = arith.truncf %12 : vector<16x64xf32> to vector<16x64xbf16>
    %c0_9 = arith.constant 0 : index
    %c0_10 = arith.constant 0 : index
    %c0_11 = arith.constant 0 : index
    %14 = vector.load %arg6[%c0_9, %c0_10, %c0_11] : memref<1x16x64xbf16, #tpu.memory_space<vmem>>, vector<1x16x64xbf16>
    %15 = vector.shape_cast %14 : vector<1x16x64xbf16> to vector<16x64xbf16>
    %16 = vector.shape_cast %13 : vector<16x64xbf16> to vector<1x16x64xbf16>
    tpu.vector_store %arg6[%c0_9, %c0_10, %c0_11], %16 {strides = array<i32>} : memref<1x16x64xbf16, #tpu.memory_space<vmem>>, vector<1x16x64xbf16>,
    return
  }
  func.func @transform_0(%arg0: i32, %arg1: i32) -> (i32, i32, i32) {
    %c0_i32 = arith.constant 0 : i32
    %c0_i32_0 = arith.constant 0 : i32
    return %arg0, %arg1, %c0_i32 : i32, i32, i32
  }
  func.func @transform_1(%arg0: i32, %arg1: i32) -> (i32, i32, i32) {
    %c0_i32 = arith.constant 0 : i32
    %c0_i32_0 = arith.constant 0 : i32
    return %arg0, %arg1, %c0_i32 : i32, i32, i32
  }
  func.func @transform_2(%arg0: i32, %arg1: i32) -> (i32, i32) {
    %c0_i32 = arith.constant 0 : i32
    %c0_i32_0 = arith.constant 0 : i32
    %c0_i32_1 = arith.constant 0 : i32
    return %c0_i32, %c0_i32_0 : i32, i32
  }
  func.func @transform_3(%arg0: i32, %arg1: i32) -> (i32, i32) {
    %c0_i32 = arith.constant 0 : i32
    %c0_i32_0 = arith.constant 0 : i32
    %c0_i32_1 = arith.constant 0 : i32
    return %c0_i32, %c0_i32_0 : i32, i32
  }
  func.func @transform_4(%arg0: i32, %arg1: i32) -> (i32, i32, i32) {
    %c0_i32 = arith.constant 0 : i32
    %c0_i32_0 = arith.constant 0 : i32
    return %arg0, %arg1, %c0_i32 : i32, i32, i32
  }
}

module attributes {stable_mosaic.version = 11 : i64} {
  func.func @kernel(%arg0: i32, %arg1: i32, %arg2: memref<1x64x64xbf16, #tpu.memory_space<vmem>>, %arg3: memref<1x64x64xbf16, #tpu.memory_space<vmem>>, %arg4: memref<64x32xbf16, #tpu.memory_space<vmem>>, %arg5: memref<1x32xf32, #tpu.memory_space<vmem>>, %arg6: memref<1x64x32xbf16, #tpu.memory_space<vmem>>) attributes {dimension_semantics = [#tpu.dimension_semantics<parallel>, #tpu.dimension_semantics<parallel>], iteration_bounds = array<i64: 2, 1>, scalar_prefetch = 0 : i64, scratch_operands = 0 : i64, tpu.core_type = #tpu.core_type<tc>, window_params = [{transform_indices = @transform_0, window_bounds = array<i64: 1, 64, 64>}, {transform_indices = @transform_1, window_bounds = array<i64: 1, 64, 64>}, {pipeline_mode = #tpu.pipeline_mode<synchronous>, transform_indices = @transform_2, window_bounds = array<i64: 64, 32>}, {pipeline_mode = #tpu.pipeline_mode<synchronous>, transform_indices = @transform_3, window_bounds = array<i64: 1, 32>}, {transform_indices = @transform_4, window_bounds = array<i64: 1, 64, 32>}]} {
    %c0 = arith.constant 0 : index
    %c0_0 = arith.constant 0 : index
    %c0_1 = arith.constant 0 : index
    %0 = vector.load %arg2[%c0, %c0_0, %c0_1] : memref<1x64x64xbf16, #tpu.memory_space<vmem>>, vector<1x64x64xbf16>
    %1 = vector.shape_cast %0 : vector<1x64x64xbf16> to vector<64x64xbf16>
    %2 = arith.extf %1 : vector<64x64xbf16> to vector<64x64xf32>
    %c0_2 = arith.constant 0 : index
    %c0_3 = arith.constant 0 : index
    %c0_4 = arith.constant 0 : index
    %3 = vector.load %arg3[%c0_2, %c0_3, %c0_4] : memref<1x64x64xbf16, #tpu.memory_space<vmem>>, vector<1x64x64xbf16>
    %4 = vector.shape_cast %3 : vector<1x64x64xbf16> to vector<64x64xbf16>
    %5 = arith.extf %4 : vector<64x64xbf16> to vector<64x64xf32>
    %6 = arith.addf %2, %5 : vector<64x64xf32>
    %7 = arith.truncf %6 : vector<64x64xf32> to vector<64x64xbf16>
    %c0_5 = arith.constant 0 : index
    %c0_6 = arith.constant 0 : index
    %8 = vector.load %arg4[%c0_5, %c0_6] : memref<64x32xbf16, #tpu.memory_space<vmem>>, vector<64x32xbf16>
    %cst = arith.constant dense<0.000000e+00> : vector<64x32xf32>
    %9 = tpu.matmul %7, %8, %cst {dimension_numbers = #tpu.dot_dimension_numbers<[1], [0], [0], [1], [0, 0, 1, 1], [], []>} : vector<64x64xbf16>, vector<64x32xbf16>, vector<64x32xf32> -> vector<64x32xf32>
    %c0_7 = arith.constant 0 : index
    %c0_8 = arith.constant 0 : index
    %10 = vector.load %arg5[%c0_7, %c0_8] : memref<1x32xf32, #tpu.memory_space<vmem>>, vector<1x32xf32>
    %11 = vector.broadcast %10 : vector<1x32xf32> to vector<64x32xf32>
    %12 = arith.addf %9, %11 : vector<64x32xf32>
    %13 = arith.truncf %12 : vector<64x32xf32> to vector<64x32xbf16>
    %c0_9 = arith.constant 0 : index
    %c0_10 = arith.constant 0 : index
    %c0_11 = arith.constant 0 : index
    %14 = vector.load %arg6[%c0_9, %c0_10, %c0_11] : memref<1x64x32xbf16, #tpu.memory_space<vmem>>, vector<1x64x32xbf16>
    %15 = vector.shape_cast %14 : vector<1x64x32xbf16> to vector<64x32xbf16>
    %16 = vector.shape_cast %13 : vector<64x32xbf16> to vector<1x64x32xbf16>
    tpu.vector_store %arg6[%c0_9, %c0_10, %c0_11], %16 {strides = array<i32>} : memref<1x64x32xbf16, #tpu.memory_space<vmem>>, vector<1x64x32xbf16>,
    return
  }
  func.func @transform_0(%arg0: i32, %arg1: i32) -> (i32, i32, i32) {
    %c0_i32 = arith.constant 0 : i32
    %c0_i32_0 = arith.constant 0 : i32
    return %arg0, %arg1, %c0_i32 : i32, i32, i32
  }
  func.func @transform_1(%arg0: i32, %arg1: i32) -> (i32, i32, i32) {
    %c0_i32 = arith.constant 0 : i32
    %c0_i32_0 = arith.constant 0 : i32
    return %arg0, %arg1, %c0_i32 : i32, i32, i32
  }
  func.func @transform_2(%arg0: i32, %arg1: i32) -> (i32, i32) {
    %c0_i32 = arith.constant 0 : i32
    %c0_i32_0 = arith.constant 0 : i32
    %c0_i32_1 = arith.constant 0 : i32
    return %c0_i32, %c0_i32_0 : i32, i32
  }
  func.func @transform_3(%arg0: i32, %arg1: i32) -> (i32, i32) {
    %c0_i32 = arith.constant 0 : i32
    %c0_i32_0 = arith.constant 0 : i32
    %c0_i32_1 = arith.constant 0 : i32
    return %c0_i32, %c0_i32_0 : i32, i32
  }
  func.func @transform_4(%arg0: i32, %arg1: i32) -> (i32, i32, i32) {
    %c0_i32 = arith.constant 0 : i32
    %c0_i32_0 = arith.constant 0 : i32
    return %arg0, %arg1, %c0_i32 : i32, i32, i32
  }
}

module attributes {stable_mosaic.version = 11 : i64} {
  func.func @kernel(%arg0: i32, %arg1: i32, %arg2: memref<1x256x32xbf16, #tpu.memory_space<vmem>>, %arg3: memref<256x32xbf16, #tpu.memory_space<vmem>>, %arg4: memref<32x32xbf16, #tpu.memory_space<vmem>>, %arg5: memref<1x32xf32, #tpu.memory_space<vmem>>, %arg6: memref<1x256x32xbf16, #tpu.memory_space<vmem>>) attributes {dimension_semantics = [#tpu.dimension_semantics<parallel>, #tpu.dimension_semantics<parallel>], iteration_bounds = array<i64: 2, 1>, scalar_prefetch = 0 : i64, scratch_operands = 0 : i64, tpu.core_type = #tpu.core_type<tc>, window_params = [{transform_indices = @transform_0, window_bounds = array<i64: 1, 256, 32>}, {transform_indices = @transform_1, window_bounds = array<i64: 256, 32>}, {pipeline_mode = #tpu.pipeline_mode<synchronous>, transform_indices = @transform_2, window_bounds = array<i64: 32, 32>}, {pipeline_mode = #tpu.pipeline_mode<synchronous>, transform_indices = @transform_3, window_bounds = array<i64: 1, 32>}, {transform_indices = @transform_4, window_bounds = array<i64: 1, 256, 32>}]} {
    %c0 = arith.constant 0 : index
    %c0_0 = arith.constant 0 : index
    %c0_1 = arith.constant 0 : index
    %0 = vector.load %arg2[%c0, %c0_0, %c0_1] : memref<1x256x32xbf16, #tpu.memory_space<vmem>>, vector<1x256x32xbf16>
    %1 = vector.shape_cast %0 : vector<1x256x32xbf16> to vector<256x32xbf16>
    %2 = arith.extf %1 : vector<256x32xbf16> to vector<256x32xf32>
    %c0_2 = arith.constant 0 : index
    %c0_3 = arith.constant 0 : index
    %3 = vector.load %arg3[%c0_2, %c0_3] : memref<256x32xbf16, #tpu.memory_space<vmem>>, vector<256x32xbf16>
    %4 = arith.extf %3 : vector<256x32xbf16> to vector<256x32xf32>
    %5 = arith.addf %2, %4 : vector<256x32xf32>
    %6 = arith.truncf %5 : vector<256x32xf32> to vector<256x32xbf16>
    %c0_4 = arith.constant 0 : index
    %c0_5 = arith.constant 0 : index
    %7 = vector.load %arg4[%c0_4, %c0_5] : memref<32x32xbf16, #tpu.memory_space<vmem>>, vector<32x32xbf16>
    %cst = arith.constant dense<0.000000e+00> : vector<256x32xf32>
    %8 = tpu.matmul %6, %7, %cst {dimension_numbers = #tpu.dot_dimension_numbers<[1], [0], [0], [1], [0, 0, 1, 1], [], []>} : vector<256x32xbf16>, vector<32x32xbf16>, vector<256x32xf32> -> vector<256x32xf32>
    %c0_6 = arith.constant 0 : index
    %c0_7 = arith.constant 0 : index
    %9 = vector.load %arg5[%c0_6, %c0_7] : memref<1x32xf32, #tpu.memory_space<vmem>>, vector<1x32xf32>
    %10 = vector.broadcast %9 : vector<1x32xf32> to vector<256x32xf32>
    %11 = arith.addf %8, %10 : vector<256x32xf32>
    %12 = arith.truncf %11 : vector<256x32xf32> to vector<256x32xbf16>
    %c0_8 = arith.constant 0 : index
    %c0_9 = arith.constant 0 : index
    %c0_10 = arith.constant 0 : index
    %13 = vector.load %arg6[%c0_8, %c0_9, %c0_10] : memref<1x256x32xbf16, #tpu.memory_space<vmem>>, vector<1x256x32xbf16>
    %14 = vector.shape_cast %13 : vector<1x256x32xbf16> to vector<256x32xbf16>
    %15 = vector.shape_cast %12 : vector<256x32xbf16> to vector<1x256x32xbf16>
    tpu.vector_store %arg6[%c0_8, %c0_9, %c0_10], %15 {strides = array<i32>} : memref<1x256x32xbf16, #tpu.memory_space<vmem>>, vector<1x256x32xbf16>,
    return
  }
  func.func @transform_0(%arg0: i32, %arg1: i32) -> (i32, i32, i32) {
    %c0_i32 = arith.constant 0 : i32
    %c0_i32_0 = arith.constant 0 : i32
    return %arg0, %arg1, %c0_i32 : i32, i32, i32
  }
  func.func @transform_1(%arg0: i32, %arg1: i32) -> (i32, i32) {
    %c0_i32 = arith.constant 0 : i32
    %c0_i32_0 = arith.constant 0 : i32
    return %arg1, %c0_i32 : i32, i32
  }
  func.func @transform_2(%arg0: i32, %arg1: i32) -> (i32, i32) {
    %c0_i32 = arith.constant 0 : i32
    %c0_i32_0 = arith.constant 0 : i32
    %c0_i32_1 = arith.constant 0 : i32
    return %c0_i32, %c0_i32_0 : i32, i32
  }
  func.func @transform_3(%arg0: i32, %arg1: i32) -> (i32, i32) {
    %c0_i32 = arith.constant 0 : i32
    %c0_i32_0 = arith.constant 0 : i32
    %c0_i32_1 = arith.constant 0 : i32
    return %c0_i32, %c0_i32_0 : i32, i32
  }
  func.func @transform_4(%arg0: i32, %arg1: i32) -> (i32, i32, i32) {
    %c0_i32 = arith.constant 0 : i32
    %c0_i32_0 = arith.constant 0 : i32
    return %arg0, %arg1, %c0_i32 : i32, i32, i32
  }
}

module attributes {stable_mosaic.version = 11 : i64} {
  func.func @kernel(%arg0: i32, %arg1: i32, %arg2: memref<1x256x32xbf16, #tpu.memory_space<vmem>>, %arg3: memref<1x256x32xbf16, #tpu.memory_space<vmem>>, %arg4: memref<1x256x32xbf16, #tpu.memory_space<vmem>>, %arg5: memref<32x21xbf16, #tpu.memory_space<vmem>>, %arg6: memref<1x21xf32, #tpu.memory_space<vmem>>, %arg7: memref<1x256x21xf32, #tpu.memory_space<vmem>>) attributes {dimension_semantics = [#tpu.dimension_semantics<parallel>, #tpu.dimension_semantics<parallel>], iteration_bounds = array<i64: 2, 1>, scalar_prefetch = 0 : i64, scratch_operands = 0 : i64, tpu.core_type = #tpu.core_type<tc>, window_params = [{transform_indices = @transform_0, window_bounds = array<i64: 1, 256, 32>}, {transform_indices = @transform_1, window_bounds = array<i64: 1, 256, 32>}, {transform_indices = @transform_2, window_bounds = array<i64: 1, 256, 32>}, {pipeline_mode = #tpu.pipeline_mode<synchronous>, transform_indices = @transform_3, window_bounds = array<i64: 32, 21>}, {pipeline_mode = #tpu.pipeline_mode<synchronous>, transform_indices = @transform_4, window_bounds = array<i64: 1, 21>}, {transform_indices = @transform_5, window_bounds = array<i64: 1, 256, 21>}]} {
    %c0 = arith.constant 0 : index
    %c0_0 = arith.constant 0 : index
    %c0_1 = arith.constant 0 : index
    %0 = vector.load %arg2[%c0, %c0_0, %c0_1] : memref<1x256x32xbf16, #tpu.memory_space<vmem>>, vector<1x256x32xbf16>
    %1 = vector.shape_cast %0 : vector<1x256x32xbf16> to vector<256x32xbf16>
    %2 = arith.extf %1 : vector<256x32xbf16> to vector<256x32xf32>
    %c0_2 = arith.constant 0 : index
    %c0_3 = arith.constant 0 : index
    %c0_4 = arith.constant 0 : index
    %3 = vector.load %arg3[%c0_2, %c0_3, %c0_4] : memref<1x256x32xbf16, #tpu.memory_space<vmem>>, vector<1x256x32xbf16>
    %4 = vector.shape_cast %3 : vector<1x256x32xbf16> to vector<256x32xbf16>
    %5 = arith.extf %4 : vector<256x32xbf16> to vector<256x32xf32>
    %6 = arith.addf %2, %5 : vector<256x32xf32>
    %c0_5 = arith.constant 0 : index
    %c0_6 = arith.constant 0 : index
    %c0_7 = arith.constant 0 : index
    %7 = vector.load %arg4[%c0_5, %c0_6, %c0_7] : memref<1x256x32xbf16, #tpu.memory_space<vmem>>, vector<1x256x32xbf16>
    %8 = vector.shape_cast %7 : vector<1x256x32xbf16> to vector<256x32xbf16>
    %9 = arith.extf %8 : vector<256x32xbf16> to vector<256x32xf32>
    %10 = arith.addf %6, %9 : vector<256x32xf32>
    %11 = arith.truncf %10 : vector<256x32xf32> to vector<256x32xbf16>
    %c0_8 = arith.constant 0 : index
    %c0_9 = arith.constant 0 : index
    %12 = vector.load %arg5[%c0_8, %c0_9] : memref<32x21xbf16, #tpu.memory_space<vmem>>, vector<32x21xbf16>
    %cst = arith.constant dense<0.000000e+00> : vector<256x21xf32>
    %13 = tpu.matmul %11, %12, %cst {dimension_numbers = #tpu.dot_dimension_numbers<[1], [0], [0], [1], [0, 0, 1, 1], [], []>} : vector<256x32xbf16>, vector<32x21xbf16>, vector<256x21xf32> -> vector<256x21xf32>
    %c0_10 = arith.constant 0 : index
    %c0_11 = arith.constant 0 : index
    %14 = vector.load %arg6[%c0_10, %c0_11] : memref<1x21xf32, #tpu.memory_space<vmem>>, vector<1x21xf32>
    %15 = vector.broadcast %14 : vector<1x21xf32> to vector<256x21xf32>
    %16 = arith.addf %13, %15 : vector<256x21xf32>
    %c0_12 = arith.constant 0 : index
    %c0_13 = arith.constant 0 : index
    %c0_14 = arith.constant 0 : index
    %17 = vector.load %arg7[%c0_12, %c0_13, %c0_14] : memref<1x256x21xf32, #tpu.memory_space<vmem>>, vector<1x256x21xf32>
    %18 = vector.shape_cast %17 : vector<1x256x21xf32> to vector<256x21xf32>
    %19 = vector.shape_cast %16 : vector<256x21xf32> to vector<1x256x21xf32>
    tpu.vector_store %arg7[%c0_12, %c0_13, %c0_14], %19 {strides = array<i32>} : memref<1x256x21xf32, #tpu.memory_space<vmem>>, vector<1x256x21xf32>,
    return
  }
  func.func @transform_0(%arg0: i32, %arg1: i32) -> (i32, i32, i32) {
    %c0_i32 = arith.constant 0 : i32
    %c0_i32_0 = arith.constant 0 : i32
    return %arg0, %arg1, %c0_i32 : i32, i32, i32
  }
  func.func @transform_1(%arg0: i32, %arg1: i32) -> (i32, i32, i32) {
    %c0_i32 = arith.constant 0 : i32
    %c0_i32_0 = arith.constant 0 : i32
    return %arg0, %arg1, %c0_i32 : i32, i32, i32
  }
  func.func @transform_2(%arg0: i32, %arg1: i32) -> (i32, i32, i32) {
    %c0_i32 = arith.constant 0 : i32
    %c0_i32_0 = arith.constant 0 : i32
    return %arg0, %arg1, %c0_i32 : i32, i32, i32
  }
  func.func @transform_3(%arg0: i32, %arg1: i32) -> (i32, i32) {
    %c0_i32 = arith.constant 0 : i32
    %c0_i32_0 = arith.constant 0 : i32
    %c0_i32_1 = arith.constant 0 : i32
    return %c0_i32, %c0_i32_0 : i32, i32
  }
  func.func @transform_4(%arg0: i32, %arg1: i32) -> (i32, i32) {
    %c0_i32 = arith.constant 0 : i32
    %c0_i32_0 = arith.constant 0 : i32
    %c0_i32_1 = arith.constant 0 : i32
    return %c0_i32, %c0_i32_0 : i32, i32
  }
  func.func @transform_5(%arg0: i32, %arg1: i32) -> (i32, i32, i32) {
    %c0_i32 = arith.constant 0 : i32
    %c0_i32_0 = arith.constant 0 : i32
    return %arg0, %arg1, %c0_i32 : i32, i32, i32
  }
}

module attributes {stable_mosaic.version = 11 : i64} {
  func.func @_head_kernel(%arg0: i32, %arg1: i32, %arg2: memref<1x336x16xf32, #tpu.memory_space<vmem>>, %arg3: memref<64x16xf32, #tpu.memory_space<vmem>>, %arg4: memref<16x64xf32, #tpu.memory_space<vmem>>, %arg5: memref<1x21x64x64xf32, #tpu.memory_space<vmem>>, %arg6: memref<336x64xf32, #tpu.memory_space<vmem>>) attributes {dimension_semantics = [#tpu.dimension_semantics<parallel>, #tpu.dimension_semantics<arbitrary>], iteration_bounds = array<i64: 2, 1>, scalar_prefetch = 0 : i64, scratch_operands = 1 : i64, tpu.core_type = #tpu.core_type<tc>, window_params = [{transform_indices = @transform_0, window_bounds = array<i64: 1, 336, 16>}, {transform_indices = @transform_1, window_bounds = array<i64: 64, 16>}, {pipeline_mode = #tpu.pipeline_mode<synchronous>, transform_indices = @transform_2, window_bounds = array<i64: 16, 64>}, {transform_indices = @transform_3, window_bounds = array<i64: 1, 21, 64, 64>}]} {
    %c0_i32 = arith.constant 0 : i32
    %0 = arith.cmpi eq, %arg1, %c0_i32 : i32
    %1 = arith.extui %0 : i1 to i32
    %c0_i32_0 = arith.constant 0 : i32
    %2 = arith.cmpi ne, %1, %c0_i32_0 : i32
    scf.if %2 {
      %c0_110 = arith.constant 0 : index
      %c0_111 = arith.constant 0 : index
      %c0_112 = arith.constant 0 : index
      %217 = vector.load %arg2[%c0_110, %c0_111, %c0_112] : memref<1x336x16xf32, #tpu.memory_space<vmem>>, vector<1x336x16xf32>
      %218 = vector.shape_cast %217 : vector<1x336x16xf32> to vector<336x16xf32>
      %c0_113 = arith.constant 0 : index
      %c0_114 = arith.constant 0 : index
      %219 = vector.load %arg4[%c0_113, %c0_114] : memref<16x64xf32, #tpu.memory_space<vmem>>, vector<16x64xf32>
      %cst_115 = arith.constant dense<0.000000e+00> : vector<336x64xf32>
      %220 = tpu.matmul %218, %219, %cst_115 {dimension_numbers = #tpu.dot_dimension_numbers<[1], [0], [0], [1], [0, 0, 1, 1], [], []>} : vector<336x16xf32>, vector<16x64xf32>, vector<336x64xf32> -> vector<336x64xf32>
      %c0_116 = arith.constant 0 : index
      %c0_117 = arith.constant 0 : index
      %221 = vector.load %arg6[%c0_116, %c0_117] : memref<336x64xf32, #tpu.memory_space<vmem>>, vector<336x64xf32>
      tpu.vector_store %arg6[%c0_116, %c0_117], %220 {strides = array<i32>} : memref<336x64xf32, #tpu.memory_space<vmem>>, vector<336x64xf32>,
    } else {
    }
    %c0 = arith.constant 0 : index
    %c0_1 = arith.constant 0 : index
    %3 = vector.load %arg3[%c0, %c0_1] : memref<64x16xf32, #tpu.memory_space<vmem>>, vector<64x16xf32>
    %c0_2 = arith.constant 0 : index
    %c0_3 = arith.constant 0 : index
    %4 = vector.load %arg6[%c0_2, %c0_3] : memref<336x64xf32, #tpu.memory_space<vmem>>, vector<16x64xf32>
    %cst = arith.constant dense<0.000000e+00> : vector<64x64xf32>
    %5 = tpu.matmul %3, %4, %cst {dimension_numbers = #tpu.dot_dimension_numbers<[1], [0], [0], [1], [0, 0, 1, 1], [], []>} : vector<64x16xf32>, vector<16x64xf32>, vector<64x64xf32> -> vector<64x64xf32>
    %c16 = arith.constant 16 : index
    %c0_4 = arith.constant 0 : index
    %6 = vector.load %arg6[%c16, %c0_4] : memref<336x64xf32, #tpu.memory_space<vmem>>, vector<16x64xf32>
    %cst_5 = arith.constant dense<0.000000e+00> : vector<64x64xf32>
    %7 = tpu.matmul %3, %6, %cst_5 {dimension_numbers = #tpu.dot_dimension_numbers<[1], [0], [0], [1], [0, 0, 1, 1], [], []>} : vector<64x16xf32>, vector<16x64xf32>, vector<64x64xf32> -> vector<64x64xf32>
    %c32 = arith.constant 32 : index
    %c0_6 = arith.constant 0 : index
    %8 = vector.load %arg6[%c32, %c0_6] : memref<336x64xf32, #tpu.memory_space<vmem>>, vector<16x64xf32>
    %cst_7 = arith.constant dense<0.000000e+00> : vector<64x64xf32>
    %9 = tpu.matmul %3, %8, %cst_7 {dimension_numbers = #tpu.dot_dimension_numbers<[1], [0], [0], [1], [0, 0, 1, 1], [], []>} : vector<64x16xf32>, vector<16x64xf32>, vector<64x64xf32> -> vector<64x64xf32>
    %c48 = arith.constant 48 : index
    %c0_8 = arith.constant 0 : index
    %10 = vector.load %arg6[%c48, %c0_8] : memref<336x64xf32, #tpu.memory_space<vmem>>, vector<16x64xf32>
    %cst_9 = arith.constant dense<0.000000e+00> : vector<64x64xf32>
    %11 = tpu.matmul %3, %10, %cst_9 {dimension_numbers = #tpu.dot_dimension_numbers<[1], [0], [0], [1], [0, 0, 1, 1], [], []>} : vector<64x16xf32>, vector<16x64xf32>, vector<64x64xf32> -> vector<64x64xf32>
    %c64 = arith.constant 64 : index
    %c0_10 = arith.constant 0 : index
    %12 = vector.load %arg6[%c64, %c0_10] : memref<336x64xf32, #tpu.memory_space<vmem>>, vector<16x64xf32>
    %cst_11 = arith.constant dense<0.000000e+00> : vector<64x64xf32>
    %13 = tpu.matmul %3, %12, %cst_11 {dimension_numbers = #tpu.dot_dimension_numbers<[1], [0], [0], [1], [0, 0, 1, 1], [], []>} : vector<64x16xf32>, vector<16x64xf32>, vector<64x64xf32> -> vector<64x64xf32>
    %c80 = arith.constant 80 : index
    %c0_12 = arith.constant 0 : index
    %14 = vector.load %arg6[%c80, %c0_12] : memref<336x64xf32, #tpu.memory_space<vmem>>, vector<16x64xf32>
    %cst_13 = arith.constant dense<0.000000e+00> : vector<64x64xf32>
    %15 = tpu.matmul %3, %14, %cst_13 {dimension_numbers = #tpu.dot_dimension_numbers<[1], [0], [0], [1], [0, 0, 1, 1], [], []>} : vector<64x16xf32>, vector<16x64xf32>, vector<64x64xf32> -> vector<64x64xf32>
    %c96 = arith.constant 96 : index
    %c0_14 = arith.constant 0 : index
    %16 = vector.load %arg6[%c96, %c0_14] : memref<336x64xf32, #tpu.memory_space<vmem>>, vector<16x64xf32>
    %cst_15 = arith.constant dense<0.000000e+00> : vector<64x64xf32>
    %17 = tpu.matmul %3, %16, %cst_15 {dimension_numbers = #tpu.dot_dimension_numbers<[1], [0], [0], [1], [0, 0, 1, 1], [], []>} : vector<64x16xf32>, vector<16x64xf32>, vector<64x64xf32> -> vector<64x64xf32>
    %c112 = arith.constant 112 : index
    %c0_16 = arith.constant 0 : index
    %18 = vector.load %arg6[%c112, %c0_16] : memref<336x64xf32, #tpu.memory_space<vmem>>, vector<16x64xf32>
    %cst_17 = arith.constant dense<0.000000e+00> : vector<64x64xf32>
    %19 = tpu.matmul %3, %18, %cst_17 {dimension_numbers = #tpu.dot_dimension_numbers<[1], [0], [0], [1], [0, 0, 1, 1], [], []>} : vector<64x16xf32>, vector<16x64xf32>, vector<64x64xf32> -> vector<64x64xf32>
    %c128 = arith.constant 128 : index
    %c0_18 = arith.constant 0 : index
    %20 = vector.load %arg6[%c128, %c0_18] : memref<336x64xf32, #tpu.memory_space<vmem>>, vector<16x64xf32>
    %cst_19 = arith.constant dense<0.000000e+00> : vector<64x64xf32>
    %21 = tpu.matmul %3, %20, %cst_19 {dimension_numbers = #tpu.dot_dimension_numbers<[1], [0], [0], [1], [0, 0, 1, 1], [], []>} : vector<64x16xf32>, vector<16x64xf32>, vector<64x64xf32> -> vector<64x64xf32>
    %c144 = arith.constant 144 : index
    %c0_20 = arith.constant 0 : index
    %22 = vector.load %arg6[%c144, %c0_20] : memref<336x64xf32, #tpu.memory_space<vmem>>, vector<16x64xf32>
    %cst_21 = arith.constant dense<0.000000e+00> : vector<64x64xf32>
    %23 = tpu.matmul %3, %22, %cst_21 {dimension_numbers = #tpu.dot_dimension_numbers<[1], [0], [0], [1], [0, 0, 1, 1], [], []>} : vector<64x16xf32>, vector<16x64xf32>, vector<64x64xf32> -> vector<64x64xf32>
    %c160 = arith.constant 160 : index
    %c0_22 = arith.constant 0 : index
    %24 = vector.load %arg6[%c160, %c0_22] : memref<336x64xf32, #tpu.memory_space<vmem>>, vector<16x64xf32>
    %cst_23 = arith.constant dense<0.000000e+00> : vector<64x64xf32>
    %25 = tpu.matmul %3, %24, %cst_23 {dimension_numbers = #tpu.dot_dimension_numbers<[1], [0], [0], [1], [0, 0, 1, 1], [], []>} : vector<64x16xf32>, vector<16x64xf32>, vector<64x64xf32> -> vector<64x64xf32>
    %c176 = arith.constant 176 : index
    %c0_24 = arith.constant 0 : index
    %26 = vector.load %arg6[%c176, %c0_24] : memref<336x64xf32, #tpu.memory_space<vmem>>, vector<16x64xf32>
    %cst_25 = arith.constant dense<0.000000e+00> : vector<64x64xf32>
    %27 = tpu.matmul %3, %26, %cst_25 {dimension_numbers = #tpu.dot_dimension_numbers<[1], [0], [0], [1], [0, 0, 1, 1], [], []>} : vector<64x16xf32>, vector<16x64xf32>, vector<64x64xf32> -> vector<64x64xf32>
    %c192 = arith.constant 192 : index
    %c0_26 = arith.constant 0 : index
    %28 = vector.load %arg6[%c192, %c0_26] : memref<336x64xf32, #tpu.memory_space<vmem>>, vector<16x64xf32>
    %cst_27 = arith.constant dense<0.000000e+00> : vector<64x64xf32>
    %29 = tpu.matmul %3, %28, %cst_27 {dimension_numbers = #tpu.dot_dimension_numbers<[1], [0], [0], [1], [0, 0, 1, 1], [], []>} : vector<64x16xf32>, vector<16x64xf32>, vector<64x64xf32> -> vector<64x64xf32>
    %c208 = arith.constant 208 : index
    %c0_28 = arith.constant 0 : index
    %30 = vector.load %arg6[%c208, %c0_28] : memref<336x64xf32, #tpu.memory_space<vmem>>, vector<16x64xf32>
    %cst_29 = arith.constant dense<0.000000e+00> : vector<64x64xf32>
    %31 = tpu.matmul %3, %30, %cst_29 {dimension_numbers = #tpu.dot_dimension_numbers<[1], [0], [0], [1], [0, 0, 1, 1], [], []>} : vector<64x16xf32>, vector<16x64xf32>, vector<64x64xf32> -> vector<64x64xf32>
    %c224 = arith.constant 224 : index
    %c0_30 = arith.constant 0 : index
    %32 = vector.load %arg6[%c224, %c0_30] : memref<336x64xf32, #tpu.memory_space<vmem>>, vector<16x64xf32>
    %cst_31 = arith.constant dense<0.000000e+00> : vector<64x64xf32>
    %33 = tpu.matmul %3, %32, %cst_31 {dimension_numbers = #tpu.dot_dimension_numbers<[1], [0], [0], [1], [0, 0, 1, 1], [], []>} : vector<64x16xf32>, vector<16x64xf32>, vector<64x64xf32> -> vector<64x64xf32>
    %c240 = arith.constant 240 : index
    %c0_32 = arith.constant 0 : index
    %34 = vector.load %arg6[%c240, %c0_32] : memref<336x64xf32, #tpu.memory_space<vmem>>, vector<16x64xf32>
    %cst_33 = arith.constant dense<0.000000e+00> : vector<64x64xf32>
    %35 = tpu.matmul %3, %34, %cst_33 {dimension_numbers = #tpu.dot_dimension_numbers<[1], [0], [0], [1], [0, 0, 1, 1], [], []>} : vector<64x16xf32>, vector<16x64xf32>, vector<64x64xf32> -> vector<64x64xf32>
    %c256 = arith.constant 256 : index
    %c0_34 = arith.constant 0 : index
    %36 = vector.load %arg6[%c256, %c0_34] : memref<336x64xf32, #tpu.memory_space<vmem>>, vector<16x64xf32>
    %cst_35 = arith.constant dense<0.000000e+00> : vector<64x64xf32>
    %37 = tpu.matmul %3, %36, %cst_35 {dimension_numbers = #tpu.dot_dimension_numbers<[1], [0], [0], [1], [0, 0, 1, 1], [], []>} : vector<64x16xf32>, vector<16x64xf32>, vector<64x64xf32> -> vector<64x64xf32>
    %c272 = arith.constant 272 : index
    %c0_36 = arith.constant 0 : index
    %38 = vector.load %arg6[%c272, %c0_36] : memref<336x64xf32, #tpu.memory_space<vmem>>, vector<16x64xf32>
    %cst_37 = arith.constant dense<0.000000e+00> : vector<64x64xf32>
    %39 = tpu.matmul %3, %38, %cst_37 {dimension_numbers = #tpu.dot_dimension_numbers<[1], [0], [0], [1], [0, 0, 1, 1], [], []>} : vector<64x16xf32>, vector<16x64xf32>, vector<64x64xf32> -> vector<64x64xf32>
    %c288 = arith.constant 288 : index
    %c0_38 = arith.constant 0 : index
    %40 = vector.load %arg6[%c288, %c0_38] : memref<336x64xf32, #tpu.memory_space<vmem>>, vector<16x64xf32>
    %cst_39 = arith.constant dense<0.000000e+00> : vector<64x64xf32>
    %41 = tpu.matmul %3, %40, %cst_39 {dimension_numbers = #tpu.dot_dimension_numbers<[1], [0], [0], [1], [0, 0, 1, 1], [], []>} : vector<64x16xf32>, vector<16x64xf32>, vector<64x64xf32> -> vector<64x64xf32>
    %c304 = arith.constant 304 : index
    %c0_40 = arith.constant 0 : index
    %42 = vector.load %arg6[%c304, %c0_40] : memref<336x64xf32, #tpu.memory_space<vmem>>, vector<16x64xf32>
    %cst_41 = arith.constant dense<0.000000e+00> : vector<64x64xf32>
    %43 = tpu.matmul %3, %42, %cst_41 {dimension_numbers = #tpu.dot_dimension_numbers<[1], [0], [0], [1], [0, 0, 1, 1], [], []>} : vector<64x16xf32>, vector<16x64xf32>, vector<64x64xf32> -> vector<64x64xf32>
    %c320 = arith.constant 320 : index
    %c0_42 = arith.constant 0 : index
    %44 = vector.load %arg6[%c320, %c0_42] : memref<336x64xf32, #tpu.memory_space<vmem>>, vector<16x64xf32>
    %cst_43 = arith.constant dense<0.000000e+00> : vector<64x64xf32>
    %45 = tpu.matmul %3, %44, %cst_43 {dimension_numbers = #tpu.dot_dimension_numbers<[1], [0], [0], [1], [0, 0, 1, 1], [], []>} : vector<64x16xf32>, vector<16x64xf32>, vector<64x64xf32> -> vector<64x64xf32>
    %46 = arith.maximumf %5, %7 : vector<64x64xf32>
    %47 = arith.maximumf %46, %9 : vector<64x64xf32>
    %48 = arith.maximumf %47, %11 : vector<64x64xf32>
    %49 = arith.maximumf %48, %13 : vector<64x64xf32>
    %50 = arith.maximumf %49, %15 : vector<64x64xf32>
    %51 = arith.maximumf %50, %17 : vector<64x64xf32>
    %52 = arith.maximumf %51, %19 : vector<64x64xf32>
    %53 = arith.maximumf %52, %21 : vector<64x64xf32>
    %54 = arith.maximumf %53, %23 : vector<64x64xf32>
    %55 = arith.maximumf %54, %25 : vector<64x64xf32>
    %56 = arith.maximumf %55, %27 : vector<64x64xf32>
    %57 = arith.maximumf %56, %29 : vector<64x64xf32>
    %58 = arith.maximumf %57, %31 : vector<64x64xf32>
    %59 = arith.maximumf %58, %33 : vector<64x64xf32>
    %60 = arith.maximumf %59, %35 : vector<64x64xf32>
    %61 = arith.maximumf %60, %37 : vector<64x64xf32>
    %62 = arith.maximumf %61, %39 : vector<64x64xf32>
    %63 = arith.maximumf %62, %41 : vector<64x64xf32>
    %64 = arith.maximumf %63, %43 : vector<64x64xf32>
    %65 = arith.maximumf %64, %45 : vector<64x64xf32>
    %66 = arith.subf %5, %65 : vector<64x64xf32>
    %67 = math.exp %66 : vector<64x64xf32>
    %68 = arith.subf %7, %65 : vector<64x64xf32>
    %69 = math.exp %68 : vector<64x64xf32>
    %70 = arith.subf %9, %65 : vector<64x64xf32>
    %71 = math.exp %70 : vector<64x64xf32>
    %72 = arith.subf %11, %65 : vector<64x64xf32>
    %73 = math.exp %72 : vector<64x64xf32>
    %74 = arith.subf %13, %65 : vector<64x64xf32>
    %75 = math.exp %74 : vector<64x64xf32>
    %76 = arith.subf %15, %65 : vector<64x64xf32>
    %77 = math.exp %76 : vector<64x64xf32>
    %78 = arith.subf %17, %65 : vector<64x64xf32>
    %79 = math.exp %78 : vector<64x64xf32>
    %80 = arith.subf %19, %65 : vector<64x64xf32>
    %81 = math.exp %80 : vector<64x64xf32>
    %82 = arith.subf %21, %65 : vector<64x64xf32>
    %83 = math.exp %82 : vector<64x64xf32>
    %84 = arith.subf %23, %65 : vector<64x64xf32>
    %85 = math.exp %84 : vector<64x64xf32>
    %86 = arith.subf %25, %65 : vector<64x64xf32>
    %87 = math.exp %86 : vector<64x64xf32>
    %88 = arith.subf %27, %65 : vector<64x64xf32>
    %89 = math.exp %88 : vector<64x64xf32>
    %90 = arith.subf %29, %65 : vector<64x64xf32>
    %91 = math.exp %90 : vector<64x64xf32>
    %92 = arith.subf %31, %65 : vector<64x64xf32>
    %93 = math.exp %92 : vector<64x64xf32>
    %94 = arith.subf %33, %65 : vector<64x64xf32>
    %95 = math.exp %94 : vector<64x64xf32>
    %96 = arith.subf %35, %65 : vector<64x64xf32>
    %97 = math.exp %96 : vector<64x64xf32>
    %98 = arith.subf %37, %65 : vector<64x64xf32>
    %99 = math.exp %98 : vector<64x64xf32>
    %100 = arith.subf %39, %65 : vector<64x64xf32>
    %101 = math.exp %100 : vector<64x64xf32>
    %102 = arith.subf %41, %65 : vector<64x64xf32>
    %103 = math.exp %102 : vector<64x64xf32>
    %104 = arith.subf %43, %65 : vector<64x64xf32>
    %105 = math.exp %104 : vector<64x64xf32>
    %106 = arith.subf %45, %65 : vector<64x64xf32>
    %107 = math.exp %106 : vector<64x64xf32>
    %108 = arith.addf %67, %69 : vector<64x64xf32>
    %109 = arith.addf %108, %71 : vector<64x64xf32>
    %110 = arith.addf %109, %73 : vector<64x64xf32>
    %111 = arith.addf %110, %75 : vector<64x64xf32>
    %112 = arith.addf %111, %77 : vector<64x64xf32>
    %113 = arith.addf %112, %79 : vector<64x64xf32>
    %114 = arith.addf %113, %81 : vector<64x64xf32>
    %115 = arith.addf %114, %83 : vector<64x64xf32>
    %116 = arith.addf %115, %85 : vector<64x64xf32>
    %117 = arith.addf %116, %87 : vector<64x64xf32>
    %118 = arith.addf %117, %89 : vector<64x64xf32>
    %119 = arith.addf %118, %91 : vector<64x64xf32>
    %120 = arith.addf %119, %93 : vector<64x64xf32>
    %121 = arith.addf %120, %95 : vector<64x64xf32>
    %122 = arith.addf %121, %97 : vector<64x64xf32>
    %123 = arith.addf %122, %99 : vector<64x64xf32>
    %124 = arith.addf %123, %101 : vector<64x64xf32>
    %125 = arith.addf %124, %103 : vector<64x64xf32>
    %126 = arith.addf %125, %105 : vector<64x64xf32>
    %127 = arith.addf %126, %107 : vector<64x64xf32>
    %128 = tpu.reciprocal %127 {approx = true} : vector<64x64xf32> -> vector<64x64xf32>
    %129 = arith.mulf %127, %128 : vector<64x64xf32>
    %cst_44 = arith.constant 2.000000e+00 : f32
    %130 = vector.broadcast %cst_44 : f32 to vector<64x64xf32>
    %131 = arith.subf %130, %129 : vector<64x64xf32>
    %132 = arith.mulf %128, %131 : vector<64x64xf32>
    %133 = arith.mulf %67, %132 : vector<64x64xf32>
    %c0_45 = arith.constant 0 : index
    %c0_46 = arith.constant 0 : index
    %c0_47 = arith.constant 0 : index
    %c0_48 = arith.constant 0 : index
    %134 = vector.load %arg5[%c0_45, %c0_46, %c0_47, %c0_48] : memref<1x21x64x64xf32, #tpu.memory_space<vmem>>, vector<1x1x64x64xf32>
    %135 = vector.shape_cast %134 : vector<1x1x64x64xf32> to vector<64x64xf32>
    %136 = vector.shape_cast %133 : vector<64x64xf32> to vector<1x1x64x64xf32>
    tpu.vector_store %arg5[%c0_45, %c0_46, %c0_47, %c0_48], %136 {strides = array<i32>} : memref<1x21x64x64xf32, #tpu.memory_space<vmem>>, vector<1x1x64x64xf32>,
    %137 = arith.mulf %69, %132 : vector<64x64xf32>
    %c0_49 = arith.constant 0 : index
    %c1 = arith.constant 1 : index
    %c0_50 = arith.constant 0 : index
    %c0_51 = arith.constant 0 : index
    %138 = vector.load %arg5[%c0_49, %c1, %c0_50, %c0_51] : memref<1x21x64x64xf32, #tpu.memory_space<vmem>>, vector<1x1x64x64xf32>
    %139 = vector.shape_cast %138 : vector<1x1x64x64xf32> to vector<64x64xf32>
    %140 = vector.shape_cast %137 : vector<64x64xf32> to vector<1x1x64x64xf32>
    tpu.vector_store %arg5[%c0_49, %c1, %c0_50, %c0_51], %140 {strides = array<i32>} : memref<1x21x64x64xf32, #tpu.memory_space<vmem>>, vector<1x1x64x64xf32>,
    %141 = arith.mulf %71, %132 : vector<64x64xf32>
    %c0_52 = arith.constant 0 : index
    %c2 = arith.constant 2 : index
    %c0_53 = arith.constant 0 : index
    %c0_54 = arith.constant 0 : index
    %142 = vector.load %arg5[%c0_52, %c2, %c0_53, %c0_54] : memref<1x21x64x64xf32, #tpu.memory_space<vmem>>, vector<1x1x64x64xf32>
    %143 = vector.shape_cast %142 : vector<1x1x64x64xf32> to vector<64x64xf32>
    %144 = vector.shape_cast %141 : vector<64x64xf32> to vector<1x1x64x64xf32>
    tpu.vector_store %arg5[%c0_52, %c2, %c0_53, %c0_54], %144 {strides = array<i32>} : memref<1x21x64x64xf32, #tpu.memory_space<vmem>>, vector<1x1x64x64xf32>,
    %145 = arith.mulf %73, %132 : vector<64x64xf32>
    %c0_55 = arith.constant 0 : index
    %c3 = arith.constant 3 : index
    %c0_56 = arith.constant 0 : index
    %c0_57 = arith.constant 0 : index
    %146 = vector.load %arg5[%c0_55, %c3, %c0_56, %c0_57] : memref<1x21x64x64xf32, #tpu.memory_space<vmem>>, vector<1x1x64x64xf32>
    %147 = vector.shape_cast %146 : vector<1x1x64x64xf32> to vector<64x64xf32>
    %148 = vector.shape_cast %145 : vector<64x64xf32> to vector<1x1x64x64xf32>
    tpu.vector_store %arg5[%c0_55, %c3, %c0_56, %c0_57], %148 {strides = array<i32>} : memref<1x21x64x64xf32, #tpu.memory_space<vmem>>, vector<1x1x64x64xf32>,
    %149 = arith.mulf %75, %132 : vector<64x64xf32>
    %c0_58 = arith.constant 0 : index
    %c4 = arith.constant 4 : index
    %c0_59 = arith.constant 0 : index
    %c0_60 = arith.constant 0 : index
    %150 = vector.load %arg5[%c0_58, %c4, %c0_59, %c0_60] : memref<1x21x64x64xf32, #tpu.memory_space<vmem>>, vector<1x1x64x64xf32>
    %151 = vector.shape_cast %150 : vector<1x1x64x64xf32> to vector<64x64xf32>
    %152 = vector.shape_cast %149 : vector<64x64xf32> to vector<1x1x64x64xf32>
    tpu.vector_store %arg5[%c0_58, %c4, %c0_59, %c0_60], %152 {strides = array<i32>} : memref<1x21x64x64xf32, #tpu.memory_space<vmem>>, vector<1x1x64x64xf32>,
    %153 = arith.mulf %77, %132 : vector<64x64xf32>
    %c0_61 = arith.constant 0 : index
    %c5 = arith.constant 5 : index
    %c0_62 = arith.constant 0 : index
    %c0_63 = arith.constant 0 : index
    %154 = vector.load %arg5[%c0_61, %c5, %c0_62, %c0_63] : memref<1x21x64x64xf32, #tpu.memory_space<vmem>>, vector<1x1x64x64xf32>
    %155 = vector.shape_cast %154 : vector<1x1x64x64xf32> to vector<64x64xf32>
    %156 = vector.shape_cast %153 : vector<64x64xf32> to vector<1x1x64x64xf32>
    tpu.vector_store %arg5[%c0_61, %c5, %c0_62, %c0_63], %156 {strides = array<i32>} : memref<1x21x64x64xf32, #tpu.memory_space<vmem>>, vector<1x1x64x64xf32>,
    %157 = arith.mulf %79, %132 : vector<64x64xf32>
    %c0_64 = arith.constant 0 : index
    %c6 = arith.constant 6 : index
    %c0_65 = arith.constant 0 : index
    %c0_66 = arith.constant 0 : index
    %158 = vector.load %arg5[%c0_64, %c6, %c0_65, %c0_66] : memref<1x21x64x64xf32, #tpu.memory_space<vmem>>, vector<1x1x64x64xf32>
    %159 = vector.shape_cast %158 : vector<1x1x64x64xf32> to vector<64x64xf32>
    %160 = vector.shape_cast %157 : vector<64x64xf32> to vector<1x1x64x64xf32>
    tpu.vector_store %arg5[%c0_64, %c6, %c0_65, %c0_66], %160 {strides = array<i32>} : memref<1x21x64x64xf32, #tpu.memory_space<vmem>>, vector<1x1x64x64xf32>,
    %161 = arith.mulf %81, %132 : vector<64x64xf32>
    %c0_67 = arith.constant 0 : index
    %c7 = arith.constant 7 : index
    %c0_68 = arith.constant 0 : index
    %c0_69 = arith.constant 0 : index
    %162 = vector.load %arg5[%c0_67, %c7, %c0_68, %c0_69] : memref<1x21x64x64xf32, #tpu.memory_space<vmem>>, vector<1x1x64x64xf32>
    %163 = vector.shape_cast %162 : vector<1x1x64x64xf32> to vector<64x64xf32>
    %164 = vector.shape_cast %161 : vector<64x64xf32> to vector<1x1x64x64xf32>
    tpu.vector_store %arg5[%c0_67, %c7, %c0_68, %c0_69], %164 {strides = array<i32>} : memref<1x21x64x64xf32, #tpu.memory_space<vmem>>, vector<1x1x64x64xf32>,
    %165 = arith.mulf %83, %132 : vector<64x64xf32>
    %c0_70 = arith.constant 0 : index
    %c8 = arith.constant 8 : index
    %c0_71 = arith.constant 0 : index
    %c0_72 = arith.constant 0 : index
    %166 = vector.load %arg5[%c0_70, %c8, %c0_71, %c0_72] : memref<1x21x64x64xf32, #tpu.memory_space<vmem>>, vector<1x1x64x64xf32>
    %167 = vector.shape_cast %166 : vector<1x1x64x64xf32> to vector<64x64xf32>
    %168 = vector.shape_cast %165 : vector<64x64xf32> to vector<1x1x64x64xf32>
    tpu.vector_store %arg5[%c0_70, %c8, %c0_71, %c0_72], %168 {strides = array<i32>} : memref<1x21x64x64xf32, #tpu.memory_space<vmem>>, vector<1x1x64x64xf32>,
    %169 = arith.mulf %85, %132 : vector<64x64xf32>
    %c0_73 = arith.constant 0 : index
    %c9 = arith.constant 9 : index
    %c0_74 = arith.constant 0 : index
    %c0_75 = arith.constant 0 : index
    %170 = vector.load %arg5[%c0_73, %c9, %c0_74, %c0_75] : memref<1x21x64x64xf32, #tpu.memory_space<vmem>>, vector<1x1x64x64xf32>
    %171 = vector.shape_cast %170 : vector<1x1x64x64xf32> to vector<64x64xf32>
    %172 = vector.shape_cast %169 : vector<64x64xf32> to vector<1x1x64x64xf32>
    tpu.vector_store %arg5[%c0_73, %c9, %c0_74, %c0_75], %172 {strides = array<i32>} : memref<1x21x64x64xf32, #tpu.memory_space<vmem>>, vector<1x1x64x64xf32>,
    %173 = arith.mulf %87, %132 : vector<64x64xf32>
    %c0_76 = arith.constant 0 : index
    %c10 = arith.constant 10 : index
    %c0_77 = arith.constant 0 : index
    %c0_78 = arith.constant 0 : index
    %174 = vector.load %arg5[%c0_76, %c10, %c0_77, %c0_78] : memref<1x21x64x64xf32, #tpu.memory_space<vmem>>, vector<1x1x64x64xf32>
    %175 = vector.shape_cast %174 : vector<1x1x64x64xf32> to vector<64x64xf32>
    %176 = vector.shape_cast %173 : vector<64x64xf32> to vector<1x1x64x64xf32>
    tpu.vector_store %arg5[%c0_76, %c10, %c0_77, %c0_78], %176 {strides = array<i32>} : memref<1x21x64x64xf32, #tpu.memory_space<vmem>>, vector<1x1x64x64xf32>,
    %177 = arith.mulf %89, %132 : vector<64x64xf32>
    %c0_79 = arith.constant 0 : index
    %c11 = arith.constant 11 : index
    %c0_80 = arith.constant 0 : index
    %c0_81 = arith.constant 0 : index
    %178 = vector.load %arg5[%c0_79, %c11, %c0_80, %c0_81] : memref<1x21x64x64xf32, #tpu.memory_space<vmem>>, vector<1x1x64x64xf32>
    %179 = vector.shape_cast %178 : vector<1x1x64x64xf32> to vector<64x64xf32>
    %180 = vector.shape_cast %177 : vector<64x64xf32> to vector<1x1x64x64xf32>
    tpu.vector_store %arg5[%c0_79, %c11, %c0_80, %c0_81], %180 {strides = array<i32>} : memref<1x21x64x64xf32, #tpu.memory_space<vmem>>, vector<1x1x64x64xf32>,
    %181 = arith.mulf %91, %132 : vector<64x64xf32>
    %c0_82 = arith.constant 0 : index
    %c12 = arith.constant 12 : index
    %c0_83 = arith.constant 0 : index
    %c0_84 = arith.constant 0 : index
    %182 = vector.load %arg5[%c0_82, %c12, %c0_83, %c0_84] : memref<1x21x64x64xf32, #tpu.memory_space<vmem>>, vector<1x1x64x64xf32>
    %183 = vector.shape_cast %182 : vector<1x1x64x64xf32> to vector<64x64xf32>
    %184 = vector.shape_cast %181 : vector<64x64xf32> to vector<1x1x64x64xf32>
    tpu.vector_store %arg5[%c0_82, %c12, %c0_83, %c0_84], %184 {strides = array<i32>} : memref<1x21x64x64xf32, #tpu.memory_space<vmem>>, vector<1x1x64x64xf32>,
    %185 = arith.mulf %93, %132 : vector<64x64xf32>
    %c0_85 = arith.constant 0 : index
    %c13 = arith.constant 13 : index
    %c0_86 = arith.constant 0 : index
    %c0_87 = arith.constant 0 : index
    %186 = vector.load %arg5[%c0_85, %c13, %c0_86, %c0_87] : memref<1x21x64x64xf32, #tpu.memory_space<vmem>>, vector<1x1x64x64xf32>
    %187 = vector.shape_cast %186 : vector<1x1x64x64xf32> to vector<64x64xf32>
    %188 = vector.shape_cast %185 : vector<64x64xf32> to vector<1x1x64x64xf32>
    tpu.vector_store %arg5[%c0_85, %c13, %c0_86, %c0_87], %188 {strides = array<i32>} : memref<1x21x64x64xf32, #tpu.memory_space<vmem>>, vector<1x1x64x64xf32>,
    %189 = arith.mulf %95, %132 : vector<64x64xf32>
    %c0_88 = arith.constant 0 : index
    %c14 = arith.constant 14 : index
    %c0_89 = arith.constant 0 : index
    %c0_90 = arith.constant 0 : index
    %190 = vector.load %arg5[%c0_88, %c14, %c0_89, %c0_90] : memref<1x21x64x64xf32, #tpu.memory_space<vmem>>, vector<1x1x64x64xf32>
    %191 = vector.shape_cast %190 : vector<1x1x64x64xf32> to vector<64x64xf32>
    %192 = vector.shape_cast %189 : vector<64x64xf32> to vector<1x1x64x64xf32>
    tpu.vector_store %arg5[%c0_88, %c14, %c0_89, %c0_90], %192 {strides = array<i32>} : memref<1x21x64x64xf32, #tpu.memory_space<vmem>>, vector<1x1x64x64xf32>,
    %193 = arith.mulf %97, %132 : vector<64x64xf32>
    %c0_91 = arith.constant 0 : index
    %c15 = arith.constant 15 : index
    %c0_92 = arith.constant 0 : index
    %c0_93 = arith.constant 0 : index
    %194 = vector.load %arg5[%c0_91, %c15, %c0_92, %c0_93] : memref<1x21x64x64xf32, #tpu.memory_space<vmem>>, vector<1x1x64x64xf32>
    %195 = vector.shape_cast %194 : vector<1x1x64x64xf32> to vector<64x64xf32>
    %196 = vector.shape_cast %193 : vector<64x64xf32> to vector<1x1x64x64xf32>
    tpu.vector_store %arg5[%c0_91, %c15, %c0_92, %c0_93], %196 {strides = array<i32>} : memref<1x21x64x64xf32, #tpu.memory_space<vmem>>, vector<1x1x64x64xf32>,
    %197 = arith.mulf %99, %132 : vector<64x64xf32>
    %c0_94 = arith.constant 0 : index
    %c16_95 = arith.constant 16 : index
    %c0_96 = arith.constant 0 : index
    %c0_97 = arith.constant 0 : index
    %198 = vector.load %arg5[%c0_94, %c16_95, %c0_96, %c0_97] : memref<1x21x64x64xf32, #tpu.memory_space<vmem>>, vector<1x1x64x64xf32>
    %199 = vector.shape_cast %198 : vector<1x1x64x64xf32> to vector<64x64xf32>
    %200 = vector.shape_cast %197 : vector<64x64xf32> to vector<1x1x64x64xf32>
    tpu.vector_store %arg5[%c0_94, %c16_95, %c0_96, %c0_97], %200 {strides = array<i32>} : memref<1x21x64x64xf32, #tpu.memory_space<vmem>>, vector<1x1x64x64xf32>,
    %201 = arith.mulf %101, %132 : vector<64x64xf32>
    %c0_98 = arith.constant 0 : index
    %c17 = arith.constant 17 : index
    %c0_99 = arith.constant 0 : index
    %c0_100 = arith.constant 0 : index
    %202 = vector.load %arg5[%c0_98, %c17, %c0_99, %c0_100] : memref<1x21x64x64xf32, #tpu.memory_space<vmem>>, vector<1x1x64x64xf32>
    %203 = vector.shape_cast %202 : vector<1x1x64x64xf32> to vector<64x64xf32>
    %204 = vector.shape_cast %201 : vector<64x64xf32> to vector<1x1x64x64xf32>
    tpu.vector_store %arg5[%c0_98, %c17, %c0_99, %c0_100], %204 {strides = array<i32>} : memref<1x21x64x64xf32, #tpu.memory_space<vmem>>, vector<1x1x64x64xf32>,
    %205 = arith.mulf %103, %132 : vector<64x64xf32>
    %c0_101 = arith.constant 0 : index
    %c18 = arith.constant 18 : index
    %c0_102 = arith.constant 0 : index
    %c0_103 = arith.constant 0 : index
    %206 = vector.load %arg5[%c0_101, %c18, %c0_102, %c0_103] : memref<1x21x64x64xf32, #tpu.memory_space<vmem>>, vector<1x1x64x64xf32>
    %207 = vector.shape_cast %206 : vector<1x1x64x64xf32> to vector<64x64xf32>
    %208 = vector.shape_cast %205 : vector<64x64xf32> to vector<1x1x64x64xf32>
    tpu.vector_store %arg5[%c0_101, %c18, %c0_102, %c0_103], %208 {strides = array<i32>} : memref<1x21x64x64xf32, #tpu.memory_space<vmem>>, vector<1x1x64x64xf32>,
    %209 = arith.mulf %105, %132 : vector<64x64xf32>
    %c0_104 = arith.constant 0 : index
    %c19 = arith.constant 19 : index
    %c0_105 = arith.constant 0 : index
    %c0_106 = arith.constant 0 : index
    %210 = vector.load %arg5[%c0_104, %c19, %c0_105, %c0_106] : memref<1x21x64x64xf32, #tpu.memory_space<vmem>>, vector<1x1x64x64xf32>
    %211 = vector.shape_cast %210 : vector<1x1x64x64xf32> to vector<64x64xf32>
    %212 = vector.shape_cast %209 : vector<64x64xf32> to vector<1x1x64x64xf32>
    tpu.vector_store %arg5[%c0_104, %c19, %c0_105, %c0_106], %212 {strides = array<i32>} : memref<1x21x64x64xf32, #tpu.memory_space<vmem>>, vector<1x1x64x64xf32>,
    %213 = arith.mulf %107, %132 : vector<64x64xf32>
    %c0_107 = arith.constant 0 : index
    %c20 = arith.constant 20 : index
    %c0_108 = arith.constant 0 : index
    %c0_109 = arith.constant 0 : index
    %214 = vector.load %arg5[%c0_107, %c20, %c0_108, %c0_109] : memref<1x21x64x64xf32, #tpu.memory_space<vmem>>, vector<1x1x64x64xf32>
    %215 = vector.shape_cast %214 : vector<1x1x64x64xf32> to vector<64x64xf32>
    %216 = vector.shape_cast %213 : vector<64x64xf32> to vector<1x1x64x64xf32>
    tpu.vector_store %arg5[%c0_107, %c20, %c0_108, %c0_109], %216 {strides = array<i32>} : memref<1x21x64x64xf32, #tpu.memory_space<vmem>>, vector<1x1x64x64xf32>,
    return
  }
  func.func @transform_0(%arg0: i32, %arg1: i32) -> (i32, i32, i32) {
    %c0_i32 = arith.constant 0 : i32
    %c0_i32_0 = arith.constant 0 : i32
    %c0_i32_1 = arith.constant 0 : i32
    return %arg0, %c0_i32, %c0_i32_0 : i32, i32, i32
  }
  func.func @transform_1(%arg0: i32, %arg1: i32) -> (i32, i32) {
    %c0_i32 = arith.constant 0 : i32
    %c0_i32_0 = arith.constant 0 : i32
    return %arg1, %c0_i32 : i32, i32
  }
  func.func @transform_2(%arg0: i32, %arg1: i32) -> (i32, i32) {
    %c0_i32 = arith.constant 0 : i32
    %c0_i32_0 = arith.constant 0 : i32
    %c0_i32_1 = arith.constant 0 : i32
    return %c0_i32, %c0_i32_0 : i32, i32
  }
  func.func @transform_3(%arg0: i32, %arg1: i32) -> (i32, i32, i32, i32) {
    %c0_i32 = arith.constant 0 : i32
    %c0_i32_0 = arith.constant 0 : i32
    %c0_i32_1 = arith.constant 0 : i32
    return %arg0, %c0_i32, %arg1, %c0_i32_0 : i32, i32, i32, i32
  }
}

</mosaic_0001>

<llo_original>
// kernel: net_forward.13
$region0: #{net_forward.13}
  #allocation0 [shape = 'u32[]', space=smem, size = 0x4, offset = 0x4, fixed_abs, tag = 'smem constant byte address 0x4 - core index']
  #allocation1 [shape = 'u32[72,128]{1,0:T(1,128)}', space=vmem, size = 0x9000, scoped, tag = 'internal scratch']
  %s0 = inlined_call_operand.vmem [shape: bf16[2,64,128], index: 0, kind: input, shape index: {}]
  %s1 = inlined_call_operand.vmem [shape: bf16[128,64], index: 1, kind: input, shape index: {}]
  %s2 = inlined_call_operand.vmem [shape: f32[1,64], index: 2, kind: input, shape index: {}]
  %s3 = inlined_call_operand.vmem [shape: bf16[2,64,64], index: 3, kind: output, shape index: {}]
  %s4 = sld [smem:[#allocation0]]
  $region45: #{net_forward.13} parent=0
    _
  %s6 = ssub.s32 1, %s4
  %s7 = scalar_select 0, %s6, %s4
  loop: start=0, step=1, limit=4
  $region2: #{net_forward.13} parent=0 // loop_pre_header
    _
  $region3: #{net_forward.13} parent=0 // loop_header
    %s9 = sphi 0, %s13
    %p10 = scmp.ge.s32.totalorder %s9, 4
    %s16 = sphi 0, %s28
    %s17 = sphi 0, %s24
    %s18 = sphi 0, %s16
    %s19 = sphi 0, %s17
    %s20 = sphi 0, %s18
    %s21 = sphi 0, %s19
    %s33 = sphi 0, %s35
    %s36 = sphi 0, %s33
    %s37 = sphi 0, %s36
    %s53 = sphi 0, %s37
    %s57 = sphi 0, %s57
    %s59 = sphi 0, %s57
    %s60 = sphi 0, %s59
    %s74 = sphi 0, %s60
    %s78 = sphi 0, %s78
    %s80 = sphi 0, %s78
    %s81 = sphi 0, %s80
    %s95 = sphi 0, %s81
    %s103 = sphi 0, %s105
    %s106 = sphi 0, %s103
    %s107 = sphi 0, %s106
    %s123 = sphi 0, %s107
  $region4: #{net_forward.13} parent=0 // loop_header_branch
    %12 = sbr.rel (%p10) target = $region8
  $region5: #{net_forward.13} parent=0 // loop_body
    %s14 = ssub.s32 %s9, 1
    %s15 = ssub.s32 %s9, 2
    %s22 = sadd.s32 1, %s17
    %p23 = scmp.ge.s32.totalorder %s22, 1
    %s24 = scalar_select %p23, 0, %s22
    %s25 = sadd.s32 1, %s16
    %s26 = scalar_select %p23, %s25, %s16
    %p27 = scmp.ge.s32.totalorder %s26, 2
    %s28 = scalar_select %p27, 0, %s26
    %s29 = ssub.s32 %s16, %s28
    %s30 = ssub.s32 %s17, %s24
    %s31 = sor.u32 %s29, %s30
    %p32 = scmp.eq.s32.totalorder %s31, 0
    %s34 = sadd.s32 %s33, 1
    %s35 = scalar_select %p32, %s33, %s34
    %p38 = pneg %p32
    %p39 = scmp.eq.s32.totalorder %s9, 1
    %p40 = por %p38, %p39
    %p41 = scmp.ne.s32.totalorder %s33, %s36
    %p42 = scmp.eq.s32.totalorder %s9, 0
    %p43 = por %p41, %p42
    %p44 = scmp.ne.s32.totalorder %s33, %s36
    %p45 = scmp.eq.s32.totalorder %s14, 1
    %p46 = por %p44, %p45
    %p47 = scmp.ne.s32.totalorder %s36, %s37
    %p48 = scmp.eq.s32.totalorder %s14, 0
    %p49 = por %p47, %p48
    %p50 = scmp.ne.s32.totalorder %s36, %s37
    %p51 = scmp.eq.s32.totalorder %s15, 1
    %p52 = por %p50, %p51
    %p54 = scmp.ne.s32.totalorder %s37, %s53
    %p55 = scmp.eq.s32.totalorder %s15, 0
    %p56 = por %p54, %p55
    %s58 = sadd.s32 %s57, 1
    %p61 = scmp.eq.s32.totalorder %s9, 1
    %p62 = scmp.ne.s32.totalorder %s57, %s59
    %p63 = scmp.eq.s32.totalorder %s9, 0
    %p64 = por %p62, %p63
    %p65 = scmp.ne.s32.totalorder %s57, %s59
    %p66 = scmp.eq.s32.totalorder %s14, 1
    %p67 = por %p65, %p66
    %p68 = scmp.ne.s32.totalorder %s59, %s60
    %p69 = scmp.eq.s32.totalorder %s14, 0
    %p70 = por %p68, %p69
    %p71 = scmp.ne.s32.totalorder %s59, %s60
    %p72 = scmp.eq.s32.totalorder %s15, 1
    %p73 = por %p71, %p72
    %p75 = scmp.ne.s32.totalorder %s60, %s74
    %p76 = scmp.eq.s32.totalorder %s15, 0
    %p77 = por %p75, %p76
    %s79 = sadd.s32 %s78, 1
    %p82 = scmp.eq.s32.totalorder %s9, 1
    %p83 = scmp.ne.s32.totalorder %s78, %s80
    %p84 = scmp.eq.s32.totalorder %s9, 0
    %p85 = por %p83, %p84
    %p86 = scmp.ne.s32.totalorder %s78, %s80
    %p87 = scmp.eq.s32.totalorder %s14, 1
    %p88 = por %p86, %p87
    %p89 = scmp.ne.s32.totalorder %s80, %s81
    %p90 = scmp.eq.s32.totalorder %s14, 0
    %p91 = por %p89, %p90
    %p92 = scmp.ne.s32.totalorder %s80, %s81
    %p93 = scmp.eq.s32.totalorder %s15, 1
    %p94 = por %p92, %p93
    %p96 = scmp.ne.s32.totalorder %s81, %s95
    %p97 = scmp.eq.s32.totalorder %s15, 0
    %p98 = por %p96, %p97
    %s99 = ssub.s32 %s16, %s28
    %s100 = ssub.s32 %s17, %s24
    %s101 = sor.u32 %s99, %s100
    %p102 = scmp.eq.s32.totalorder %s101, 0
    %s104 = sadd.s32 %s103, 1
    %s105 = scalar_select %p102, %s103, %s104
    %p108 = pneg %p102
    %p109 = scmp.eq.s32.totalorder %s9, 1
    %p110 = por %p108, %p109
    %p111 = scmp.ne.s32.totalorder %s103, %s106
    %p112 = scmp.eq.s32.totalorder %s9, 0
    %p113 = por %p111, %p112
    %p114 = scmp.ne.s32.totalorder %s103, %s106
    %p115 = scmp.eq.s32.totalorder %s14, 1
    %p116 = por %p114, %p115
    %p117 = scmp.ne.s32.totalorder %s106, %s107
    %p118 = scmp.eq.s32.totalorder %s14, 0
    %p119 = por %p117, %p118
    %p120 = scmp.ne.s32.totalorder %s106, %s107
    %p121 = scmp.eq.s32.totalorder %s15, 1
    %p122 = por %p120, %p121
    %p124 = scmp.ne.s32.totalorder %s107, %s123
    %p125 = scmp.eq.s32.totalorder %s15, 0
    %p126 = por %p124, %p125
    %p127 = scmp.le.s32.totalorder 1, %s9
    %p128 = scmp.lt.s32.totalorder %s9, 3
    %p129 = pnand %p127, %p128
    %p130 = pneg %p129
    // Predicated region
    $region9: #{net_forward.13} parent=5 // pred_check
      _
    $region10: #{net_forward.13} parent=5 // pred_check_branch
      %132 = sbr.rel (%p129) target = $region12
    $region11: #{net_forward.13} parent=5 // pred_region
      %s133 = ssub.s32 %s9, 1
      // Predicated region
      $region13: #{net_forward.13} parent=11 // pred_check
        %p134 = pneg %p70
      $region14: #{net_forward.13} parent=11 // pred_check_branch
        %136 = sbr.rel (%p134) target = $region16
      $region15: #{net_forward.13} parent=11 // pred_region
        _
      $region16: #{net_forward.13} parent=11 // pred_fallthru
        _
      // Predicated region
      $region17: #{net_forward.13} parent=11 // pred_check
        %p137 = pneg %p91
      $region18: #{net_forward.13} parent=11 // pred_check_branch
        %139 = sbr.rel (%p137) target = $region20
      $region19: #{net_forward.13} parent=11 // pred_region
        _
      $region20: #{net_forward.13} parent=11 // pred_fallthru
        _
    $region12: #{net_forward.13} parent=5 // pred_fallthru
      _
    %p140 = scmp.lt.s32.totalorder %s9, 2
    // Predicated region
    $region21: #{net_forward.13} parent=5 // pred_check
      %p141 = pneg %p140
    $region22: #{net_forward.13} parent=5 // pred_check_branch
      %143 = sbr.rel (%p141) target = $region24
    $region23: #{net_forward.13} parent=5 // pred_region
      // Predicated region
      $region25: #{net_forward.13} parent=23 // pred_check
        %p144 = pneg %p43
      $region26: #{net_forward.13} parent=23 // pred_check_branch
        %146 = sbr.rel (%p144) target = $region28
      $region27: #{net_forward.13} parent=23 // pred_region
        %s147 = smul.u32 8, %s17
        %p148 = scmp.lt.s32.totalorder %s16, 1
        %s149 = scalar_select %p148, %s16, 1
        %p150 = scmp.lt.s32.totalorder %s147, 7
        %s151 = scalar_select %p150, %s147, 7
        %s152 = smul.addr %s149, 8
        %s153 = sadd.s32 %s151, %s152
        %s154 = smul.addr %s153, 4
        %s155 = scalar_lea.vmem %s0, %s154
        %s156 = smul.u32 8, %s17
      $region28: #{net_forward.13} parent=23 // pred_fallthru
        _
    $region24: #{net_forward.13} parent=5 // pred_fallthru
      _
    %p157 = scmp.le.s32.totalorder 1, %s9
    %p158 = scmp.lt.s32.totalorder %s9, 3
    %p159 = pnand %p157, %p158
    %p160 = pneg %p159
    // Predicated region
    $region29: #{net_forward.13} parent=5 // pred_check
      _
    $region30: #{net_forward.13} parent=5 // pred_check_branch
      %162 = sbr.rel (%p159) target = $region32
    $region31: #{net_forward.13} parent=5 // pred_region
      %s163 = ssub.s32 %s9, 1
      %s164 = smul.u32 8, %s19
      %p165 = scmp.lt.s32.totalorder %s18, 1
      %s166 = scalar_select %p165, %s18, 1
      %p167 = scmp.lt.s32.totalorder %s164, 7
      %s168 = scalar_select %p167, %s164, 7
      %s169 = smul.addr %s166, 8
      %s170 = sadd.s32 %s168, %s169
      %s171 = smul.addr %s170, 4
      %s172 = scalar_lea.vmem %s0, %s171
      %p173 = pneg %p49
      %p174 = pneg %p46
      %p175 = pneg %p70
      %p176 = pneg %p67
      %p177 = pneg %p91
      %p178 = pneg %p88
      %p179 = pneg %p119
      %p180 = pneg %p116
      %s181 = smul.u32 8, %s19
      %p182 = scmp.lt.s32.totalorder %s18, 1
      %s183 = scalar_select %p182, %s18, 1
      %p184 = scmp.lt.s32.totalorder %s181, 7
      %s185 = scalar_select %p184, %s181, 7
      %s186 = smul.addr %s183, 8
      %s187 = sadd.s32 %s185, %s186
      %s188 = smul.addr %s187, 4
      %s189 = scalar_lea.vmem %s3, %s188
      %s190 = smul.u32 8, %s19
      %p191 = scmp.lt.s32.totalorder %s18, 1
      %s192 = scalar_select %p191, %s18, 1
      %p193 = scmp.lt.s32.totalorder %s190, 7
      %s194 = scalar_select %p193, %s190, 7
      %s195 = smul.addr %s192, 8
      %s196 = sadd.s32 %s194, %s195
      %s197 = smul.addr %s196, 4
      %s198 = scalar_lea.vmem %s0, %s197
      %s199 = smul.u32 8, %s19
      %s200 = smul.u32 8, %s19
      %p201 = scmp.lt.s32.totalorder %s18, 1
      %s202 = scalar_select %p201, %s18, 1
      %p203 = scmp.lt.s32.totalorder %s200, 7
      %s204 = scalar_select %p203, %s200, 7
      %s205 = smul.addr %s202, 8
      %s206 = sadd.s32 %s204, %s205
      %s207 = smul.addr %s206, 4
      %s208 = scalar_lea.vmem %s3, %s207
      %s209 = smul.u32 8, %s19
      %v210 = vld [vmem:[%s198] sm:$0xf]
      %v211 = vld [vmem:[%s198 + $0x4] sm:$0xf]
      %v212 = vld [vmem:[%s198 + $0x8] sm:$0xf]
      %v213 = vld [vmem:[%s198 + $0xc] sm:$0xf]
      %v214 = vld [vmem:[%s198 + $0x10] sm:$0xf]
      %v215 = vld [vmem:[%s198 + $0x14] sm:$0xf]
      %v216 = vld [vmem:[%s198 + $0x18] sm:$0xf]
      %v217 = vld [vmem:[%s198 + $0x1c] sm:$0xf]
      %v218 = vld [vmem:[%s1] sm:$0xf]
      %v219 = vld [vmem:[%s1 + $0x4] sm:$0xf]
      %v220 = vld [vmem:[%s1 + $0x8] sm:$0xf]
      %v221 = vld [vmem:[%s1 + $0xc] sm:$0xf]
      %v222 = vld [vmem:[%s1 + $0x10] sm:$0xf]
      %v223 = vld [vmem:[%s1 + $0x14] sm:$0xf]
      %v224 = vld [vmem:[%s1 + $0x18] sm:$0xf]
      %v225 = vld [vmem:[%s1 + $0x1c] sm:$0xf]
      %v226 = vld [vmem:[%s1 + $0x20] sm:$0xf]
      %v227 = vld [vmem:[%s1 + $0x24] sm:$0xf]
      %v228 = vld [vmem:[%s1 + $0x28] sm:$0xf]
      %v229 = vld [vmem:[%s1 + $0x2c] sm:$0xf]
      %v230 = vld [vmem:[%s1 + $0x30] sm:$0xf]
      %v231 = vld [vmem:[%s1 + $0x34] sm:$0xf]
      %v232 = vld [vmem:[%s1 + $0x38] sm:$0xf]
      %v233 = vld [vmem:[%s1 + $0x3c] sm:$0xf]
      %v234 = vld [vmem:[%s2] sm:$0x1]
      %v236 = vperm.slane %v234, 0
      %v246 = vunpack.c.l.b16 %v210
      %v247 = vunpack.c.l.b16 %v211
      %v248 = vunpack.c.l.b16 %v212
      %v249 = vunpack.c.l.b16 %v213
      %v250 = vunpack.c.l.b16 %v214
      %v251 = vunpack.c.l.b16 %v215
      %v252 = vunpack.c.l.b16 %v216
      %v253 = vunpack.c.l.b16 %v217
      %v254 = vpack.c.b16 %v247, %v246
      %v255 = vpack.c.b16 %v249, %v248
      %v256 = vpack.c.b16 %v251, %v250
      %v257 = vpack.c.b16 %v253, %v252
      %v278 = vunpack.c.l.b16 %v218
      %v279 = vunpack.c.l.b16 %v219
      %v280 = vunpack.c.l.b16 %v220
      %v281 = vunpack.c.l.b16 %v221
      %v282 = vunpack.c.l.b16 %v222
      %v283 = vunpack.c.l.b16 %v223
      %v284 = vunpack.c.l.b16 %v224
      %v285 = vunpack.c.l.b16 %v225
      %v286 = vunpack.c.l.b16 %v226
      %v287 = vunpack.c.l.b16 %v227
      %v288 = vunpack.c.l.b16 %v228
      %v289 = vunpack.c.l.b16 %v229
      %v290 = vunpack.c.l.b16 %v230
      %v291 = vunpack.c.l.b16 %v231
      %v292 = vunpack.c.l.b16 %v232
      %v293 = vunpack.c.l.b16 %v233
      %v294 = vpack.c.b16 %v279, %v278
      %v295 = vpack.c.b16 %v281, %v280
      %v296 = vpack.c.b16 %v283, %v282
      %v297 = vpack.c.b16 %v285, %v284
      %v298 = vpack.c.b16 %v287, %v286
      %v299 = vpack.c.b16 %v289, %v288
      %v300 = vpack.c.b16 %v291, %v290
      %v301 = vpack.c.b16 %v293, %v292
      %310 = vmatpush.bf16.msra.mxu0 %v301
      %311 = vmatpush.bf16.msra.mxu0 %v300
      %312 = vmatpush.bf16.msra.mxu0 %v299
      %313 = vmatpush.bf16.msra.mxu0 %v298
      %314 = vmatpush.bf16.msra.mxu0 %v297
      %315 = vmatpush.bf16.msra.mxu0 %v296
      %316 = vmatpush.bf16.msra.mxu0 %v295
      %317 = vmatpush.bf16.msra.mxu0 %v294
      %318 = vmatmul.bf16.gmra.mxu0 %v254
      %v319 = vpop.f32.mrf.mxu0
      %v320 = vadd.f32 %v236, %v319
      %v321 = vpop.f32.mrf.mxu0
      %v322 = vadd.f32 %v236, %v321
      %323 = vmatmul.bf16.gmra.mxu0 %v255
      %v324 = vpop.f32.mrf.mxu0
      %v325 = vadd.f32 %v236, %v324
      %v326 = vpop.f32.mrf.mxu0
      %v327 = vadd.f32 %v236, %v326
      %328 = vmatmul.bf16.gmra.mxu0 %v256
      %v329 = vpop.f32.mrf.mxu0
      %v330 = vadd.f32 %v236, %v329
      %v331 = vpop.f32.mrf.mxu0
      %v332 = vadd.f32 %v236, %v331
      %333 = vmatmul.bf16.gmra.mxu0 %v257
      %v334 = vpop.f32.mrf.mxu0
      %v335 = vadd.f32 %v236, %v334
      %v336 = vpop.f32.mrf.mxu0
      %v337 = vadd.f32 %v236, %v336
      %338 = vdwg.mxu0
      %v339 = vpack.c.bf16 %v320, %v320
      %v340 = vpack.c.bf16 %v322, %v322
      %v341 = vpack.c.bf16 %v325, %v325
      %v342 = vpack.c.bf16 %v327, %v327
      %v343 = vpack.c.bf16 %v330, %v330
      %v344 = vpack.c.bf16 %v332, %v332
      %v345 = vpack.c.bf16 %v335, %v335
      %v346 = vpack.c.bf16 %v337, %v337
      %vm347 = vcmask 519168
      %348 = vst.msk [vmem:[%s208] sm:$0xf] %vm347, %v339
      %349 = vst.msk [vmem:[%s208 + $0x4] sm:$0xf] %vm347, %v340
      %350 = vst.msk [vmem:[%s208 + $0x8] sm:$0xf] %vm347, %v341
      %351 = vst.msk [vmem:[%s208 + $0xc] sm:$0xf] %vm347, %v342
      %352 = vst.msk [vmem:[%s208 + $0x10] sm:$0xf] %vm347, %v343
      %353 = vst.msk [vmem:[%s208 + $0x14] sm:$0xf] %vm347, %v344
      %354 = vst.msk [vmem:[%s208 + $0x18] sm:$0xf] %vm347, %v345
      %355 = vst.msk [vmem:[%s208 + $0x1c] sm:$0xf] %vm347, %v346
      %s356 = smul.u32 8, %s19
      %p357 = scmp.lt.s32.totalorder %s18, 1
      %s358 = scalar_select %p357, %s18, 1
      %p359 = scmp.lt.s32.totalorder %s356, 7
      %s360 = scalar_select %p359, %s356, 7
      %s361 = smul.addr %s358, 8
      %s362 = sadd.s32 %s360, %s361
      %s363 = smul.addr %s362, 4
      %s364 = scalar_lea.vmem %s3, %s363
      // Predicated region
      $region33: #{net_forward.13} parent=31 // pred_check
        %p365 = pneg %p116
      $region34: #{net_forward.13} parent=31 // pred_check_branch
        %367 = sbr.rel (%p365) target = $region36
      $region35: #{net_forward.13} parent=31 // pred_region
        %s368 = smul.u32 8, %s19
      $region36: #{net_forward.13} parent=31 // pred_fallthru
        _
    $region32: #{net_forward.13} parent=5 // pred_fallthru
      _
    %p369 = scmp.le.s32.totalorder 2, %s9
    // Predicated region
    $region37: #{net_forward.13} parent=5 // pred_check
      %p370 = pneg %p369
    $region38: #{net_forward.13} parent=5 // pred_check_branch
      %372 = sbr.rel (%p370) target = $region40
    $region39: #{net_forward.13} parent=5 // pred_region
      %s373 = ssub.s32 %s9, 2
      // Predicated region
      $region41: #{net_forward.13} parent=39 // pred_check
        %p374 = pneg %p122
      $region42: #{net_forward.13} parent=39 // pred_check_branch
        %376 = sbr.rel (%p374) target = $region44
      $region43: #{net_forward.13} parent=39 // pred_region
        %s377 = smul.u32 8, %s21
        %p378 = scmp.lt.s32.totalorder %s20, 1
        %s379 = scalar_select %p378, %s20, 1
        %p380 = scmp.lt.s32.totalorder %s377, 7
        %s381 = scalar_select %p380, %s377, 7
        %s382 = smul.addr %s379, 8
        %s383 = sadd.s32 %s381, %s382
        %s384 = smul.addr %s383, 4
        %s385 = scalar_lea.vmem %s3, %s384
      $region44: #{net_forward.13} parent=39 // pred_fallthru
        _
    $region40: #{net_forward.13} parent=5 // pred_fallthru
      _
  $region6: #{net_forward.13} parent=0 // loop_footer
    %s13 = sadd.s32 1, %s9
  $region7: #{net_forward.13} parent=0 // loop_footer_branch
    %8 = sbr.rel target = $region3
  $region8: #{net_forward.13} parent=0 // loop_exit
    _

// kernel: net_forward.12
$region0: #{net_forward.12}
  #allocation0 [shape = 'u32[]', space=smem, size = 0x4, offset = 0x4, fixed_abs, tag = 'smem constant byte address 0x4 - core index']
  #allocation1 [shape = 'u32[72,128]{1,0:T(1,128)}', space=vmem, size = 0x9000, scoped, tag = 'internal scratch']
  %s0 = inlined_call_operand.vmem [shape: bf16[2,256,48], index: 0, kind: input, shape index: {}]
  %s1 = inlined_call_operand.vmem [shape: bf16[256,48], index: 1, kind: input, shape index: {}]
  %s2 = inlined_call_operand.vmem [shape: bf16[48,32], index: 2, kind: input, shape index: {}]
  %s3 = inlined_call_operand.vmem [shape: f32[1,32], index: 3, kind: input, shape index: {}]
  %s4 = inlined_call_operand.vmem [shape: bf16[2,256,32], index: 4, kind: output, shape index: {}]
  %s5 = sld [smem:[#allocation0]]
  $region49: #{net_forward.12} parent=0
    _
  %s7 = ssub.s32 1, %s5
  %s8 = scalar_select 0, %s7, %s5
  loop: start=0, step=1, limit=4
  $region2: #{net_forward.12} parent=0 // loop_pre_header
    _
  $region3: #{net_forward.12} parent=0 // loop_header
    %s10 = sphi 0, %s14
    %p11 = scmp.ge.s32.totalorder %s10, 4
    %s17 = sphi 0, %s29
    %s18 = sphi 0, %s25
    %s19 = sphi 0, %s17
    %s20 = sphi 0, %s18
    %s21 = sphi 0, %s19
    %s22 = sphi 0, %s20
    %s34 = sphi 0, %s36
    %s37 = sphi 0, %s34
    %s38 = sphi 0, %s37
    %s54 = sphi 0, %s38
    %s60 = sphi 0, %s62
    %s63 = sphi 0, %s60
    %s64 = sphi 0, %s63
    %s80 = sphi 0, %s64
    %s84 = sphi 0, %s84
    %s86 = sphi 0, %s84
    %s87 = sphi 0, %s86
    %s101 = sphi 0, %s87
    %s105 = sphi 0, %s105
    %s107 = sphi 0, %s105
    %s108 = sphi 0, %s107
    %s122 = sphi 0, %s108
    %s130 = sphi 0, %s132
    %s133 = sphi 0, %s130
    %s134 = sphi 0, %s133
    %s150 = sphi 0, %s134
  $region4: #{net_forward.12} parent=0 // loop_header_branch
    %13 = sbr.rel (%p11) target = $region8
  $region5: #{net_forward.12} parent=0 // loop_body
    %s15 = ssub.s32 %s10, 1
    %s16 = ssub.s32 %s10, 2
    %s23 = sadd.s32 1, %s18
    %p24 = scmp.ge.s32.totalorder %s23, 1
    %s25 = scalar_select %p24, 0, %s23
    %s26 = sadd.s32 1, %s17
    %s27 = scalar_select %p24, %s26, %s17
    %p28 = scmp.ge.s32.totalorder %s27, 2
    %s29 = scalar_select %p28, 0, %s27
    %s30 = ssub.s32 %s17, %s29
    %s31 = ssub.s32 %s18, %s25
    %s32 = sor.u32 %s30, %s31
    %p33 = scmp.eq.s32.totalorder %s32, 0
    %s35 = sadd.s32 %s34, 1
    %s36 = scalar_select %p33, %s34, %s35
    %p39 = pneg %p33
    %p40 = scmp.eq.s32.totalorder %s10, 1
    %p41 = por %p39, %p40
    %p42 = scmp.ne.s32.totalorder %s34, %s37
    %p43 = scmp.eq.s32.totalorder %s10, 0
    %p44 = por %p42, %p43
    %p45 = scmp.ne.s32.totalorder %s34, %s37
    %p46 = scmp.eq.s32.totalorder %s15, 1
    %p47 = por %p45, %p46
    %p48 = scmp.ne.s32.totalorder %s37, %s38
    %p49 = scmp.eq.s32.totalorder %s15, 0
    %p50 = por %p48, %p49
    %p51 = scmp.ne.s32.totalorder %s37, %s38
    %p52 = scmp.eq.s32.totalorder %s16, 1
    %p53 = por %p51, %p52
    %p55 = scmp.ne.s32.totalorder %s38, %s54
    %p56 = scmp.eq.s32.totalorder %s16, 0
    %p57 = por %p55, %p56
    %s58 = ssub.s32 %s18, %s25
    %p59 = scmp.eq.s32.totalorder %s58, 0
    %s61 = sadd.s32 %s60, 1
    %s62 = scalar_select %p59, %s60, %s61
    %p65 = pneg %p59
    %p66 = scmp.eq.s32.totalorder %s10, 1
    %p67 = por %p65, %p66
    %p68 = scmp.ne.s32.totalorder %s60, %s63
    %p69 = scmp.eq.s32.totalorder %s10, 0
    %p70 = por %p68, %p69
    %p71 = scmp.ne.s32.totalorder %s60, %s63
    %p72 = scmp.eq.s32.totalorder %s15, 1
    %p73 = por %p71, %p72
    %p74 = scmp.ne.s32.totalorder %s63, %s64
    %p75 = scmp.eq.s32.totalorder %s15, 0
    %p76 = por %p74, %p75
    %p77 = scmp.ne.s32.totalorder %s63, %s64
    %p78 = scmp.eq.s32.totalorder %s16, 1
    %p79 = por %p77, %p78
    %p81 = scmp.ne.s32.totalorder %s64, %s80
    %p82 = scmp.eq.s32.totalorder %s16, 0
    %p83 = por %p81, %p82
    %s85 = sadd.s32 %s84, 1
    %p88 = scmp.eq.s32.totalorder %s10, 1
    %p89 = scmp.ne.s32.totalorder %s84, %s86
    %p90 = scmp.eq.s32.totalorder %s10, 0
    %p91 = por %p89, %p90
    %p92 = scmp.ne.s32.totalorder %s84, %s86
    %p93 = scmp.eq.s32.totalorder %s15, 1
    %p94 = por %p92, %p93
    %p95 = scmp.ne.s32.totalorder %s86, %s87
    %p96 = scmp.eq.s32.totalorder %s15, 0
    %p97 = por %p95, %p96
    %p98 = scmp.ne.s32.totalorder %s86, %s87
    %p99 = scmp.eq.s32.totalorder %s16, 1
    %p100 = por %p98, %p99
    %p102 = scmp.ne.s32.totalorder %s87, %s101
    %p103 = scmp.eq.s32.totalorder %s16, 0
    %p104 = por %p102, %p103
    %s106 = sadd.s32 %s105, 1
    %p109 = scmp.eq.s32.totalorder %s10, 1
    %p110 = scmp.ne.s32.totalorder %s105, %s107
    %p111 = scmp.eq.s32.totalorder %s10, 0
    %p112 = por %p110, %p111
    %p113 = scmp.ne.s32.totalorder %s105, %s107
    %p114 = scmp.eq.s32.totalorder %s15, 1
    %p115 = por %p113, %p114
    %p116 = scmp.ne.s32.totalorder %s107, %s108
    %p117 = scmp.eq.s32.totalorder %s15, 0
    %p118 = por %p116, %p117
    %p119 = scmp.ne.s32.totalorder %s107, %s108
    %p120 = scmp.eq.s32.totalorder %s16, 1
    %p121 = por %p119, %p120
    %p123 = scmp.ne.s32.totalorder %s108, %s122
    %p124 = scmp.eq.s32.totalorder %s16, 0
    %p125 = por %p123, %p124
    %s126 = ssub.s32 %s17, %s29
    %s127 = ssub.s32 %s18, %s25
    %s128 = sor.u32 %s126, %s127
    %p129 = scmp.eq.s32.totalorder %s128, 0
    %s131 = sadd.s32 %s130, 1
    %s132 = scalar_select %p129, %s130, %s131
    %p135 = pneg %p129
    %p136 = scmp.eq.s32.totalorder %s10, 1
    %p137 = por %p135, %p136
    %p138 = scmp.ne.s32.totalorder %s130, %s133
    %p139 = scmp.eq.s32.totalorder %s10, 0
    %p140 = por %p138, %p139
    %p141 = scmp.ne.s32.totalorder %s130, %s133
    %p142 = scmp.eq.s32.totalorder %s15, 1
    %p143 = por %p141, %p142
    %p144 = scmp.ne.s32.totalorder %s133, %s134
    %p145 = scmp.eq.s32.totalorder %s15, 0
    %p146 = por %p144, %p145
    %p147 = scmp.ne.s32.totalorder %s133, %s134
    %p148 = scmp.eq.s32.totalorder %s16, 1
    %p149 = por %p147, %p148
    %p151 = scmp.ne.s32.totalorder %s134, %s150
    %p152 = scmp.eq.s32.totalorder %s16, 0
    %p153 = por %p151, %p152
    %p154 = scmp.le.s32.totalorder 1, %s10
    %p155 = scmp.lt.s32.totalorder %s10, 3
    %p156 = pnand %p154, %p155
    %p157 = pneg %p156
    // Predicated region
    $region9: #{net_forward.12} parent=5 // pred_check
      _
    $region10: #{net_forward.12} parent=5 // pred_check_branch
      %159 = sbr.rel (%p156) target = $region12
    $region11: #{net_forward.12} parent=5 // pred_region
      %s160 = ssub.s32 %s10, 1
      // Predicated region
      $region13: #{net_forward.12} parent=11 // pred_check
        %p161 = pneg %p76
      $region14: #{net_forward.12} parent=11 // pred_check_branch
        %163 = sbr.rel (%p161) target = $region16
      $region15: #{net_forward.12} parent=11 // pred_region
        %s164 = smul.u32 32, %s20
        %p165 = scmp.lt.s32.totalorder %s164, 31
        %s166 = scalar_select %p165, %s164, 31
        %s167 = smul.addr %s166, 4
        %s168 = scalar_lea.vmem %s1, %s167
        %s169 = smul.u32 32, %s20
      $region16: #{net_forward.12} parent=11 // pred_fallthru
        _
      // Predicated region
      $region17: #{net_forward.12} parent=11 // pred_check
        %p170 = pneg %p97
      $region18: #{net_forward.12} parent=11 // pred_check_branch
        %172 = sbr.rel (%p170) target = $region20
      $region19: #{net_forward.12} parent=11 // pred_region
        _
      $region20: #{net_forward.12} parent=11 // pred_fallthru
        _
      // Predicated region
      $region21: #{net_forward.12} parent=11 // pred_check
        %p173 = pneg %p118
      $region22: #{net_forward.12} parent=11 // pred_check_branch
        %175 = sbr.rel (%p173) target = $region24
      $region23: #{net_forward.12} parent=11 // pred_region
        _
      $region24: #{net_forward.12} parent=11 // pred_fallthru
        _
    $region12: #{net_forward.12} parent=5 // pred_fallthru
      _
    %p176 = scmp.lt.s32.totalorder %s10, 2
    // Predicated region
    $region25: #{net_forward.12} parent=5 // pred_check
      %p177 = pneg %p176
    $region26: #{net_forward.12} parent=5 // pred_check_branch
      %179 = sbr.rel (%p177) target = $region28
    $region27: #{net_forward.12} parent=5 // pred_region
      // Predicated region
      $region29: #{net_forward.12} parent=27 // pred_check
        %p180 = pneg %p44
      $region30: #{net_forward.12} parent=27 // pred_check_branch
        %182 = sbr.rel (%p180) target = $region32
      $region31: #{net_forward.12} parent=27 // pred_region
        %s183 = smul.u32 32, %s18
        %p184 = scmp.lt.s32.totalorder %s17, 1
        %s185 = scalar_select %p184, %s17, 1
        %p186 = scmp.lt.s32.totalorder %s183, 31
        %s187 = scalar_select %p186, %s183, 31
        %s188 = smul.addr %s185, 32
        %s189 = sadd.s32 %s187, %s188
        %s190 = smul.addr %s189, 4
        %s191 = scalar_lea.vmem %s0, %s190
        %s192 = smul.u32 32, %s18
      $region32: #{net_forward.12} parent=27 // pred_fallthru
        _
    $region28: #{net_forward.12} parent=5 // pred_fallthru
      _
    %p193 = scmp.le.s32.totalorder 1, %s10
    %p194 = scmp.lt.s32.totalorder %s10, 3
    %p195 = pnand %p193, %p194
    %p196 = pneg %p195
    // Predicated region
    $region33: #{net_forward.12} parent=5 // pred_check
      _
    $region34: #{net_forward.12} parent=5 // pred_check_branch
      %198 = sbr.rel (%p195) target = $region36
    $region35: #{net_forward.12} parent=5 // pred_region
      %s199 = ssub.s32 %s10, 1
      %s200 = smul.u32 32, %s20
      %p201 = scmp.lt.s32.totalorder %s19, 1
      %s202 = scalar_select %p201, %s19, 1
      %p203 = scmp.lt.s32.totalorder %s200, 31
      %s204 = scalar_select %p203, %s200, 31
      %s205 = smul.addr %s202, 32
      %s206 = sadd.s32 %s204, %s205
      %s207 = smul.addr %s206, 4
      %s208 = scalar_lea.vmem %s0, %s207
      %p209 = pneg %p50
      %p210 = pneg %p47
      %s211 = smul.u32 32, %s20
      %p212 = scmp.lt.s32.totalorder %s211, 31
      %s213 = scalar_select %p212, %s211, 31
      %s214 = smul.addr %s213, 4
      %s215 = scalar_lea.vmem %s1, %s214
      %p216 = pneg %p76
      %p217 = pneg %p73
      %p218 = pneg %p97
      %p219 = pneg %p94
      %p220 = pneg %p118
      %p221 = pneg %p115
      %p222 = pneg %p146
      %p223 = pneg %p143
      %s224 = smul.u32 32, %s20
      %p225 = scmp.lt.s32.totalorder %s19, 1
      %s226 = scalar_select %p225, %s19, 1
      %p227 = scmp.lt.s32.totalorder %s224, 31
      %s228 = scalar_select %p227, %s224, 31
      %s229 = smul.addr %s226, 32
      %s230 = sadd.s32 %s228, %s229
      %s231 = smul.addr %s230, 4
      %s232 = scalar_lea.vmem %s4, %s231
      %s233 = smul.u32 32, %s20
      %p234 = scmp.lt.s32.totalorder %s19, 1
      %s235 = scalar_select %p234, %s19, 1
      %p236 = scmp.lt.s32.totalorder %s233, 31
      %s237 = scalar_select %p236, %s233, 31
      %s238 = smul.addr %s235, 32
      %s239 = sadd.s32 %s237, %s238
      %s240 = smul.addr %s239, 4
      %s241 = scalar_lea.vmem %s0, %s240
      %s242 = smul.u32 32, %s20
      %s243 = smul.u32 32, %s20
      %p244 = scmp.lt.s32.totalorder %s243, 31
      %s245 = scalar_select %p244, %s243, 31
      %s246 = smul.addr %s245, 4
      %s247 = scalar_lea.vmem %s1, %s246
      %s248 = smul.u32 32, %s20
      %s249 = smul.u32 32, %s20
      %p250 = scmp.lt.s32.totalorder %s19, 1
      %s251 = scalar_select %p250, %s19, 1
      %p252 = scmp.lt.s32.totalorder %s249, 31
      %s253 = scalar_select %p252, %s249, 31
      %s254 = smul.addr %s251, 32
      %s255 = sadd.s32 %s253, %s254
      %s256 = smul.addr %s255, 4
      %s257 = scalar_lea.vmem %s4, %s256
      %s258 = smul.u32 32, %s20
      %v260 = vld [vmem:[%s241] sm:$0xf]
      %v261 = vld [vmem:[%s241 + $0x4] sm:$0xf]
      %v262 = vld [vmem:[%s241 + $0x8] sm:$0xf]
      %v263 = vld [vmem:[%s241 + $0xc] sm:$0xf]
      %v264 = vld [vmem:[%s241 + $0x10] sm:$0xf]
      %v265 = vld [vmem:[%s241 + $0x14] sm:$0xf]
      %v266 = vld [vmem:[%s241 + $0x18] sm:$0xf]
      %v267 = vld [vmem:[%s241 + $0x1c] sm:$0xf]
      %v268 = vld [vmem:[%s241 + $0x20] sm:$0xf]
      %v269 = vld [vmem:[%s241 + $0x24] sm:$0xf]
      %v270 = vld [vmem:[%s241 + $0x28] sm:$0xf]
      %v271 = vld [vmem:[%s241 + $0x2c] sm:$0xf]
      %v272 = vld [vmem:[%s241 + $0x30] sm:$0xf]
      %v273 = vld [vmem:[%s241 + $0x34] sm:$0xf]
      %v274 = vld [vmem:[%s241 + $0x38] sm:$0xf]
      %v275 = vld [vmem:[%s241 + $0x3c] sm:$0xf]
      %v276 = vld [vmem:[%s241 + $0x40] sm:$0xf]
      %v277 = vld [vmem:[%s241 + $0x44] sm:$0xf]
      %v278 = vld [vmem:[%s241 + $0x48] sm:$0xf]
      %v279 = vld [vmem:[%s241 + $0x4c] sm:$0xf]
      %v280 = vld [vmem:[%s241 + $0x50] sm:$0xf]
      %v281 = vld [vmem:[%s241 + $0x54] sm:$0xf]
      %v282 = vld [vmem:[%s241 + $0x58] sm:$0xf]
      %v283 = vld [vmem:[%s241 + $0x5c] sm:$0xf]
      %v284 = vld [vmem:[%s241 + $0x60] sm:$0xf]
      %v285 = vld [vmem:[%s241 + $0x64] sm:$0xf]
      %v286 = vld [vmem:[%s241 + $0x68] sm:$0xf]
      %v287 = vld [vmem:[%s241 + $0x6c] sm:$0xf]
      %v288 = vld [vmem:[%s241 + $0x70] sm:$0xf]
      %v289 = vld [vmem:[%s241 + $0x74] sm:$0xf]
      %v290 = vld [vmem:[%s241 + $0x78] sm:$0xf]
      %v291 = vld [vmem:[%s241 + $0x7c] sm:$0xf]
      %v292 = vunpack.c.l.bf16 %v260
      %v293 = vunpack.c.l.bf16 %v261
      %v294 = vunpack.c.l.bf16 %v262
      %v295 = vunpack.c.l.bf16 %v263
      %v296 = vunpack.c.l.bf16 %v264
      %v297 = vunpack.c.l.bf16 %v265
      %v298 = vunpack.c.l.bf16 %v266
      %v299 = vunpack.c.l.bf16 %v267
      %v300 = vunpack.c.l.bf16 %v268
      %v301 = vunpack.c.l.bf16 %v269
      %v302 = vunpack.c.l.bf16 %v270
      %v303 = vunpack.c.l.bf16 %v271
      %v304 = vunpack.c.l.bf16 %v272
      %v305 = vunpack.c.l.bf16 %v273
      %v306 = vunpack.c.l.bf16 %v274
      %v307 = vunpack.c.l.bf16 %v275
      %v308 = vunpack.c.l.bf16 %v276
      %v309 = vunpack.c.l.bf16 %v277
      %v310 = vunpack.c.l.bf16 %v278
      %v311 = vunpack.c.l.bf16 %v279
      %v312 = vunpack.c.l.bf16 %v280
      %v313 = vunpack.c.l.bf16 %v281
      %v314 = vunpack.c.l.bf16 %v282
      %v315 = vunpack.c.l.bf16 %v283
      %v316 = vunpack.c.l.bf16 %v284
      %v317 = vunpack.c.l.bf16 %v285
      %v318 = vunpack.c.l.bf16 %v286
      %v319 = vunpack.c.l.bf16 %v287
      %v320 = vunpack.c.l.bf16 %v288
      %v321 = vunpack.c.l.bf16 %v289
      %v322 = vunpack.c.l.bf16 %v290
      %v323 = vunpack.c.l.bf16 %v291
      %v324 = vld [vmem:[%s247] sm:$0xf]
      %v325 = vld [vmem:[%s247 + $0x4] sm:$0xf]
      %v326 = vld [vmem:[%s247 + $0x8] sm:$0xf]
      %v327 = vld [vmem:[%s247 + $0xc] sm:$0xf]
      %v328 = vld [vmem:[%s247 + $0x10] sm:$0xf]
      %v329 = vld [vmem:[%s247 + $0x14] sm:$0xf]
      %v330 = vld [vmem:[%s247 + $0x18] sm:$0xf]
      %v331 = vld [vmem:[%s247 + $0x1c] sm:$0xf]
      %v332 = vld [vmem:[%s247 + $0x20] sm:$0xf]
      %v333 = vld [vmem:[%s247 + $0x24] sm:$0xf]
      %v334 = vld [vmem:[%s247 + $0x28] sm:$0xf]
      %v335 = vld [vmem:[%s247 + $0x2c] sm:$0xf]
      %v336 = vld [vmem:[%s247 + $0x30] sm:$0xf]
      %v337 = vld [vmem:[%s247 + $0x34] sm:$0xf]
      %v338 = vld [vmem:[%s247 + $0x38] sm:$0xf]
      %v339 = vld [vmem:[%s247 + $0x3c] sm:$0xf]
      %v340 = vld [vmem:[%s247 + $0x40] sm:$0xf]
      %v341 = vld [vmem:[%s247 + $0x44] sm:$0xf]
      %v342 = vld [vmem:[%s247 + $0x48] sm:$0xf]
      %v343 = vld [vmem:[%s247 + $0x4c] sm:$0xf]
      %v344 = vld [vmem:[%s247 + $0x50] sm:$0xf]
      %v345 = vld [vmem:[%s247 + $0x54] sm:$0xf]
      %v346 = vld [vmem:[%s247 + $0x58] sm:$0xf]
      %v347 = vld [vmem:[%s247 + $0x5c] sm:$0xf]
      %v348 = vld [vmem:[%s247 + $0x60] sm:$0xf]
      %v349 = vld [vmem:[%s247 + $0x64] sm:$0xf]
      %v350 = vld [vmem:[%s247 + $0x68] sm:$0xf]
      %v351 = vld [vmem:[%s247 + $0x6c] sm:$0xf]
      %v352 = vld [vmem:[%s247 + $0x70] sm:$0xf]
      %v353 = vld [vmem:[%s247 + $0x74] sm:$0xf]
      %v354 = vld [vmem:[%s247 + $0x78] sm:$0xf]
      %v355 = vld [vmem:[%s247 + $0x7c] sm:$0xf]
      %v356 = vunpack.c.l.bf16 %v324
      %v357 = vunpack.c.l.bf16 %v325
      %v358 = vunpack.c.l.bf16 %v326
      %v359 = vunpack.c.l.bf16 %v327
      %v360 = vunpack.c.l.bf16 %v328
      %v361 = vunpack.c.l.bf16 %v329
      %v362 = vunpack.c.l.bf16 %v330
      %v363 = vunpack.c.l.bf16 %v331
      %v364 = vunpack.c.l.bf16 %v332
      %v365 = vunpack.c.l.bf16 %v333
      %v366 = vunpack.c.l.bf16 %v334
      %v367 = vunpack.c.l.bf16 %v335
      %v368 = vunpack.c.l.bf16 %v336
      %v369 = vunpack.c.l.bf16 %v337
      %v370 = vunpack.c.l.bf16 %v338
      %v371 = vunpack.c.l.bf16 %v339
      %v372 = vunpack.c.l.bf16 %v340
      %v373 = vunpack.c.l.bf16 %v341
      %v374 = vunpack.c.l.bf16 %v342
      %v375 = vunpack.c.l.bf16 %v343
      %v376 = vunpack.c.l.bf16 %v344
      %v377 = vunpack.c.l.bf16 %v345
      %v378 = vunpack.c.l.bf16 %v346
      %v379 = vunpack.c.l.bf16 %v347
      %v380 = vunpack.c.l.bf16 %v348
      %v381 = vunpack.c.l.bf16 %v349
      %v382 = vunpack.c.l.bf16 %v350
      %v383 = vunpack.c.l.bf16 %v351
      %v384 = vunpack.c.l.bf16 %v352
      %v385 = vunpack.c.l.bf16 %v353
      %v386 = vunpack.c.l.bf16 %v354
      %v387 = vunpack.c.l.bf16 %v355
      %v388 = vadd.f32 %v292, %v356
      %v389 = vadd.f32 %v293, %v357
      %v390 = vadd.f32 %v294, %v358
      %v391 = vadd.f32 %v295, %v359
      %v392 = vadd.f32 %v296, %v360
      %v393 = vadd.f32 %v297, %v361
      %v394 = vadd.f32 %v298, %v362
      %v395 = vadd.f32 %v299, %v363
      %v396 = vadd.f32 %v300, %v364
      %v397 = vadd.f32 %v301, %v365
      %v398 = vadd.f32 %v302, %v366
      %v399 = vadd.f32 %v303, %v367
      %v400 = vadd.f32 %v304, %v368
      %v401 = vadd.f32 %v305, %v369
      %v402 = vadd.f32 %v306, %v370
      %v403 = vadd.f32 %v307, %v371
      %v404 = vadd.f32 %v308, %v372
      %v405 = vadd.f32 %v309, %v373
      %v406 = vadd.f32 %v310, %v374
      %v407 = vadd.f32 %v311, %v375
      %v408 = vadd.f32 %v312, %v376
      %v409 = vadd.f32 %v313, %v377
      %v410 = vadd.f32 %v314, %v378
      %v411 = vadd.f32 %v315, %v379
      %v412 = vadd.f32 %v316, %v380
      %v413 = vadd.f32 %v317, %v381
      %v414 = vadd.f32 %v318, %v382
      %v415 = vadd.f32 %v319, %v383
      %v416 = vadd.f32 %v320, %v384
      %v417 = vadd.f32 %v321, %v385
      %v418 = vadd.f32 %v322, %v386
      %v419 = vadd.f32 %v323, %v387
      %v420 = vpack.c.bf16 %v389, %v388
      %v421 = vpack.c.bf16 %v391, %v390
      %v422 = vpack.c.bf16 %v393, %v392
      %v423 = vpack.c.bf16 %v395, %v394
      %v424 = vpack.c.bf16 %v397, %v396
      %v425 = vpack.c.bf16 %v399, %v398
      %v426 = vpack.c.bf16 %v401, %v400
      %v427 = vpack.c.bf16 %v403, %v402
      %v428 = vpack.c.bf16 %v405, %v404
      %v429 = vpack.c.bf16 %v407, %v406
      %v430 = vpack.c.bf16 %v409, %v408
      %v431 = vpack.c.bf16 %v411, %v410
      %v432 = vpack.c.bf16 %v413, %v412
      %v433 = vpack.c.bf16 %v415, %v414
      %v434 = vpack.c.bf16 %v417, %v416
      %v435 = vpack.c.bf16 %v419, %v418
      %v436 = vld [vmem:[%s2] sm:$0xf]
      %v437 = vld [vmem:[%s2 + $0x4] sm:$0xf]
      %v438 = vld [vmem:[%s2 + $0x8] sm:$0xf]
      %v439 = vld [vmem:[%s2 + $0xc] sm:$0xf]
      %v440 = vld [vmem:[%s2 + $0x10] sm:$0xf]
      %v441 = vld [vmem:[%s2 + $0x14] sm:$0xf]
      %v442 = vld [vmem:[%s3] sm:$0x1]
      %v444 = vperm.slane %v442, 0
      %v452 = vunpack.c.l.b16 %v436
      %v453 = vunpack.c.l.b16 %v437
      %v454 = vunpack.c.l.b16 %v438
      %v455 = vunpack.c.l.b16 %v439
      %v456 = vunpack.c.l.b16 %v440
      %v457 = vunpack.c.l.b16 %v441
      %v458 = vpack.c.b16 %v453, %v452
      %v459 = vpack.c.b16 %v455, %v454
      %v460 = vpack.c.b16 %v457, %v456
      %vm464 = vcmask 392192
      %v466 = vsel %vm464, %v420, 0
      %v469 = vsel %vm464, %v421, 0
      %v472 = vsel %vm464, %v422, 0
      %v475 = vsel %vm464, %v423, 0
      %v478 = vsel %vm464, %v424, 0
      %v481 = vsel %vm464, %v425, 0
      %v484 = vsel %vm464, %v426, 0
      %v487 = vsel %vm464, %v427, 0
      %v490 = vsel %vm464, %v428, 0
      %v493 = vsel %vm464, %v429, 0
      %v496 = vsel %vm464, %v430, 0
      %v499 = vsel %vm464, %v431, 0
      %v502 = vsel %vm464, %v432, 0
      %v505 = vsel %vm464, %v433, 0
      %v508 = vsel %vm464, %v434, 0
      %v511 = vsel %vm464, %v435, 0
      %513 = vmatpush.bf16.msra.mxu0 0
      %514 = vmatpush.bf16.msra.mxu0 0
      %515 = vmatpush.bf16.msra.mxu0 0
      %516 = vmatpush.bf16.msra.mxu0 0
      %517 = vmatpush.bf16.msra.mxu0 0
      %518 = vmatpush.bf16.msra.mxu0 %v460
      %519 = vmatpush.bf16.msra.mxu0 %v459
      %520 = vmatpush.bf16.msra.mxu0 %v458
      %521 = vmatmul.bf16.gmra.mxu0 %v466
      %v522 = vpop.f32.mrf.mxu0
      %v523 = vadd.f32 %v444, %v522
      %v524 = vpop.f32.mrf.mxu0
      %v525 = vadd.f32 %v444, %v524
      %526 = vmatmul.bf16.gmra.mxu0 %v469
      %v527 = vpop.f32.mrf.mxu0
      %v528 = vadd.f32 %v444, %v527
      %v529 = vpop.f32.mrf.mxu0
      %v530 = vadd.f32 %v444, %v529
      %531 = vmatmul.bf16.gmra.mxu0 %v472
      %v532 = vpop.f32.mrf.mxu0
      %v533 = vadd.f32 %v444, %v532
      %v534 = vpop.f32.mrf.mxu0
      %v535 = vadd.f32 %v444, %v534
      %536 = vmatmul.bf16.gmra.mxu0 %v475
      %v537 = vpop.f32.mrf.mxu0
      %v538 = vadd.f32 %v444, %v537
      %v539 = vpop.f32.mrf.mxu0
      %v540 = vadd.f32 %v444, %v539
      %541 = vmatmul.bf16.gmra.mxu0 %v478
      %v542 = vpop.f32.mrf.mxu0
      %v543 = vadd.f32 %v444, %v542
      %v544 = vpop.f32.mrf.mxu0
      %v545 = vadd.f32 %v444, %v544
      %546 = vmatmul.bf16.gmra.mxu0 %v481
      %v547 = vpop.f32.mrf.mxu0
      %v548 = vadd.f32 %v444, %v547
      %v549 = vpop.f32.mrf.mxu0
      %v550 = vadd.f32 %v444, %v549
      %551 = vmatmul.bf16.gmra.mxu0 %v484
      %v552 = vpop.f32.mrf.mxu0
      %v553 = vadd.f32 %v444, %v552
      %v554 = vpop.f32.mrf.mxu0
      %v555 = vadd.f32 %v444, %v554
      %556 = vmatmul.bf16.gmra.mxu0 %v487
      %v557 = vpop.f32.mrf.mxu0
      %v558 = vadd.f32 %v444, %v557
      %v559 = vpop.f32.mrf.mxu0
      %v560 = vadd.f32 %v444, %v559
      %561 = vmatmul.bf16.gmra.mxu0 %v490
      %v562 = vpop.f32.mrf.mxu0
      %v563 = vadd.f32 %v444, %v562
      %v564 = vpop.f32.mrf.mxu0
      %v565 = vadd.f32 %v444, %v564
      %566 = vmatmul.bf16.gmra.mxu0 %v493
      %v567 = vpop.f32.mrf.mxu0
      %v568 = vadd.f32 %v444, %v567
      %v569 = vpop.f32.mrf.mxu0
      %v570 = vadd.f32 %v444, %v569
      %571 = vmatmul.bf16.gmra.mxu0 %v496
      %v572 = vpop.f32.mrf.mxu0
      %v573 = vadd.f32 %v444, %v572
      %v574 = vpop.f32.mrf.mxu0
      %v575 = vadd.f32 %v444, %v574
      %576 = vmatmul.bf16.gmra.mxu0 %v499
      %v577 = vpop.f32.mrf.mxu0
      %v578 = vadd.f32 %v444, %v577
      %v579 = vpop.f32.mrf.mxu0
      %v580 = vadd.f32 %v444, %v579
      %581 = vmatmul.bf16.gmra.mxu0 %v502
      %v582 = vpop.f32.mrf.mxu0
      %v583 = vadd.f32 %v444, %v582
      %v584 = vpop.f32.mrf.mxu0
      %v585 = vadd.f32 %v444, %v584
      %586 = vmatmul.bf16.gmra.mxu0 %v505
      %v587 = vpop.f32.mrf.mxu0
      %v588 = vadd.f32 %v444, %v587
      %v589 = vpop.f32.mrf.mxu0
      %v590 = vadd.f32 %v444, %v589
      %591 = vmatmul.bf16.gmra.mxu0 %v508
      %v592 = vpop.f32.mrf.mxu0
      %v593 = vadd.f32 %v444, %v592
      %v594 = vpop.f32.mrf.mxu0
      %v595 = vadd.f32 %v444, %v594
      %596 = vmatmul.bf16.gmra.mxu0 %v511
      %v597 = vpop.f32.mrf.mxu0
      %v598 = vadd.f32 %v444, %v597
      %v599 = vpop.f32.mrf.mxu0
      %v600 = vadd.f32 %v444, %v599
      %601 = vdwg.mxu0
      %v602 = vpack.c.bf16 %v523, %v523
      %v603 = vpack.c.bf16 %v525, %v525
      %v604 = vpack.c.bf16 %v528, %v528
      %v605 = vpack.c.bf16 %v530, %v530
      %v606 = vpack.c.bf16 %v533, %v533
      %v607 = vpack.c.bf16 %v535, %v535
      %v608 = vpack.c.bf16 %v538, %v538
      %v609 = vpack.c.bf16 %v540, %v540
      %v610 = vpack.c.bf16 %v543, %v543
      %v611 = vpack.c.bf16 %v545, %v545
      %v612 = vpack.c.bf16 %v548, %v548
      %v613 = vpack.c.bf16 %v550, %v550
      %v614 = vpack.c.bf16 %v553, %v553
      %v615 = vpack.c.bf16 %v555, %v555
      %v616 = vpack.c.bf16 %v558, %v558
      %v617 = vpack.c.bf16 %v560, %v560
      %v618 = vpack.c.bf16 %v563, %v563
      %v619 = vpack.c.bf16 %v565, %v565
      %v620 = vpack.c.bf16 %v568, %v568
      %v621 = vpack.c.bf16 %v570, %v570
      %v622 = vpack.c.bf16 %v573, %v573
      %v623 = vpack.c.bf16 %v575, %v575
      %v624 = vpack.c.bf16 %v578, %v578
      %v625 = vpack.c.bf16 %v580, %v580
      %v626 = vpack.c.bf16 %v583, %v583
      %v627 = vpack.c.bf16 %v585, %v585
      %v628 = vpack.c.bf16 %v588, %v588
      %v629 = vpack.c.bf16 %v590, %v590
      %v630 = vpack.c.bf16 %v593, %v593
      %v631 = vpack.c.bf16 %v595, %v595
      %v632 = vpack.c.bf16 %v598, %v598
      %v633 = vpack.c.bf16 %v600, %v600
      %vm634 = vcmask 257024
      %635 = vst.msk [vmem:[%s257] sm:$0xf] %vm634, %v602
      %636 = vst.msk [vmem:[%s257 + $0x4] sm:$0xf] %vm634, %v603
      %637 = vst.msk [vmem:[%s257 + $0x8] sm:$0xf] %vm634, %v604
      %638 = vst.msk [vmem:[%s257 + $0xc] sm:$0xf] %vm634, %v605
      %639 = vst.msk [vmem:[%s257 + $0x10] sm:$0xf] %vm634, %v606
      %640 = vst.msk [vmem:[%s257 + $0x14] sm:$0xf] %vm634, %v607
      %641 = vst.msk [vmem:[%s257 + $0x18] sm:$0xf] %vm634, %v608
      %642 = vst.msk [vmem:[%s257 + $0x1c] sm:$0xf] %vm634, %v609
      %643 = vst.msk [vmem:[%s257 + $0x20] sm:$0xf] %vm634, %v610
      %644 = vst.msk [vmem:[%s257 + $0x24] sm:$0xf] %vm634, %v611
      %645 = vst.msk [vmem:[%s257 + $0x28] sm:$0xf] %vm634, %v612
      %646 = vst.msk [vmem:[%s257 + $0x2c] sm:$0xf] %vm634, %v613
      %647 = vst.msk [vmem:[%s257 + $0x30] sm:$0xf] %vm634, %v614
      %648 = vst.msk [vmem:[%s257 + $0x34] sm:$0xf] %vm634, %v615
      %649 = vst.msk [vmem:[%s257 + $0x38] sm:$0xf] %vm634, %v616
      %650 = vst.msk [vmem:[%s257 + $0x3c] sm:$0xf] %vm634, %v617
      %651 = vst.msk [vmem:[%s257 + $0x40] sm:$0xf] %vm634, %v618
      %652 = vst.msk [vmem:[%s257 + $0x44] sm:$0xf] %vm634, %v619
      %653 = vst.msk [vmem:[%s257 + $0x48] sm:$0xf] %vm634, %v620
      %654 = vst.msk [vmem:[%s257 + $0x4c] sm:$0xf] %vm634, %v621
      %655 = vst.msk [vmem:[%s257 + $0x50] sm:$0xf] %vm634, %v622
      %656 = vst.msk [vmem:[%s257 + $0x54] sm:$0xf] %vm634, %v623
      %657 = vst.msk [vmem:[%s257 + $0x58] sm:$0xf] %vm634, %v624
      %658 = vst.msk [vmem:[%s257 + $0x5c] sm:$0xf] %vm634, %v625
      %659 = vst.msk [vmem:[%s257 + $0x60] sm:$0xf] %vm634, %v626
      %660 = vst.msk [vmem:[%s257 + $0x64] sm:$0xf] %vm634, %v627
      %661 = vst.msk [vmem:[%s257 + $0x68] sm:$0xf] %vm634, %v628
      %662 = vst.msk [vmem:[%s257 + $0x6c] sm:$0xf] %vm634, %v629
      %663 = vst.msk [vmem:[%s257 + $0x70] sm:$0xf] %vm634, %v630
      %664 = vst.msk [vmem:[%s257 + $0x74] sm:$0xf] %vm634, %v631
      %665 = vst.msk [vmem:[%s257 + $0x78] sm:$0xf] %vm634, %v632
      %666 = vst.msk [vmem:[%s257 + $0x7c] sm:$0xf] %vm634, %v633
      %s667 = smul.u32 32, %s20
      %p668 = scmp.lt.s32.totalorder %s19, 1
      %s669 = scalar_select %p668, %s19, 1
      %p670 = scmp.lt.s32.totalorder %s667, 31
      %s671 = scalar_select %p670, %s667, 31
      %s672 = smul.addr %s669, 32
      %s673 = sadd.s32 %s671, %s672
      %s674 = smul.addr %s673, 4
      %s675 = scalar_lea.vmem %s4, %s674
      // Predicated region
      $region37: #{net_forward.12} parent=35 // pred_check
        %p676 = pneg %p143
      $region38: #{net_forward.12} parent=35 // pred_check_branch
        %678 = sbr.rel (%p676) target = $region40
      $region39: #{net_forward.12} parent=35 // pred_region
        %s679 = smul.u32 32, %s20
      $region40: #{net_forward.12} parent=35 // pred_fallthru
        _
    $region36: #{net_forward.12} parent=5 // pred_fallthru
      _
    %p680 = scmp.le.s32.totalorder 2, %s10
    // Predicated region
    $region41: #{net_forward.12} parent=5 // pred_check
      %p681 = pneg %p680
    $region42: #{net_forward.12} parent=5 // pred_check_branch
      %683 = sbr.rel (%p681) target = $region44
    $region43: #{net_forward.12} parent=5 // pred_region
      %s684 = ssub.s32 %s10, 2
      // Predicated region
      $region45: #{net_forward.12} parent=43 // pred_check
        %p685 = pneg %p149
      $region46: #{net_forward.12} parent=43 // pred_check_branch
        %687 = sbr.rel (%p685) target = $region48
      $region47: #{net_forward.12} parent=43 // pred_region
        %s688 = smul.u32 32, %s22
        %p689 = scmp.lt.s32.totalorder %s21, 1
        %s690 = scalar_select %p689, %s21, 1
        %p691 = scmp.lt.s32.totalorder %s688, 31
        %s692 = scalar_select %p691, %s688, 31
        %s693 = smul.addr %s690, 32
        %s694 = sadd.s32 %s692, %s693
        %s695 = smul.addr %s694, 4
        %s696 = scalar_lea.vmem %s4, %s695
      $region48: #{net_forward.12} parent=43 // pred_fallthru
        _
    $region44: #{net_forward.12} parent=5 // pred_fallthru
      _
  $region6: #{net_forward.12} parent=0 // loop_footer
    %s14 = sadd.s32 1, %s10
  $region7: #{net_forward.12} parent=0 // loop_footer_branch
    %9 = sbr.rel target = $region3
  $region8: #{net_forward.12} parent=0 // loop_exit
    _

// kernel: net_forward.14
$region0: #{net_forward.14}
  #allocation0 [shape = 'u32[]', space=smem, size = 0x4, offset = 0x4, fixed_abs, tag = 'smem constant byte address 0x4 - core index']
  #allocation1 [shape = 'u32[72,128]{1,0:T(1,128)}', space=vmem, size = 0x9000, scoped, tag = 'internal scratch']
  %s0 = inlined_call_operand.vmem [shape: bf16[2,16,256], index: 0, kind: input, shape index: {}]
  %s1 = inlined_call_operand.vmem [shape: bf16[256,160], index: 1, kind: input, shape index: {}]
  %s2 = inlined_call_operand.vmem [shape: f32[1,160], index: 2, kind: input, shape index: {}]
  %s3 = inlined_call_operand.vmem [shape: bf16[2,16,160], index: 3, kind: output, shape index: {}]
  %s4 = sld [smem:[#allocation0]]
  $region45: #{net_forward.14} parent=0
    _
  %s6 = ssub.s32 1, %s4
  %s7 = scalar_select 0, %s6, %s4
  loop: start=0, step=1, limit=4
  $region2: #{net_forward.14} parent=0 // loop_pre_header
    _
  $region3: #{net_forward.14} parent=0 // loop_header
    %s9 = sphi 0, %s13
    %p10 = scmp.ge.s32.totalorder %s9, 4
    %s16 = sphi 0, %s28
    %s17 = sphi 0, %s24
    %s18 = sphi 0, %s16
    %s19 = sphi 0, %s17
    %s20 = sphi 0, %s18
    %s21 = sphi 0, %s19
    %s33 = sphi 0, %s35
    %s36 = sphi 0, %s33
    %s37 = sphi 0, %s36
    %s53 = sphi 0, %s37
    %s57 = sphi 0, %s57
    %s59 = sphi 0, %s57
    %s60 = sphi 0, %s59
    %s74 = sphi 0, %s60
    %s78 = sphi 0, %s78
    %s80 = sphi 0, %s78
    %s81 = sphi 0, %s80
    %s95 = sphi 0, %s81
    %s103 = sphi 0, %s105
    %s106 = sphi 0, %s103
    %s107 = sphi 0, %s106
    %s123 = sphi 0, %s107
  $region4: #{net_forward.14} parent=0 // loop_header_branch
    %12 = sbr.rel (%p10) target = $region8
  $region5: #{net_forward.14} parent=0 // loop_body
    %s14 = ssub.s32 %s9, 1
    %s15 = ssub.s32 %s9, 2
    %s22 = sadd.s32 1, %s17
    %p23 = scmp.ge.s32.totalorder %s22, 1
    %s24 = scalar_select %p23, 0, %s22
    %s25 = sadd.s32 1, %s16
    %s26 = scalar_select %p23, %s25, %s16
    %p27 = scmp.ge.s32.totalorder %s26, 2
    %s28 = scalar_select %p27, 0, %s26
    %s29 = ssub.s32 %s16, %s28
    %s30 = ssub.s32 %s17, %s24
    %s31 = sor.u32 %s29, %s30
    %p32 = scmp.eq.s32.totalorder %s31, 0
    %s34 = sadd.s32 %s33, 1
    %s35 = scalar_select %p32, %s33, %s34
    %p38 = pneg %p32
    %p39 = scmp.eq.s32.totalorder %s9, 1
    %p40 = por %p38, %p39
    %p41 = scmp.ne.s32.totalorder %s33, %s36
    %p42 = scmp.eq.s32.totalorder %s9, 0
    %p43 = por %p41, %p42
    %p44 = scmp.ne.s32.totalorder %s33, %s36
    %p45 = scmp.eq.s32.totalorder %s14, 1
    %p46 = por %p44, %p45
    %p47 = scmp.ne.s32.totalorder %s36, %s37
    %p48 = scmp.eq.s32.totalorder %s14, 0
    %p49 = por %p47, %p48
    %p50 = scmp.ne.s32.totalorder %s36, %s37
    %p51 = scmp.eq.s32.totalorder %s15, 1
    %p52 = por %p50, %p51
    %p54 = scmp.ne.s32.totalorder %s37, %s53
    %p55 = scmp.eq.s32.totalorder %s15, 0
    %p56 = por %p54, %p55
    %s58 = sadd.s32 %s57, 1
    %p61 = scmp.eq.s32.totalorder %s9, 1
    %p62 = scmp.ne.s32.totalorder %s57, %s59
    %p63 = scmp.eq.s32.totalorder %s9, 0
    %p64 = por %p62, %p63
    %p65 = scmp.ne.s32.totalorder %s57, %s59
    %p66 = scmp.eq.s32.totalorder %s14, 1
    %p67 = por %p65, %p66
    %p68 = scmp.ne.s32.totalorder %s59, %s60
    %p69 = scmp.eq.s32.totalorder %s14, 0
    %p70 = por %p68, %p69
    %p71 = scmp.ne.s32.totalorder %s59, %s60
    %p72 = scmp.eq.s32.totalorder %s15, 1
    %p73 = por %p71, %p72
    %p75 = scmp.ne.s32.totalorder %s60, %s74
    %p76 = scmp.eq.s32.totalorder %s15, 0
    %p77 = por %p75, %p76
    %s79 = sadd.s32 %s78, 1
    %p82 = scmp.eq.s32.totalorder %s9, 1
    %p83 = scmp.ne.s32.totalorder %s78, %s80
    %p84 = scmp.eq.s32.totalorder %s9, 0
    %p85 = por %p83, %p84
    %p86 = scmp.ne.s32.totalorder %s78, %s80
    %p87 = scmp.eq.s32.totalorder %s14, 1
    %p88 = por %p86, %p87
    %p89 = scmp.ne.s32.totalorder %s80, %s81
    %p90 = scmp.eq.s32.totalorder %s14, 0
    %p91 = por %p89, %p90
    %p92 = scmp.ne.s32.totalorder %s80, %s81
    %p93 = scmp.eq.s32.totalorder %s15, 1
    %p94 = por %p92, %p93
    %p96 = scmp.ne.s32.totalorder %s81, %s95
    %p97 = scmp.eq.s32.totalorder %s15, 0
    %p98 = por %p96, %p97
    %s99 = ssub.s32 %s16, %s28
    %s100 = ssub.s32 %s17, %s24
    %s101 = sor.u32 %s99, %s100
    %p102 = scmp.eq.s32.totalorder %s101, 0
    %s104 = sadd.s32 %s103, 1
    %s105 = scalar_select %p102, %s103, %s104
    %p108 = pneg %p102
    %p109 = scmp.eq.s32.totalorder %s9, 1
    %p110 = por %p108, %p109
    %p111 = scmp.ne.s32.totalorder %s103, %s106
    %p112 = scmp.eq.s32.totalorder %s9, 0
    %p113 = por %p111, %p112
    %p114 = scmp.ne.s32.totalorder %s103, %s106
    %p115 = scmp.eq.s32.totalorder %s14, 1
    %p116 = por %p114, %p115
    %p117 = scmp.ne.s32.totalorder %s106, %s107
    %p118 = scmp.eq.s32.totalorder %s14, 0
    %p119 = por %p117, %p118
    %p120 = scmp.ne.s32.totalorder %s106, %s107
    %p121 = scmp.eq.s32.totalorder %s15, 1
    %p122 = por %p120, %p121
    %p124 = scmp.ne.s32.totalorder %s107, %s123
    %p125 = scmp.eq.s32.totalorder %s15, 0
    %p126 = por %p124, %p125
    %p127 = scmp.le.s32.totalorder 1, %s9
    %p128 = scmp.lt.s32.totalorder %s9, 3
    %p129 = pnand %p127, %p128
    %p130 = pneg %p129
    // Predicated region
    $region9: #{net_forward.14} parent=5 // pred_check
      _
    $region10: #{net_forward.14} parent=5 // pred_check_branch
      %132 = sbr.rel (%p129) target = $region12
    $region11: #{net_forward.14} parent=5 // pred_region
      %s133 = ssub.s32 %s9, 1
      // Predicated region
      $region13: #{net_forward.14} parent=11 // pred_check
        %p134 = pneg %p70
      $region14: #{net_forward.14} parent=11 // pred_check_branch
        %136 = sbr.rel (%p134) target = $region16
      $region15: #{net_forward.14} parent=11 // pred_region
        _
      $region16: #{net_forward.14} parent=11 // pred_fallthru
        _
      // Predicated region
      $region17: #{net_forward.14} parent=11 // pred_check
        %p137 = pneg %p91
      $region18: #{net_forward.14} parent=11 // pred_check_branch
        %139 = sbr.rel (%p137) target = $region20
      $region19: #{net_forward.14} parent=11 // pred_region
        _
      $region20: #{net_forward.14} parent=11 // pred_fallthru
        _
    $region12: #{net_forward.14} parent=5 // pred_fallthru
      _
    %p140 = scmp.lt.s32.totalorder %s9, 2
    // Predicated region
    $region21: #{net_forward.14} parent=5 // pred_check
      %p141 = pneg %p140
    $region22: #{net_forward.14} parent=5 // pred_check_branch
      %143 = sbr.rel (%p141) target = $region24
    $region23: #{net_forward.14} parent=5 // pred_region
      // Predicated region
      $region25: #{net_forward.14} parent=23 // pred_check
        %p144 = pneg %p43
      $region26: #{net_forward.14} parent=23 // pred_check_branch
        %146 = sbr.rel (%p144) target = $region28
      $region27: #{net_forward.14} parent=23 // pred_region
        %s147 = smul.u32 2, %s17
        %p148 = scmp.lt.s32.totalorder %s16, 1
        %s149 = scalar_select %p148, %s16, 1
        %p150 = scmp.lt.s32.totalorder %s147, 1
        %s151 = scalar_select %p150, %s147, 1
        %s152 = smul.addr %s151, 2
        %s153 = smul.addr %s149, 4
        %s154 = sadd.s32 %s152, %s153
        %s155 = smul.addr %s154, 4
        %s156 = scalar_lea.vmem %s0, %s155
        %s157 = smul.u32 2, %s17
      $region28: #{net_forward.14} parent=23 // pred_fallthru
        _
    $region24: #{net_forward.14} parent=5 // pred_fallthru
      _
    %p158 = scmp.le.s32.totalorder 1, %s9
    %p159 = scmp.lt.s32.totalorder %s9, 3
    %p160 = pnand %p158, %p159
    %p161 = pneg %p160
    // Predicated region
    $region29: #{net_forward.14} parent=5 // pred_check
      _
    $region30: #{net_forward.14} parent=5 // pred_check_branch
      %163 = sbr.rel (%p160) target = $region32
    $region31: #{net_forward.14} parent=5 // pred_region
      %s164 = ssub.s32 %s9, 1
      %s165 = smul.u32 2, %s19
      %p166 = scmp.lt.s32.totalorder %s18, 1
      %s167 = scalar_select %p166, %s18, 1
      %p168 = scmp.lt.s32.totalorder %s165, 1
      %s169 = scalar_select %p168, %s165, 1
      %s170 = smul.addr %s169, 2
      %s171 = smul.addr %s167, 4
      %s172 = sadd.s32 %s170, %s171
      %s173 = smul.addr %s172, 4
      %s174 = scalar_lea.vmem %s0, %s173
      %p175 = pneg %p49
      %p176 = pneg %p46
      %p177 = pneg %p70
      %p178 = pneg %p67
      %p179 = pneg %p91
      %p180 = pneg %p88
      %p181 = pneg %p119
      %p182 = pneg %p116
      %s183 = smul.u32 2, %s19
      %p184 = scmp.lt.s32.totalorder %s18, 1
      %s185 = scalar_select %p184, %s18, 1
      %p186 = scmp.lt.s32.totalorder %s183, 1
      %s187 = scalar_select %p186, %s183, 1
      %s188 = smul.addr %s187, 2
      %s189 = smul.addr %s185, 4
      %s190 = sadd.s32 %s188, %s189
      %s191 = smul.addr %s190, 4
      %s192 = scalar_lea.vmem %s3, %s191
      %s193 = smul.u32 2, %s19
      %p194 = scmp.lt.s32.totalorder %s18, 1
      %s195 = scalar_select %p194, %s18, 1
      %p196 = scmp.lt.s32.totalorder %s193, 1
      %s197 = scalar_select %p196, %s193, 1
      %s198 = smul.addr %s197, 2
      %s199 = smul.addr %s195, 4
      %s200 = sadd.s32 %s198, %s199
      %s201 = smul.addr %s200, 4
      %s202 = scalar_lea.vmem %s0, %s201
      %s203 = smul.u32 2, %s19
      %s204 = smul.u32 2, %s19
      %p205 = scmp.lt.s32.totalorder %s18, 1
      %s206 = scalar_select %p205, %s18, 1
      %p207 = scmp.lt.s32.totalorder %s204, 1
      %s208 = scalar_select %p207, %s204, 1
      %s209 = smul.addr %s208, 2
      %s210 = smul.addr %s206, 4
      %s211 = sadd.s32 %s209, %s210
      %s212 = smul.addr %s211, 4
      %s213 = scalar_lea.vmem %s3, %s212
      %s214 = smul.u32 2, %s19
      %v215 = vld [vmem:[%s202] sm:$0xff]
      %v216 = vld [vmem:[%s202 + $0x8] sm:$0xff]
      %v217 = vld [vmem:[%s1] sm:$0xff]
      %v218 = vld [vmem:[%s1 + $0x8] sm:$0xff]
      %v219 = vld [vmem:[%s1 + $0x10] sm:$0xff]
      %v220 = vld [vmem:[%s1 + $0x18] sm:$0xff]
      %v221 = vld [vmem:[%s1 + $0x20] sm:$0xff]
      %v222 = vld [vmem:[%s1 + $0x28] sm:$0xff]
      %v223 = vld [vmem:[%s1 + $0x30] sm:$0xff]
      %v224 = vld [vmem:[%s1 + $0x38] sm:$0xff]
      %v225 = vld [vmem:[%s1 + $0x40] sm:$0xff]
      %v226 = vld [vmem:[%s1 + $0x48] sm:$0xff]
      %v227 = vld [vmem:[%s1 + $0x50] sm:$0xff]
      %v228 = vld [vmem:[%s1 + $0x58] sm:$0xff]
      %v229 = vld [vmem:[%s1 + $0x60] sm:$0xff]
      %v230 = vld [vmem:[%s1 + $0x68] sm:$0xff]
      %v231 = vld [vmem:[%s1 + $0x70] sm:$0xff]
      %v232 = vld [vmem:[%s1 + $0x78] sm:$0xff]
      %v233 = vld [vmem:[%s1 + $0x80] sm:$0xff]
      %v234 = vld [vmem:[%s1 + $0x88] sm:$0xff]
      %v235 = vld [vmem:[%s1 + $0x90] sm:$0xff]
      %v236 = vld [vmem:[%s1 + $0x98] sm:$0xff]
      %v237 = vld [vmem:[%s1 + $0xa0] sm:$0xff]
      %v238 = vld [vmem:[%s1 + $0xa8] sm:$0xff]
      %v239 = vld [vmem:[%s1 + $0xb0] sm:$0xff]
      %v240 = vld [vmem:[%s1 + $0xb8] sm:$0xff]
      %v241 = vld [vmem:[%s1 + $0xc0] sm:$0xff]
      %v242 = vld [vmem:[%s1 + $0xc8] sm:$0xff]
      %v243 = vld [vmem:[%s1 + $0xd0] sm:$0xff]
      %v244 = vld [vmem:[%s1 + $0xd8] sm:$0xff]
      %v245 = vld [vmem:[%s1 + $0xe0] sm:$0xff]
      %v246 = vld [vmem:[%s1 + $0xe8] sm:$0xff]
      %v247 = vld [vmem:[%s1 + $0xf0] sm:$0xff]
      %v248 = vld [vmem:[%s1 + $0xf8] sm:$0xff]
      %v249 = vld [vmem:[%s2] sm:$0x3]
      %v251 = vperm.slane %v249, 0
      %v252 = vperm.slane %v249, 1
      %v257 = vunpack.c.l.b16 %v215
      %v258 = vunpack.c.h.b16 %v215
      %v259 = vunpack.c.l.b16 %v216
      %v260 = vunpack.c.h.b16 %v216
      %v261 = vpack.c.b16 %v259, %v257
      %v262 = vpack.c.b16 %v260, %v258
      %v297 = vunpack.c.l.b16 %v217
      %v298 = vunpack.c.h.b16 %v217
      %v299 = vunpack.c.l.b16 %v218
      %v300 = vunpack.c.h.b16 %v218
      %v301 = vunpack.c.l.b16 %v219
      %v302 = vunpack.c.h.b16 %v219
      %v303 = vunpack.c.l.b16 %v220
      %v304 = vunpack.c.h.b16 %v220
      %v305 = vunpack.c.l.b16 %v221
      %v306 = vunpack.c.h.b16 %v221
      %v307 = vunpack.c.l.b16 %v222
      %v308 = vunpack.c.h.b16 %v222
      %v309 = vunpack.c.l.b16 %v223
      %v310 = vunpack.c.h.b16 %v223
      %v311 = vunpack.c.l.b16 %v224
      %v312 = vunpack.c.h.b16 %v224
      %v313 = vunpack.c.l.b16 %v225
      %v314 = vunpack.c.h.b16 %v225
      %v315 = vunpack.c.l.b16 %v226
      %v316 = vunpack.c.h.b16 %v226
      %v317 = vunpack.c.l.b16 %v227
      %v318 = vunpack.c.h.b16 %v227
      %v319 = vunpack.c.l.b16 %v228
      %v320 = vunpack.c.h.b16 %v228
      %v321 = vunpack.c.l.b16 %v229
      %v322 = vunpack.c.h.b16 %v229
      %v323 = vunpack.c.l.b16 %v230
      %v324 = vunpack.c.h.b16 %v230
      %v325 = vunpack.c.l.b16 %v231
      %v326 = vunpack.c.h.b16 %v231
      %v327 = vunpack.c.l.b16 %v232
      %v328 = vunpack.c.h.b16 %v232
      %v329 = vunpack.c.l.b16 %v233
      %v330 = vunpack.c.h.b16 %v233
      %v331 = vunpack.c.l.b16 %v234
      %v332 = vunpack.c.h.b16 %v234
      %v333 = vunpack.c.l.b16 %v235
      %v334 = vunpack.c.h.b16 %v235
      %v335 = vunpack.c.l.b16 %v236
      %v336 = vunpack.c.h.b16 %v236
      %v337 = vunpack.c.l.b16 %v237
      %v338 = vunpack.c.h.b16 %v237
      %v339 = vunpack.c.l.b16 %v238
      %v340 = vunpack.c.h.b16 %v238
      %v341 = vunpack.c.l.b16 %v239
      %v342 = vunpack.c.h.b16 %v239
      %v343 = vunpack.c.l.b16 %v240
      %v344 = vunpack.c.h.b16 %v240
      %v345 = vunpack.c.l.b16 %v241
      %v346 = vunpack.c.h.b16 %v241
      %v347 = vunpack.c.l.b16 %v242
      %v348 = vunpack.c.h.b16 %v242
      %v349 = vunpack.c.l.b16 %v243
      %v350 = vunpack.c.h.b16 %v243
      %v351 = vunpack.c.l.b16 %v244
      %v352 = vunpack.c.h.b16 %v244
      %v353 = vunpack.c.l.b16 %v245
      %v354 = vunpack.c.h.b16 %v245
      %v355 = vunpack.c.l.b16 %v246
      %v356 = vunpack.c.h.b16 %v246
      %v357 = vunpack.c.l.b16 %v247
      %v358 = vunpack.c.h.b16 %v247
      %v359 = vunpack.c.l.b16 %v248
      %v360 = vunpack.c.h.b16 %v248
      %v361 = vpack.c.b16 %v299, %v297
      %v362 = vpack.c.b16 %v300, %v298
      %v363 = vpack.c.b16 %v303, %v301
      %v364 = vpack.c.b16 %v304, %v302
      %v365 = vpack.c.b16 %v307, %v305
      %v366 = vpack.c.b16 %v308, %v306
      %v367 = vpack.c.b16 %v311, %v309
      %v368 = vpack.c.b16 %v312, %v310
      %v369 = vpack.c.b16 %v315, %v313
      %v370 = vpack.c.b16 %v316, %v314
      %v371 = vpack.c.b16 %v319, %v317
      %v372 = vpack.c.b16 %v320, %v318
      %v373 = vpack.c.b16 %v323, %v321
      %v374 = vpack.c.b16 %v324, %v322
      %v375 = vpack.c.b16 %v327, %v325
      %v376 = vpack.c.b16 %v328, %v326
      %v377 = vpack.c.b16 %v331, %v329
      %v378 = vpack.c.b16 %v332, %v330
      %v379 = vpack.c.b16 %v335, %v333
      %v380 = vpack.c.b16 %v336, %v334
      %v381 = vpack.c.b16 %v339, %v337
      %v382 = vpack.c.b16 %v340, %v338
      %v383 = vpack.c.b16 %v343, %v341
      %v384 = vpack.c.b16 %v344, %v342
      %v385 = vpack.c.b16 %v347, %v345
      %v386 = vpack.c.b16 %v348, %v346
      %v387 = vpack.c.b16 %v351, %v349
      %v388 = vpack.c.b16 %v352, %v350
      %v389 = vpack.c.b16 %v355, %v353
      %v390 = vpack.c.b16 %v356, %v354
      %v391 = vpack.c.b16 %v359, %v357
      %v392 = vpack.c.b16 %v360, %v358
      %425 = vmatpush.bf16.msra.mxu0 %v375
      %426 = vmatpush.bf16.msra.mxu0 %v373
      %427 = vmatpush.bf16.msra.mxu0 %v371
      %428 = vmatpush.bf16.msra.mxu0 %v369
      %429 = vmatpush.bf16.msra.mxu0 %v367
      %430 = vmatpush.bf16.msra.mxu0 %v365
      %431 = vmatpush.bf16.msra.mxu0 %v363
      %432 = vmatpush.bf16.msra.mxu0 %v361
      %433 = vmatmul.bf16.gmra.mxu0 %v261
      %v434 = vpop.f32.mrf.mxu0
      %v435 = vadd.f32 %v251, %v434
      %v436 = vpop.f32.mrf.mxu0
      %v437 = vadd.f32 %v251, %v436
      %438 = vdwg.mxu0
      %439 = vmatpush.bf16.msra.mxu0 %v391
      %440 = vmatpush.bf16.msra.mxu0 %v389
      %441 = vmatpush.bf16.msra.mxu0 %v387
      %442 = vmatpush.bf16.msra.mxu0 %v385
      %443 = vmatpush.bf16.msra.mxu0 %v383
      %444 = vmatpush.bf16.msra.mxu0 %v381
      %445 = vmatpush.bf16.msra.mxu0 %v379
      %446 = vmatpush.bf16.msra.mxu0 %v377
      %447 = vmatmul.bf16.gmra.mxu0 %v262
      %v448 = vpop.f32.mrf.mxu0
      %v449 = vadd.f32 %v435, %v448
      %v450 = vpop.f32.mrf.mxu0
      %v451 = vadd.f32 %v437, %v450
      %452 = vdwg.mxu0
      %453 = vmatpush.bf16.msra.mxu0 %v376
      %454 = vmatpush.bf16.msra.mxu0 %v374
      %455 = vmatpush.bf16.msra.mxu0 %v372
      %456 = vmatpush.bf16.msra.mxu0 %v370
      %457 = vmatpush.bf16.msra.mxu0 %v368
      %458 = vmatpush.bf16.msra.mxu0 %v366
      %459 = vmatpush.bf16.msra.mxu0 %v364
      %460 = vmatpush.bf16.msra.mxu0 %v362
      %461 = vmatmul.bf16.gmra.mxu0 %v261
      %v462 = vpop.f32.mrf.mxu0
      %v463 = vadd.f32 %v252, %v462
      %v464 = vpop.f32.mrf.mxu0
      %v465 = vadd.f32 %v252, %v464
      %466 = vdwg.mxu0
      %467 = vmatpush.bf16.msra.mxu0 %v392
      %468 = vmatpush.bf16.msra.mxu0 %v390
      %469 = vmatpush.bf16.msra.mxu0 %v388
      %470 = vmatpush.bf16.msra.mxu0 %v386
      %471 = vmatpush.bf16.msra.mxu0 %v384
      %472 = vmatpush.bf16.msra.mxu0 %v382
      %473 = vmatpush.bf16.msra.mxu0 %v380
      %474 = vmatpush.bf16.msra.mxu0 %v378
      %475 = vmatmul.bf16.gmra.mxu0 %v262
      %v476 = vpop.f32.mrf.mxu0
      %v477 = vadd.f32 %v463, %v476
      %v478 = vpop.f32.mrf.mxu0
      %v479 = vadd.f32 %v465, %v478
      %480 = vdwg.mxu0
      %v481 = vpack.c.bf16 %v477, %v449
      %v482 = vpack.c.bf16 %v479, %v451
      %vm483 = vcmask 1043456
      %vm484 = vcmask 261124
      %vm485 = vmor %vm484, %vm483
      %486 = vst.msk [vmem:[%s213] sm:$0xff] %vm485, %v481
      %487 = vst.msk [vmem:[%s213 + $0x8] sm:$0xff] %vm485, %v482
      %s488 = smul.u32 2, %s19
      %p489 = scmp.lt.s32.totalorder %s18, 1
      %s490 = scalar_select %p489, %s18, 1
      %p491 = scmp.lt.s32.totalorder %s488, 1
      %s492 = scalar_select %p491, %s488, 1
      %s493 = smul.addr %s492, 2
      %s494 = smul.addr %s490, 4
      %s495 = sadd.s32 %s493, %s494
      %s496 = smul.addr %s495, 4
      %s497 = scalar_lea.vmem %s3, %s496
      // Predicated region
      $region33: #{net_forward.14} parent=31 // pred_check
        %p498 = pneg %p116
      $region34: #{net_forward.14} parent=31 // pred_check_branch
        %500 = sbr.rel (%p498) target = $region36
      $region35: #{net_forward.14} parent=31 // pred_region
        %s501 = smul.u32 2, %s19
      $region36: #{net_forward.14} parent=31 // pred_fallthru
        _
    $region32: #{net_forward.14} parent=5 // pred_fallthru
      _
    %p502 = scmp.le.s32.totalorder 2, %s9
    // Predicated region
    $region37: #{net_forward.14} parent=5 // pred_check
      %p503 = pneg %p502
    $region38: #{net_forward.14} parent=5 // pred_check_branch
      %505 = sbr.rel (%p503) target = $region40
    $region39: #{net_forward.14} parent=5 // pred_region
      %s506 = ssub.s32 %s9, 2
      // Predicated region
      $region41: #{net_forward.14} parent=39 // pred_check
        %p507 = pneg %p122
      $region42: #{net_forward.14} parent=39 // pred_check_branch
        %509 = sbr.rel (%p507) target = $region44
      $region43: #{net_forward.14} parent=39 // pred_region
        %s510 = smul.u32 2, %s21
        %p511 = scmp.lt.s32.totalorder %s20, 1
        %s512 = scalar_select %p511, %s20, 1
        %p513 = scmp.lt.s32.totalorder %s510, 1
        %s514 = scalar_select %p513, %s510, 1
        %s515 = smul.addr %s514, 2
        %s516 = smul.addr %s512, 4
        %s517 = sadd.s32 %s515, %s516
        %s518 = smul.addr %s517, 4
        %s519 = scalar_lea.vmem %s3, %s518
      $region44: #{net_forward.14} parent=39 // pred_fallthru
        _
    $region40: #{net_forward.14} parent=5 // pred_fallthru
      _
  $region6: #{net_forward.14} parent=0 // loop_footer
    %s13 = sadd.s32 1, %s9
  $region7: #{net_forward.14} parent=0 // loop_footer_branch
    %8 = sbr.rel target = $region3
  $region8: #{net_forward.14} parent=0 // loop_exit
    _

// kernel: net_forward.15
$region0: #{net_forward.15}
  #allocation0 [shape = 'u32[]', space=smem, size = 0x4, offset = 0x4, fixed_abs, tag = 'smem constant byte address 0x4 - core index']
  #allocation1 [shape = 'u32[72,128]{1,0:T(1,128)}', space=vmem, size = 0x9000, scoped, tag = 'internal scratch']
  %s0 = inlined_call_operand.vmem [shape: bf16[2,4,640], index: 0, kind: input, shape index: {}]
  %s1 = inlined_call_operand.vmem [shape: bf16[640,256], index: 1, kind: input, shape index: {}]
  %s2 = inlined_call_operand.vmem [shape: f32[1,256], index: 2, kind: input, shape index: {}]
  %s3 = inlined_call_operand.vmem [shape: bf16[2,4,256], index: 3, kind: output, shape index: {}]
  %s4 = sld [smem:[#allocation0]]
  $region45: #{net_forward.15} parent=0
    _
  %s6 = ssub.s32 1, %s4
  %s7 = scalar_select 0, %s6, %s4
  loop: start=0, step=1, limit=4
  $region2: #{net_forward.15} parent=0 // loop_pre_header
    _
  $region3: #{net_forward.15} parent=0 // loop_header
    %s9 = sphi 0, %s13
    %p10 = scmp.ge.s32.totalorder %s9, 4
    %s16 = sphi 0, %s28
    %s17 = sphi 0, %s24
    %s18 = sphi 0, %s16
    %s19 = sphi 0, %s17
    %s20 = sphi 0, %s18
    %s21 = sphi 0, %s19
    %s33 = sphi 0, %s35
    %s36 = sphi 0, %s33
    %s37 = sphi 0, %s36
    %s53 = sphi 0, %s37
    %s57 = sphi 0, %s57
    %s59 = sphi 0, %s57
    %s60 = sphi 0, %s59
    %s74 = sphi 0, %s60
    %s78 = sphi 0, %s78
    %s80 = sphi 0, %s78
    %s81 = sphi 0, %s80
    %s95 = sphi 0, %s81
    %s103 = sphi 0, %s105
    %s106 = sphi 0, %s103
    %s107 = sphi 0, %s106
    %s123 = sphi 0, %s107
  $region4: #{net_forward.15} parent=0 // loop_header_branch
    %12 = sbr.rel (%p10) target = $region8
  $region5: #{net_forward.15} parent=0 // loop_body
    %s14 = ssub.s32 %s9, 1
    %s15 = ssub.s32 %s9, 2
    %s22 = sadd.s32 1, %s17
    %p23 = scmp.ge.s32.totalorder %s22, 1
    %s24 = scalar_select %p23, 0, %s22
    %s25 = sadd.s32 1, %s16
    %s26 = scalar_select %p23, %s25, %s16
    %p27 = scmp.ge.s32.totalorder %s26, 2
    %s28 = scalar_select %p27, 0, %s26
    %s29 = ssub.s32 %s16, %s28
    %s30 = ssub.s32 %s17, %s24
    %s31 = sor.u32 %s29, %s30
    %p32 = scmp.eq.s32.totalorder %s31, 0
    %s34 = sadd.s32 %s33, 1
    %s35 = scalar_select %p32, %s33, %s34
    %p38 = pneg %p32
    %p39 = scmp.eq.s32.totalorder %s9, 1
    %p40 = por %p38, %p39
    %p41 = scmp.ne.s32.totalorder %s33, %s36
    %p42 = scmp.eq.s32.totalorder %s9, 0
    %p43 = por %p41, %p42
    %p44 = scmp.ne.s32.totalorder %s33, %s36
    %p45 = scmp.eq.s32.totalorder %s14, 1
    %p46 = por %p44, %p45
    %p47 = scmp.ne.s32.totalorder %s36, %s37
    %p48 = scmp.eq.s32.totalorder %s14, 0
    %p49 = por %p47, %p48
    %p50 = scmp.ne.s32.totalorder %s36, %s37
    %p51 = scmp.eq.s32.totalorder %s15, 1
    %p52 = por %p50, %p51
    %p54 = scmp.ne.s32.totalorder %s37, %s53
    %p55 = scmp.eq.s32.totalorder %s15, 0
    %p56 = por %p54, %p55
    %s58 = sadd.s32 %s57, 1
    %p61 = scmp.eq.s32.totalorder %s9, 1
    %p62 = scmp.ne.s32.totalorder %s57, %s59
    %p63 = scmp.eq.s32.totalorder %s9, 0
    %p64 = por %p62, %p63
    %p65 = scmp.ne.s32.totalorder %s57, %s59
    %p66 = scmp.eq.s32.totalorder %s14, 1
    %p67 = por %p65, %p66
    %p68 = scmp.ne.s32.totalorder %s59, %s60
    %p69 = scmp.eq.s32.totalorder %s14, 0
    %p70 = por %p68, %p69
    %p71 = scmp.ne.s32.totalorder %s59, %s60
    %p72 = scmp.eq.s32.totalorder %s15, 1
    %p73 = por %p71, %p72
    %p75 = scmp.ne.s32.totalorder %s60, %s74
    %p76 = scmp.eq.s32.totalorder %s15, 0
    %p77 = por %p75, %p76
    %s79 = sadd.s32 %s78, 1
    %p82 = scmp.eq.s32.totalorder %s9, 1
    %p83 = scmp.ne.s32.totalorder %s78, %s80
    %p84 = scmp.eq.s32.totalorder %s9, 0
    %p85 = por %p83, %p84
    %p86 = scmp.ne.s32.totalorder %s78, %s80
    %p87 = scmp.eq.s32.totalorder %s14, 1
    %p88 = por %p86, %p87
    %p89 = scmp.ne.s32.totalorder %s80, %s81
    %p90 = scmp.eq.s32.totalorder %s14, 0
    %p91 = por %p89, %p90
    %p92 = scmp.ne.s32.totalorder %s80, %s81
    %p93 = scmp.eq.s32.totalorder %s15, 1
    %p94 = por %p92, %p93
    %p96 = scmp.ne.s32.totalorder %s81, %s95
    %p97 = scmp.eq.s32.totalorder %s15, 0
    %p98 = por %p96, %p97
    %s99 = ssub.s32 %s16, %s28
    %s100 = ssub.s32 %s17, %s24
    %s101 = sor.u32 %s99, %s100
    %p102 = scmp.eq.s32.totalorder %s101, 0
    %s104 = sadd.s32 %s103, 1
    %s105 = scalar_select %p102, %s103, %s104
    %p108 = pneg %p102
    %p109 = scmp.eq.s32.totalorder %s9, 1
    %p110 = por %p108, %p109
    %p111 = scmp.ne.s32.totalorder %s103, %s106
    %p112 = scmp.eq.s32.totalorder %s9, 0
    %p113 = por %p111, %p112
    %p114 = scmp.ne.s32.totalorder %s103, %s106
    %p115 = scmp.eq.s32.totalorder %s14, 1
    %p116 = por %p114, %p115
    %p117 = scmp.ne.s32.totalorder %s106, %s107
    %p118 = scmp.eq.s32.totalorder %s14, 0
    %p119 = por %p117, %p118
    %p120 = scmp.ne.s32.totalorder %s106, %s107
    %p121 = scmp.eq.s32.totalorder %s15, 1
    %p122 = por %p120, %p121
    %p124 = scmp.ne.s32.totalorder %s107, %s123
    %p125 = scmp.eq.s32.totalorder %s15, 0
    %p126 = por %p124, %p125
    %p127 = scmp.le.s32.totalorder 1, %s9
    %p128 = scmp.lt.s32.totalorder %s9, 3
    %p129 = pnand %p127, %p128
    %p130 = pneg %p129
    // Predicated region
    $region9: #{net_forward.15} parent=5 // pred_check
      _
    $region10: #{net_forward.15} parent=5 // pred_check_branch
      %132 = sbr.rel (%p129) target = $region12
    $region11: #{net_forward.15} parent=5 // pred_region
      %s133 = ssub.s32 %s9, 1
      // Predicated region
      $region13: #{net_forward.15} parent=11 // pred_check
        %p134 = pneg %p70
      $region14: #{net_forward.15} parent=11 // pred_check_branch
        %136 = sbr.rel (%p134) target = $region16
      $region15: #{net_forward.15} parent=11 // pred_region
        _
      $region16: #{net_forward.15} parent=11 // pred_fallthru
        _
      // Predicated region
      $region17: #{net_forward.15} parent=11 // pred_check
        %p137 = pneg %p91
      $region18: #{net_forward.15} parent=11 // pred_check_branch
        %139 = sbr.rel (%p137) target = $region20
      $region19: #{net_forward.15} parent=11 // pred_region
        _
      $region20: #{net_forward.15} parent=11 // pred_fallthru
        _
    $region12: #{net_forward.15} parent=5 // pred_fallthru
      _
    %p140 = scmp.lt.s32.totalorder %s9, 2
    // Predicated region
    $region21: #{net_forward.15} parent=5 // pred_check
      %p141 = pneg %p140
    $region22: #{net_forward.15} parent=5 // pred_check_branch
      %143 = sbr.rel (%p141) target = $region24
    $region23: #{net_forward.15} parent=5 // pred_region
      // Predicated region
      $region25: #{net_forward.15} parent=23 // pred_check
        %p144 = pneg %p43
      $region26: #{net_forward.15} parent=23 // pred_check_branch
        %146 = sbr.rel (%p144) target = $region28
      $region27: #{net_forward.15} parent=23 // pred_region
        %p147 = scmp.lt.s32.totalorder %s16, 1
        %s148 = scalar_select %p147, %s16, 1
        %p149 = scmp.lt.s32.totalorder %s17, 0
        %s150 = scalar_select %p149, %s17, 0
        %s151 = smul.addr %s150, 5
        %s152 = smul.addr %s148, 5
        %s153 = sadd.s32 %s151, %s152
        %s154 = smul.addr %s153, 2
        %s155 = scalar_lea.vmem %s0, %s154
      $region28: #{net_forward.15} parent=23 // pred_fallthru
        _
    $region24: #{net_forward.15} parent=5 // pred_fallthru
      _
    %p156 = scmp.le.s32.totalorder 1, %s9
    %p157 = scmp.lt.s32.totalorder %s9, 3
    %p158 = pnand %p156, %p157
    %p159 = pneg %p158
    // Predicated region
    $region29: #{net_forward.15} parent=5 // pred_check
      _
    $region30: #{net_forward.15} parent=5 // pred_check_branch
      %161 = sbr.rel (%p158) target = $region32
    $region31: #{net_forward.15} parent=5 // pred_region
      %s162 = ssub.s32 %s9, 1
      %p163 = scmp.lt.s32.totalorder %s18, 1
      %s164 = scalar_select %p163, %s18, 1
      %p165 = scmp.lt.s32.totalorder %s19, 0
      %s166 = scalar_select %p165, %s19, 0
      %s167 = smul.addr %s166, 5
      %s168 = smul.addr %s164, 5
      %s169 = sadd.s32 %s167, %s168
      %s170 = smul.addr %s169, 2
      %s171 = scalar_lea.vmem %s0, %s170
      %p172 = pneg %p49
      %p173 = pneg %p46
      %p174 = pneg %p70
      %p175 = pneg %p67
      %p176 = pneg %p91
      %p177 = pneg %p88
      %p178 = pneg %p119
      %p179 = pneg %p116
      %p180 = scmp.lt.s32.totalorder %s18, 1
      %s181 = scalar_select %p180, %s18, 1
      %p182 = scmp.lt.s32.totalorder %s19, 0
      %s183 = scalar_select %p182, %s19, 0
      %s184 = smul.addr %s183, 2
      %s185 = smul.addr %s181, 2
      %s186 = sadd.s32 %s184, %s185
      %s187 = smul.addr %s186, 2
      %s188 = scalar_lea.vmem %s3, %s187
      %p189 = scmp.lt.s32.totalorder %s18, 1
      %s190 = scalar_select %p189, %s18, 1
      %p191 = scmp.lt.s32.totalorder %s19, 0
      %s192 = scalar_select %p191, %s19, 0
      %s193 = smul.addr %s192, 5
      %s194 = smul.addr %s190, 5
      %s195 = sadd.s32 %s193, %s194
      %s196 = smul.addr %s195, 2
      %s197 = scalar_lea.vmem %s0, %s196
      %p198 = scmp.lt.s32.totalorder %s18, 1
      %s199 = scalar_select %p198, %s18, 1
      %p200 = scmp.lt.s32.totalorder %s19, 0
      %s201 = scalar_select %p200, %s19, 0
      %s202 = smul.addr %s201, 2
      %s203 = smul.addr %s199, 2
      %s204 = sadd.s32 %s202, %s203
      %s205 = smul.addr %s204, 2
      %s206 = scalar_lea.vmem %s3, %s205
      %v207 = vld [vmem:[%s197] sm:$0xff]
      %v208 = vld [vmem:[%s197 + $0x8] sm:$0x3]
      %v209 = vld [vmem:[%s1] sm:$0xff]
      %v210 = vld [vmem:[%s1 + $0x8] sm:$0xff]
      %v211 = vld [vmem:[%s1 + $0x10] sm:$0xff]
      %v212 = vld [vmem:[%s1 + $0x18] sm:$0xff]
      %v213 = vld [vmem:[%s1 + $0x20] sm:$0xff]
      %v214 = vld [vmem:[%s1 + $0x28] sm:$0xff]
      %v215 = vld [vmem:[%s1 + $0x30] sm:$0xff]
      %v216 = vld [vmem:[%s1 + $0x38] sm:$0xff]
      %v217 = vld [vmem:[%s1 + $0x40] sm:$0xff]
      %v218 = vld [vmem:[%s1 + $0x48] sm:$0xff]
      %v219 = vld [vmem:[%s1 + $0x50] sm:$0xff]
      %v220 = vld [vmem:[%s1 + $0x58] sm:$0xff]
      %v221 = vld [vmem:[%s1 + $0x60] sm:$0xff]
      %v222 = vld [vmem:[%s1 + $0x68] sm:$0xff]
      %v223 = vld [vmem:[%s1 + $0x70] sm:$0xff]
      %v224 = vld [vmem:[%s1 + $0x78] sm:$0xff]
      %v225 = vld [vmem:[%s1 + $0x80] sm:$0xff]
      %v226 = vld [vmem:[%s1 + $0x88] sm:$0xff]
      %v227 = vld [vmem:[%s1 + $0x90] sm:$0xff]
      %v228 = vld [vmem:[%s1 + $0x98] sm:$0xff]
      %v229 = vld [vmem:[%s1 + $0xa0] sm:$0xff]
      %v230 = vld [vmem:[%s1 + $0xa8] sm:$0xff]
      %v231 = vld [vmem:[%s1 + $0xb0] sm:$0xff]
      %v232 = vld [vmem:[%s1 + $0xb8] sm:$0xff]
      %v233 = vld [vmem:[%s1 + $0xc0] sm:$0xff]
      %v234 = vld [vmem:[%s1 + $0xc8] sm:$0xff]
      %v235 = vld [vmem:[%s1 + $0xd0] sm:$0xff]
      %v236 = vld [vmem:[%s1 + $0xd8] sm:$0xff]
      %v237 = vld [vmem:[%s1 + $0xe0] sm:$0xff]
      %v238 = vld [vmem:[%s1 + $0xe8] sm:$0xff]
      %v239 = vld [vmem:[%s1 + $0xf0] sm:$0xff]
      %v240 = vld [vmem:[%s1 + $0xf8] sm:$0xff]
      %v241 = vld [vmem:[%s1 + $0x100] sm:$0xff]
      %v242 = vld [vmem:[%s1 + $0x108] sm:$0xff]
      %v243 = vld [vmem:[%s1 + $0x110] sm:$0xff]
      %v244 = vld [vmem:[%s1 + $0x118] sm:$0xff]
      %v245 = vld [vmem:[%s1 + $0x120] sm:$0xff]
      %v246 = vld [vmem:[%s1 + $0x128] sm:$0xff]
      %v247 = vld [vmem:[%s1 + $0x130] sm:$0xff]
      %v248 = vld [vmem:[%s1 + $0x138] sm:$0xff]
      %v249 = vld [vmem:[%s1 + $0x140] sm:$0xff]
      %v250 = vld [vmem:[%s1 + $0x148] sm:$0xff]
      %v251 = vld [vmem:[%s1 + $0x150] sm:$0xff]
      %v252 = vld [vmem:[%s1 + $0x158] sm:$0xff]
      %v253 = vld [vmem:[%s1 + $0x160] sm:$0xff]
      %v254 = vld [vmem:[%s1 + $0x168] sm:$0xff]
      %v255 = vld [vmem:[%s1 + $0x170] sm:$0xff]
      %v256 = vld [vmem:[%s1 + $0x178] sm:$0xff]
      %v257 = vld [vmem:[%s1 + $0x180] sm:$0xff]
      %v258 = vld [vmem:[%s1 + $0x188] sm:$0xff]
      %v259 = vld [vmem:[%s1 + $0x190] sm:$0xff]
      %v260 = vld [vmem:[%s1 + $0x198] sm:$0xff]
      %v261 = vld [vmem:[%s1 + $0x1a0] sm:$0xff]
      %v262 = vld [vmem:[%s1 + $0x1a8] sm:$0xff]
      %v263 = vld [vmem:[%s1 + $0x1b0] sm:$0xff]
      %v264 = vld [vmem:[%s1 + $0x1b8] sm:$0xff]
      %v265 = vld [vmem:[%s1 + $0x1c0] sm:$0xff]
      %v266 = vld [vmem:[%s1 + $0x1c8] sm:$0xff]
      %v267 = vld [vmem:[%s1 + $0x1d0] sm:$0xff]
      %v268 = vld [vmem:[%s1 + $0x1d8] sm:$0xff]
      %v269 = vld [vmem:[%s1 + $0x1e0] sm:$0xff]
      %v270 = vld [vmem:[%s1 + $0x1e8] sm:$0xff]
      %v271 = vld [vmem:[%s1 + $0x1f0] sm:$0xff]
      %v272 = vld [vmem:[%s1 + $0x1f8] sm:$0xff]
      %v273 = vld [vmem:[%s1 + $0x200] sm:$0xff]
      %v274 = vld [vmem:[%s1 + $0x208] sm:$0xff]
      %v275 = vld [vmem:[%s1 + $0x210] sm:$0xff]
      %v276 = vld [vmem:[%s1 + $0x218] sm:$0xff]
      %v277 = vld [vmem:[%s1 + $0x220] sm:$0xff]
      %v278 = vld [vmem:[%s1 + $0x228] sm:$0xff]
      %v279 = vld [vmem:[%s1 + $0x230] sm:$0xff]
      %v280 = vld [vmem:[%s1 + $0x238] sm:$0xff]
      %v281 = vld [vmem:[%s1 + $0x240] sm:$0xff]
      %v282 = vld [vmem:[%s1 + $0x248] sm:$0xff]
      %v283 = vld [vmem:[%s1 + $0x250] sm:$0xff]
      %v284 = vld [vmem:[%s1 + $0x258] sm:$0xff]
      %v285 = vld [vmem:[%s1 + $0x260] sm:$0xff]
      %v286 = vld [vmem:[%s1 + $0x268] sm:$0xff]
      %v287 = vld [vmem:[%s1 + $0x270] sm:$0xff]
      %v288 = vld [vmem:[%s1 + $0x278] sm:$0xff]
      %v289 = vld [vmem:[%s2] sm:$0x3]
      %v291 = vperm.slane %v289, 0
      %v292 = vperm.slane %v289, 1
      %296 = vst [vmem:[#allocation1] ss:$4 sm:$0xff] %v207
      %s298 = scalar_lea.vmem [#allocation1], 32
      %299 = vst [vmem:[%s298] ss:$4 sm:$0xff] %v208
      %v300 = vld.sshfl [vmem:[#allocation1] sm:$0xff pattern:$0x73625140]
      %v301 = vld.sshfl [vmem:[#allocation1 + $0x8] sm:$0xff pattern:$0x73625140]
      %v302 = vld.sshfl [vmem:[#allocation1 + $0x10] sm:$0xff pattern:$0x73625140]
      %v303 = vld.sshfl [vmem:[#allocation1 + $0x18] sm:$0xff pattern:$0x73625140]
      %v304 = vld.sshfl [vmem:[#allocation1 + $0x20] sm:$0xff pattern:$0x73625140]
      %v390 = vunpack.c.l.b16 %v209
      %v391 = vunpack.c.h.b16 %v209
      %v392 = vunpack.c.l.b16 %v210
      %v393 = vunpack.c.h.b16 %v210
      %v394 = vunpack.c.l.b16 %v211
      %v395 = vunpack.c.h.b16 %v211
      %v396 = vunpack.c.l.b16 %v212
      %v397 = vunpack.c.h.b16 %v212
      %v398 = vunpack.c.l.b16 %v213
      %v399 = vunpack.c.h.b16 %v213
      %v400 = vunpack.c.l.b16 %v214
      %v401 = vunpack.c.h.b16 %v214
      %v402 = vunpack.c.l.b16 %v215
      %v403 = vunpack.c.h.b16 %v215
      %v404 = vunpack.c.l.b16 %v216
      %v405 = vunpack.c.h.b16 %v216
      %v406 = vunpack.c.l.b16 %v217
      %v407 = vunpack.c.h.b16 %v217
      %v408 = vunpack.c.l.b16 %v218
      %v409 = vunpack.c.h.b16 %v218
      %v410 = vunpack.c.l.b16 %v219
      %v411 = vunpack.c.h.b16 %v219
      %v412 = vunpack.c.l.b16 %v220
      %v413 = vunpack.c.h.b16 %v220
      %v414 = vunpack.c.l.b16 %v221
      %v415 = vunpack.c.h.b16 %v221
      %v416 = vunpack.c.l.b16 %v222
      %v417 = vunpack.c.h.b16 %v222
      %v418 = vunpack.c.l.b16 %v223
      %v419 = vunpack.c.h.b16 %v223
      %v420 = vunpack.c.l.b16 %v224
      %v421 = vunpack.c.h.b16 %v224
      %v422 = vunpack.c.l.b16 %v225
      %v423 = vunpack.c.h.b16 %v225
      %v424 = vunpack.c.l.b16 %v226
      %v425 = vunpack.c.h.b16 %v226
      %v426 = vunpack.c.l.b16 %v227
      %v427 = vunpack.c.h.b16 %v227
      %v428 = vunpack.c.l.b16 %v228
      %v429 = vunpack.c.h.b16 %v228
      %v430 = vunpack.c.l.b16 %v229
      %v431 = vunpack.c.h.b16 %v229
      %v432 = vunpack.c.l.b16 %v230
      %v433 = vunpack.c.h.b16 %v230
      %v434 = vunpack.c.l.b16 %v231
      %v435 = vunpack.c.h.b16 %v231
      %v436 = vunpack.c.l.b16 %v232
      %v437 = vunpack.c.h.b16 %v232
      %v438 = vunpack.c.l.b16 %v233
      %v439 = vunpack.c.h.b16 %v233
      %v440 = vunpack.c.l.b16 %v234
      %v441 = vunpack.c.h.b16 %v234
      %v442 = vunpack.c.l.b16 %v235
      %v443 = vunpack.c.h.b16 %v235
      %v444 = vunpack.c.l.b16 %v236
      %v445 = vunpack.c.h.b16 %v236
      %v446 = vunpack.c.l.b16 %v237
      %v447 = vunpack.c.h.b16 %v237
      %v448 = vunpack.c.l.b16 %v238
      %v449 = vunpack.c.h.b16 %v238
      %v450 = vunpack.c.l.b16 %v239
      %v451 = vunpack.c.h.b16 %v239
      %v452 = vunpack.c.l.b16 %v240
      %v453 = vunpack.c.h.b16 %v240
      %v454 = vunpack.c.l.b16 %v241
      %v455 = vunpack.c.h.b16 %v241
      %v456 = vunpack.c.l.b16 %v242
      %v457 = vunpack.c.h.b16 %v242
      %v458 = vunpack.c.l.b16 %v243
      %v459 = vunpack.c.h.b16 %v243
      %v460 = vunpack.c.l.b16 %v244
      %v461 = vunpack.c.h.b16 %v244
      %v462 = vunpack.c.l.b16 %v245
      %v463 = vunpack.c.h.b16 %v245
      %v464 = vunpack.c.l.b16 %v246
      %v465 = vunpack.c.h.b16 %v246
      %v466 = vunpack.c.l.b16 %v247
      %v467 = vunpack.c.h.b16 %v247
      %v468 = vunpack.c.l.b16 %v248
      %v469 = vunpack.c.h.b16 %v248
      %v470 = vunpack.c.l.b16 %v249
      %v471 = vunpack.c.h.b16 %v249
      %v472 = vunpack.c.l.b16 %v250
      %v473 = vunpack.c.h.b16 %v250
      %v474 = vunpack.c.l.b16 %v251
      %v475 = vunpack.c.h.b16 %v251
      %v476 = vunpack.c.l.b16 %v252
      %v477 = vunpack.c.h.b16 %v252
      %v478 = vunpack.c.l.b16 %v253
      %v479 = vunpack.c.h.b16 %v253
      %v480 = vunpack.c.l.b16 %v254
      %v481 = vunpack.c.h.b16 %v254
      %v482 = vunpack.c.l.b16 %v255
      %v483 = vunpack.c.h.b16 %v255
      %v484 = vunpack.c.l.b16 %v256
      %v485 = vunpack.c.h.b16 %v256
      %v486 = vunpack.c.l.b16 %v257
      %v487 = vunpack.c.h.b16 %v257
      %v488 = vunpack.c.l.b16 %v258
      %v489 = vunpack.c.h.b16 %v258
      %v490 = vunpack.c.l.b16 %v259
      %v491 = vunpack.c.h.b16 %v259
      %v492 = vunpack.c.l.b16 %v260
      %v493 = vunpack.c.h.b16 %v260
      %v494 = vunpack.c.l.b16 %v261
      %v495 = vunpack.c.h.b16 %v261
      %v496 = vunpack.c.l.b16 %v262
      %v497 = vunpack.c.h.b16 %v262
      %v498 = vunpack.c.l.b16 %v263
      %v499 = vunpack.c.h.b16 %v263
      %v500 = vunpack.c.l.b16 %v264
      %v501 = vunpack.c.h.b16 %v264
      %v502 = vunpack.c.l.b16 %v265
      %v503 = vunpack.c.h.b16 %v265
      %v504 = vunpack.c.l.b16 %v266
      %v505 = vunpack.c.h.b16 %v266
      %v506 = vunpack.c.l.b16 %v267
      %v507 = vunpack.c.h.b16 %v267
      %v508 = vunpack.c.l.b16 %v268
      %v509 = vunpack.c.h.b16 %v268
      %v510 = vunpack.c.l.b16 %v269
      %v511 = vunpack.c.h.b16 %v269
      %v512 = vunpack.c.l.b16 %v270
      %v513 = vunpack.c.h.b16 %v270
      %v514 = vunpack.c.l.b16 %v271
      %v515 = vunpack.c.h.b16 %v271
      %v516 = vunpack.c.l.b16 %v272
      %v517 = vunpack.c.h.b16 %v272
      %v518 = vunpack.c.l.b16 %v273
      %v519 = vunpack.c.h.b16 %v273
      %v520 = vunpack.c.l.b16 %v274
      %v521 = vunpack.c.h.b16 %v274
      %v522 = vunpack.c.l.b16 %v275
      %v523 = vunpack.c.h.b16 %v275
      %v524 = vunpack.c.l.b16 %v276
      %v525 = vunpack.c.h.b16 %v276
      %v526 = vunpack.c.l.b16 %v277
      %v527 = vunpack.c.h.b16 %v277
      %v528 = vunpack.c.l.b16 %v278
      %v529 = vunpack.c.h.b16 %v278
      %v530 = vunpack.c.l.b16 %v279
      %v531 = vunpack.c.h.b16 %v279
      %v532 = vunpack.c.l.b16 %v280
      %v533 = vunpack.c.h.b16 %v280
      %v534 = vunpack.c.l.b16 %v281
      %v535 = vunpack.c.h.b16 %v281
      %v536 = vunpack.c.l.b16 %v282
      %v537 = vunpack.c.h.b16 %v282
      %v538 = vunpack.c.l.b16 %v283
      %v539 = vunpack.c.h.b16 %v283
      %v540 = vunpack.c.l.b16 %v284
      %v541 = vunpack.c.h.b16 %v284
      %v542 = vunpack.c.l.b16 %v285
      %v543 = vunpack.c.h.b16 %v285
      %v544 = vunpack.c.l.b16 %v286
      %v545 = vunpack.c.h.b16 %v286
      %v546 = vunpack.c.l.b16 %v287
      %v547 = vunpack.c.h.b16 %v287
      %v548 = vunpack.c.l.b16 %v288
      %v549 = vunpack.c.h.b16 %v288
      %v550 = vpack.c.b16 %v392, %v390
      %v551 = vpack.c.b16 %v393, %v391
      %v552 = vpack.c.b16 %v396, %v394
      %v553 = vpack.c.b16 %v397, %v395
      %v554 = vpack.c.b16 %v400, %v398
      %v555 = vpack.c.b16 %v401, %v399
      %v556 = vpack.c.b16 %v404, %v402
      %v557 = vpack.c.b16 %v405, %v403
      %v558 = vpack.c.b16 %v408, %v406
      %v559 = vpack.c.b16 %v409, %v407
      %v560 = vpack.c.b16 %v412, %v410
      %v561 = vpack.c.b16 %v413, %v411
      %v562 = vpack.c.b16 %v416, %v414
      %v563 = vpack.c.b16 %v417, %v415
      %v564 = vpack.c.b16 %v420, %v418
      %v565 = vpack.c.b16 %v421, %v419
      %v566 = vpack.c.b16 %v424, %v422
      %v567 = vpack.c.b16 %v425, %v423
      %v568 = vpack.c.b16 %v428, %v426
      %v569 = vpack.c.b16 %v429, %v427
      %v570 = vpack.c.b16 %v432, %v430
      %v571 = vpack.c.b16 %v433, %v431
      %v572 = vpack.c.b16 %v436, %v434
      %v573 = vpack.c.b16 %v437, %v435
      %v574 = vpack.c.b16 %v440, %v438
      %v575 = vpack.c.b16 %v441, %v439
      %v576 = vpack.c.b16 %v444, %v442
      %v577 = vpack.c.b16 %v445, %v443
      %v578 = vpack.c.b16 %v448, %v446
      %v579 = vpack.c.b16 %v449, %v447
      %v580 = vpack.c.b16 %v452, %v450
      %v581 = vpack.c.b16 %v453, %v451
      %v582 = vpack.c.b16 %v456, %v454
      %v583 = vpack.c.b16 %v457, %v455
      %v584 = vpack.c.b16 %v460, %v458
      %v585 = vpack.c.b16 %v461, %v459
      %v586 = vpack.c.b16 %v464, %v462
      %v587 = vpack.c.b16 %v465, %v463
      %v588 = vpack.c.b16 %v468, %v466
      %v589 = vpack.c.b16 %v469, %v467
      %v590 = vpack.c.b16 %v472, %v470
      %v591 = vpack.c.b16 %v473, %v471
      %v592 = vpack.c.b16 %v476, %v474
      %v593 = vpack.c.b16 %v477, %v475
      %v594 = vpack.c.b16 %v480, %v478
      %v595 = vpack.c.b16 %v481, %v479
      %v596 = vpack.c.b16 %v484, %v482
      %v597 = vpack.c.b16 %v485, %v483
      %v598 = vpack.c.b16 %v488, %v486
      %v599 = vpack.c.b16 %v489, %v487
      %v600 = vpack.c.b16 %v492, %v490
      %v601 = vpack.c.b16 %v493, %v491
      %v602 = vpack.c.b16 %v496, %v494
      %v603 = vpack.c.b16 %v497, %v495
      %v604 = vpack.c.b16 %v500, %v498
      %v605 = vpack.c.b16 %v501, %v499
      %v606 = vpack.c.b16 %v504, %v502
      %v607 = vpack.c.b16 %v505, %v503
      %v608 = vpack.c.b16 %v508, %v506
      %v609 = vpack.c.b16 %v509, %v507
      %v610 = vpack.c.b16 %v512, %v510
      %v611 = vpack.c.b16 %v513, %v511
      %v612 = vpack.c.b16 %v516, %v514
      %v613 = vpack.c.b16 %v517, %v515
      %v614 = vpack.c.b16 %v520, %v518
      %v615 = vpack.c.b16 %v521, %v519
      %v616 = vpack.c.b16 %v524, %v522
      %v617 = vpack.c.b16 %v525, %v523
      %v618 = vpack.c.b16 %v528, %v526
      %v619 = vpack.c.b16 %v529, %v527
      %v620 = vpack.c.b16 %v532, %v530
      %v621 = vpack.c.b16 %v533, %v531
      %v622 = vpack.c.b16 %v536, %v534
      %v623 = vpack.c.b16 %v537, %v535
      %v624 = vpack.c.b16 %v540, %v538
      %v625 = vpack.c.b16 %v541, %v539
      %v626 = vpack.c.b16 %v544, %v542
      %v627 = vpack.c.b16 %v545, %v543
      %v628 = vpack.c.b16 %v548, %v546
      %v629 = vpack.c.b16 %v549, %v547
      %710 = vmatpush.bf16.msra.mxu0 %v564
      %711 = vmatpush.bf16.msra.mxu0 %v562
      %712 = vmatpush.bf16.msra.mxu0 %v560
      %713 = vmatpush.bf16.msra.mxu0 %v558
      %714 = vmatpush.bf16.msra.mxu0 %v556
      %715 = vmatpush.bf16.msra.mxu0 %v554
      %716 = vmatpush.bf16.msra.mxu0 %v552
      %717 = vmatpush.bf16.msra.mxu0 %v550
      %718 = vmatmul.bf16.gmra.mxu0 %v300
      %v719 = vpop.f32.mrf.mxu0
      %v720 = vadd.f32 %v291, %v719
      %v721 = vpop.f32.mrf.mxu0
      %722 = vdwg.mxu0
      %723 = vmatpush.bf16.msra.mxu0 %v580
      %724 = vmatpush.bf16.msra.mxu0 %v578
      %725 = vmatpush.bf16.msra.mxu0 %v576
      %726 = vmatpush.bf16.msra.mxu0 %v574
      %727 = vmatpush.bf16.msra.mxu0 %v572
      %728 = vmatpush.bf16.msra.mxu0 %v570
      %729 = vmatpush.bf16.msra.mxu0 %v568
      %730 = vmatpush.bf16.msra.mxu0 %v566
      %731 = vmatmul.bf16.gmra.mxu0 %v301
      %v732 = vpop.f32.mrf.mxu0
      %v733 = vadd.f32 %v720, %v732
      %v734 = vpop.f32.mrf.mxu0
      %735 = vdwg.mxu0
      %736 = vmatpush.bf16.msra.mxu0 %v596
      %737 = vmatpush.bf16.msra.mxu0 %v594
      %738 = vmatpush.bf16.msra.mxu0 %v592
      %739 = vmatpush.bf16.msra.mxu0 %v590
      %740 = vmatpush.bf16.msra.mxu0 %v588
      %741 = vmatpush.bf16.msra.mxu0 %v586
      %742 = vmatpush.bf16.msra.mxu0 %v584
      %743 = vmatpush.bf16.msra.mxu0 %v582
      %744 = vmatmul.bf16.gmra.mxu0 %v302
      %v745 = vpop.f32.mrf.mxu0
      %v746 = vadd.f32 %v733, %v745
      %v747 = vpop.f32.mrf.mxu0
      %748 = vdwg.mxu0
      %749 = vmatpush.bf16.msra.mxu0 %v612
      %750 = vmatpush.bf16.msra.mxu0 %v610
      %751 = vmatpush.bf16.msra.mxu0 %v608
      %752 = vmatpush.bf16.msra.mxu0 %v606
      %753 = vmatpush.bf16.msra.mxu0 %v604
      %754 = vmatpush.bf16.msra.mxu0 %v602
      %755 = vmatpush.bf16.msra.mxu0 %v600
      %756 = vmatpush.bf16.msra.mxu0 %v598
      %757 = vmatmul.bf16.gmra.mxu0 %v303
      %v758 = vpop.f32.mrf.mxu0
      %v759 = vadd.f32 %v746, %v758
      %v760 = vpop.f32.mrf.mxu0
      %761 = vdwg.mxu0
      %762 = vmatpush.bf16.msra.mxu0 %v628
      %763 = vmatpush.bf16.msra.mxu0 %v626
      %764 = vmatpush.bf16.msra.mxu0 %v624
      %765 = vmatpush.bf16.msra.mxu0 %v622
      %766 = vmatpush.bf16.msra.mxu0 %v620
      %767 = vmatpush.bf16.msra.mxu0 %v618
      %768 = vmatpush.bf16.msra.mxu0 %v616
      %769 = vmatpush.bf16.msra.mxu0 %v614
      %770 = vmatmul.bf16.gmra.mxu0 %v304
      %v771 = vpop.f32.mrf.mxu0
      %v772 = vadd.f32 %v759, %v771
      %v773 = vpop.f32.mrf.mxu0
      %774 = vdwg.mxu0
      %775 = vmatpush.bf16.msra.mxu0 %v565
      %776 = vmatpush.bf16.msra.mxu0 %v563
      %777 = vmatpush.bf16.msra.mxu0 %v561
      %778 = vmatpush.bf16.msra.mxu0 %v559
      %779 = vmatpush.bf16.msra.mxu0 %v557
      %780 = vmatpush.bf16.msra.mxu0 %v555
      %781 = vmatpush.bf16.msra.mxu0 %v553
      %782 = vmatpush.bf16.msra.mxu0 %v551
      %783 = vmatmul.bf16.gmra.mxu0 %v300
      %v784 = vpop.f32.mrf.mxu0
      %v785 = vadd.f32 %v292, %v784
      %v786 = vpop.f32.mrf.mxu0
      %787 = vdwg.mxu0
      %788 = vmatpush.bf16.msra.mxu0 %v581
      %789 = vmatpush.bf16.msra.mxu0 %v579
      %790 = vmatpush.bf16.msra.mxu0 %v577
      %791 = vmatpush.bf16.msra.mxu0 %v575
      %792 = vmatpush.bf16.msra.mxu0 %v573
      %793 = vmatpush.bf16.msra.mxu0 %v571
      %794 = vmatpush.bf16.msra.mxu0 %v569
      %795 = vmatpush.bf16.msra.mxu0 %v567
      %796 = vmatmul.bf16.gmra.mxu0 %v301
      %v797 = vpop.f32.mrf.mxu0
      %v798 = vadd.f32 %v785, %v797
      %v799 = vpop.f32.mrf.mxu0
      %800 = vdwg.mxu0
      %801 = vmatpush.bf16.msra.mxu0 %v597
      %802 = vmatpush.bf16.msra.mxu0 %v595
      %803 = vmatpush.bf16.msra.mxu0 %v593
      %804 = vmatpush.bf16.msra.mxu0 %v591
      %805 = vmatpush.bf16.msra.mxu0 %v589
      %806 = vmatpush.bf16.msra.mxu0 %v587
      %807 = vmatpush.bf16.msra.mxu0 %v585
      %808 = vmatpush.bf16.msra.mxu0 %v583
      %809 = vmatmul.bf16.gmra.mxu0 %v302
      %v810 = vpop.f32.mrf.mxu0
      %v811 = vadd.f32 %v798, %v810
      %v812 = vpop.f32.mrf.mxu0
      %813 = vdwg.mxu0
      %814 = vmatpush.bf16.msra.mxu0 %v613
      %815 = vmatpush.bf16.msra.mxu0 %v611
      %816 = vmatpush.bf16.msra.mxu0 %v609
      %817 = vmatpush.bf16.msra.mxu0 %v607
      %818 = vmatpush.bf16.msra.mxu0 %v605
      %819 = vmatpush.bf16.msra.mxu0 %v603
      %820 = vmatpush.bf16.msra.mxu0 %v601
      %821 = vmatpush.bf16.msra.mxu0 %v599
      %822 = vmatmul.bf16.gmra.mxu0 %v303
      %v823 = vpop.f32.mrf.mxu0
      %v824 = vadd.f32 %v811, %v823
      %v825 = vpop.f32.mrf.mxu0
      %826 = vdwg.mxu0
      %827 = vmatpush.bf16.msra.mxu0 %v629
      %828 = vmatpush.bf16.msra.mxu0 %v627
      %829 = vmatpush.bf16.msra.mxu0 %v625
      %830 = vmatpush.bf16.msra.mxu0 %v623
      %831 = vmatpush.bf16.msra.mxu0 %v621
      %832 = vmatpush.bf16.msra.mxu0 %v619
      %833 = vmatpush.bf16.msra.mxu0 %v617
      %834 = vmatpush.bf16.msra.mxu0 %v615
      %835 = vmatmul.bf16.gmra.mxu0 %v304
      %v836 = vpop.f32.mrf.mxu0
      %v837 = vadd.f32 %v824, %v836
      %v838 = vpop.f32.mrf.mxu0
      %839 = vdwg.mxu0
      %v840 = vpack.c.bf16 %v837, %v772
      %v842 = vrot.slane %v840, 2
      %vm843 = vcmask 1041408
      %v846 = vsel %vm843, %v840, %v842
      %848 = vst [vmem:[%s206] sm:$0xf] %v846
      %p849 = scmp.lt.s32.totalorder %s18, 1
      %s850 = scalar_select %p849, %s18, 1
      %p851 = scmp.lt.s32.totalorder %s19, 0
      %s852 = scalar_select %p851, %s19, 0
      %s853 = smul.addr %s852, 2
      %s854 = smul.addr %s850, 2
      %s855 = sadd.s32 %s853, %s854
      %s856 = smul.addr %s855, 2
      %s857 = scalar_lea.vmem %s3, %s856
      // Predicated region
      $region33: #{net_forward.15} parent=31 // pred_check
        %p858 = pneg %p116
      $region34: #{net_forward.15} parent=31 // pred_check_branch
        %860 = sbr.rel (%p858) target = $region36
      $region35: #{net_forward.15} parent=31 // pred_region
        _
      $region36: #{net_forward.15} parent=31 // pred_fallthru
        _
    $region32: #{net_forward.15} parent=5 // pred_fallthru
      _
    %p861 = scmp.le.s32.totalorder 2, %s9
    // Predicated region
    $region37: #{net_forward.15} parent=5 // pred_check
      %p862 = pneg %p861
    $region38: #{net_forward.15} parent=5 // pred_check_branch
      %864 = sbr.rel (%p862) target = $region40
    $region39: #{net_forward.15} parent=5 // pred_region
      %s865 = ssub.s32 %s9, 2
      // Predicated region
      $region41: #{net_forward.15} parent=39 // pred_check
        %p866 = pneg %p122
      $region42: #{net_forward.15} parent=39 // pred_check_branch
        %868 = sbr.rel (%p866) target = $region44
      $region43: #{net_forward.15} parent=39 // pred_region
        %p869 = scmp.lt.s32.totalorder %s20, 1
        %s870 = scalar_select %p869, %s20, 1
        %p871 = scmp.lt.s32.totalorder %s21, 0
        %s872 = scalar_select %p871, %s21, 0
        %s873 = smul.addr %s872, 2
        %s874 = smul.addr %s870, 2
        %s875 = sadd.s32 %s873, %s874
        %s876 = smul.addr %s875, 2
        %s877 = scalar_lea.vmem %s3, %s876
      $region44: #{net_forward.15} parent=39 // pred_fallthru
        _
    $region40: #{net_forward.15} parent=5 // pred_fallthru
      _
  $region6: #{net_forward.15} parent=0 // loop_footer
    %s13 = sadd.s32 1, %s9
  $region7: #{net_forward.15} parent=0 // loop_footer_branch
    %8 = sbr.rel target = $region3
  $region8: #{net_forward.15} parent=0 // loop_exit
    _

// kernel: net_forward.19
$region0: #{net_forward.19}
  #allocation0 [shape = 'u32[]', space=smem, size = 0x4, offset = 0x4, fixed_abs, tag = 'smem constant byte address 0x4 - core index']
  #allocation1 [shape = 'u32[72,128]{1,0:T(1,128)}', space=vmem, size = 0x9000, scoped, tag = 'internal scratch']
  %s0 = inlined_call_operand.vmem [shape: bf16[2,4,256], index: 0, kind: input, shape index: {}]
  %s1 = inlined_call_operand.vmem [shape: bf16[256,160], index: 1, kind: input, shape index: {}]
  %s2 = inlined_call_operand.vmem [shape: f32[1,160], index: 2, kind: input, shape index: {}]
  %s3 = inlined_call_operand.vmem [shape: bf16[2,4,160], index: 3, kind: output, shape index: {}]
  %s4 = sld [smem:[#allocation0]]
  $region45: #{net_forward.19} parent=0
    _
  %s6 = ssub.s32 1, %s4
  %s7 = scalar_select 0, %s6, %s4
  loop: start=0, step=1, limit=4
  $region2: #{net_forward.19} parent=0 // loop_pre_header
    _
  $region3: #{net_forward.19} parent=0 // loop_header
    %s9 = sphi 0, %s13
    %p10 = scmp.ge.s32.totalorder %s9, 4
    %s16 = sphi 0, %s28
    %s17 = sphi 0, %s24
    %s18 = sphi 0, %s16
    %s19 = sphi 0, %s17
    %s20 = sphi 0, %s18
    %s21 = sphi 0, %s19
    %s33 = sphi 0, %s35
    %s36 = sphi 0, %s33
    %s37 = sphi 0, %s36
    %s53 = sphi 0, %s37
    %s57 = sphi 0, %s57
    %s59 = sphi 0, %s57
    %s60 = sphi 0, %s59
    %s74 = sphi 0, %s60
    %s78 = sphi 0, %s78
    %s80 = sphi 0, %s78
    %s81 = sphi 0, %s80
    %s95 = sphi 0, %s81
    %s103 = sphi 0, %s105
    %s106 = sphi 0, %s103
    %s107 = sphi 0, %s106
    %s123 = sphi 0, %s107
  $region4: #{net_forward.19} parent=0 // loop_header_branch
    %12 = sbr.rel (%p10) target = $region8
  $region5: #{net_forward.19} parent=0 // loop_body
    %s14 = ssub.s32 %s9, 1
    %s15 = ssub.s32 %s9, 2
    %s22 = sadd.s32 1, %s17
    %p23 = scmp.ge.s32.totalorder %s22, 1
    %s24 = scalar_select %p23, 0, %s22
    %s25 = sadd.s32 1, %s16
    %s26 = scalar_select %p23, %s25, %s16
    %p27 = scmp.ge.s32.totalorder %s26, 2
    %s28 = scalar_select %p27, 0, %s26
    %s29 = ssub.s32 %s16, %s28
    %s30 = ssub.s32 %s17, %s24
    %s31 = sor.u32 %s29, %s30
    %p32 = scmp.eq.s32.totalorder %s31, 0
    %s34 = sadd.s32 %s33, 1
    %s35 = scalar_select %p32, %s33, %s34
    %p38 = pneg %p32
    %p39 = scmp.eq.s32.totalorder %s9, 1
    %p40 = por %p38, %p39
    %p41 = scmp.ne.s32.totalorder %s33, %s36
    %p42 = scmp.eq.s32.totalorder %s9, 0
    %p43 = por %p41, %p42
    %p44 = scmp.ne.s32.totalorder %s33, %s36
    %p45 = scmp.eq.s32.totalorder %s14, 1
    %p46 = por %p44, %p45
    %p47 = scmp.ne.s32.totalorder %s36, %s37
    %p48 = scmp.eq.s32.totalorder %s14, 0
    %p49 = por %p47, %p48
    %p50 = scmp.ne.s32.totalorder %s36, %s37
    %p51 = scmp.eq.s32.totalorder %s15, 1
    %p52 = por %p50, %p51
    %p54 = scmp.ne.s32.totalorder %s37, %s53
    %p55 = scmp.eq.s32.totalorder %s15, 0
    %p56 = por %p54, %p55
    %s58 = sadd.s32 %s57, 1
    %p61 = scmp.eq.s32.totalorder %s9, 1
    %p62 = scmp.ne.s32.totalorder %s57, %s59
    %p63 = scmp.eq.s32.totalorder %s9, 0
    %p64 = por %p62, %p63
    %p65 = scmp.ne.s32.totalorder %s57, %s59
    %p66 = scmp.eq.s32.totalorder %s14, 1
    %p67 = por %p65, %p66
    %p68 = scmp.ne.s32.totalorder %s59, %s60
    %p69 = scmp.eq.s32.totalorder %s14, 0
    %p70 = por %p68, %p69
    %p71 = scmp.ne.s32.totalorder %s59, %s60
    %p72 = scmp.eq.s32.totalorder %s15, 1
    %p73 = por %p71, %p72
    %p75 = scmp.ne.s32.totalorder %s60, %s74
    %p76 = scmp.eq.s32.totalorder %s15, 0
    %p77 = por %p75, %p76
    %s79 = sadd.s32 %s78, 1
    %p82 = scmp.eq.s32.totalorder %s9, 1
    %p83 = scmp.ne.s32.totalorder %s78, %s80
    %p84 = scmp.eq.s32.totalorder %s9, 0
    %p85 = por %p83, %p84
    %p86 = scmp.ne.s32.totalorder %s78, %s80
    %p87 = scmp.eq.s32.totalorder %s14, 1
    %p88 = por %p86, %p87
    %p89 = scmp.ne.s32.totalorder %s80, %s81
    %p90 = scmp.eq.s32.totalorder %s14, 0
    %p91 = por %p89, %p90
    %p92 = scmp.ne.s32.totalorder %s80, %s81
    %p93 = scmp.eq.s32.totalorder %s15, 1
    %p94 = por %p92, %p93
    %p96 = scmp.ne.s32.totalorder %s81, %s95
    %p97 = scmp.eq.s32.totalorder %s15, 0
    %p98 = por %p96, %p97
    %s99 = ssub.s32 %s16, %s28
    %s100 = ssub.s32 %s17, %s24
    %s101 = sor.u32 %s99, %s100
    %p102 = scmp.eq.s32.totalorder %s101, 0
    %s104 = sadd.s32 %s103, 1
    %s105 = scalar_select %p102, %s103, %s104
    %p108 = pneg %p102
    %p109 = scmp.eq.s32.totalorder %s9, 1
    %p110 = por %p108, %p109
    %p111 = scmp.ne.s32.totalorder %s103, %s106
    %p112 = scmp.eq.s32.totalorder %s9, 0
    %p113 = por %p111, %p112
    %p114 = scmp.ne.s32.totalorder %s103, %s106
    %p115 = scmp.eq.s32.totalorder %s14, 1
    %p116 = por %p114, %p115
    %p117 = scmp.ne.s32.totalorder %s106, %s107
    %p118 = scmp.eq.s32.totalorder %s14, 0
    %p119 = por %p117, %p118
    %p120 = scmp.ne.s32.totalorder %s106, %s107
    %p121 = scmp.eq.s32.totalorder %s15, 1
    %p122 = por %p120, %p121
    %p124 = scmp.ne.s32.totalorder %s107, %s123
    %p125 = scmp.eq.s32.totalorder %s15, 0
    %p126 = por %p124, %p125
    %p127 = scmp.le.s32.totalorder 1, %s9
    %p128 = scmp.lt.s32.totalorder %s9, 3
    %p129 = pnand %p127, %p128
    %p130 = pneg %p129
    // Predicated region
    $region9: #{net_forward.19} parent=5 // pred_check
      _
    $region10: #{net_forward.19} parent=5 // pred_check_branch
      %132 = sbr.rel (%p129) target = $region12
    $region11: #{net_forward.19} parent=5 // pred_region
      %s133 = ssub.s32 %s9, 1
      // Predicated region
      $region13: #{net_forward.19} parent=11 // pred_check
        %p134 = pneg %p70
      $region14: #{net_forward.19} parent=11 // pred_check_branch
        %136 = sbr.rel (%p134) target = $region16
      $region15: #{net_forward.19} parent=11 // pred_region
        _
      $region16: #{net_forward.19} parent=11 // pred_fallthru
        _
      // Predicated region
      $region17: #{net_forward.19} parent=11 // pred_check
        %p137 = pneg %p91
      $region18: #{net_forward.19} parent=11 // pred_check_branch
        %139 = sbr.rel (%p137) target = $region20
      $region19: #{net_forward.19} parent=11 // pred_region
        _
      $region20: #{net_forward.19} parent=11 // pred_fallthru
        _
    $region12: #{net_forward.19} parent=5 // pred_fallthru
      _
    %p140 = scmp.lt.s32.totalorder %s9, 2
    // Predicated region
    $region21: #{net_forward.19} parent=5 // pred_check
      %p141 = pneg %p140
    $region22: #{net_forward.19} parent=5 // pred_check_branch
      %143 = sbr.rel (%p141) target = $region24
    $region23: #{net_forward.19} parent=5 // pred_region
      // Predicated region
      $region25: #{net_forward.19} parent=23 // pred_check
        %p144 = pneg %p43
      $region26: #{net_forward.19} parent=23 // pred_check_branch
        %146 = sbr.rel (%p144) target = $region28
      $region27: #{net_forward.19} parent=23 // pred_region
        %p147 = scmp.lt.s32.totalorder %s16, 1
        %s148 = scalar_select %p147, %s16, 1
        %p149 = scmp.lt.s32.totalorder %s17, 0
        %s150 = scalar_select %p149, %s17, 0
        %s151 = smul.addr %s150, 2
        %s152 = smul.addr %s148, 2
        %s153 = sadd.s32 %s151, %s152
        %s154 = smul.addr %s153, 2
        %s155 = scalar_lea.vmem %s0, %s154
      $region28: #{net_forward.19} parent=23 // pred_fallthru
        _
    $region24: #{net_forward.19} parent=5 // pred_fallthru
      _
    %p156 = scmp.le.s32.totalorder 1, %s9
    %p157 = scmp.lt.s32.totalorder %s9, 3
    %p158 = pnand %p156, %p157
    %p159 = pneg %p158
    // Predicated region
    $region29: #{net_forward.19} parent=5 // pred_check
      _
    $region30: #{net_forward.19} parent=5 // pred_check_branch
      %161 = sbr.rel (%p158) target = $region32
    $region31: #{net_forward.19} parent=5 // pred_region
      %s162 = ssub.s32 %s9, 1
      %p163 = scmp.lt.s32.totalorder %s18, 1
      %s164 = scalar_select %p163, %s18, 1
      %p165 = scmp.lt.s32.totalorder %s19, 0
      %s166 = scalar_select %p165, %s19, 0
      %s167 = smul.addr %s166, 2
      %s168 = smul.addr %s164, 2
      %s169 = sadd.s32 %s167, %s168
      %s170 = smul.addr %s169, 2
      %s171 = scalar_lea.vmem %s0, %s170
      %p172 = pneg %p49
      %p173 = pneg %p46
      %p174 = pneg %p70
      %p175 = pneg %p67
      %p176 = pneg %p91
      %p177 = pneg %p88
      %p178 = pneg %p119
      %p179 = pneg %p116
      %p180 = scmp.lt.s32.totalorder %s18, 1
      %s181 = scalar_select %p180, %s18, 1
      %p182 = scmp.lt.s32.totalorder %s19, 0
      %s183 = scalar_select %p182, %s19, 0
      %s184 = smul.addr %s183, 2
      %s185 = smul.addr %s181, 2
      %s186 = sadd.s32 %s184, %s185
      %s187 = smul.addr %s186, 2
      %s188 = scalar_lea.vmem %s3, %s187
      %p189 = scmp.lt.s32.totalorder %s18, 1
      %s190 = scalar_select %p189, %s18, 1
      %p191 = scmp.lt.s32.totalorder %s19, 0
      %s192 = scalar_select %p191, %s19, 0
      %s193 = smul.addr %s192, 2
      %s194 = smul.addr %s190, 2
      %s195 = sadd.s32 %s193, %s194
      %s196 = smul.addr %s195, 2
      %s197 = scalar_lea.vmem %s0, %s196
      %p198 = scmp.lt.s32.totalorder %s18, 1
      %s199 = scalar_select %p198, %s18, 1
      %p200 = scmp.lt.s32.totalorder %s19, 0
      %s201 = scalar_select %p200, %s19, 0
      %s202 = smul.addr %s201, 2
      %s203 = smul.addr %s199, 2
      %s204 = sadd.s32 %s202, %s203
      %s205 = smul.addr %s204, 2
      %s206 = scalar_lea.vmem %s3, %s205
      %v207 = vld [vmem:[%s197] sm:$0xf]
      %v208 = vld [vmem:[%s1] sm:$0xff]
      %v209 = vld [vmem:[%s1 + $0x8] sm:$0xff]
      %v210 = vld [vmem:[%s1 + $0x10] sm:$0xff]
      %v211 = vld [vmem:[%s1 + $0x18] sm:$0xff]
      %v212 = vld [vmem:[%s1 + $0x20] sm:$0xff]
      %v213 = vld [vmem:[%s1 + $0x28] sm:$0xff]
      %v214 = vld [vmem:[%s1 + $0x30] sm:$0xff]
      %v215 = vld [vmem:[%s1 + $0x38] sm:$0xff]
      %v216 = vld [vmem:[%s1 + $0x40] sm:$0xff]
      %v217 = vld [vmem:[%s1 + $0x48] sm:$0xff]
      %v218 = vld [vmem:[%s1 + $0x50] sm:$0xff]
      %v219 = vld [vmem:[%s1 + $0x58] sm:$0xff]
      %v220 = vld [vmem:[%s1 + $0x60] sm:$0xff]
      %v221 = vld [vmem:[%s1 + $0x68] sm:$0xff]
      %v222 = vld [vmem:[%s1 + $0x70] sm:$0xff]
      %v223 = vld [vmem:[%s1 + $0x78] sm:$0xff]
      %v224 = vld [vmem:[%s1 + $0x80] sm:$0xff]
      %v225 = vld [vmem:[%s1 + $0x88] sm:$0xff]
      %v226 = vld [vmem:[%s1 + $0x90] sm:$0xff]
      %v227 = vld [vmem:[%s1 + $0x98] sm:$0xff]
      %v228 = vld [vmem:[%s1 + $0xa0] sm:$0xff]
      %v229 = vld [vmem:[%s1 + $0xa8] sm:$0xff]
      %v230 = vld [vmem:[%s1 + $0xb0] sm:$0xff]
      %v231 = vld [vmem:[%s1 + $0xb8] sm:$0xff]
      %v232 = vld [vmem:[%s1 + $0xc0] sm:$0xff]
      %v233 = vld [vmem:[%s1 + $0xc8] sm:$0xff]
      %v234 = vld [vmem:[%s1 + $0xd0] sm:$0xff]
      %v235 = vld [vmem:[%s1 + $0xd8] sm:$0xff]
      %v236 = vld [vmem:[%s1 + $0xe0] sm:$0xff]
      %v237 = vld [vmem:[%s1 + $0xe8] sm:$0xff]
      %v238 = vld [vmem:[%s1 + $0xf0] sm:$0xff]
      %v239 = vld [vmem:[%s1 + $0xf8] sm:$0xff]
      %v240 = vld [vmem:[%s2] sm:$0x3]
      %v242 = vperm.slane %v240, 0
      %v243 = vperm.slane %v240, 1
      %247 = vst [vmem:[#allocation1] ss:$4 sm:$0xff] %v207
      %v248 = vld.sshfl [vmem:[#allocation1] sm:$0xff pattern:$0x73625140]
      %v249 = vld.sshfl [vmem:[#allocation1 + $0x8] sm:$0xff pattern:$0x73625140]
      %v284 = vunpack.c.l.b16 %v208
      %v285 = vunpack.c.h.b16 %v208
      %v286 = vunpack.c.l.b16 %v209
      %v287 = vunpack.c.h.b16 %v209
      %v288 = vunpack.c.l.b16 %v210
      %v289 = vunpack.c.h.b16 %v210
      %v290 = vunpack.c.l.b16 %v211
      %v291 = vunpack.c.h.b16 %v211
      %v292 = vunpack.c.l.b16 %v212
      %v293 = vunpack.c.h.b16 %v212
      %v294 = vunpack.c.l.b16 %v213
      %v295 = vunpack.c.h.b16 %v213
      %v296 = vunpack.c.l.b16 %v214
      %v297 = vunpack.c.h.b16 %v214
      %v298 = vunpack.c.l.b16 %v215
      %v299 = vunpack.c.h.b16 %v215
      %v300 = vunpack.c.l.b16 %v216
      %v301 = vunpack.c.h.b16 %v216
      %v302 = vunpack.c.l.b16 %v217
      %v303 = vunpack.c.h.b16 %v217
      %v304 = vunpack.c.l.b16 %v218
      %v305 = vunpack.c.h.b16 %v218
      %v306 = vunpack.c.l.b16 %v219
      %v307 = vunpack.c.h.b16 %v219
      %v308 = vunpack.c.l.b16 %v220
      %v309 = vunpack.c.h.b16 %v220
      %v310 = vunpack.c.l.b16 %v221
      %v311 = vunpack.c.h.b16 %v221
      %v312 = vunpack.c.l.b16 %v222
      %v313 = vunpack.c.h.b16 %v222
      %v314 = vunpack.c.l.b16 %v223
      %v315 = vunpack.c.h.b16 %v223
      %v316 = vunpack.c.l.b16 %v224
      %v317 = vunpack.c.h.b16 %v224
      %v318 = vunpack.c.l.b16 %v225
      %v319 = vunpack.c.h.b16 %v225
      %v320 = vunpack.c.l.b16 %v226
      %v321 = vunpack.c.h.b16 %v226
      %v322 = vunpack.c.l.b16 %v227
      %v323 = vunpack.c.h.b16 %v227
      %v324 = vunpack.c.l.b16 %v228
      %v325 = vunpack.c.h.b16 %v228
      %v326 = vunpack.c.l.b16 %v229
      %v327 = vunpack.c.h.b16 %v229
      %v328 = vunpack.c.l.b16 %v230
      %v329 = vunpack.c.h.b16 %v230
      %v330 = vunpack.c.l.b16 %v231
      %v331 = vunpack.c.h.b16 %v231
      %v332 = vunpack.c.l.b16 %v232
      %v333 = vunpack.c.h.b16 %v232
      %v334 = vunpack.c.l.b16 %v233
      %v335 = vunpack.c.h.b16 %v233
      %v336 = vunpack.c.l.b16 %v234
      %v337 = vunpack.c.h.b16 %v234
      %v338 = vunpack.c.l.b16 %v235
      %v339 = vunpack.c.h.b16 %v235
      %v340 = vunpack.c.l.b16 %v236
      %v341 = vunpack.c.h.b16 %v236
      %v342 = vunpack.c.l.b16 %v237
      %v343 = vunpack.c.h.b16 %v237
      %v344 = vunpack.c.l.b16 %v238
      %v345 = vunpack.c.h.b16 %v238
      %v346 = vunpack.c.l.b16 %v239
      %v347 = vunpack.c.h.b16 %v239
      %v348 = vpack.c.b16 %v286, %v284
      %v349 = vpack.c.b16 %v287, %v285
      %v350 = vpack.c.b16 %v290, %v288
      %v351 = vpack.c.b16 %v291, %v289
      %v352 = vpack.c.b16 %v294, %v292
      %v353 = vpack.c.b16 %v295, %v293
      %v354 = vpack.c.b16 %v298, %v296
      %v355 = vpack.c.b16 %v299, %v297
      %v356 = vpack.c.b16 %v302, %v300
      %v357 = vpack.c.b16 %v303, %v301
      %v358 = vpack.c.b16 %v306, %v304
      %v359 = vpack.c.b16 %v307, %v305
      %v360 = vpack.c.b16 %v310, %v308
      %v361 = vpack.c.b16 %v311, %v309
      %v362 = vpack.c.b16 %v314, %v312
      %v363 = vpack.c.b16 %v315, %v313
      %v364 = vpack.c.b16 %v318, %v316
      %v365 = vpack.c.b16 %v319, %v317
      %v366 = vpack.c.b16 %v322, %v320
      %v367 = vpack.c.b16 %v323, %v321
      %v368 = vpack.c.b16 %v326, %v324
      %v369 = vpack.c.b16 %v327, %v325
      %v370 = vpack.c.b16 %v330, %v328
      %v371 = vpack.c.b16 %v331, %v329
      %v372 = vpack.c.b16 %v334, %v332
      %v373 = vpack.c.b16 %v335, %v333
      %v374 = vpack.c.b16 %v338, %v336
      %v375 = vpack.c.b16 %v339, %v337
      %v376 = vpack.c.b16 %v342, %v340
      %v377 = vpack.c.b16 %v343, %v341
      %v378 = vpack.c.b16 %v346, %v344
      %v379 = vpack.c.b16 %v347, %v345
      %412 = vmatpush.bf16.msra.mxu0 %v362
      %413 = vmatpush.bf16.msra.mxu0 %v360
      %414 = vmatpush.bf16.msra.mxu0 %v358
      %415 = vmatpush.bf16.msra.mxu0 %v356
      %416 = vmatpush.bf16.msra.mxu0 %v354
      %417 = vmatpush.bf16.msra.mxu0 %v352
      %418 = vmatpush.bf16.msra.mxu0 %v350
      %419 = vmatpush.bf16.msra.mxu0 %v348
      %420 = vmatmul.bf16.gmra.mxu0 %v248
      %v421 = vpop.f32.mrf.mxu0
      %v422 = vadd.f32 %v242, %v421
      %v423 = vpop.f32.mrf.mxu0
      %424 = vdwg.mxu0
      %425 = vmatpush.bf16.msra.mxu0 %v378
      %426 = vmatpush.bf16.msra.mxu0 %v376
      %427 = vmatpush.bf16.msra.mxu0 %v374
      %428 = vmatpush.bf16.msra.mxu0 %v372
      %429 = vmatpush.bf16.msra.mxu0 %v370
      %430 = vmatpush.bf16.msra.mxu0 %v368
      %431 = vmatpush.bf16.msra.mxu0 %v366
      %432 = vmatpush.bf16.msra.mxu0 %v364
      %433 = vmatmul.bf16.gmra.mxu0 %v249
      %v434 = vpop.f32.mrf.mxu0
      %v435 = vadd.f32 %v422, %v434
      %v436 = vpop.f32.mrf.mxu0
      %437 = vdwg.mxu0
      %438 = vmatpush.bf16.msra.mxu0 %v363
      %439 = vmatpush.bf16.msra.mxu0 %v361
      %440 = vmatpush.bf16.msra.mxu0 %v359
      %441 = vmatpush.bf16.msra.mxu0 %v357
      %442 = vmatpush.bf16.msra.mxu0 %v355
      %443 = vmatpush.bf16.msra.mxu0 %v353
      %444 = vmatpush.bf16.msra.mxu0 %v351
      %445 = vmatpush.bf16.msra.mxu0 %v349
      %446 = vmatmul.bf16.gmra.mxu0 %v248
      %v447 = vpop.f32.mrf.mxu0
      %v448 = vadd.f32 %v243, %v447
      %v449 = vpop.f32.mrf.mxu0
      %450 = vdwg.mxu0
      %451 = vmatpush.bf16.msra.mxu0 %v379
      %452 = vmatpush.bf16.msra.mxu0 %v377
      %453 = vmatpush.bf16.msra.mxu0 %v375
      %454 = vmatpush.bf16.msra.mxu0 %v373
      %455 = vmatpush.bf16.msra.mxu0 %v371
      %456 = vmatpush.bf16.msra.mxu0 %v369
      %457 = vmatpush.bf16.msra.mxu0 %v367
      %458 = vmatpush.bf16.msra.mxu0 %v365
      %459 = vmatmul.bf16.gmra.mxu0 %v249
      %v460 = vpop.f32.mrf.mxu0
      %v461 = vadd.f32 %v448, %v460
      %v462 = vpop.f32.mrf.mxu0
      %463 = vdwg.mxu0
      %v464 = vpack.c.bf16 %v461, %v435
      %v466 = vrot.slane %v464, 2
      %vm467 = vcmask 1041408
      %v470 = vsel %vm467, %v464, %v466
      %vm472 = vcmask 257026
      %vm473 = vmor %vm472, %vm467
      %474 = vst.msk [vmem:[%s206] sm:$0xf] %vm473, %v470
      %p475 = scmp.lt.s32.totalorder %s18, 1
      %s476 = scalar_select %p475, %s18, 1
      %p477 = scmp.lt.s32.totalorder %s19, 0
      %s478 = scalar_select %p477, %s19, 0
      %s479 = smul.addr %s478, 2
      %s480 = smul.addr %s476, 2
      %s481 = sadd.s32 %s479, %s480
      %s482 = smul.addr %s481, 2
      %s483 = scalar_lea.vmem %s3, %s482
      // Predicated region
      $region33: #{net_forward.19} parent=31 // pred_check
        %p484 = pneg %p116
      $region34: #{net_forward.19} parent=31 // pred_check_branch
        %486 = sbr.rel (%p484) target = $region36
      $region35: #{net_forward.19} parent=31 // pred_region
        _
      $region36: #{net_forward.19} parent=31 // pred_fallthru
        _
    $region32: #{net_forward.19} parent=5 // pred_fallthru
      _
    %p487 = scmp.le.s32.totalorder 2, %s9
    // Predicated region
    $region37: #{net_forward.19} parent=5 // pred_check
      %p488 = pneg %p487
    $region38: #{net_forward.19} parent=5 // pred_check_branch
      %490 = sbr.rel (%p488) target = $region40
    $region39: #{net_forward.19} parent=5 // pred_region
      %s491 = ssub.s32 %s9, 2
      // Predicated region
      $region41: #{net_forward.19} parent=39 // pred_check
        %p492 = pneg %p122
      $region42: #{net_forward.19} parent=39 // pred_check_branch
        %494 = sbr.rel (%p492) target = $region44
      $region43: #{net_forward.19} parent=39 // pred_region
        %p495 = scmp.lt.s32.totalorder %s20, 1
        %s496 = scalar_select %p495, %s20, 1
        %p497 = scmp.lt.s32.totalorder %s21, 0
        %s498 = scalar_select %p497, %s21, 0
        %s499 = smul.addr %s498, 2
        %s500 = smul.addr %s496, 2
        %s501 = sadd.s32 %s499, %s500
        %s502 = smul.addr %s501, 2
        %s503 = scalar_lea.vmem %s3, %s502
      $region44: #{net_forward.19} parent=39 // pred_fallthru
        _
    $region40: #{net_forward.19} parent=5 // pred_fallthru
      _
  $region6: #{net_forward.19} parent=0 // loop_footer
    %s13 = sadd.s32 1, %s9
  $region7: #{net_forward.19} parent=0 // loop_footer_branch
    %8 = sbr.rel target = $region3
  $region8: #{net_forward.19} parent=0 // loop_exit
    _

// kernel: net_forward.17
$region0: #{net_forward.17}
  #allocation0 [shape = 'u32[]', space=smem, size = 0x4, offset = 0x4, fixed_abs, tag = 'smem constant byte address 0x4 - core index']
  #allocation1 [shape = 'u32[72,128]{1,0:T(1,128)}', space=vmem, size = 0x9000, scoped, tag = 'internal scratch']
  %s0 = inlined_call_operand.vmem [shape: bf16[2,4,256], index: 0, kind: input, shape index: {}]
  %s1 = inlined_call_operand.vmem [shape: bf16[256,256], index: 1, kind: input, shape index: {}]
  %s2 = inlined_call_operand.vmem [shape: f32[1,256], index: 2, kind: input, shape index: {}]
  %s3 = inlined_call_operand.vmem [shape: bf16[2,4,256], index: 3, kind: output, shape index: {}]
  %s4 = sld [smem:[#allocation0]]
  $region45: #{net_forward.17} parent=0
    _
  %s6 = ssub.s32 1, %s4
  %s7 = scalar_select 0, %s6, %s4
  loop: start=0, step=1, limit=4
  $region2: #{net_forward.17} parent=0 // loop_pre_header
    _
  $region3: #{net_forward.17} parent=0 // loop_header
    %s9 = sphi 0, %s13
    %p10 = scmp.ge.s32.totalorder %s9, 4
    %s16 = sphi 0, %s28
    %s17 = sphi 0, %s24
    %s18 = sphi 0, %s16
    %s19 = sphi 0, %s17
    %s20 = sphi 0, %s18
    %s21 = sphi 0, %s19
    %s33 = sphi 0, %s35
    %s36 = sphi 0, %s33
    %s37 = sphi 0, %s36
    %s53 = sphi 0, %s37
    %s57 = sphi 0, %s57
    %s59 = sphi 0, %s57
    %s60 = sphi 0, %s59
    %s74 = sphi 0, %s60
    %s78 = sphi 0, %s78
    %s80 = sphi 0, %s78
    %s81 = sphi 0, %s80
    %s95 = sphi 0, %s81
    %s103 = sphi 0, %s105
    %s106 = sphi 0, %s103
    %s107 = sphi 0, %s106
    %s123 = sphi 0, %s107
  $region4: #{net_forward.17} parent=0 // loop_header_branch
    %12 = sbr.rel (%p10) target = $region8
  $region5: #{net_forward.17} parent=0 // loop_body
    %s14 = ssub.s32 %s9, 1
    %s15 = ssub.s32 %s9, 2
    %s22 = sadd.s32 1, %s17
    %p23 = scmp.ge.s32.totalorder %s22, 1
    %s24 = scalar_select %p23, 0, %s22
    %s25 = sadd.s32 1, %s16
    %s26 = scalar_select %p23, %s25, %s16
    %p27 = scmp.ge.s32.totalorder %s26, 2
    %s28 = scalar_select %p27, 0, %s26
    %s29 = ssub.s32 %s16, %s28
    %s30 = ssub.s32 %s17, %s24
    %s31 = sor.u32 %s29, %s30
    %p32 = scmp.eq.s32.totalorder %s31, 0
    %s34 = sadd.s32 %s33, 1
    %s35 = scalar_select %p32, %s33, %s34
    %p38 = pneg %p32
    %p39 = scmp.eq.s32.totalorder %s9, 1
    %p40 = por %p38, %p39
    %p41 = scmp.ne.s32.totalorder %s33, %s36
    %p42 = scmp.eq.s32.totalorder %s9, 0
    %p43 = por %p41, %p42
    %p44 = scmp.ne.s32.totalorder %s33, %s36
    %p45 = scmp.eq.s32.totalorder %s14, 1
    %p46 = por %p44, %p45
    %p47 = scmp.ne.s32.totalorder %s36, %s37
    %p48 = scmp.eq.s32.totalorder %s14, 0
    %p49 = por %p47, %p48
    %p50 = scmp.ne.s32.totalorder %s36, %s37
    %p51 = scmp.eq.s32.totalorder %s15, 1
    %p52 = por %p50, %p51
    %p54 = scmp.ne.s32.totalorder %s37, %s53
    %p55 = scmp.eq.s32.totalorder %s15, 0
    %p56 = por %p54, %p55
    %s58 = sadd.s32 %s57, 1
    %p61 = scmp.eq.s32.totalorder %s9, 1
    %p62 = scmp.ne.s32.totalorder %s57, %s59
    %p63 = scmp.eq.s32.totalorder %s9, 0
    %p64 = por %p62, %p63
    %p65 = scmp.ne.s32.totalorder %s57, %s59
    %p66 = scmp.eq.s32.totalorder %s14, 1
    %p67 = por %p65, %p66
    %p68 = scmp.ne.s32.totalorder %s59, %s60
    %p69 = scmp.eq.s32.totalorder %s14, 0
    %p70 = por %p68, %p69
    %p71 = scmp.ne.s32.totalorder %s59, %s60
    %p72 = scmp.eq.s32.totalorder %s15, 1
    %p73 = por %p71, %p72
    %p75 = scmp.ne.s32.totalorder %s60, %s74
    %p76 = scmp.eq.s32.totalorder %s15, 0
    %p77 = por %p75, %p76
    %s79 = sadd.s32 %s78, 1
    %p82 = scmp.eq.s32.totalorder %s9, 1
    %p83 = scmp.ne.s32.totalorder %s78, %s80
    %p84 = scmp.eq.s32.totalorder %s9, 0
    %p85 = por %p83, %p84
    %p86 = scmp.ne.s32.totalorder %s78, %s80
    %p87 = scmp.eq.s32.totalorder %s14, 1
    %p88 = por %p86, %p87
    %p89 = scmp.ne.s32.totalorder %s80, %s81
    %p90 = scmp.eq.s32.totalorder %s14, 0
    %p91 = por %p89, %p90
    %p92 = scmp.ne.s32.totalorder %s80, %s81
    %p93 = scmp.eq.s32.totalorder %s15, 1
    %p94 = por %p92, %p93
    %p96 = scmp.ne.s32.totalorder %s81, %s95
    %p97 = scmp.eq.s32.totalorder %s15, 0
    %p98 = por %p96, %p97
    %s99 = ssub.s32 %s16, %s28
    %s100 = ssub.s32 %s17, %s24
    %s101 = sor.u32 %s99, %s100
    %p102 = scmp.eq.s32.totalorder %s101, 0
    %s104 = sadd.s32 %s103, 1
    %s105 = scalar_select %p102, %s103, %s104
    %p108 = pneg %p102
    %p109 = scmp.eq.s32.totalorder %s9, 1
    %p110 = por %p108, %p109
    %p111 = scmp.ne.s32.totalorder %s103, %s106
    %p112 = scmp.eq.s32.totalorder %s9, 0
    %p113 = por %p111, %p112
    %p114 = scmp.ne.s32.totalorder %s103, %s106
    %p115 = scmp.eq.s32.totalorder %s14, 1
    %p116 = por %p114, %p115
    %p117 = scmp.ne.s32.totalorder %s106, %s107
    %p118 = scmp.eq.s32.totalorder %s14, 0
    %p119 = por %p117, %p118
    %p120 = scmp.ne.s32.totalorder %s106, %s107
    %p121 = scmp.eq.s32.totalorder %s15, 1
    %p122 = por %p120, %p121
    %p124 = scmp.ne.s32.totalorder %s107, %s123
    %p125 = scmp.eq.s32.totalorder %s15, 0
    %p126 = por %p124, %p125
    %p127 = scmp.le.s32.totalorder 1, %s9
    %p128 = scmp.lt.s32.totalorder %s9, 3
    %p129 = pnand %p127, %p128
    %p130 = pneg %p129
    // Predicated region
    $region9: #{net_forward.17} parent=5 // pred_check
      _
    $region10: #{net_forward.17} parent=5 // pred_check_branch
      %132 = sbr.rel (%p129) target = $region12
    $region11: #{net_forward.17} parent=5 // pred_region
      %s133 = ssub.s32 %s9, 1
      // Predicated region
      $region13: #{net_forward.17} parent=11 // pred_check
        %p134 = pneg %p70
      $region14: #{net_forward.17} parent=11 // pred_check_branch
        %136 = sbr.rel (%p134) target = $region16
      $region15: #{net_forward.17} parent=11 // pred_region
        _
      $region16: #{net_forward.17} parent=11 // pred_fallthru
        _
      // Predicated region
      $region17: #{net_forward.17} parent=11 // pred_check
        %p137 = pneg %p91
      $region18: #{net_forward.17} parent=11 // pred_check_branch
        %139 = sbr.rel (%p137) target = $region20
      $region19: #{net_forward.17} parent=11 // pred_region
        _
      $region20: #{net_forward.17} parent=11 // pred_fallthru
        _
    $region12: #{net_forward.17} parent=5 // pred_fallthru
      _
    %p140 = scmp.lt.s32.totalorder %s9, 2
    // Predicated region
    $region21: #{net_forward.17} parent=5 // pred_check
      %p141 = pneg %p140
    $region22: #{net_forward.17} parent=5 // pred_check_branch
      %143 = sbr.rel (%p141) target = $region24
    $region23: #{net_forward.17} parent=5 // pred_region
      // Predicated region
      $region25: #{net_forward.17} parent=23 // pred_check
        %p144 = pneg %p43
      $region26: #{net_forward.17} parent=23 // pred_check_branch
        %146 = sbr.rel (%p144) target = $region28
      $region27: #{net_forward.17} parent=23 // pred_region
        %p147 = scmp.lt.s32.totalorder %s16, 1
        %s148 = scalar_select %p147, %s16, 1
        %p149 = scmp.lt.s32.totalorder %s17, 0
        %s150 = scalar_select %p149, %s17, 0
        %s151 = smul.addr %s150, 2
        %s152 = smul.addr %s148, 2
        %s153 = sadd.s32 %s151, %s152
        %s154 = smul.addr %s153, 2
        %s155 = scalar_lea.vmem %s0, %s154
      $region28: #{net_forward.17} parent=23 // pred_fallthru
        _
    $region24: #{net_forward.17} parent=5 // pred_fallthru
      _
    %p156 = scmp.le.s32.totalorder 1, %s9
    %p157 = scmp.lt.s32.totalorder %s9, 3
    %p158 = pnand %p156, %p157
    %p159 = pneg %p158
    // Predicated region
    $region29: #{net_forward.17} parent=5 // pred_check
      _
    $region30: #{net_forward.17} parent=5 // pred_check_branch
      %161 = sbr.rel (%p158) target = $region32
    $region31: #{net_forward.17} parent=5 // pred_region
      %s162 = ssub.s32 %s9, 1
      %p163 = scmp.lt.s32.totalorder %s18, 1
      %s164 = scalar_select %p163, %s18, 1
      %p165 = scmp.lt.s32.totalorder %s19, 0
      %s166 = scalar_select %p165, %s19, 0
      %s167 = smul.addr %s166, 2
      %s168 = smul.addr %s164, 2
      %s169 = sadd.s32 %s167, %s168
      %s170 = smul.addr %s169, 2
      %s171 = scalar_lea.vmem %s0, %s170
      %p172 = pneg %p49
      %p173 = pneg %p46
      %p174 = pneg %p70
      %p175 = pneg %p67
      %p176 = pneg %p91
      %p177 = pneg %p88
      %p178 = pneg %p119
      %p179 = pneg %p116
      %p180 = scmp.lt.s32.totalorder %s18, 1
      %s181 = scalar_select %p180, %s18, 1
      %p182 = scmp.lt.s32.totalorder %s19, 0
      %s183 = scalar_select %p182, %s19, 0
      %s184 = smul.addr %s183, 2
      %s185 = smul.addr %s181, 2
      %s186 = sadd.s32 %s184, %s185
      %s187 = smul.addr %s186, 2
      %s188 = scalar_lea.vmem %s3, %s187
      %p189 = scmp.lt.s32.totalorder %s18, 1
      %s190 = scalar_select %p189, %s18, 1
      %p191 = scmp.lt.s32.totalorder %s19, 0
      %s192 = scalar_select %p191, %s19, 0
      %s193 = smul.addr %s192, 2
      %s194 = smul.addr %s190, 2
      %s195 = sadd.s32 %s193, %s194
      %s196 = smul.addr %s195, 2
      %s197 = scalar_lea.vmem %s0, %s196
      %p198 = scmp.lt.s32.totalorder %s18, 1
      %s199 = scalar_select %p198, %s18, 1
      %p200 = scmp.lt.s32.totalorder %s19, 0
      %s201 = scalar_select %p200, %s19, 0
      %s202 = smul.addr %s201, 2
      %s203 = smul.addr %s199, 2
      %s204 = sadd.s32 %s202, %s203
      %s205 = smul.addr %s204, 2
      %s206 = scalar_lea.vmem %s3, %s205
      %v207 = vld [vmem:[%s197] sm:$0xf]
      %v208 = vld [vmem:[%s1] sm:$0xff]
      %v209 = vld [vmem:[%s1 + $0x8] sm:$0xff]
      %v210 = vld [vmem:[%s1 + $0x10] sm:$0xff]
      %v211 = vld [vmem:[%s1 + $0x18] sm:$0xff]
      %v212 = vld [vmem:[%s1 + $0x20] sm:$0xff]
      %v213 = vld [vmem:[%s1 + $0x28] sm:$0xff]
      %v214 = vld [vmem:[%s1 + $0x30] sm:$0xff]
      %v215 = vld [vmem:[%s1 + $0x38] sm:$0xff]
      %v216 = vld [vmem:[%s1 + $0x40] sm:$0xff]
      %v217 = vld [vmem:[%s1 + $0x48] sm:$0xff]
      %v218 = vld [vmem:[%s1 + $0x50] sm:$0xff]
      %v219 = vld [vmem:[%s1 + $0x58] sm:$0xff]
      %v220 = vld [vmem:[%s1 + $0x60] sm:$0xff]
      %v221 = vld [vmem:[%s1 + $0x68] sm:$0xff]
      %v222 = vld [vmem:[%s1 + $0x70] sm:$0xff]
      %v223 = vld [vmem:[%s1 + $0x78] sm:$0xff]
      %v224 = vld [vmem:[%s1 + $0x80] sm:$0xff]
      %v225 = vld [vmem:[%s1 + $0x88] sm:$0xff]
      %v226 = vld [vmem:[%s1 + $0x90] sm:$0xff]
      %v227 = vld [vmem:[%s1 + $0x98] sm:$0xff]
      %v228 = vld [vmem:[%s1 + $0xa0] sm:$0xff]
      %v229 = vld [vmem:[%s1 + $0xa8] sm:$0xff]
      %v230 = vld [vmem:[%s1 + $0xb0] sm:$0xff]
      %v231 = vld [vmem:[%s1 + $0xb8] sm:$0xff]
      %v232 = vld [vmem:[%s1 + $0xc0] sm:$0xff]
      %v233 = vld [vmem:[%s1 + $0xc8] sm:$0xff]
      %v234 = vld [vmem:[%s1 + $0xd0] sm:$0xff]
      %v235 = vld [vmem:[%s1 + $0xd8] sm:$0xff]
      %v236 = vld [vmem:[%s1 + $0xe0] sm:$0xff]
      %v237 = vld [vmem:[%s1 + $0xe8] sm:$0xff]
      %v238 = vld [vmem:[%s1 + $0xf0] sm:$0xff]
      %v239 = vld [vmem:[%s1 + $0xf8] sm:$0xff]
      %v240 = vld [vmem:[%s2] sm:$0x3]
      %v242 = vperm.slane %v240, 0
      %v243 = vperm.slane %v240, 1
      %247 = vst [vmem:[#allocation1] ss:$4 sm:$0xff] %v207
      %v248 = vld.sshfl [vmem:[#allocation1] sm:$0xff pattern:$0x73625140]
      %v249 = vld.sshfl [vmem:[#allocation1 + $0x8] sm:$0xff pattern:$0x73625140]
      %v284 = vunpack.c.l.b16 %v208
      %v285 = vunpack.c.h.b16 %v208
      %v286 = vunpack.c.l.b16 %v209
      %v287 = vunpack.c.h.b16 %v209
      %v288 = vunpack.c.l.b16 %v210
      %v289 = vunpack.c.h.b16 %v210
      %v290 = vunpack.c.l.b16 %v211
      %v291 = vunpack.c.h.b16 %v211
      %v292 = vunpack.c.l.b16 %v212
      %v293 = vunpack.c.h.b16 %v212
      %v294 = vunpack.c.l.b16 %v213
      %v295 = vunpack.c.h.b16 %v213
      %v296 = vunpack.c.l.b16 %v214
      %v297 = vunpack.c.h.b16 %v214
      %v298 = vunpack.c.l.b16 %v215
      %v299 = vunpack.c.h.b16 %v215
      %v300 = vunpack.c.l.b16 %v216
      %v301 = vunpack.c.h.b16 %v216
      %v302 = vunpack.c.l.b16 %v217
      %v303 = vunpack.c.h.b16 %v217
      %v304 = vunpack.c.l.b16 %v218
      %v305 = vunpack.c.h.b16 %v218
      %v306 = vunpack.c.l.b16 %v219
      %v307 = vunpack.c.h.b16 %v219
      %v308 = vunpack.c.l.b16 %v220
      %v309 = vunpack.c.h.b16 %v220
      %v310 = vunpack.c.l.b16 %v221
      %v311 = vunpack.c.h.b16 %v221
      %v312 = vunpack.c.l.b16 %v222
      %v313 = vunpack.c.h.b16 %v222
      %v314 = vunpack.c.l.b16 %v223
      %v315 = vunpack.c.h.b16 %v223
      %v316 = vunpack.c.l.b16 %v224
      %v317 = vunpack.c.h.b16 %v224
      %v318 = vunpack.c.l.b16 %v225
      %v319 = vunpack.c.h.b16 %v225
      %v320 = vunpack.c.l.b16 %v226
      %v321 = vunpack.c.h.b16 %v226
      %v322 = vunpack.c.l.b16 %v227
      %v323 = vunpack.c.h.b16 %v227
      %v324 = vunpack.c.l.b16 %v228
      %v325 = vunpack.c.h.b16 %v228
      %v326 = vunpack.c.l.b16 %v229
      %v327 = vunpack.c.h.b16 %v229
      %v328 = vunpack.c.l.b16 %v230
      %v329 = vunpack.c.h.b16 %v230
      %v330 = vunpack.c.l.b16 %v231
      %v331 = vunpack.c.h.b16 %v231
      %v332 = vunpack.c.l.b16 %v232
      %v333 = vunpack.c.h.b16 %v232
      %v334 = vunpack.c.l.b16 %v233
      %v335 = vunpack.c.h.b16 %v233
      %v336 = vunpack.c.l.b16 %v234
      %v337 = vunpack.c.h.b16 %v234
      %v338 = vunpack.c.l.b16 %v235
      %v339 = vunpack.c.h.b16 %v235
      %v340 = vunpack.c.l.b16 %v236
      %v341 = vunpack.c.h.b16 %v236
      %v342 = vunpack.c.l.b16 %v237
      %v343 = vunpack.c.h.b16 %v237
      %v344 = vunpack.c.l.b16 %v238
      %v345 = vunpack.c.h.b16 %v238
      %v346 = vunpack.c.l.b16 %v239
      %v347 = vunpack.c.h.b16 %v239
      %v348 = vpack.c.b16 %v286, %v284
      %v349 = vpack.c.b16 %v287, %v285
      %v350 = vpack.c.b16 %v290, %v288
      %v351 = vpack.c.b16 %v291, %v289
      %v352 = vpack.c.b16 %v294, %v292
      %v353 = vpack.c.b16 %v295, %v293
      %v354 = vpack.c.b16 %v298, %v296
      %v355 = vpack.c.b16 %v299, %v297
      %v356 = vpack.c.b16 %v302, %v300
      %v357 = vpack.c.b16 %v303, %v301
      %v358 = vpack.c.b16 %v306, %v304
      %v359 = vpack.c.b16 %v307, %v305
      %v360 = vpack.c.b16 %v310, %v308
      %v361 = vpack.c.b16 %v311, %v309
      %v362 = vpack.c.b16 %v314, %v312
      %v363 = vpack.c.b16 %v315, %v313
      %v364 = vpack.c.b16 %v318, %v316
      %v365 = vpack.c.b16 %v319, %v317
      %v366 = vpack.c.b16 %v322, %v320
      %v367 = vpack.c.b16 %v323, %v321
      %v368 = vpack.c.b16 %v326, %v324
      %v369 = vpack.c.b16 %v327, %v325
      %v370 = vpack.c.b16 %v330, %v328
      %v371 = vpack.c.b16 %v331, %v329
      %v372 = vpack.c.b16 %v334, %v332
      %v373 = vpack.c.b16 %v335, %v333
      %v374 = vpack.c.b16 %v338, %v336
      %v375 = vpack.c.b16 %v339, %v337
      %v376 = vpack.c.b16 %v342, %v340
      %v377 = vpack.c.b16 %v343, %v341
      %v378 = vpack.c.b16 %v346, %v344
      %v379 = vpack.c.b16 %v347, %v345
      %412 = vmatpush.bf16.msra.mxu0 %v362
      %413 = vmatpush.bf16.msra.mxu0 %v360
      %414 = vmatpush.bf16.msra.mxu0 %v358
      %415 = vmatpush.bf16.msra.mxu0 %v356
      %416 = vmatpush.bf16.msra.mxu0 %v354
      %417 = vmatpush.bf16.msra.mxu0 %v352
      %418 = vmatpush.bf16.msra.mxu0 %v350
      %419 = vmatpush.bf16.msra.mxu0 %v348
      %420 = vmatmul.bf16.gmra.mxu0 %v248
      %v421 = vpop.f32.mrf.mxu0
      %v422 = vadd.f32 %v242, %v421
      %v423 = vpop.f32.mrf.mxu0
      %424 = vdwg.mxu0
      %425 = vmatpush.bf16.msra.mxu0 %v378
      %426 = vmatpush.bf16.msra.mxu0 %v376
      %427 = vmatpush.bf16.msra.mxu0 %v374
      %428 = vmatpush.bf16.msra.mxu0 %v372
      %429 = vmatpush.bf16.msra.mxu0 %v370
      %430 = vmatpush.bf16.msra.mxu0 %v368
      %431 = vmatpush.bf16.msra.mxu0 %v366
      %432 = vmatpush.bf16.msra.mxu0 %v364
      %433 = vmatmul.bf16.gmra.mxu0 %v249
      %v434 = vpop.f32.mrf.mxu0
      %v435 = vadd.f32 %v422, %v434
      %v436 = vpop.f32.mrf.mxu0
      %437 = vdwg.mxu0
      %438 = vmatpush.bf16.msra.mxu0 %v363
      %439 = vmatpush.bf16.msra.mxu0 %v361
      %440 = vmatpush.bf16.msra.mxu0 %v359
      %441 = vmatpush.bf16.msra.mxu0 %v357
      %442 = vmatpush.bf16.msra.mxu0 %v355
      %443 = vmatpush.bf16.msra.mxu0 %v353
      %444 = vmatpush.bf16.msra.mxu0 %v351
      %445 = vmatpush.bf16.msra.mxu0 %v349
      %446 = vmatmul.bf16.gmra.mxu0 %v248
      %v447 = vpop.f32.mrf.mxu0
      %v448 = vadd.f32 %v243, %v447
      %v449 = vpop.f32.mrf.mxu0
      %450 = vdwg.mxu0
      %451 = vmatpush.bf16.msra.mxu0 %v379
      %452 = vmatpush.bf16.msra.mxu0 %v377
      %453 = vmatpush.bf16.msra.mxu0 %v375
      %454 = vmatpush.bf16.msra.mxu0 %v373
      %455 = vmatpush.bf16.msra.mxu0 %v371
      %456 = vmatpush.bf16.msra.mxu0 %v369
      %457 = vmatpush.bf16.msra.mxu0 %v367
      %458 = vmatpush.bf16.msra.mxu0 %v365
      %459 = vmatmul.bf16.gmra.mxu0 %v249
      %v460 = vpop.f32.mrf.mxu0
      %v461 = vadd.f32 %v448, %v460
      %v462 = vpop.f32.mrf.mxu0
      %463 = vdwg.mxu0
      %v464 = vpack.c.bf16 %v461, %v435
      %v466 = vrot.slane %v464, 2
      %vm467 = vcmask 1041408
      %v470 = vsel %vm467, %v464, %v466
      %472 = vst [vmem:[%s206] sm:$0xf] %v470
      %p473 = scmp.lt.s32.totalorder %s18, 1
      %s474 = scalar_select %p473, %s18, 1
      %p475 = scmp.lt.s32.totalorder %s19, 0
      %s476 = scalar_select %p475, %s19, 0
      %s477 = smul.addr %s476, 2
      %s478 = smul.addr %s474, 2
      %s479 = sadd.s32 %s477, %s478
      %s480 = smul.addr %s479, 2
      %s481 = scalar_lea.vmem %s3, %s480
      // Predicated region
      $region33: #{net_forward.17} parent=31 // pred_check
        %p482 = pneg %p116
      $region34: #{net_forward.17} parent=31 // pred_check_branch
        %484 = sbr.rel (%p482) target = $region36
      $region35: #{net_forward.17} parent=31 // pred_region
        _
      $region36: #{net_forward.17} parent=31 // pred_fallthru
        _
    $region32: #{net_forward.17} parent=5 // pred_fallthru
      _
    %p485 = scmp.le.s32.totalorder 2, %s9
    // Predicated region
    $region37: #{net_forward.17} parent=5 // pred_check
      %p486 = pneg %p485
    $region38: #{net_forward.17} parent=5 // pred_check_branch
      %488 = sbr.rel (%p486) target = $region40
    $region39: #{net_forward.17} parent=5 // pred_region
      %s489 = ssub.s32 %s9, 2
      // Predicated region
      $region41: #{net_forward.17} parent=39 // pred_check
        %p490 = pneg %p122
      $region42: #{net_forward.17} parent=39 // pred_check_branch
        %492 = sbr.rel (%p490) target = $region44
      $region43: #{net_forward.17} parent=39 // pred_region
        %p493 = scmp.lt.s32.totalorder %s20, 1
        %s494 = scalar_select %p493, %s20, 1
        %p495 = scmp.lt.s32.totalorder %s21, 0
        %s496 = scalar_select %p495, %s21, 0
        %s497 = smul.addr %s496, 2
        %s498 = smul.addr %s494, 2
        %s499 = sadd.s32 %s497, %s498
        %s500 = smul.addr %s499, 2
        %s501 = scalar_lea.vmem %s3, %s500
      $region44: #{net_forward.17} parent=39 // pred_fallthru
        _
    $region40: #{net_forward.17} parent=5 // pred_fallthru
      _
  $region6: #{net_forward.17} parent=0 // loop_footer
    %s13 = sadd.s32 1, %s9
  $region7: #{net_forward.17} parent=0 // loop_footer_branch
    %8 = sbr.rel target = $region3
  $region8: #{net_forward.17} parent=0 // loop_exit
    _

// kernel: net_forward.18
$region0: #{net_forward.18}
  #allocation0 [shape = 'u32[]', space=smem, size = 0x4, offset = 0x4, fixed_abs, tag = 'smem constant byte address 0x4 - core index']
  #allocation1 [shape = 'u32[72,128]{1,0:T(1,128)}', space=vmem, size = 0x9000, scoped, tag = 'internal scratch']
  %s0 = inlined_call_operand.vmem [shape: bf16[2,4,480], index: 0, kind: input, shape index: {}]
  %s1 = inlined_call_operand.vmem [shape: bf16[480,256], index: 1, kind: input, shape index: {}]
  %s2 = inlined_call_operand.vmem [shape: f32[1,256], index: 2, kind: input, shape index: {}]
  %s3 = inlined_call_operand.vmem [shape: bf16[2,4,256], index: 3, kind: input, shape index: {}]
  %s4 = inlined_call_operand.vmem [shape: bf16[2,4,256], index: 4, kind: output, shape index: {}]
  %s5 = sld [smem:[#allocation0]]
  $region49: #{net_forward.18} parent=0
    _
  %s7 = ssub.s32 1, %s5
  %s8 = scalar_select 0, %s7, %s5
  loop: start=0, step=1, limit=4
  $region2: #{net_forward.18} parent=0 // loop_pre_header
    _
  $region3: #{net_forward.18} parent=0 // loop_header
    %s10 = sphi 0, %s14
    %p11 = scmp.ge.s32.totalorder %s10, 4
    %s17 = sphi 0, %s29
    %s18 = sphi 0, %s25
    %s19 = sphi 0, %s17
    %s20 = sphi 0, %s18
    %s21 = sphi 0, %s19
    %s22 = sphi 0, %s20
    %s34 = sphi 0, %s36
    %s37 = sphi 0, %s34
    %s38 = sphi 0, %s37
    %s54 = sphi 0, %s38
    %s58 = sphi 0, %s58
    %s60 = sphi 0, %s58
    %s61 = sphi 0, %s60
    %s75 = sphi 0, %s61
    %s79 = sphi 0, %s79
    %s81 = sphi 0, %s79
    %s82 = sphi 0, %s81
    %s96 = sphi 0, %s82
    %s104 = sphi 0, %s106
    %s107 = sphi 0, %s104
    %s108 = sphi 0, %s107
    %s124 = sphi 0, %s108
    %s132 = sphi 0, %s134
    %s135 = sphi 0, %s132
    %s136 = sphi 0, %s135
    %s152 = sphi 0, %s136
  $region4: #{net_forward.18} parent=0 // loop_header_branch
    %13 = sbr.rel (%p11) target = $region8
  $region5: #{net_forward.18} parent=0 // loop_body
    %s15 = ssub.s32 %s10, 1
    %s16 = ssub.s32 %s10, 2
    %s23 = sadd.s32 1, %s18
    %p24 = scmp.ge.s32.totalorder %s23, 1
    %s25 = scalar_select %p24, 0, %s23
    %s26 = sadd.s32 1, %s17
    %s27 = scalar_select %p24, %s26, %s17
    %p28 = scmp.ge.s32.totalorder %s27, 2
    %s29 = scalar_select %p28, 0, %s27
    %s30 = ssub.s32 %s17, %s29
    %s31 = ssub.s32 %s18, %s25
    %s32 = sor.u32 %s30, %s31
    %p33 = scmp.eq.s32.totalorder %s32, 0
    %s35 = sadd.s32 %s34, 1
    %s36 = scalar_select %p33, %s34, %s35
    %p39 = pneg %p33
    %p40 = scmp.eq.s32.totalorder %s10, 1
    %p41 = por %p39, %p40
    %p42 = scmp.ne.s32.totalorder %s34, %s37
    %p43 = scmp.eq.s32.totalorder %s10, 0
    %p44 = por %p42, %p43
    %p45 = scmp.ne.s32.totalorder %s34, %s37
    %p46 = scmp.eq.s32.totalorder %s15, 1
    %p47 = por %p45, %p46
    %p48 = scmp.ne.s32.totalorder %s37, %s38
    %p49 = scmp.eq.s32.totalorder %s15, 0
    %p50 = por %p48, %p49
    %p51 = scmp.ne.s32.totalorder %s37, %s38
    %p52 = scmp.eq.s32.totalorder %s16, 1
    %p53 = por %p51, %p52
    %p55 = scmp.ne.s32.totalorder %s38, %s54
    %p56 = scmp.eq.s32.totalorder %s16, 0
    %p57 = por %p55, %p56
    %s59 = sadd.s32 %s58, 1
    %p62 = scmp.eq.s32.totalorder %s10, 1
    %p63 = scmp.ne.s32.totalorder %s58, %s60
    %p64 = scmp.eq.s32.totalorder %s10, 0
    %p65 = por %p63, %p64
    %p66 = scmp.ne.s32.totalorder %s58, %s60
    %p67 = scmp.eq.s32.totalorder %s15, 1
    %p68 = por %p66, %p67
    %p69 = scmp.ne.s32.totalorder %s60, %s61
    %p70 = scmp.eq.s32.totalorder %s15, 0
    %p71 = por %p69, %p70
    %p72 = scmp.ne.s32.totalorder %s60, %s61
    %p73 = scmp.eq.s32.totalorder %s16, 1
    %p74 = por %p72, %p73
    %p76 = scmp.ne.s32.totalorder %s61, %s75
    %p77 = scmp.eq.s32.totalorder %s16, 0
    %p78 = por %p76, %p77
    %s80 = sadd.s32 %s79, 1
    %p83 = scmp.eq.s32.totalorder %s10, 1
    %p84 = scmp.ne.s32.totalorder %s79, %s81
    %p85 = scmp.eq.s32.totalorder %s10, 0
    %p86 = por %p84, %p85
    %p87 = scmp.ne.s32.totalorder %s79, %s81
    %p88 = scmp.eq.s32.totalorder %s15, 1
    %p89 = por %p87, %p88
    %p90 = scmp.ne.s32.totalorder %s81, %s82
    %p91 = scmp.eq.s32.totalorder %s15, 0
    %p92 = por %p90, %p91
    %p93 = scmp.ne.s32.totalorder %s81, %s82
    %p94 = scmp.eq.s32.totalorder %s16, 1
    %p95 = por %p93, %p94
    %p97 = scmp.ne.s32.totalorder %s82, %s96
    %p98 = scmp.eq.s32.totalorder %s16, 0
    %p99 = por %p97, %p98
    %s100 = ssub.s32 %s17, %s29
    %s101 = ssub.s32 %s18, %s25
    %s102 = sor.u32 %s100, %s101
    %p103 = scmp.eq.s32.totalorder %s102, 0
    %s105 = sadd.s32 %s104, 1
    %s106 = scalar_select %p103, %s104, %s105
    %p109 = pneg %p103
    %p110 = scmp.eq.s32.totalorder %s10, 1
    %p111 = por %p109, %p110
    %p112 = scmp.ne.s32.totalorder %s104, %s107
    %p113 = scmp.eq.s32.totalorder %s10, 0
    %p114 = por %p112, %p113
    %p115 = scmp.ne.s32.totalorder %s104, %s107
    %p116 = scmp.eq.s32.totalorder %s15, 1
    %p117 = por %p115, %p116
    %p118 = scmp.ne.s32.totalorder %s107, %s108
    %p119 = scmp.eq.s32.totalorder %s15, 0
    %p120 = por %p118, %p119
    %p121 = scmp.ne.s32.totalorder %s107, %s108
    %p122 = scmp.eq.s32.totalorder %s16, 1
    %p123 = por %p121, %p122
    %p125 = scmp.ne.s32.totalorder %s108, %s124
    %p126 = scmp.eq.s32.totalorder %s16, 0
    %p127 = por %p125, %p126
    %s128 = ssub.s32 %s17, %s29
    %s129 = ssub.s32 %s18, %s25
    %s130 = sor.u32 %s128, %s129
    %p131 = scmp.eq.s32.totalorder %s130, 0
    %s133 = sadd.s32 %s132, 1
    %s134 = scalar_select %p131, %s132, %s133
    %p137 = pneg %p131
    %p138 = scmp.eq.s32.totalorder %s10, 1
    %p139 = por %p137, %p138
    %p140 = scmp.ne.s32.totalorder %s132, %s135
    %p141 = scmp.eq.s32.totalorder %s10, 0
    %p142 = por %p140, %p141
    %p143 = scmp.ne.s32.totalorder %s132, %s135
    %p144 = scmp.eq.s32.totalorder %s15, 1
    %p145 = por %p143, %p144
    %p146 = scmp.ne.s32.totalorder %s135, %s136
    %p147 = scmp.eq.s32.totalorder %s15, 0
    %p148 = por %p146, %p147
    %p149 = scmp.ne.s32.totalorder %s135, %s136
    %p150 = scmp.eq.s32.totalorder %s16, 1
    %p151 = por %p149, %p150
    %p153 = scmp.ne.s32.totalorder %s136, %s152
    %p154 = scmp.eq.s32.totalorder %s16, 0
    %p155 = por %p153, %p154
    %p156 = scmp.le.s32.totalorder 1, %s10
    %p157 = scmp.lt.s32.totalorder %s10, 3
    %p158 = pnand %p156, %p157
    %p159 = pneg %p158
    // Predicated region
    $region9: #{net_forward.18} parent=5 // pred_check
      _
    $region10: #{net_forward.18} parent=5 // pred_check_branch
      %161 = sbr.rel (%p158) target = $region12
    $region11: #{net_forward.18} parent=5 // pred_region
      %s162 = ssub.s32 %s10, 1
      // Predicated region
      $region13: #{net_forward.18} parent=11 // pred_check
        %p163 = pneg %p71
      $region14: #{net_forward.18} parent=11 // pred_check_branch
        %165 = sbr.rel (%p163) target = $region16
      $region15: #{net_forward.18} parent=11 // pred_region
        _
      $region16: #{net_forward.18} parent=11 // pred_fallthru
        _
      // Predicated region
      $region17: #{net_forward.18} parent=11 // pred_check
        %p166 = pneg %p92
      $region18: #{net_forward.18} parent=11 // pred_check_branch
        %168 = sbr.rel (%p166) target = $region20
      $region19: #{net_forward.18} parent=11 // pred_region
        _
      $region20: #{net_forward.18} parent=11 // pred_fallthru
        _
    $region12: #{net_forward.18} parent=5 // pred_fallthru
      _
    %p169 = scmp.lt.s32.totalorder %s10, 2
    // Predicated region
    $region21: #{net_forward.18} parent=5 // pred_check
      %p170 = pneg %p169
    $region22: #{net_forward.18} parent=5 // pred_check_branch
      %172 = sbr.rel (%p170) target = $region24
    $region23: #{net_forward.18} parent=5 // pred_region
      // Predicated region
      $region25: #{net_forward.18} parent=23 // pred_check
        %p173 = pneg %p44
      $region26: #{net_forward.18} parent=23 // pred_check_branch
        %175 = sbr.rel (%p173) target = $region28
      $region27: #{net_forward.18} parent=23 // pred_region
        %p176 = scmp.lt.s32.totalorder %s17, 1
        %s177 = scalar_select %p176, %s17, 1
        %p178 = scmp.lt.s32.totalorder %s18, 0
        %s179 = scalar_select %p178, %s18, 0
        %s180 = smul.addr %s179, 4
        %s181 = smul.addr %s177, 4
        %s182 = sadd.s32 %s180, %s181
        %s183 = smul.addr %s182, 2
        %s184 = scalar_lea.vmem %s0, %s183
      $region28: #{net_forward.18} parent=23 // pred_fallthru
        _
      // Predicated region
      $region29: #{net_forward.18} parent=23 // pred_check
        %p185 = pneg %p114
      $region30: #{net_forward.18} parent=23 // pred_check_branch
        %187 = sbr.rel (%p185) target = $region32
      $region31: #{net_forward.18} parent=23 // pred_region
        %p188 = scmp.lt.s32.totalorder %s17, 1
        %s189 = scalar_select %p188, %s17, 1
        %p190 = scmp.lt.s32.totalorder %s18, 0
        %s191 = scalar_select %p190, %s18, 0
        %s192 = smul.addr %s191, 2
        %s193 = smul.addr %s189, 2
        %s194 = sadd.s32 %s192, %s193
        %s195 = smul.addr %s194, 2
        %s196 = scalar_lea.vmem %s3, %s195
      $region32: #{net_forward.18} parent=23 // pred_fallthru
        _
    $region24: #{net_forward.18} parent=5 // pred_fallthru
      _
    %p197 = scmp.le.s32.totalorder 1, %s10
    %p198 = scmp.lt.s32.totalorder %s10, 3
    %p199 = pnand %p197, %p198
    %p200 = pneg %p199
    // Predicated region
    $region33: #{net_forward.18} parent=5 // pred_check
      _
    $region34: #{net_forward.18} parent=5 // pred_check_branch
      %202 = sbr.rel (%p199) target = $region36
    $region35: #{net_forward.18} parent=5 // pred_region
      %s203 = ssub.s32 %s10, 1
      %p204 = scmp.lt.s32.totalorder %s19, 1
      %s205 = scalar_select %p204, %s19, 1
      %p206 = scmp.lt.s32.totalorder %s20, 0
      %s207 = scalar_select %p206, %s20, 0
      %s208 = smul.addr %s207, 4
      %s209 = smul.addr %s205, 4
      %s210 = sadd.s32 %s208, %s209
      %s211 = smul.addr %s210, 2
      %s212 = scalar_lea.vmem %s0, %s211
      %p213 = pneg %p50
      %p214 = pneg %p47
      %p215 = pneg %p71
      %p216 = pneg %p68
      %p217 = pneg %p92
      %p218 = pneg %p89
      %p219 = scmp.lt.s32.totalorder %s19, 1
      %s220 = scalar_select %p219, %s19, 1
      %p221 = scmp.lt.s32.totalorder %s20, 0
      %s222 = scalar_select %p221, %s20, 0
      %s223 = smul.addr %s222, 2
      %s224 = smul.addr %s220, 2
      %s225 = sadd.s32 %s223, %s224
      %s226 = smul.addr %s225, 2
      %s227 = scalar_lea.vmem %s3, %s226
      %p228 = pneg %p120
      %p229 = pneg %p117
      %p230 = pneg %p148
      %p231 = pneg %p145
      %p232 = scmp.lt.s32.totalorder %s19, 1
      %s233 = scalar_select %p232, %s19, 1
      %p234 = scmp.lt.s32.totalorder %s20, 0
      %s235 = scalar_select %p234, %s20, 0
      %s236 = smul.addr %s235, 2
      %s237 = smul.addr %s233, 2
      %s238 = sadd.s32 %s236, %s237
      %s239 = smul.addr %s238, 2
      %s240 = scalar_lea.vmem %s4, %s239
      %p241 = scmp.lt.s32.totalorder %s19, 1
      %s242 = scalar_select %p241, %s19, 1
      %p243 = scmp.lt.s32.totalorder %s20, 0
      %s244 = scalar_select %p243, %s20, 0
      %s245 = smul.addr %s244, 4
      %s246 = smul.addr %s242, 4
      %s247 = sadd.s32 %s245, %s246
      %s248 = smul.addr %s247, 2
      %s249 = scalar_lea.vmem %s0, %s248
      %p250 = scmp.lt.s32.totalorder %s19, 1
      %s251 = scalar_select %p250, %s19, 1
      %p252 = scmp.lt.s32.totalorder %s20, 0
      %s253 = scalar_select %p252, %s20, 0
      %s254 = smul.addr %s253, 2
      %s255 = smul.addr %s251, 2
      %s256 = sadd.s32 %s254, %s255
      %s257 = smul.addr %s256, 2
      %s258 = scalar_lea.vmem %s3, %s257
      %p259 = scmp.lt.s32.totalorder %s19, 1
      %s260 = scalar_select %p259, %s19, 1
      %p261 = scmp.lt.s32.totalorder %s20, 0
      %s262 = scalar_select %p261, %s20, 0
      %s263 = smul.addr %s262, 2
      %s264 = smul.addr %s260, 2
      %s265 = sadd.s32 %s263, %s264
      %s266 = smul.addr %s265, 2
      %s267 = scalar_lea.vmem %s4, %s266
      %v269 = vld [vmem:[%s249] sm:$0xff]
      %v270 = vld [vmem:[%s1] sm:$0xff]
      %v271 = vld [vmem:[%s1 + $0x8] sm:$0xff]
      %v272 = vld [vmem:[%s1 + $0x10] sm:$0xff]
      %v273 = vld [vmem:[%s1 + $0x18] sm:$0xff]
      %v274 = vld [vmem:[%s1 + $0x20] sm:$0xff]
      %v275 = vld [vmem:[%s1 + $0x28] sm:$0xff]
      %v276 = vld [vmem:[%s1 + $0x30] sm:$0xff]
      %v277 = vld [vmem:[%s1 + $0x38] sm:$0xff]
      %v278 = vld [vmem:[%s1 + $0x40] sm:$0xff]
      %v279 = vld [vmem:[%s1 + $0x48] sm:$0xff]
      %v280 = vld [vmem:[%s1 + $0x50] sm:$0xff]
      %v281 = vld [vmem:[%s1 + $0x58] sm:$0xff]
      %v282 = vld [vmem:[%s1 + $0x60] sm:$0xff]
      %v283 = vld [vmem:[%s1 + $0x68] sm:$0xff]
      %v284 = vld [vmem:[%s1 + $0x70] sm:$0xff]
      %v285 = vld [vmem:[%s1 + $0x78] sm:$0xff]
      %v286 = vld [vmem:[%s1 + $0x80] sm:$0xff]
      %v287 = vld [vmem:[%s1 + $0x88] sm:$0xff]
      %v288 = vld [vmem:[%s1 + $0x90] sm:$0xff]
      %v289 = vld [vmem:[%s1 + $0x98] sm:$0xff]
      %v290 = vld [vmem:[%s1 + $0xa0] sm:$0xff]
      %v291 = vld [vmem:[%s1 + $0xa8] sm:$0xff]
      %v292 = vld [vmem:[%s1 + $0xb0] sm:$0xff]
      %v293 = vld [vmem:[%s1 + $0xb8] sm:$0xff]
      %v294 = vld [vmem:[%s1 + $0xc0] sm:$0xff]
      %v295 = vld [vmem:[%s1 + $0xc8] sm:$0xff]
      %v296 = vld [vmem:[%s1 + $0xd0] sm:$0xff]
      %v297 = vld [vmem:[%s1 + $0xd8] sm:$0xff]
      %v298 = vld [vmem:[%s1 + $0xe0] sm:$0xff]
      %v299 = vld [vmem:[%s1 + $0xe8] sm:$0xff]
      %v300 = vld [vmem:[%s1 + $0xf0] sm:$0xff]
      %v301 = vld [vmem:[%s1 + $0xf8] sm:$0xff]
      %v302 = vld [vmem:[%s1 + $0x100] sm:$0xff]
      %v303 = vld [vmem:[%s1 + $0x108] sm:$0xff]
      %v304 = vld [vmem:[%s1 + $0x110] sm:$0xff]
      %v305 = vld [vmem:[%s1 + $0x118] sm:$0xff]
      %v306 = vld [vmem:[%s1 + $0x120] sm:$0xff]
      %v307 = vld [vmem:[%s1 + $0x128] sm:$0xff]
      %v308 = vld [vmem:[%s1 + $0x130] sm:$0xff]
      %v309 = vld [vmem:[%s1 + $0x138] sm:$0xff]
      %v310 = vld [vmem:[%s1 + $0x140] sm:$0xff]
      %v311 = vld [vmem:[%s1 + $0x148] sm:$0xff]
      %v312 = vld [vmem:[%s1 + $0x150] sm:$0xff]
      %v313 = vld [vmem:[%s1 + $0x158] sm:$0xff]
      %v314 = vld [vmem:[%s1 + $0x160] sm:$0xff]
      %v315 = vld [vmem:[%s1 + $0x168] sm:$0xff]
      %v316 = vld [vmem:[%s1 + $0x170] sm:$0xff]
      %v317 = vld [vmem:[%s1 + $0x178] sm:$0xff]
      %v318 = vld [vmem:[%s1 + $0x180] sm:$0xff]
      %v319 = vld [vmem:[%s1 + $0x188] sm:$0xff]
      %v320 = vld [vmem:[%s1 + $0x190] sm:$0xff]
      %v321 = vld [vmem:[%s1 + $0x198] sm:$0xff]
      %v322 = vld [vmem:[%s1 + $0x1a0] sm:$0xff]
      %v323 = vld [vmem:[%s1 + $0x1a8] sm:$0xff]
      %v324 = vld [vmem:[%s1 + $0x1b0] sm:$0xff]
      %v325 = vld [vmem:[%s1 + $0x1b8] sm:$0xff]
      %v326 = vld [vmem:[%s1 + $0x1c0] sm:$0xff]
      %v327 = vld [vmem:[%s1 + $0x1c8] sm:$0xff]
      %v328 = vld [vmem:[%s1 + $0x1d0] sm:$0xff]
      %v329 = vld [vmem:[%s1 + $0x1d8] sm:$0xff]
      %v330 = vld [vmem:[%s2] sm:$0x3]
      %v332 = vperm.slane %v330, 0
      %v333 = vperm.slane %v330, 1
      %337 = vst [vmem:[#allocation1] ss:$4 sm:$0xff] %v269
      %v338 = vld.sshfl [vmem:[#allocation1] sm:$0xff pattern:$0x73625140]
      %v339 = vld.sshfl [vmem:[#allocation1 + $0x8] sm:$0xff pattern:$0x73625140]
      %v340 = vld.sshfl [vmem:[#allocation1 + $0x10] sm:$0xff pattern:$0x73625140]
      %v341 = vld.sshfl [vmem:[#allocation1 + $0x18] sm:$0xff pattern:$0x73625140]
      %v405 = vunpack.c.l.b16 %v270
      %v406 = vunpack.c.h.b16 %v270
      %v407 = vunpack.c.l.b16 %v271
      %v408 = vunpack.c.h.b16 %v271
      %v409 = vunpack.c.l.b16 %v272
      %v410 = vunpack.c.h.b16 %v272
      %v411 = vunpack.c.l.b16 %v273
      %v412 = vunpack.c.h.b16 %v273
      %v413 = vunpack.c.l.b16 %v274
      %v414 = vunpack.c.h.b16 %v274
      %v415 = vunpack.c.l.b16 %v275
      %v416 = vunpack.c.h.b16 %v275
      %v417 = vunpack.c.l.b16 %v276
      %v418 = vunpack.c.h.b16 %v276
      %v419 = vunpack.c.l.b16 %v277
      %v420 = vunpack.c.h.b16 %v277
      %v421 = vunpack.c.l.b16 %v278
      %v422 = vunpack.c.h.b16 %v278
      %v423 = vunpack.c.l.b16 %v279
      %v424 = vunpack.c.h.b16 %v279
      %v425 = vunpack.c.l.b16 %v280
      %v426 = vunpack.c.h.b16 %v280
      %v427 = vunpack.c.l.b16 %v281
      %v428 = vunpack.c.h.b16 %v281
      %v429 = vunpack.c.l.b16 %v282
      %v430 = vunpack.c.h.b16 %v282
      %v431 = vunpack.c.l.b16 %v283
      %v432 = vunpack.c.h.b16 %v283
      %v433 = vunpack.c.l.b16 %v284
      %v434 = vunpack.c.h.b16 %v284
      %v435 = vunpack.c.l.b16 %v285
      %v436 = vunpack.c.h.b16 %v285
      %v437 = vunpack.c.l.b16 %v286
      %v438 = vunpack.c.h.b16 %v286
      %v439 = vunpack.c.l.b16 %v287
      %v440 = vunpack.c.h.b16 %v287
      %v441 = vunpack.c.l.b16 %v288
      %v442 = vunpack.c.h.b16 %v288
      %v443 = vunpack.c.l.b16 %v289
      %v444 = vunpack.c.h.b16 %v289
      %v445 = vunpack.c.l.b16 %v290
      %v446 = vunpack.c.h.b16 %v290
      %v447 = vunpack.c.l.b16 %v291
      %v448 = vunpack.c.h.b16 %v291
      %v449 = vunpack.c.l.b16 %v292
      %v450 = vunpack.c.h.b16 %v292
      %v451 = vunpack.c.l.b16 %v293
      %v452 = vunpack.c.h.b16 %v293
      %v453 = vunpack.c.l.b16 %v294
      %v454 = vunpack.c.h.b16 %v294
      %v455 = vunpack.c.l.b16 %v295
      %v456 = vunpack.c.h.b16 %v295
      %v457 = vunpack.c.l.b16 %v296
      %v458 = vunpack.c.h.b16 %v296
      %v459 = vunpack.c.l.b16 %v297
      %v460 = vunpack.c.h.b16 %v297
      %v461 = vunpack.c.l.b16 %v298
      %v462 = vunpack.c.h.b16 %v298
      %v463 = vunpack.c.l.b16 %v299
      %v464 = vunpack.c.h.b16 %v299
      %v465 = vunpack.c.l.b16 %v300
      %v466 = vunpack.c.h.b16 %v300
      %v467 = vunpack.c.l.b16 %v301
      %v468 = vunpack.c.h.b16 %v301
      %v469 = vunpack.c.l.b16 %v302
      %v470 = vunpack.c.h.b16 %v302
      %v471 = vunpack.c.l.b16 %v303
      %v472 = vunpack.c.h.b16 %v303
      %v473 = vunpack.c.l.b16 %v304
      %v474 = vunpack.c.h.b16 %v304
      %v475 = vunpack.c.l.b16 %v305
      %v476 = vunpack.c.h.b16 %v305
      %v477 = vunpack.c.l.b16 %v306
      %v478 = vunpack.c.h.b16 %v306
      %v479 = vunpack.c.l.b16 %v307
      %v480 = vunpack.c.h.b16 %v307
      %v481 = vunpack.c.l.b16 %v308
      %v482 = vunpack.c.h.b16 %v308
      %v483 = vunpack.c.l.b16 %v309
      %v484 = vunpack.c.h.b16 %v309
      %v485 = vunpack.c.l.b16 %v310
      %v486 = vunpack.c.h.b16 %v310
      %v487 = vunpack.c.l.b16 %v311
      %v488 = vunpack.c.h.b16 %v311
      %v489 = vunpack.c.l.b16 %v312
      %v490 = vunpack.c.h.b16 %v312
      %v491 = vunpack.c.l.b16 %v313
      %v492 = vunpack.c.h.b16 %v313
      %v493 = vunpack.c.l.b16 %v314
      %v494 = vunpack.c.h.b16 %v314
      %v495 = vunpack.c.l.b16 %v315
      %v496 = vunpack.c.h.b16 %v315
      %v497 = vunpack.c.l.b16 %v316
      %v498 = vunpack.c.h.b16 %v316
      %v499 = vunpack.c.l.b16 %v317
      %v500 = vunpack.c.h.b16 %v317
      %v501 = vunpack.c.l.b16 %v318
      %v502 = vunpack.c.h.b16 %v318
      %v503 = vunpack.c.l.b16 %v319
      %v504 = vunpack.c.h.b16 %v319
      %v505 = vunpack.c.l.b16 %v320
      %v506 = vunpack.c.h.b16 %v320
      %v507 = vunpack.c.l.b16 %v321
      %v508 = vunpack.c.h.b16 %v321
      %v509 = vunpack.c.l.b16 %v322
      %v510 = vunpack.c.h.b16 %v322
      %v511 = vunpack.c.l.b16 %v323
      %v512 = vunpack.c.h.b16 %v323
      %v513 = vunpack.c.l.b16 %v324
      %v514 = vunpack.c.h.b16 %v324
      %v515 = vunpack.c.l.b16 %v325
      %v516 = vunpack.c.h.b16 %v325
      %v517 = vunpack.c.l.b16 %v326
      %v518 = vunpack.c.h.b16 %v326
      %v519 = vunpack.c.l.b16 %v327
      %v520 = vunpack.c.h.b16 %v327
      %v521 = vunpack.c.l.b16 %v328
      %v522 = vunpack.c.h.b16 %v328
      %v523 = vunpack.c.l.b16 %v329
      %v524 = vunpack.c.h.b16 %v329
      %v525 = vpack.c.b16 %v407, %v405
      %v526 = vpack.c.b16 %v408, %v406
      %v527 = vpack.c.b16 %v411, %v409
      %v528 = vpack.c.b16 %v412, %v410
      %v529 = vpack.c.b16 %v415, %v413
      %v530 = vpack.c.b16 %v416, %v414
      %v531 = vpack.c.b16 %v419, %v417
      %v532 = vpack.c.b16 %v420, %v418
      %v533 = vpack.c.b16 %v423, %v421
      %v534 = vpack.c.b16 %v424, %v422
      %v535 = vpack.c.b16 %v427, %v425
      %v536 = vpack.c.b16 %v428, %v426
      %v537 = vpack.c.b16 %v431, %v429
      %v538 = vpack.c.b16 %v432, %v430
      %v539 = vpack.c.b16 %v435, %v433
      %v540 = vpack.c.b16 %v436, %v434
      %v541 = vpack.c.b16 %v439, %v437
      %v542 = vpack.c.b16 %v440, %v438
      %v543 = vpack.c.b16 %v443, %v441
      %v544 = vpack.c.b16 %v444, %v442
      %v545 = vpack.c.b16 %v447, %v445
      %v546 = vpack.c.b16 %v448, %v446
      %v547 = vpack.c.b16 %v451, %v449
      %v548 = vpack.c.b16 %v452, %v450
      %v549 = vpack.c.b16 %v455, %v453
      %v550 = vpack.c.b16 %v456, %v454
      %v551 = vpack.c.b16 %v459, %v457
      %v552 = vpack.c.b16 %v460, %v458
      %v553 = vpack.c.b16 %v463, %v461
      %v554 = vpack.c.b16 %v464, %v462
      %v555 = vpack.c.b16 %v467, %v465
      %v556 = vpack.c.b16 %v468, %v466
      %v557 = vpack.c.b16 %v471, %v469
      %v558 = vpack.c.b16 %v472, %v470
      %v559 = vpack.c.b16 %v475, %v473
      %v560 = vpack.c.b16 %v476, %v474
      %v561 = vpack.c.b16 %v479, %v477
      %v562 = vpack.c.b16 %v480, %v478
      %v563 = vpack.c.b16 %v483, %v481
      %v564 = vpack.c.b16 %v484, %v482
      %v565 = vpack.c.b16 %v487, %v485
      %v566 = vpack.c.b16 %v488, %v486
      %v567 = vpack.c.b16 %v491, %v489
      %v568 = vpack.c.b16 %v492, %v490
      %v569 = vpack.c.b16 %v495, %v493
      %v570 = vpack.c.b16 %v496, %v494
      %v571 = vpack.c.b16 %v499, %v497
      %v572 = vpack.c.b16 %v500, %v498
      %v573 = vpack.c.b16 %v503, %v501
      %v574 = vpack.c.b16 %v504, %v502
      %v575 = vpack.c.b16 %v507, %v505
      %v576 = vpack.c.b16 %v508, %v506
      %v577 = vpack.c.b16 %v511, %v509
      %v578 = vpack.c.b16 %v512, %v510
      %v579 = vpack.c.b16 %v515, %v513
      %v580 = vpack.c.b16 %v516, %v514
      %v581 = vpack.c.b16 %v519, %v517
      %v582 = vpack.c.b16 %v520, %v518
      %v583 = vpack.c.b16 %v523, %v521
      %v584 = vpack.c.b16 %v524, %v522
      %vm645 = vcmask 785408
      %v646 = vsel %vm645, %v341, 0
      %648 = vmatpush.bf16.msra.mxu0 %v539
      %649 = vmatpush.bf16.msra.mxu0 %v537
      %650 = vmatpush.bf16.msra.mxu0 %v535
      %651 = vmatpush.bf16.msra.mxu0 %v533
      %652 = vmatpush.bf16.msra.mxu0 %v531
      %653 = vmatpush.bf16.msra.mxu0 %v529
      %654 = vmatpush.bf16.msra.mxu0 %v527
      %655 = vmatpush.bf16.msra.mxu0 %v525
      %656 = vmatmul.bf16.gmra.mxu0 %v338
      %v657 = vpop.f32.mrf.mxu0
      %v658 = vadd.f32 %v332, %v657
      %v659 = vpop.f32.mrf.mxu0
      %660 = vdwg.mxu0
      %661 = vmatpush.bf16.msra.mxu0 %v555
      %662 = vmatpush.bf16.msra.mxu0 %v553
      %663 = vmatpush.bf16.msra.mxu0 %v551
      %664 = vmatpush.bf16.msra.mxu0 %v549
      %665 = vmatpush.bf16.msra.mxu0 %v547
      %666 = vmatpush.bf16.msra.mxu0 %v545
      %667 = vmatpush.bf16.msra.mxu0 %v543
      %668 = vmatpush.bf16.msra.mxu0 %v541
      %669 = vmatmul.bf16.gmra.mxu0 %v339
      %v670 = vpop.f32.mrf.mxu0
      %v671 = vadd.f32 %v658, %v670
      %v672 = vpop.f32.mrf.mxu0
      %673 = vdwg.mxu0
      %674 = vmatpush.bf16.msra.mxu0 %v571
      %675 = vmatpush.bf16.msra.mxu0 %v569
      %676 = vmatpush.bf16.msra.mxu0 %v567
      %677 = vmatpush.bf16.msra.mxu0 %v565
      %678 = vmatpush.bf16.msra.mxu0 %v563
      %679 = vmatpush.bf16.msra.mxu0 %v561
      %680 = vmatpush.bf16.msra.mxu0 %v559
      %681 = vmatpush.bf16.msra.mxu0 %v557
      %682 = vmatmul.bf16.gmra.mxu0 %v340
      %v683 = vpop.f32.mrf.mxu0
      %v684 = vadd.f32 %v671, %v683
      %v685 = vpop.f32.mrf.mxu0
      %686 = vdwg.mxu0
      %687 = vmatpush.bf16.msra.mxu0 0
      %688 = vmatpush.bf16.msra.mxu0 0
      %689 = vmatpush.bf16.msra.mxu0 %v583
      %690 = vmatpush.bf16.msra.mxu0 %v581
      %691 = vmatpush.bf16.msra.mxu0 %v579
      %692 = vmatpush.bf16.msra.mxu0 %v577
      %693 = vmatpush.bf16.msra.mxu0 %v575
      %694 = vmatpush.bf16.msra.mxu0 %v573
      %695 = vmatmul.bf16.gmra.mxu0 %v646
      %v696 = vpop.f32.mrf.mxu0
      %v697 = vadd.f32 %v684, %v696
      %v698 = vpop.f32.mrf.mxu0
      %699 = vdwg.mxu0
      %700 = vmatpush.bf16.msra.mxu0 %v540
      %701 = vmatpush.bf16.msra.mxu0 %v538
      %702 = vmatpush.bf16.msra.mxu0 %v536
      %703 = vmatpush.bf16.msra.mxu0 %v534
      %704 = vmatpush.bf16.msra.mxu0 %v532
      %705 = vmatpush.bf16.msra.mxu0 %v530
      %706 = vmatpush.bf16.msra.mxu0 %v528
      %707 = vmatpush.bf16.msra.mxu0 %v526
      %708 = vmatmul.bf16.gmra.mxu0 %v338
      %v709 = vpop.f32.mrf.mxu0
      %v710 = vadd.f32 %v333, %v709
      %v711 = vpop.f32.mrf.mxu0
      %712 = vdwg.mxu0
      %713 = vmatpush.bf16.msra.mxu0 %v556
      %714 = vmatpush.bf16.msra.mxu0 %v554
      %715 = vmatpush.bf16.msra.mxu0 %v552
      %716 = vmatpush.bf16.msra.mxu0 %v550
      %717 = vmatpush.bf16.msra.mxu0 %v548
      %718 = vmatpush.bf16.msra.mxu0 %v546
      %719 = vmatpush.bf16.msra.mxu0 %v544
      %720 = vmatpush.bf16.msra.mxu0 %v542
      %721 = vmatmul.bf16.gmra.mxu0 %v339
      %v722 = vpop.f32.mrf.mxu0
      %v723 = vadd.f32 %v710, %v722
      %v724 = vpop.f32.mrf.mxu0
      %725 = vdwg.mxu0
      %726 = vmatpush.bf16.msra.mxu0 %v572
      %727 = vmatpush.bf16.msra.mxu0 %v570
      %728 = vmatpush.bf16.msra.mxu0 %v568
      %729 = vmatpush.bf16.msra.mxu0 %v566
      %730 = vmatpush.bf16.msra.mxu0 %v564
      %731 = vmatpush.bf16.msra.mxu0 %v562
      %732 = vmatpush.bf16.msra.mxu0 %v560
      %733 = vmatpush.bf16.msra.mxu0 %v558
      %734 = vmatmul.bf16.gmra.mxu0 %v340
      %v735 = vpop.f32.mrf.mxu0
      %v736 = vadd.f32 %v723, %v735
      %v737 = vpop.f32.mrf.mxu0
      %738 = vdwg.mxu0
      %739 = vmatpush.bf16.msra.mxu0 0
      %740 = vmatpush.bf16.msra.mxu0 0
      %741 = vmatpush.bf16.msra.mxu0 %v584
      %742 = vmatpush.bf16.msra.mxu0 %v582
      %743 = vmatpush.bf16.msra.mxu0 %v580
      %744 = vmatpush.bf16.msra.mxu0 %v578
      %745 = vmatpush.bf16.msra.mxu0 %v576
      %746 = vmatpush.bf16.msra.mxu0 %v574
      %747 = vmatmul.bf16.gmra.mxu0 %v646
      %v748 = vpop.f32.mrf.mxu0
      %v749 = vadd.f32 %v736, %v748
      %v750 = vpop.f32.mrf.mxu0
      %751 = vdwg.mxu0
      %v752 = vld [vmem:[%s258] sm:$0xf]
      %v753 = vunpack.c.l.bf16 %v752
      %755 = vst [vmem:[#allocation1] ss:$2 sm:$0xff] %v753
      %v756 = vld.sshfl [vmem:[#allocation1] sm:$0xff pattern:$0x75316420]
      %v757 = vld.sshfl [vmem:[#allocation1 + $0x8] sm:$0xff pattern:$0x75316420]
      %v760 = vadd.f32 %v697, %v756
      %v761 = vadd.f32 %v749, %v757
      %v762 = vpack.c.bf16 %v761, %v760
      %v764 = vrot.slane %v762, 2
      %vm765 = vcmask 1041408
      %v768 = vsel %vm765, %v762, %v764
      %770 = vst [vmem:[%s267] sm:$0xf] %v768
      %p771 = scmp.lt.s32.totalorder %s19, 1
      %s772 = scalar_select %p771, %s19, 1
      %p773 = scmp.lt.s32.totalorder %s20, 0
      %s774 = scalar_select %p773, %s20, 0
      %s775 = smul.addr %s774, 2
      %s776 = smul.addr %s772, 2
      %s777 = sadd.s32 %s775, %s776
      %s778 = smul.addr %s777, 2
      %s779 = scalar_lea.vmem %s4, %s778
      // Predicated region
      $region37: #{net_forward.18} parent=35 // pred_check
        %p780 = pneg %p145
      $region38: #{net_forward.18} parent=35 // pred_check_branch
        %782 = sbr.rel (%p780) target = $region40
      $region39: #{net_forward.18} parent=35 // pred_region
        _
      $region40: #{net_forward.18} parent=35 // pred_fallthru
        _
    $region36: #{net_forward.18} parent=5 // pred_fallthru
      _
    %p783 = scmp.le.s32.totalorder 2, %s10
    // Predicated region
    $region41: #{net_forward.18} parent=5 // pred_check
      %p784 = pneg %p783
    $region42: #{net_forward.18} parent=5 // pred_check_branch
      %786 = sbr.rel (%p784) target = $region44
    $region43: #{net_forward.18} parent=5 // pred_region
      %s787 = ssub.s32 %s10, 2
      // Predicated region
      $region45: #{net_forward.18} parent=43 // pred_check
        %p788 = pneg %p151
      $region46: #{net_forward.18} parent=43 // pred_check_branch
        %790 = sbr.rel (%p788) target = $region48
      $region47: #{net_forward.18} parent=43 // pred_region
        %p791 = scmp.lt.s32.totalorder %s21, 1
        %s792 = scalar_select %p791, %s21, 1
        %p793 = scmp.lt.s32.totalorder %s22, 0
        %s794 = scalar_select %p793, %s22, 0
        %s795 = smul.addr %s794, 2
        %s796 = smul.addr %s792, 2
        %s797 = sadd.s32 %s795, %s796
        %s798 = smul.addr %s797, 2
        %s799 = scalar_lea.vmem %s4, %s798
      $region48: #{net_forward.18} parent=43 // pred_fallthru
        _
    $region44: #{net_forward.18} parent=5 // pred_fallthru
      _
  $region6: #{net_forward.18} parent=0 // loop_footer
    %s14 = sadd.s32 1, %s10
  $region7: #{net_forward.18} parent=0 // loop_footer_branch
    %9 = sbr.rel target = $region3
  $region8: #{net_forward.18} parent=0 // loop_exit
    _

// kernel: net_forward.21
$region0: #{net_forward.21}
  #allocation0 [shape = 'u32[]', space=smem, size = 0x4, offset = 0x4, fixed_abs, tag = 'smem constant byte address 0x4 - core index']
  #allocation1 [shape = 'u32[72,128]{1,0:T(1,128)}', space=vmem, size = 0x9000, scoped, tag = 'internal scratch']
  %s0 = inlined_call_operand.vmem [shape: bf16[2,64,64], index: 0, kind: input, shape index: {}]
  %s1 = inlined_call_operand.vmem [shape: bf16[2,64,64], index: 1, kind: input, shape index: {}]
  %s2 = inlined_call_operand.vmem [shape: bf16[64,32], index: 2, kind: input, shape index: {}]
  %s3 = inlined_call_operand.vmem [shape: f32[1,32], index: 3, kind: input, shape index: {}]
  %s4 = inlined_call_operand.vmem [shape: bf16[2,64,32], index: 4, kind: output, shape index: {}]
  %s5 = sld [smem:[#allocation0]]
  $region49: #{net_forward.21} parent=0
    _
  %s7 = ssub.s32 1, %s5
  %s8 = scalar_select 0, %s7, %s5
  loop: start=0, step=1, limit=4
  $region2: #{net_forward.21} parent=0 // loop_pre_header
    _
  $region3: #{net_forward.21} parent=0 // loop_header
    %s10 = sphi 0, %s14
    %p11 = scmp.ge.s32.totalorder %s10, 4
    %s17 = sphi 0, %s29
    %s18 = sphi 0, %s25
    %s19 = sphi 0, %s17
    %s20 = sphi 0, %s18
    %s21 = sphi 0, %s19
    %s22 = sphi 0, %s20
    %s34 = sphi 0, %s36
    %s37 = sphi 0, %s34
    %s38 = sphi 0, %s37
    %s54 = sphi 0, %s38
    %s62 = sphi 0, %s64
    %s65 = sphi 0, %s62
    %s66 = sphi 0, %s65
    %s82 = sphi 0, %s66
    %s86 = sphi 0, %s86
    %s88 = sphi 0, %s86
    %s89 = sphi 0, %s88
    %s103 = sphi 0, %s89
    %s107 = sphi 0, %s107
    %s109 = sphi 0, %s107
    %s110 = sphi 0, %s109
    %s124 = sphi 0, %s110
    %s132 = sphi 0, %s134
    %s135 = sphi 0, %s132
    %s136 = sphi 0, %s135
    %s152 = sphi 0, %s136
  $region4: #{net_forward.21} parent=0 // loop_header_branch
    %13 = sbr.rel (%p11) target = $region8
  $region5: #{net_forward.21} parent=0 // loop_body
    %s15 = ssub.s32 %s10, 1
    %s16 = ssub.s32 %s10, 2
    %s23 = sadd.s32 1, %s18
    %p24 = scmp.ge.s32.totalorder %s23, 1
    %s25 = scalar_select %p24, 0, %s23
    %s26 = sadd.s32 1, %s17
    %s27 = scalar_select %p24, %s26, %s17
    %p28 = scmp.ge.s32.totalorder %s27, 2
    %s29 = scalar_select %p28, 0, %s27
    %s30 = ssub.s32 %s17, %s29
    %s31 = ssub.s32 %s18, %s25
    %s32 = sor.u32 %s30, %s31
    %p33 = scmp.eq.s32.totalorder %s32, 0
    %s35 = sadd.s32 %s34, 1
    %s36 = scalar_select %p33, %s34, %s35
    %p39 = pneg %p33
    %p40 = scmp.eq.s32.totalorder %s10, 1
    %p41 = por %p39, %p40
    %p42 = scmp.ne.s32.totalorder %s34, %s37
    %p43 = scmp.eq.s32.totalorder %s10, 0
    %p44 = por %p42, %p43
    %p45 = scmp.ne.s32.totalorder %s34, %s37
    %p46 = scmp.eq.s32.totalorder %s15, 1
    %p47 = por %p45, %p46
    %p48 = scmp.ne.s32.totalorder %s37, %s38
    %p49 = scmp.eq.s32.totalorder %s15, 0
    %p50 = por %p48, %p49
    %p51 = scmp.ne.s32.totalorder %s37, %s38
    %p52 = scmp.eq.s32.totalorder %s16, 1
    %p53 = por %p51, %p52
    %p55 = scmp.ne.s32.totalorder %s38, %s54
    %p56 = scmp.eq.s32.totalorder %s16, 0
    %p57 = por %p55, %p56
    %s58 = ssub.s32 %s17, %s29
    %s59 = ssub.s32 %s18, %s25
    %s60 = sor.u32 %s58, %s59
    %p61 = scmp.eq.s32.totalorder %s60, 0
    %s63 = sadd.s32 %s62, 1
    %s64 = scalar_select %p61, %s62, %s63
    %p67 = pneg %p61
    %p68 = scmp.eq.s32.totalorder %s10, 1
    %p69 = por %p67, %p68
    %p70 = scmp.ne.s32.totalorder %s62, %s65
    %p71 = scmp.eq.s32.totalorder %s10, 0
    %p72 = por %p70, %p71
    %p73 = scmp.ne.s32.totalorder %s62, %s65
    %p74 = scmp.eq.s32.totalorder %s15, 1
    %p75 = por %p73, %p74
    %p76 = scmp.ne.s32.totalorder %s65, %s66
    %p77 = scmp.eq.s32.totalorder %s15, 0
    %p78 = por %p76, %p77
    %p79 = scmp.ne.s32.totalorder %s65, %s66
    %p80 = scmp.eq.s32.totalorder %s16, 1
    %p81 = por %p79, %p80
    %p83 = scmp.ne.s32.totalorder %s66, %s82
    %p84 = scmp.eq.s32.totalorder %s16, 0
    %p85 = por %p83, %p84
    %s87 = sadd.s32 %s86, 1
    %p90 = scmp.eq.s32.totalorder %s10, 1
    %p91 = scmp.ne.s32.totalorder %s86, %s88
    %p92 = scmp.eq.s32.totalorder %s10, 0
    %p93 = por %p91, %p92
    %p94 = scmp.ne.s32.totalorder %s86, %s88
    %p95 = scmp.eq.s32.totalorder %s15, 1
    %p96 = por %p94, %p95
    %p97 = scmp.ne.s32.totalorder %s88, %s89
    %p98 = scmp.eq.s32.totalorder %s15, 0
    %p99 = por %p97, %p98
    %p100 = scmp.ne.s32.totalorder %s88, %s89
    %p101 = scmp.eq.s32.totalorder %s16, 1
    %p102 = por %p100, %p101
    %p104 = scmp.ne.s32.totalorder %s89, %s103
    %p105 = scmp.eq.s32.totalorder %s16, 0
    %p106 = por %p104, %p105
    %s108 = sadd.s32 %s107, 1
    %p111 = scmp.eq.s32.totalorder %s10, 1
    %p112 = scmp.ne.s32.totalorder %s107, %s109
    %p113 = scmp.eq.s32.totalorder %s10, 0
    %p114 = por %p112, %p113
    %p115 = scmp.ne.s32.totalorder %s107, %s109
    %p116 = scmp.eq.s32.totalorder %s15, 1
    %p117 = por %p115, %p116
    %p118 = scmp.ne.s32.totalorder %s109, %s110
    %p119 = scmp.eq.s32.totalorder %s15, 0
    %p120 = por %p118, %p119
    %p121 = scmp.ne.s32.totalorder %s109, %s110
    %p122 = scmp.eq.s32.totalorder %s16, 1
    %p123 = por %p121, %p122
    %p125 = scmp.ne.s32.totalorder %s110, %s124
    %p126 = scmp.eq.s32.totalorder %s16, 0
    %p127 = por %p125, %p126
    %s128 = ssub.s32 %s17, %s29
    %s129 = ssub.s32 %s18, %s25
    %s130 = sor.u32 %s128, %s129
    %p131 = scmp.eq.s32.totalorder %s130, 0
    %s133 = sadd.s32 %s132, 1
    %s134 = scalar_select %p131, %s132, %s133
    %p137 = pneg %p131
    %p138 = scmp.eq.s32.totalorder %s10, 1
    %p139 = por %p137, %p138
    %p140 = scmp.ne.s32.totalorder %s132, %s135
    %p141 = scmp.eq.s32.totalorder %s10, 0
    %p142 = por %p140, %p141
    %p143 = scmp.ne.s32.totalorder %s132, %s135
    %p144 = scmp.eq.s32.totalorder %s15, 1
    %p145 = por %p143, %p144
    %p146 = scmp.ne.s32.totalorder %s135, %s136
    %p147 = scmp.eq.s32.totalorder %s15, 0
    %p148 = por %p146, %p147
    %p149 = scmp.ne.s32.totalorder %s135, %s136
    %p150 = scmp.eq.s32.totalorder %s16, 1
    %p151 = por %p149, %p150
    %p153 = scmp.ne.s32.totalorder %s136, %s152
    %p154 = scmp.eq.s32.totalorder %s16, 0
    %p155 = por %p153, %p154
    %p156 = scmp.le.s32.totalorder 1, %s10
    %p157 = scmp.lt.s32.totalorder %s10, 3
    %p158 = pnand %p156, %p157
    %p159 = pneg %p158
    // Predicated region
    $region9: #{net_forward.21} parent=5 // pred_check
      _
    $region10: #{net_forward.21} parent=5 // pred_check_branch
      %161 = sbr.rel (%p158) target = $region12
    $region11: #{net_forward.21} parent=5 // pred_region
      %s162 = ssub.s32 %s10, 1
      // Predicated region
      $region13: #{net_forward.21} parent=11 // pred_check
        %p163 = pneg %p99
      $region14: #{net_forward.21} parent=11 // pred_check_branch
        %165 = sbr.rel (%p163) target = $region16
      $region15: #{net_forward.21} parent=11 // pred_region
        _
      $region16: #{net_forward.21} parent=11 // pred_fallthru
        _
      // Predicated region
      $region17: #{net_forward.21} parent=11 // pred_check
        %p166 = pneg %p120
      $region18: #{net_forward.21} parent=11 // pred_check_branch
        %168 = sbr.rel (%p166) target = $region20
      $region19: #{net_forward.21} parent=11 // pred_region
        _
      $region20: #{net_forward.21} parent=11 // pred_fallthru
        _
    $region12: #{net_forward.21} parent=5 // pred_fallthru
      _
    %p169 = scmp.lt.s32.totalorder %s10, 2
    // Predicated region
    $region21: #{net_forward.21} parent=5 // pred_check
      %p170 = pneg %p169
    $region22: #{net_forward.21} parent=5 // pred_check_branch
      %172 = sbr.rel (%p170) target = $region24
    $region23: #{net_forward.21} parent=5 // pred_region
      // Predicated region
      $region25: #{net_forward.21} parent=23 // pred_check
        %p173 = pneg %p44
      $region26: #{net_forward.21} parent=23 // pred_check_branch
        %175 = sbr.rel (%p173) target = $region28
      $region27: #{net_forward.21} parent=23 // pred_region
        %s176 = smul.u32 8, %s18
        %p177 = scmp.lt.s32.totalorder %s17, 1
        %s178 = scalar_select %p177, %s17, 1
        %p179 = scmp.lt.s32.totalorder %s176, 7
        %s180 = scalar_select %p179, %s176, 7
        %s181 = smul.addr %s178, 8
        %s182 = sadd.s32 %s180, %s181
        %s183 = smul.addr %s182, 4
        %s184 = scalar_lea.vmem %s0, %s183
        %s185 = smul.u32 8, %s18
      $region28: #{net_forward.21} parent=23 // pred_fallthru
        _
      // Predicated region
      $region29: #{net_forward.21} parent=23 // pred_check
        %p186 = pneg %p72
      $region30: #{net_forward.21} parent=23 // pred_check_branch
        %188 = sbr.rel (%p186) target = $region32
      $region31: #{net_forward.21} parent=23 // pred_region
        %s189 = smul.u32 8, %s18
        %p190 = scmp.lt.s32.totalorder %s17, 1
        %s191 = scalar_select %p190, %s17, 1
        %p192 = scmp.lt.s32.totalorder %s189, 7
        %s193 = scalar_select %p192, %s189, 7
        %s194 = smul.addr %s191, 8
        %s195 = sadd.s32 %s193, %s194
        %s196 = smul.addr %s195, 4
        %s197 = scalar_lea.vmem %s1, %s196
        %s198 = smul.u32 8, %s18
      $region32: #{net_forward.21} parent=23 // pred_fallthru
        _
    $region24: #{net_forward.21} parent=5 // pred_fallthru
      _
    %p199 = scmp.le.s32.totalorder 1, %s10
    %p200 = scmp.lt.s32.totalorder %s10, 3
    %p201 = pnand %p199, %p200
    %p202 = pneg %p201
    // Predicated region
    $region33: #{net_forward.21} parent=5 // pred_check
      _
    $region34: #{net_forward.21} parent=5 // pred_check_branch
      %204 = sbr.rel (%p201) target = $region36
    $region35: #{net_forward.21} parent=5 // pred_region
      %s205 = ssub.s32 %s10, 1
      %s206 = smul.u32 8, %s20
      %p207 = scmp.lt.s32.totalorder %s19, 1
      %s208 = scalar_select %p207, %s19, 1
      %p209 = scmp.lt.s32.totalorder %s206, 7
      %s210 = scalar_select %p209, %s206, 7
      %s211 = smul.addr %s208, 8
      %s212 = sadd.s32 %s210, %s211
      %s213 = smul.addr %s212, 4
      %s214 = scalar_lea.vmem %s0, %s213
      %p215 = pneg %p50
      %p216 = pneg %p47
      %s217 = smul.u32 8, %s20
      %p218 = scmp.lt.s32.totalorder %s19, 1
      %s219 = scalar_select %p218, %s19, 1
      %p220 = scmp.lt.s32.totalorder %s217, 7
      %s221 = scalar_select %p220, %s217, 7
      %s222 = smul.addr %s219, 8
      %s223 = sadd.s32 %s221, %s222
      %s224 = smul.addr %s223, 4
      %s225 = scalar_lea.vmem %s1, %s224
      %p226 = pneg %p78
      %p227 = pneg %p75
      %p228 = pneg %p99
      %p229 = pneg %p96
      %p230 = pneg %p120
      %p231 = pneg %p117
      %p232 = pneg %p148
      %p233 = pneg %p145
      %s234 = smul.u32 8, %s20
      %p235 = scmp.lt.s32.totalorder %s19, 1
      %s236 = scalar_select %p235, %s19, 1
      %p237 = scmp.lt.s32.totalorder %s234, 7
      %s238 = scalar_select %p237, %s234, 7
      %s239 = smul.addr %s236, 8
      %s240 = sadd.s32 %s238, %s239
      %s241 = smul.addr %s240, 4
      %s242 = scalar_lea.vmem %s4, %s241
      %s243 = smul.u32 8, %s20
      %p244 = scmp.lt.s32.totalorder %s19, 1
      %s245 = scalar_select %p244, %s19, 1
      %p246 = scmp.lt.s32.totalorder %s243, 7
      %s247 = scalar_select %p246, %s243, 7
      %s248 = smul.addr %s245, 8
      %s249 = sadd.s32 %s247, %s248
      %s250 = smul.addr %s249, 4
      %s251 = scalar_lea.vmem %s0, %s250
      %s252 = smul.u32 8, %s20
      %s253 = smul.u32 8, %s20
      %p254 = scmp.lt.s32.totalorder %s19, 1
      %s255 = scalar_select %p254, %s19, 1
      %p256 = scmp.lt.s32.totalorder %s253, 7
      %s257 = scalar_select %p256, %s253, 7
      %s258 = smul.addr %s255, 8
      %s259 = sadd.s32 %s257, %s258
      %s260 = smul.addr %s259, 4
      %s261 = scalar_lea.vmem %s1, %s260
      %s262 = smul.u32 8, %s20
      %s263 = smul.u32 8, %s20
      %p264 = scmp.lt.s32.totalorder %s19, 1
      %s265 = scalar_select %p264, %s19, 1
      %p266 = scmp.lt.s32.totalorder %s263, 7
      %s267 = scalar_select %p266, %s263, 7
      %s268 = smul.addr %s265, 8
      %s269 = sadd.s32 %s267, %s268
      %s270 = smul.addr %s269, 4
      %s271 = scalar_lea.vmem %s4, %s270
      %s272 = smul.u32 8, %s20
      %v274 = vld [vmem:[%s251] sm:$0xf]
      %v275 = vld [vmem:[%s251 + $0x4] sm:$0xf]
      %v276 = vld [vmem:[%s251 + $0x8] sm:$0xf]
      %v277 = vld [vmem:[%s251 + $0xc] sm:$0xf]
      %v278 = vld [vmem:[%s251 + $0x10] sm:$0xf]
      %v279 = vld [vmem:[%s251 + $0x14] sm:$0xf]
      %v280 = vld [vmem:[%s251 + $0x18] sm:$0xf]
      %v281 = vld [vmem:[%s251 + $0x1c] sm:$0xf]
      %v282 = vunpack.c.l.bf16 %v274
      %v283 = vunpack.c.l.bf16 %v275
      %v284 = vunpack.c.l.bf16 %v276
      %v285 = vunpack.c.l.bf16 %v277
      %v286 = vunpack.c.l.bf16 %v278
      %v287 = vunpack.c.l.bf16 %v279
      %v288 = vunpack.c.l.bf16 %v280
      %v289 = vunpack.c.l.bf16 %v281
      %v290 = vld [vmem:[%s261] sm:$0xf]
      %v291 = vld [vmem:[%s261 + $0x4] sm:$0xf]
      %v292 = vld [vmem:[%s261 + $0x8] sm:$0xf]
      %v293 = vld [vmem:[%s261 + $0xc] sm:$0xf]
      %v294 = vld [vmem:[%s261 + $0x10] sm:$0xf]
      %v295 = vld [vmem:[%s261 + $0x14] sm:$0xf]
      %v296 = vld [vmem:[%s261 + $0x18] sm:$0xf]
      %v297 = vld [vmem:[%s261 + $0x1c] sm:$0xf]
      %v298 = vunpack.c.l.bf16 %v290
      %v299 = vunpack.c.l.bf16 %v291
      %v300 = vunpack.c.l.bf16 %v292
      %v301 = vunpack.c.l.bf16 %v293
      %v302 = vunpack.c.l.bf16 %v294
      %v303 = vunpack.c.l.bf16 %v295
      %v304 = vunpack.c.l.bf16 %v296
      %v305 = vunpack.c.l.bf16 %v297
      %v306 = vadd.f32 %v282, %v298
      %v307 = vadd.f32 %v283, %v299
      %v308 = vadd.f32 %v284, %v300
      %v309 = vadd.f32 %v285, %v301
      %v310 = vadd.f32 %v286, %v302
      %v311 = vadd.f32 %v287, %v303
      %v312 = vadd.f32 %v288, %v304
      %v313 = vadd.f32 %v289, %v305
      %v314 = vpack.c.bf16 %v307, %v306
      %v315 = vpack.c.bf16 %v309, %v308
      %v316 = vpack.c.bf16 %v311, %v310
      %v317 = vpack.c.bf16 %v313, %v312
      %v318 = vld [vmem:[%s2] sm:$0xf]
      %v319 = vld [vmem:[%s2 + $0x4] sm:$0xf]
      %v320 = vld [vmem:[%s2 + $0x8] sm:$0xf]
      %v321 = vld [vmem:[%s2 + $0xc] sm:$0xf]
      %v322 = vld [vmem:[%s2 + $0x10] sm:$0xf]
      %v323 = vld [vmem:[%s2 + $0x14] sm:$0xf]
      %v324 = vld [vmem:[%s2 + $0x18] sm:$0xf]
      %v325 = vld [vmem:[%s2 + $0x1c] sm:$0xf]
      %v326 = vld [vmem:[%s3] sm:$0x1]
      %v328 = vperm.slane %v326, 0
      %v338 = vunpack.c.l.b16 %v318
      %v339 = vunpack.c.l.b16 %v319
      %v340 = vunpack.c.l.b16 %v320
      %v341 = vunpack.c.l.b16 %v321
      %v342 = vunpack.c.l.b16 %v322
      %v343 = vunpack.c.l.b16 %v323
      %v344 = vunpack.c.l.b16 %v324
      %v345 = vunpack.c.l.b16 %v325
      %v346 = vpack.c.b16 %v339, %v338
      %v347 = vpack.c.b16 %v341, %v340
      %v348 = vpack.c.b16 %v343, %v342
      %v349 = vpack.c.b16 %v345, %v344
      %vm354 = vcmask 523264
      %v356 = vsel %vm354, %v314, 0
      %v359 = vsel %vm354, %v315, 0
      %v362 = vsel %vm354, %v316, 0
      %v365 = vsel %vm354, %v317, 0
      %367 = vmatpush.bf16.msra.mxu0 0
      %368 = vmatpush.bf16.msra.mxu0 0
      %369 = vmatpush.bf16.msra.mxu0 0
      %370 = vmatpush.bf16.msra.mxu0 0
      %371 = vmatpush.bf16.msra.mxu0 %v349
      %372 = vmatpush.bf16.msra.mxu0 %v348
      %373 = vmatpush.bf16.msra.mxu0 %v347
      %374 = vmatpush.bf16.msra.mxu0 %v346
      %375 = vmatmul.bf16.gmra.mxu0 %v356
      %v376 = vpop.f32.mrf.mxu0
      %v377 = vadd.f32 %v328, %v376
      %v378 = vpop.f32.mrf.mxu0
      %v379 = vadd.f32 %v328, %v378
      %380 = vmatmul.bf16.gmra.mxu0 %v359
      %v381 = vpop.f32.mrf.mxu0
      %v382 = vadd.f32 %v328, %v381
      %v383 = vpop.f32.mrf.mxu0
      %v384 = vadd.f32 %v328, %v383
      %385 = vmatmul.bf16.gmra.mxu0 %v362
      %v386 = vpop.f32.mrf.mxu0
      %v387 = vadd.f32 %v328, %v386
      %v388 = vpop.f32.mrf.mxu0
      %v389 = vadd.f32 %v328, %v388
      %390 = vmatmul.bf16.gmra.mxu0 %v365
      %v391 = vpop.f32.mrf.mxu0
      %v392 = vadd.f32 %v328, %v391
      %v393 = vpop.f32.mrf.mxu0
      %v394 = vadd.f32 %v328, %v393
      %395 = vdwg.mxu0
      %v396 = vpack.c.bf16 %v377, %v377
      %v397 = vpack.c.bf16 %v379, %v379
      %v398 = vpack.c.bf16 %v382, %v382
      %v399 = vpack.c.bf16 %v384, %v384
      %v400 = vpack.c.bf16 %v387, %v387
      %v401 = vpack.c.bf16 %v389, %v389
      %v402 = vpack.c.bf16 %v392, %v392
      %v403 = vpack.c.bf16 %v394, %v394
      %vm404 = vcmask 257024
      %405 = vst.msk [vmem:[%s271] sm:$0xf] %vm404, %v396
      %406 = vst.msk [vmem:[%s271 + $0x4] sm:$0xf] %vm404, %v397
      %407 = vst.msk [vmem:[%s271 + $0x8] sm:$0xf] %vm404, %v398
      %408 = vst.msk [vmem:[%s271 + $0xc] sm:$0xf] %vm404, %v399
      %409 = vst.msk [vmem:[%s271 + $0x10] sm:$0xf] %vm404, %v400
      %410 = vst.msk [vmem:[%s271 + $0x14] sm:$0xf] %vm404, %v401
      %411 = vst.msk [vmem:[%s271 + $0x18] sm:$0xf] %vm404, %v402
      %412 = vst.msk [vmem:[%s271 + $0x1c] sm:$0xf] %vm404, %v403
      %s413 = smul.u32 8, %s20
      %p414 = scmp.lt.s32.totalorder %s19, 1
      %s415 = scalar_select %p414, %s19, 1
      %p416 = scmp.lt.s32.totalorder %s413, 7
      %s417 = scalar_select %p416, %s413, 7
      %s418 = smul.addr %s415, 8
      %s419 = sadd.s32 %s417, %s418
      %s420 = smul.addr %s419, 4
      %s421 = scalar_lea.vmem %s4, %s420
      // Predicated region
      $region37: #{net_forward.21} parent=35 // pred_check
        %p422 = pneg %p145
      $region38: #{net_forward.21} parent=35 // pred_check_branch
        %424 = sbr.rel (%p422) target = $region40
      $region39: #{net_forward.21} parent=35 // pred_region
        %s425 = smul.u32 8, %s20
      $region40: #{net_forward.21} parent=35 // pred_fallthru
        _
    $region36: #{net_forward.21} parent=5 // pred_fallthru
      _
    %p426 = scmp.le.s32.totalorder 2, %s10
    // Predicated region
    $region41: #{net_forward.21} parent=5 // pred_check
      %p427 = pneg %p426
    $region42: #{net_forward.21} parent=5 // pred_check_branch
      %429 = sbr.rel (%p427) target = $region44
    $region43: #{net_forward.21} parent=5 // pred_region
      %s430 = ssub.s32 %s10, 2
      // Predicated region
      $region45: #{net_forward.21} parent=43 // pred_check
        %p431 = pneg %p151
      $region46: #{net_forward.21} parent=43 // pred_check_branch
        %433 = sbr.rel (%p431) target = $region48
      $region47: #{net_forward.21} parent=43 // pred_region
        %s434 = smul.u32 8, %s22
        %p435 = scmp.lt.s32.totalorder %s21, 1
        %s436 = scalar_select %p435, %s21, 1
        %p437 = scmp.lt.s32.totalorder %s434, 7
        %s438 = scalar_select %p437, %s434, 7
        %s439 = smul.addr %s436, 8
        %s440 = sadd.s32 %s438, %s439
        %s441 = smul.addr %s440, 4
        %s442 = scalar_lea.vmem %s4, %s441
      $region48: #{net_forward.21} parent=43 // pred_fallthru
        _
    $region44: #{net_forward.21} parent=5 // pred_fallthru
      _
  $region6: #{net_forward.21} parent=0 // loop_footer
    %s14 = sadd.s32 1, %s10
  $region7: #{net_forward.21} parent=0 // loop_footer_branch
    %9 = sbr.rel target = $region3
  $region8: #{net_forward.21} parent=0 // loop_exit
    _

// kernel: net_forward.20
$region0: #{net_forward.20}
  #allocation0 [shape = 'u32[]', space=smem, size = 0x4, offset = 0x4, fixed_abs, tag = 'smem constant byte address 0x4 - core index']
  #allocation1 [shape = 'u32[72,128]{1,0:T(1,128)}', space=vmem, size = 0x9000, scoped, tag = 'internal scratch']
  %s0 = inlined_call_operand.vmem [shape: bf16[2,16,160], index: 0, kind: input, shape index: {}]
  %s1 = inlined_call_operand.vmem [shape: bf16[2,16,160], index: 1, kind: input, shape index: {}]
  %s2 = inlined_call_operand.vmem [shape: bf16[160,64], index: 2, kind: input, shape index: {}]
  %s3 = inlined_call_operand.vmem [shape: f32[1,64], index: 3, kind: input, shape index: {}]
  %s4 = inlined_call_operand.vmem [shape: bf16[2,16,64], index: 4, kind: output, shape index: {}]
  %s5 = sld [smem:[#allocation0]]
  $region49: #{net_forward.20} parent=0
    _
  %s7 = ssub.s32 1, %s5
  %s8 = scalar_select 0, %s7, %s5
  loop: start=0, step=1, limit=4
  $region2: #{net_forward.20} parent=0 // loop_pre_header
    _
  $region3: #{net_forward.20} parent=0 // loop_header
    %s10 = sphi 0, %s14
    %p11 = scmp.ge.s32.totalorder %s10, 4
    %s17 = sphi 0, %s29
    %s18 = sphi 0, %s25
    %s19 = sphi 0, %s17
    %s20 = sphi 0, %s18
    %s21 = sphi 0, %s19
    %s22 = sphi 0, %s20
    %s34 = sphi 0, %s36
    %s37 = sphi 0, %s34
    %s38 = sphi 0, %s37
    %s54 = sphi 0, %s38
    %s62 = sphi 0, %s64
    %s65 = sphi 0, %s62
    %s66 = sphi 0, %s65
    %s82 = sphi 0, %s66
    %s86 = sphi 0, %s86
    %s88 = sphi 0, %s86
    %s89 = sphi 0, %s88
    %s103 = sphi 0, %s89
    %s107 = sphi 0, %s107
    %s109 = sphi 0, %s107
    %s110 = sphi 0, %s109
    %s124 = sphi 0, %s110
    %s132 = sphi 0, %s134
    %s135 = sphi 0, %s132
    %s136 = sphi 0, %s135
    %s152 = sphi 0, %s136
  $region4: #{net_forward.20} parent=0 // loop_header_branch
    %13 = sbr.rel (%p11) target = $region8
  $region5: #{net_forward.20} parent=0 // loop_body
    %s15 = ssub.s32 %s10, 1
    %s16 = ssub.s32 %s10, 2
    %s23 = sadd.s32 1, %s18
    %p24 = scmp.ge.s32.totalorder %s23, 1
    %s25 = scalar_select %p24, 0, %s23
    %s26 = sadd.s32 1, %s17
    %s27 = scalar_select %p24, %s26, %s17
    %p28 = scmp.ge.s32.totalorder %s27, 2
    %s29 = scalar_select %p28, 0, %s27
    %s30 = ssub.s32 %s17, %s29
    %s31 = ssub.s32 %s18, %s25
    %s32 = sor.u32 %s30, %s31
    %p33 = scmp.eq.s32.totalorder %s32, 0
    %s35 = sadd.s32 %s34, 1
    %s36 = scalar_select %p33, %s34, %s35
    %p39 = pneg %p33
    %p40 = scmp.eq.s32.totalorder %s10, 1
    %p41 = por %p39, %p40
    %p42 = scmp.ne.s32.totalorder %s34, %s37
    %p43 = scmp.eq.s32.totalorder %s10, 0
    %p44 = por %p42, %p43
    %p45 = scmp.ne.s32.totalorder %s34, %s37
    %p46 = scmp.eq.s32.totalorder %s15, 1
    %p47 = por %p45, %p46
    %p48 = scmp.ne.s32.totalorder %s37, %s38
    %p49 = scmp.eq.s32.totalorder %s15, 0
    %p50 = por %p48, %p49
    %p51 = scmp.ne.s32.totalorder %s37, %s38
    %p52 = scmp.eq.s32.totalorder %s16, 1
    %p53 = por %p51, %p52
    %p55 = scmp.ne.s32.totalorder %s38, %s54
    %p56 = scmp.eq.s32.totalorder %s16, 0
    %p57 = por %p55, %p56
    %s58 = ssub.s32 %s17, %s29
    %s59 = ssub.s32 %s18, %s25
    %s60 = sor.u32 %s58, %s59
    %p61 = scmp.eq.s32.totalorder %s60, 0
    %s63 = sadd.s32 %s62, 1
    %s64 = scalar_select %p61, %s62, %s63
    %p67 = pneg %p61
    %p68 = scmp.eq.s32.totalorder %s10, 1
    %p69 = por %p67, %p68
    %p70 = scmp.ne.s32.totalorder %s62, %s65
    %p71 = scmp.eq.s32.totalorder %s10, 0
    %p72 = por %p70, %p71
    %p73 = scmp.ne.s32.totalorder %s62, %s65
    %p74 = scmp.eq.s32.totalorder %s15, 1
    %p75 = por %p73, %p74
    %p76 = scmp.ne.s32.totalorder %s65, %s66
    %p77 = scmp.eq.s32.totalorder %s15, 0
    %p78 = por %p76, %p77
    %p79 = scmp.ne.s32.totalorder %s65, %s66
    %p80 = scmp.eq.s32.totalorder %s16, 1
    %p81 = por %p79, %p80
    %p83 = scmp.ne.s32.totalorder %s66, %s82
    %p84 = scmp.eq.s32.totalorder %s16, 0
    %p85 = por %p83, %p84
    %s87 = sadd.s32 %s86, 1
    %p90 = scmp.eq.s32.totalorder %s10, 1
    %p91 = scmp.ne.s32.totalorder %s86, %s88
    %p92 = scmp.eq.s32.totalorder %s10, 0
    %p93 = por %p91, %p92
    %p94 = scmp.ne.s32.totalorder %s86, %s88
    %p95 = scmp.eq.s32.totalorder %s15, 1
    %p96 = por %p94, %p95
    %p97 = scmp.ne.s32.totalorder %s88, %s89
    %p98 = scmp.eq.s32.totalorder %s15, 0
    %p99 = por %p97, %p98
    %p100 = scmp.ne.s32.totalorder %s88, %s89
    %p101 = scmp.eq.s32.totalorder %s16, 1
    %p102 = por %p100, %p101
    %p104 = scmp.ne.s32.totalorder %s89, %s103
    %p105 = scmp.eq.s32.totalorder %s16, 0
    %p106 = por %p104, %p105
    %s108 = sadd.s32 %s107, 1
    %p111 = scmp.eq.s32.totalorder %s10, 1
    %p112 = scmp.ne.s32.totalorder %s107, %s109
    %p113 = scmp.eq.s32.totalorder %s10, 0
    %p114 = por %p112, %p113
    %p115 = scmp.ne.s32.totalorder %s107, %s109
    %p116 = scmp.eq.s32.totalorder %s15, 1
    %p117 = por %p115, %p116
    %p118 = scmp.ne.s32.totalorder %s109, %s110
    %p119 = scmp.eq.s32.totalorder %s15, 0
    %p120 = por %p118, %p119
    %p121 = scmp.ne.s32.totalorder %s109, %s110
    %p122 = scmp.eq.s32.totalorder %s16, 1
    %p123 = por %p121, %p122
    %p125 = scmp.ne.s32.totalorder %s110, %s124
    %p126 = scmp.eq.s32.totalorder %s16, 0
    %p127 = por %p125, %p126
    %s128 = ssub.s32 %s17, %s29
    %s129 = ssub.s32 %s18, %s25
    %s130 = sor.u32 %s128, %s129
    %p131 = scmp.eq.s32.totalorder %s130, 0
    %s133 = sadd.s32 %s132, 1
    %s134 = scalar_select %p131, %s132, %s133
    %p137 = pneg %p131
    %p138 = scmp.eq.s32.totalorder %s10, 1
    %p139 = por %p137, %p138
    %p140 = scmp.ne.s32.totalorder %s132, %s135
    %p141 = scmp.eq.s32.totalorder %s10, 0
    %p142 = por %p140, %p141
    %p143 = scmp.ne.s32.totalorder %s132, %s135
    %p144 = scmp.eq.s32.totalorder %s15, 1
    %p145 = por %p143, %p144
    %p146 = scmp.ne.s32.totalorder %s135, %s136
    %p147 = scmp.eq.s32.totalorder %s15, 0
    %p148 = por %p146, %p147
    %p149 = scmp.ne.s32.totalorder %s135, %s136
    %p150 = scmp.eq.s32.totalorder %s16, 1
    %p151 = por %p149, %p150
    %p153 = scmp.ne.s32.totalorder %s136, %s152
    %p154 = scmp.eq.s32.totalorder %s16, 0
    %p155 = por %p153, %p154
    %p156 = scmp.le.s32.totalorder 1, %s10
    %p157 = scmp.lt.s32.totalorder %s10, 3
    %p158 = pnand %p156, %p157
    %p159 = pneg %p158
    // Predicated region
    $region9: #{net_forward.20} parent=5 // pred_check
      _
    $region10: #{net_forward.20} parent=5 // pred_check_branch
      %161 = sbr.rel (%p158) target = $region12
    $region11: #{net_forward.20} parent=5 // pred_region
      %s162 = ssub.s32 %s10, 1
      // Predicated region
      $region13: #{net_forward.20} parent=11 // pred_check
        %p163 = pneg %p99
      $region14: #{net_forward.20} parent=11 // pred_check_branch
        %165 = sbr.rel (%p163) target = $region16
      $region15: #{net_forward.20} parent=11 // pred_region
        _
      $region16: #{net_forward.20} parent=11 // pred_fallthru
        _
      // Predicated region
      $region17: #{net_forward.20} parent=11 // pred_check
        %p166 = pneg %p120
      $region18: #{net_forward.20} parent=11 // pred_check_branch
        %168 = sbr.rel (%p166) target = $region20
      $region19: #{net_forward.20} parent=11 // pred_region
        _
      $region20: #{net_forward.20} parent=11 // pred_fallthru
        _
    $region12: #{net_forward.20} parent=5 // pred_fallthru
      _
    %p169 = scmp.lt.s32.totalorder %s10, 2
    // Predicated region
    $region21: #{net_forward.20} parent=5 // pred_check
      %p170 = pneg %p169
    $region22: #{net_forward.20} parent=5 // pred_check_branch
      %172 = sbr.rel (%p170) target = $region24
    $region23: #{net_forward.20} parent=5 // pred_region
      // Predicated region
      $region25: #{net_forward.20} parent=23 // pred_check
        %p173 = pneg %p44
      $region26: #{net_forward.20} parent=23 // pred_check_branch
        %175 = sbr.rel (%p173) target = $region28
      $region27: #{net_forward.20} parent=23 // pred_region
        %s176 = smul.u32 2, %s18
        %p177 = scmp.lt.s32.totalorder %s17, 1
        %s178 = scalar_select %p177, %s17, 1
        %p179 = scmp.lt.s32.totalorder %s176, 1
        %s180 = scalar_select %p179, %s176, 1
        %s181 = smul.addr %s180, 2
        %s182 = smul.addr %s178, 4
        %s183 = sadd.s32 %s181, %s182
        %s184 = smul.addr %s183, 4
        %s185 = scalar_lea.vmem %s0, %s184
        %s186 = smul.u32 2, %s18
      $region28: #{net_forward.20} parent=23 // pred_fallthru
        _
      // Predicated region
      $region29: #{net_forward.20} parent=23 // pred_check
        %p187 = pneg %p72
      $region30: #{net_forward.20} parent=23 // pred_check_branch
        %189 = sbr.rel (%p187) target = $region32
      $region31: #{net_forward.20} parent=23 // pred_region
        %s190 = smul.u32 2, %s18
        %p191 = scmp.lt.s32.totalorder %s17, 1
        %s192 = scalar_select %p191, %s17, 1
        %p193 = scmp.lt.s32.totalorder %s190, 1
        %s194 = scalar_select %p193, %s190, 1
        %s195 = smul.addr %s194, 2
        %s196 = smul.addr %s192, 4
        %s197 = sadd.s32 %s195, %s196
        %s198 = smul.addr %s197, 4
        %s199 = scalar_lea.vmem %s1, %s198
        %s200 = smul.u32 2, %s18
      $region32: #{net_forward.20} parent=23 // pred_fallthru
        _
    $region24: #{net_forward.20} parent=5 // pred_fallthru
      _
    %p201 = scmp.le.s32.totalorder 1, %s10
    %p202 = scmp.lt.s32.totalorder %s10, 3
    %p203 = pnand %p201, %p202
    %p204 = pneg %p203
    // Predicated region
    $region33: #{net_forward.20} parent=5 // pred_check
      _
    $region34: #{net_forward.20} parent=5 // pred_check_branch
      %206 = sbr.rel (%p203) target = $region36
    $region35: #{net_forward.20} parent=5 // pred_region
      %s207 = ssub.s32 %s10, 1
      %s208 = smul.u32 2, %s20
      %p209 = scmp.lt.s32.totalorder %s19, 1
      %s210 = scalar_select %p209, %s19, 1
      %p211 = scmp.lt.s32.totalorder %s208, 1
      %s212 = scalar_select %p211, %s208, 1
      %s213 = smul.addr %s212, 2
      %s214 = smul.addr %s210, 4
      %s215 = sadd.s32 %s213, %s214
      %s216 = smul.addr %s215, 4
      %s217 = scalar_lea.vmem %s0, %s216
      %p218 = pneg %p50
      %p219 = pneg %p47
      %s220 = smul.u32 2, %s20
      %p221 = scmp.lt.s32.totalorder %s19, 1
      %s222 = scalar_select %p221, %s19, 1
      %p223 = scmp.lt.s32.totalorder %s220, 1
      %s224 = scalar_select %p223, %s220, 1
      %s225 = smul.addr %s224, 2
      %s226 = smul.addr %s222, 4
      %s227 = sadd.s32 %s225, %s226
      %s228 = smul.addr %s227, 4
      %s229 = scalar_lea.vmem %s1, %s228
      %p230 = pneg %p78
      %p231 = pneg %p75
      %p232 = pneg %p99
      %p233 = pneg %p96
      %p234 = pneg %p120
      %p235 = pneg %p117
      %p236 = pneg %p148
      %p237 = pneg %p145
      %s238 = smul.u32 2, %s20
      %p239 = scmp.lt.s32.totalorder %s19, 1
      %s240 = scalar_select %p239, %s19, 1
      %p241 = scmp.lt.s32.totalorder %s238, 1
      %s242 = scalar_select %p241, %s238, 1
      %s243 = smul.addr %s240, 2
      %s244 = sadd.s32 %s242, %s243
      %s245 = smul.addr %s244, 4
      %s246 = scalar_lea.vmem %s4, %s245
      %s247 = smul.u32 2, %s20
      %p248 = scmp.lt.s32.totalorder %s19, 1
      %s249 = scalar_select %p248, %s19, 1
      %p250 = scmp.lt.s32.totalorder %s247, 1
      %s251 = scalar_select %p250, %s247, 1
      %s252 = smul.addr %s251, 2
      %s253 = smul.addr %s249, 4
      %s254 = sadd.s32 %s252, %s253
      %s255 = smul.addr %s254, 4
      %s256 = scalar_lea.vmem %s0, %s255
      %s257 = smul.u32 2, %s20
      %s258 = smul.u32 2, %s20
      %p259 = scmp.lt.s32.totalorder %s19, 1
      %s260 = scalar_select %p259, %s19, 1
      %p261 = scmp.lt.s32.totalorder %s258, 1
      %s262 = scalar_select %p261, %s258, 1
      %s263 = smul.addr %s262, 2
      %s264 = smul.addr %s260, 4
      %s265 = sadd.s32 %s263, %s264
      %s266 = smul.addr %s265, 4
      %s267 = scalar_lea.vmem %s1, %s266
      %s268 = smul.u32 2, %s20
      %s269 = smul.u32 2, %s20
      %p270 = scmp.lt.s32.totalorder %s19, 1
      %s271 = scalar_select %p270, %s19, 1
      %p272 = scmp.lt.s32.totalorder %s269, 1
      %s273 = scalar_select %p272, %s269, 1
      %s274 = smul.addr %s271, 2
      %s275 = sadd.s32 %s273, %s274
      %s276 = smul.addr %s275, 4
      %s277 = scalar_lea.vmem %s4, %s276
      %s278 = smul.u32 2, %s20
      %v280 = vld [vmem:[%s256] sm:$0xff]
      %v281 = vld [vmem:[%s256 + $0x8] sm:$0xff]
      %v282 = vunpack.c.l.bf16 %v280
      %v283 = vunpack.c.h.bf16 %v280
      %v284 = vunpack.c.l.bf16 %v281
      %v285 = vunpack.c.h.bf16 %v281
      %v286 = vld [vmem:[%s267] sm:$0xff]
      %v287 = vld [vmem:[%s267 + $0x8] sm:$0xff]
      %v288 = vunpack.c.l.bf16 %v286
      %v289 = vunpack.c.h.bf16 %v286
      %v290 = vunpack.c.l.bf16 %v287
      %v291 = vunpack.c.h.bf16 %v287
      %v292 = vadd.f32 %v282, %v288
      %v293 = vadd.f32 %v283, %v289
      %v294 = vadd.f32 %v284, %v290
      %v295 = vadd.f32 %v285, %v291
      %v296 = vpack.c.bf16 %v294, %v292
      %v297 = vpack.c.bf16 %v295, %v293
      %v298 = vld [vmem:[%s2] sm:$0xf]
      %v299 = vld [vmem:[%s2 + $0x4] sm:$0xf]
      %v300 = vld [vmem:[%s2 + $0x8] sm:$0xf]
      %v301 = vld [vmem:[%s2 + $0xc] sm:$0xf]
      %v302 = vld [vmem:[%s2 + $0x10] sm:$0xf]
      %v303 = vld [vmem:[%s2 + $0x14] sm:$0xf]
      %v304 = vld [vmem:[%s2 + $0x18] sm:$0xf]
      %v305 = vld [vmem:[%s2 + $0x1c] sm:$0xf]
      %v306 = vld [vmem:[%s2 + $0x20] sm:$0xf]
      %v307 = vld [vmem:[%s2 + $0x24] sm:$0xf]
      %v308 = vld [vmem:[%s2 + $0x28] sm:$0xf]
      %v309 = vld [vmem:[%s2 + $0x2c] sm:$0xf]
      %v310 = vld [vmem:[%s2 + $0x30] sm:$0xf]
      %v311 = vld [vmem:[%s2 + $0x34] sm:$0xf]
      %v312 = vld [vmem:[%s2 + $0x38] sm:$0xf]
      %v313 = vld [vmem:[%s2 + $0x3c] sm:$0xf]
      %v314 = vld [vmem:[%s2 + $0x40] sm:$0xf]
      %v315 = vld [vmem:[%s2 + $0x44] sm:$0xf]
      %v316 = vld [vmem:[%s2 + $0x48] sm:$0xf]
      %v317 = vld [vmem:[%s2 + $0x4c] sm:$0xf]
      %v318 = vld [vmem:[%s3] sm:$0x1]
      %v320 = vperm.slane %v318, 0
      %v342 = vunpack.c.l.b16 %v298
      %v343 = vunpack.c.l.b16 %v299
      %v344 = vunpack.c.l.b16 %v300
      %v345 = vunpack.c.l.b16 %v301
      %v346 = vunpack.c.l.b16 %v302
      %v347 = vunpack.c.l.b16 %v303
      %v348 = vunpack.c.l.b16 %v304
      %v349 = vunpack.c.l.b16 %v305
      %v350 = vunpack.c.l.b16 %v306
      %v351 = vunpack.c.l.b16 %v307
      %v352 = vunpack.c.l.b16 %v308
      %v353 = vunpack.c.l.b16 %v309
      %v354 = vunpack.c.l.b16 %v310
      %v355 = vunpack.c.l.b16 %v311
      %v356 = vunpack.c.l.b16 %v312
      %v357 = vunpack.c.l.b16 %v313
      %v358 = vunpack.c.l.b16 %v314
      %v359 = vunpack.c.l.b16 %v315
      %v360 = vunpack.c.l.b16 %v316
      %v361 = vunpack.c.l.b16 %v317
      %v362 = vpack.c.b16 %v343, %v342
      %v363 = vpack.c.b16 %v345, %v344
      %v364 = vpack.c.b16 %v347, %v346
      %v365 = vpack.c.b16 %v349, %v348
      %v366 = vpack.c.b16 %v351, %v350
      %v367 = vpack.c.b16 %v353, %v352
      %v368 = vpack.c.b16 %v355, %v354
      %v369 = vpack.c.b16 %v357, %v356
      %v370 = vpack.c.b16 %v359, %v358
      %v371 = vpack.c.b16 %v361, %v360
      %vm382 = vcmask 261120
      %v384 = vsel %vm382, %v297, 0
      %386 = vmatpush.bf16.msra.mxu0 %v369
      %387 = vmatpush.bf16.msra.mxu0 %v368
      %388 = vmatpush.bf16.msra.mxu0 %v367
      %389 = vmatpush.bf16.msra.mxu0 %v366
      %390 = vmatpush.bf16.msra.mxu0 %v365
      %391 = vmatpush.bf16.msra.mxu0 %v364
      %392 = vmatpush.bf16.msra.mxu0 %v363
      %393 = vmatpush.bf16.msra.mxu0 %v362
      %394 = vmatmul.bf16.gmra.mxu0 %v296
      %v395 = vpop.f32.mrf.mxu0
      %v396 = vadd.f32 %v320, %v395
      %v397 = vpop.f32.mrf.mxu0
      %v398 = vadd.f32 %v320, %v397
      %399 = vdwg.mxu0
      %400 = vmatpush.bf16.msra.mxu0 0
      %401 = vmatpush.bf16.msra.mxu0 0
      %402 = vmatpush.bf16.msra.mxu0 0
      %403 = vmatpush.bf16.msra.mxu0 0
      %404 = vmatpush.bf16.msra.mxu0 0
      %405 = vmatpush.bf16.msra.mxu0 0
      %406 = vmatpush.bf16.msra.mxu0 %v371
      %407 = vmatpush.bf16.msra.mxu0 %v370
      %408 = vmatmul.bf16.gmra.mxu0 %v384
      %v409 = vpop.f32.mrf.mxu0
      %v410 = vadd.f32 %v396, %v409
      %v411 = vpop.f32.mrf.mxu0
      %v412 = vadd.f32 %v398, %v411
      %413 = vdwg.mxu0
      %v414 = vpack.c.bf16 %v410, %v410
      %v415 = vpack.c.bf16 %v412, %v412
      %vm416 = vcmask 519168
      %417 = vst.msk [vmem:[%s277] sm:$0xf] %vm416, %v414
      %418 = vst.msk [vmem:[%s277 + $0x4] sm:$0xf] %vm416, %v415
      %s419 = smul.u32 2, %s20
      %p420 = scmp.lt.s32.totalorder %s19, 1
      %s421 = scalar_select %p420, %s19, 1
      %p422 = scmp.lt.s32.totalorder %s419, 1
      %s423 = scalar_select %p422, %s419, 1
      %s424 = smul.addr %s421, 2
      %s425 = sadd.s32 %s423, %s424
      %s426 = smul.addr %s425, 4
      %s427 = scalar_lea.vmem %s4, %s426
      // Predicated region
      $region37: #{net_forward.20} parent=35 // pred_check
        %p428 = pneg %p145
      $region38: #{net_forward.20} parent=35 // pred_check_branch
        %430 = sbr.rel (%p428) target = $region40
      $region39: #{net_forward.20} parent=35 // pred_region
        %s431 = smul.u32 2, %s20
      $region40: #{net_forward.20} parent=35 // pred_fallthru
        _
    $region36: #{net_forward.20} parent=5 // pred_fallthru
      _
    %p432 = scmp.le.s32.totalorder 2, %s10
    // Predicated region
    $region41: #{net_forward.20} parent=5 // pred_check
      %p433 = pneg %p432
    $region42: #{net_forward.20} parent=5 // pred_check_branch
      %435 = sbr.rel (%p433) target = $region44
    $region43: #{net_forward.20} parent=5 // pred_region
      %s436 = ssub.s32 %s10, 2
      // Predicated region
      $region45: #{net_forward.20} parent=43 // pred_check
        %p437 = pneg %p151
      $region46: #{net_forward.20} parent=43 // pred_check_branch
        %439 = sbr.rel (%p437) target = $region48
      $region47: #{net_forward.20} parent=43 // pred_region
        %s440 = smul.u32 2, %s22
        %p441 = scmp.lt.s32.totalorder %s21, 1
        %s442 = scalar_select %p441, %s21, 1
        %p443 = scmp.lt.s32.totalorder %s440, 1
        %s444 = scalar_select %p443, %s440, 1
        %s445 = smul.addr %s442, 2
        %s446 = sadd.s32 %s444, %s445
        %s447 = smul.addr %s446, 4
        %s448 = scalar_lea.vmem %s4, %s447
      $region48: #{net_forward.20} parent=43 // pred_fallthru
        _
    $region44: #{net_forward.20} parent=5 // pred_fallthru
      _
  $region6: #{net_forward.20} parent=0 // loop_footer
    %s14 = sadd.s32 1, %s10
  $region7: #{net_forward.20} parent=0 // loop_footer_branch
    %9 = sbr.rel target = $region3
  $region8: #{net_forward.20} parent=0 // loop_exit
    _

// kernel: net_forward.16
$region0: #{net_forward.16}
  #allocation0 [shape = 'u32[]', space=smem, size = 0x4, offset = 0x4, fixed_abs, tag = 'smem constant byte address 0x4 - core index']
  #allocation1 [shape = 'u32[72,128]{1,0:T(1,128)}', space=vmem, size = 0x9000, scoped, tag = 'internal scratch']
  %s0 = inlined_call_operand.vmem [shape: bf16[2,256,32], index: 0, kind: input, shape index: {}]
  %s1 = inlined_call_operand.vmem [shape: bf16[256,32], index: 1, kind: input, shape index: {}]
  %s2 = inlined_call_operand.vmem [shape: bf16[32,32], index: 2, kind: input, shape index: {}]
  %s3 = inlined_call_operand.vmem [shape: f32[1,32], index: 3, kind: input, shape index: {}]
  %s4 = inlined_call_operand.vmem [shape: bf16[2,256,32], index: 4, kind: output, shape index: {}]
  %s5 = sld [smem:[#allocation0]]
  $region49: #{net_forward.16} parent=0
    _
  %s7 = ssub.s32 1, %s5
  %s8 = scalar_select 0, %s7, %s5
  loop: start=0, step=1, limit=4
  $region2: #{net_forward.16} parent=0 // loop_pre_header
    _
  $region3: #{net_forward.16} parent=0 // loop_header
    %s10 = sphi 0, %s14
    %p11 = scmp.ge.s32.totalorder %s10, 4
    %s17 = sphi 0, %s29
    %s18 = sphi 0, %s25
    %s19 = sphi 0, %s17
    %s20 = sphi 0, %s18
    %s21 = sphi 0, %s19
    %s22 = sphi 0, %s20
    %s34 = sphi 0, %s36
    %s37 = sphi 0, %s34
    %s38 = sphi 0, %s37
    %s54 = sphi 0, %s38
    %s60 = sphi 0, %s62
    %s63 = sphi 0, %s60
    %s64 = sphi 0, %s63
    %s80 = sphi 0, %s64
    %s84 = sphi 0, %s84
    %s86 = sphi 0, %s84
    %s87 = sphi 0, %s86
    %s101 = sphi 0, %s87
    %s105 = sphi 0, %s105
    %s107 = sphi 0, %s105
    %s108 = sphi 0, %s107
    %s122 = sphi 0, %s108
    %s130 = sphi 0, %s132
    %s133 = sphi 0, %s130
    %s134 = sphi 0, %s133
    %s150 = sphi 0, %s134
  $region4: #{net_forward.16} parent=0 // loop_header_branch
    %13 = sbr.rel (%p11) target = $region8
  $region5: #{net_forward.16} parent=0 // loop_body
    %s15 = ssub.s32 %s10, 1
    %s16 = ssub.s32 %s10, 2
    %s23 = sadd.s32 1, %s18
    %p24 = scmp.ge.s32.totalorder %s23, 1
    %s25 = scalar_select %p24, 0, %s23
    %s26 = sadd.s32 1, %s17
    %s27 = scalar_select %p24, %s26, %s17
    %p28 = scmp.ge.s32.totalorder %s27, 2
    %s29 = scalar_select %p28, 0, %s27
    %s30 = ssub.s32 %s17, %s29
    %s31 = ssub.s32 %s18, %s25
    %s32 = sor.u32 %s30, %s31
    %p33 = scmp.eq.s32.totalorder %s32, 0
    %s35 = sadd.s32 %s34, 1
    %s36 = scalar_select %p33, %s34, %s35
    %p39 = pneg %p33
    %p40 = scmp.eq.s32.totalorder %s10, 1
    %p41 = por %p39, %p40
    %p42 = scmp.ne.s32.totalorder %s34, %s37
    %p43 = scmp.eq.s32.totalorder %s10, 0
    %p44 = por %p42, %p43
    %p45 = scmp.ne.s32.totalorder %s34, %s37
    %p46 = scmp.eq.s32.totalorder %s15, 1
    %p47 = por %p45, %p46
    %p48 = scmp.ne.s32.totalorder %s37, %s38
    %p49 = scmp.eq.s32.totalorder %s15, 0
    %p50 = por %p48, %p49
    %p51 = scmp.ne.s32.totalorder %s37, %s38
    %p52 = scmp.eq.s32.totalorder %s16, 1
    %p53 = por %p51, %p52
    %p55 = scmp.ne.s32.totalorder %s38, %s54
    %p56 = scmp.eq.s32.totalorder %s16, 0
    %p57 = por %p55, %p56
    %s58 = ssub.s32 %s18, %s25
    %p59 = scmp.eq.s32.totalorder %s58, 0
    %s61 = sadd.s32 %s60, 1
    %s62 = scalar_select %p59, %s60, %s61
    %p65 = pneg %p59
    %p66 = scmp.eq.s32.totalorder %s10, 1
    %p67 = por %p65, %p66
    %p68 = scmp.ne.s32.totalorder %s60, %s63
    %p69 = scmp.eq.s32.totalorder %s10, 0
    %p70 = por %p68, %p69
    %p71 = scmp.ne.s32.totalorder %s60, %s63
    %p72 = scmp.eq.s32.totalorder %s15, 1
    %p73 = por %p71, %p72
    %p74 = scmp.ne.s32.totalorder %s63, %s64
    %p75 = scmp.eq.s32.totalorder %s15, 0
    %p76 = por %p74, %p75
    %p77 = scmp.ne.s32.totalorder %s63, %s64
    %p78 = scmp.eq.s32.totalorder %s16, 1
    %p79 = por %p77, %p78
    %p81 = scmp.ne.s32.totalorder %s64, %s80
    %p82 = scmp.eq.s32.totalorder %s16, 0
    %p83 = por %p81, %p82
    %s85 = sadd.s32 %s84, 1
    %p88 = scmp.eq.s32.totalorder %s10, 1
    %p89 = scmp.ne.s32.totalorder %s84, %s86
    %p90 = scmp.eq.s32.totalorder %s10, 0
    %p91 = por %p89, %p90
    %p92 = scmp.ne.s32.totalorder %s84, %s86
    %p93 = scmp.eq.s32.totalorder %s15, 1
    %p94 = por %p92, %p93
    %p95 = scmp.ne.s32.totalorder %s86, %s87
    %p96 = scmp.eq.s32.totalorder %s15, 0
    %p97 = por %p95, %p96
    %p98 = scmp.ne.s32.totalorder %s86, %s87
    %p99 = scmp.eq.s32.totalorder %s16, 1
    %p100 = por %p98, %p99
    %p102 = scmp.ne.s32.totalorder %s87, %s101
    %p103 = scmp.eq.s32.totalorder %s16, 0
    %p104 = por %p102, %p103
    %s106 = sadd.s32 %s105, 1
    %p109 = scmp.eq.s32.totalorder %s10, 1
    %p110 = scmp.ne.s32.totalorder %s105, %s107
    %p111 = scmp.eq.s32.totalorder %s10, 0
    %p112 = por %p110, %p111
    %p113 = scmp.ne.s32.totalorder %s105, %s107
    %p114 = scmp.eq.s32.totalorder %s15, 1
    %p115 = por %p113, %p114
    %p116 = scmp.ne.s32.totalorder %s107, %s108
    %p117 = scmp.eq.s32.totalorder %s15, 0
    %p118 = por %p116, %p117
    %p119 = scmp.ne.s32.totalorder %s107, %s108
    %p120 = scmp.eq.s32.totalorder %s16, 1
    %p121 = por %p119, %p120
    %p123 = scmp.ne.s32.totalorder %s108, %s122
    %p124 = scmp.eq.s32.totalorder %s16, 0
    %p125 = por %p123, %p124
    %s126 = ssub.s32 %s17, %s29
    %s127 = ssub.s32 %s18, %s25
    %s128 = sor.u32 %s126, %s127
    %p129 = scmp.eq.s32.totalorder %s128, 0
    %s131 = sadd.s32 %s130, 1
    %s132 = scalar_select %p129, %s130, %s131
    %p135 = pneg %p129
    %p136 = scmp.eq.s32.totalorder %s10, 1
    %p137 = por %p135, %p136
    %p138 = scmp.ne.s32.totalorder %s130, %s133
    %p139 = scmp.eq.s32.totalorder %s10, 0
    %p140 = por %p138, %p139
    %p141 = scmp.ne.s32.totalorder %s130, %s133
    %p142 = scmp.eq.s32.totalorder %s15, 1
    %p143 = por %p141, %p142
    %p144 = scmp.ne.s32.totalorder %s133, %s134
    %p145 = scmp.eq.s32.totalorder %s15, 0
    %p146 = por %p144, %p145
    %p147 = scmp.ne.s32.totalorder %s133, %s134
    %p148 = scmp.eq.s32.totalorder %s16, 1
    %p149 = por %p147, %p148
    %p151 = scmp.ne.s32.totalorder %s134, %s150
    %p152 = scmp.eq.s32.totalorder %s16, 0
    %p153 = por %p151, %p152
    %p154 = scmp.le.s32.totalorder 1, %s10
    %p155 = scmp.lt.s32.totalorder %s10, 3
    %p156 = pnand %p154, %p155
    %p157 = pneg %p156
    // Predicated region
    $region9: #{net_forward.16} parent=5 // pred_check
      _
    $region10: #{net_forward.16} parent=5 // pred_check_branch
      %159 = sbr.rel (%p156) target = $region12
    $region11: #{net_forward.16} parent=5 // pred_region
      %s160 = ssub.s32 %s10, 1
      // Predicated region
      $region13: #{net_forward.16} parent=11 // pred_check
        %p161 = pneg %p76
      $region14: #{net_forward.16} parent=11 // pred_check_branch
        %163 = sbr.rel (%p161) target = $region16
      $region15: #{net_forward.16} parent=11 // pred_region
        %s164 = smul.u32 32, %s20
        %p165 = scmp.lt.s32.totalorder %s164, 31
        %s166 = scalar_select %p165, %s164, 31
        %s167 = smul.addr %s166, 4
        %s168 = scalar_lea.vmem %s1, %s167
        %s169 = smul.u32 32, %s20
      $region16: #{net_forward.16} parent=11 // pred_fallthru
        _
      // Predicated region
      $region17: #{net_forward.16} parent=11 // pred_check
        %p170 = pneg %p97
      $region18: #{net_forward.16} parent=11 // pred_check_branch
        %172 = sbr.rel (%p170) target = $region20
      $region19: #{net_forward.16} parent=11 // pred_region
        _
      $region20: #{net_forward.16} parent=11 // pred_fallthru
        _
      // Predicated region
      $region21: #{net_forward.16} parent=11 // pred_check
        %p173 = pneg %p118
      $region22: #{net_forward.16} parent=11 // pred_check_branch
        %175 = sbr.rel (%p173) target = $region24
      $region23: #{net_forward.16} parent=11 // pred_region
        _
      $region24: #{net_forward.16} parent=11 // pred_fallthru
        _
    $region12: #{net_forward.16} parent=5 // pred_fallthru
      _
    %p176 = scmp.lt.s32.totalorder %s10, 2
    // Predicated region
    $region25: #{net_forward.16} parent=5 // pred_check
      %p177 = pneg %p176
    $region26: #{net_forward.16} parent=5 // pred_check_branch
      %179 = sbr.rel (%p177) target = $region28
    $region27: #{net_forward.16} parent=5 // pred_region
      // Predicated region
      $region29: #{net_forward.16} parent=27 // pred_check
        %p180 = pneg %p44
      $region30: #{net_forward.16} parent=27 // pred_check_branch
        %182 = sbr.rel (%p180) target = $region32
      $region31: #{net_forward.16} parent=27 // pred_region
        %s183 = smul.u32 32, %s18
        %p184 = scmp.lt.s32.totalorder %s17, 1
        %s185 = scalar_select %p184, %s17, 1
        %p186 = scmp.lt.s32.totalorder %s183, 31
        %s187 = scalar_select %p186, %s183, 31
        %s188 = smul.addr %s185, 32
        %s189 = sadd.s32 %s187, %s188
        %s190 = smul.addr %s189, 4
        %s191 = scalar_lea.vmem %s0, %s190
        %s192 = smul.u32 32, %s18
      $region32: #{net_forward.16} parent=27 // pred_fallthru
        _
    $region28: #{net_forward.16} parent=5 // pred_fallthru
      _
    %p193 = scmp.le.s32.totalorder 1, %s10
    %p194 = scmp.lt.s32.totalorder %s10, 3
    %p195 = pnand %p193, %p194
    %p196 = pneg %p195
    // Predicated region
    $region33: #{net_forward.16} parent=5 // pred_check
      _
    $region34: #{net_forward.16} parent=5 // pred_check_branch
      %198 = sbr.rel (%p195) target = $region36
    $region35: #{net_forward.16} parent=5 // pred_region
      %s199 = ssub.s32 %s10, 1
      %s200 = smul.u32 32, %s20
      %p201 = scmp.lt.s32.totalorder %s19, 1
      %s202 = scalar_select %p201, %s19, 1
      %p203 = scmp.lt.s32.totalorder %s200, 31
      %s204 = scalar_select %p203, %s200, 31
      %s205 = smul.addr %s202, 32
      %s206 = sadd.s32 %s204, %s205
      %s207 = smul.addr %s206, 4
      %s208 = scalar_lea.vmem %s0, %s207
      %p209 = pneg %p50
      %p210 = pneg %p47
      %s211 = smul.u32 32, %s20
      %p212 = scmp.lt.s32.totalorder %s211, 31
      %s213 = scalar_select %p212, %s211, 31
      %s214 = smul.addr %s213, 4
      %s215 = scalar_lea.vmem %s1, %s214
      %p216 = pneg %p76
      %p217 = pneg %p73
      %p218 = pneg %p97
      %p219 = pneg %p94
      %p220 = pneg %p118
      %p221 = pneg %p115
      %p222 = pneg %p146
      %p223 = pneg %p143
      %s224 = smul.u32 32, %s20
      %p225 = scmp.lt.s32.totalorder %s19, 1
      %s226 = scalar_select %p225, %s19, 1
      %p227 = scmp.lt.s32.totalorder %s224, 31
      %s228 = scalar_select %p227, %s224, 31
      %s229 = smul.addr %s226, 32
      %s230 = sadd.s32 %s228, %s229
      %s231 = smul.addr %s230, 4
      %s232 = scalar_lea.vmem %s4, %s231
      %s233 = smul.u32 32, %s20
      %p234 = scmp.lt.s32.totalorder %s19, 1
      %s235 = scalar_select %p234, %s19, 1
      %p236 = scmp.lt.s32.totalorder %s233, 31
      %s237 = scalar_select %p236, %s233, 31
      %s238 = smul.addr %s235, 32
      %s239 = sadd.s32 %s237, %s238
      %s240 = smul.addr %s239, 4
      %s241 = scalar_lea.vmem %s0, %s240
      %s242 = smul.u32 32, %s20
      %s243 = smul.u32 32, %s20
      %p244 = scmp.lt.s32.totalorder %s243, 31
      %s245 = scalar_select %p244, %s243, 31
      %s246 = smul.addr %s245, 4
      %s247 = scalar_lea.vmem %s1, %s246
      %s248 = smul.u32 32, %s20
      %s249 = smul.u32 32, %s20
      %p250 = scmp.lt.s32.totalorder %s19, 1
      %s251 = scalar_select %p250, %s19, 1
      %p252 = scmp.lt.s32.totalorder %s249, 31
      %s253 = scalar_select %p252, %s249, 31
      %s254 = smul.addr %s251, 32
      %s255 = sadd.s32 %s253, %s254
      %s256 = smul.addr %s255, 4
      %s257 = scalar_lea.vmem %s4, %s256
      %s258 = smul.u32 32, %s20
      %v260 = vld [vmem:[%s241] sm:$0xf]
      %v261 = vld [vmem:[%s241 + $0x4] sm:$0xf]
      %v262 = vld [vmem:[%s241 + $0x8] sm:$0xf]
      %v263 = vld [vmem:[%s241 + $0xc] sm:$0xf]
      %v264 = vld [vmem:[%s241 + $0x10] sm:$0xf]
      %v265 = vld [vmem:[%s241 + $0x14] sm:$0xf]
      %v266 = vld [vmem:[%s241 + $0x18] sm:$0xf]
      %v267 = vld [vmem:[%s241 + $0x1c] sm:$0xf]
      %v268 = vld [vmem:[%s241 + $0x20] sm:$0xf]
      %v269 = vld [vmem:[%s241 + $0x24] sm:$0xf]
      %v270 = vld [vmem:[%s241 + $0x28] sm:$0xf]
      %v271 = vld [vmem:[%s241 + $0x2c] sm:$0xf]
      %v272 = vld [vmem:[%s241 + $0x30] sm:$0xf]
      %v273 = vld [vmem:[%s241 + $0x34] sm:$0xf]
      %v274 = vld [vmem:[%s241 + $0x38] sm:$0xf]
      %v275 = vld [vmem:[%s241 + $0x3c] sm:$0xf]
      %v276 = vld [vmem:[%s241 + $0x40] sm:$0xf]
      %v277 = vld [vmem:[%s241 + $0x44] sm:$0xf]
      %v278 = vld [vmem:[%s241 + $0x48] sm:$0xf]
      %v279 = vld [vmem:[%s241 + $0x4c] sm:$0xf]
      %v280 = vld [vmem:[%s241 + $0x50] sm:$0xf]
      %v281 = vld [vmem:[%s241 + $0x54] sm:$0xf]
      %v282 = vld [vmem:[%s241 + $0x58] sm:$0xf]
      %v283 = vld [vmem:[%s241 + $0x5c] sm:$0xf]
      %v284 = vld [vmem:[%s241 + $0x60] sm:$0xf]
      %v285 = vld [vmem:[%s241 + $0x64] sm:$0xf]
      %v286 = vld [vmem:[%s241 + $0x68] sm:$0xf]
      %v287 = vld [vmem:[%s241 + $0x6c] sm:$0xf]
      %v288 = vld [vmem:[%s241 + $0x70] sm:$0xf]
      %v289 = vld [vmem:[%s241 + $0x74] sm:$0xf]
      %v290 = vld [vmem:[%s241 + $0x78] sm:$0xf]
      %v291 = vld [vmem:[%s241 + $0x7c] sm:$0xf]
      %v292 = vunpack.c.l.bf16 %v260
      %v293 = vunpack.c.l.bf16 %v261
      %v294 = vunpack.c.l.bf16 %v262
      %v295 = vunpack.c.l.bf16 %v263
      %v296 = vunpack.c.l.bf16 %v264
      %v297 = vunpack.c.l.bf16 %v265
      %v298 = vunpack.c.l.bf16 %v266
      %v299 = vunpack.c.l.bf16 %v267
      %v300 = vunpack.c.l.bf16 %v268
      %v301 = vunpack.c.l.bf16 %v269
      %v302 = vunpack.c.l.bf16 %v270
      %v303 = vunpack.c.l.bf16 %v271
      %v304 = vunpack.c.l.bf16 %v272
      %v305 = vunpack.c.l.bf16 %v273
      %v306 = vunpack.c.l.bf16 %v274
      %v307 = vunpack.c.l.bf16 %v275
      %v308 = vunpack.c.l.bf16 %v276
      %v309 = vunpack.c.l.bf16 %v277
      %v310 = vunpack.c.l.bf16 %v278
      %v311 = vunpack.c.l.bf16 %v279
      %v312 = vunpack.c.l.bf16 %v280
      %v313 = vunpack.c.l.bf16 %v281
      %v314 = vunpack.c.l.bf16 %v282
      %v315 = vunpack.c.l.bf16 %v283
      %v316 = vunpack.c.l.bf16 %v284
      %v317 = vunpack.c.l.bf16 %v285
      %v318 = vunpack.c.l.bf16 %v286
      %v319 = vunpack.c.l.bf16 %v287
      %v320 = vunpack.c.l.bf16 %v288
      %v321 = vunpack.c.l.bf16 %v289
      %v322 = vunpack.c.l.bf16 %v290
      %v323 = vunpack.c.l.bf16 %v291
      %v324 = vld [vmem:[%s247] sm:$0xf]
      %v325 = vld [vmem:[%s247 + $0x4] sm:$0xf]
      %v326 = vld [vmem:[%s247 + $0x8] sm:$0xf]
      %v327 = vld [vmem:[%s247 + $0xc] sm:$0xf]
      %v328 = vld [vmem:[%s247 + $0x10] sm:$0xf]
      %v329 = vld [vmem:[%s247 + $0x14] sm:$0xf]
      %v330 = vld [vmem:[%s247 + $0x18] sm:$0xf]
      %v331 = vld [vmem:[%s247 + $0x1c] sm:$0xf]
      %v332 = vld [vmem:[%s247 + $0x20] sm:$0xf]
      %v333 = vld [vmem:[%s247 + $0x24] sm:$0xf]
      %v334 = vld [vmem:[%s247 + $0x28] sm:$0xf]
      %v335 = vld [vmem:[%s247 + $0x2c] sm:$0xf]
      %v336 = vld [vmem:[%s247 + $0x30] sm:$0xf]
      %v337 = vld [vmem:[%s247 + $0x34] sm:$0xf]
      %v338 = vld [vmem:[%s247 + $0x38] sm:$0xf]
      %v339 = vld [vmem:[%s247 + $0x3c] sm:$0xf]
      %v340 = vld [vmem:[%s247 + $0x40] sm:$0xf]
      %v341 = vld [vmem:[%s247 + $0x44] sm:$0xf]
      %v342 = vld [vmem:[%s247 + $0x48] sm:$0xf]
      %v343 = vld [vmem:[%s247 + $0x4c] sm:$0xf]
      %v344 = vld [vmem:[%s247 + $0x50] sm:$0xf]
      %v345 = vld [vmem:[%s247 + $0x54] sm:$0xf]
      %v346 = vld [vmem:[%s247 + $0x58] sm:$0xf]
      %v347 = vld [vmem:[%s247 + $0x5c] sm:$0xf]
      %v348 = vld [vmem:[%s247 + $0x60] sm:$0xf]
      %v349 = vld [vmem:[%s247 + $0x64] sm:$0xf]
      %v350 = vld [vmem:[%s247 + $0x68] sm:$0xf]
      %v351 = vld [vmem:[%s247 + $0x6c] sm:$0xf]
      %v352 = vld [vmem:[%s247 + $0x70] sm:$0xf]
      %v353 = vld [vmem:[%s247 + $0x74] sm:$0xf]
      %v354 = vld [vmem:[%s247 + $0x78] sm:$0xf]
      %v355 = vld [vmem:[%s247 + $0x7c] sm:$0xf]
      %v356 = vunpack.c.l.bf16 %v324
      %v357 = vunpack.c.l.bf16 %v325
      %v358 = vunpack.c.l.bf16 %v326
      %v359 = vunpack.c.l.bf16 %v327
      %v360 = vunpack.c.l.bf16 %v328
      %v361 = vunpack.c.l.bf16 %v329
      %v362 = vunpack.c.l.bf16 %v330
      %v363 = vunpack.c.l.bf16 %v331
      %v364 = vunpack.c.l.bf16 %v332
      %v365 = vunpack.c.l.bf16 %v333
      %v366 = vunpack.c.l.bf16 %v334
      %v367 = vunpack.c.l.bf16 %v335
      %v368 = vunpack.c.l.bf16 %v336
      %v369 = vunpack.c.l.bf16 %v337
      %v370 = vunpack.c.l.bf16 %v338
      %v371 = vunpack.c.l.bf16 %v339
      %v372 = vunpack.c.l.bf16 %v340
      %v373 = vunpack.c.l.bf16 %v341
      %v374 = vunpack.c.l.bf16 %v342
      %v375 = vunpack.c.l.bf16 %v343
      %v376 = vunpack.c.l.bf16 %v344
      %v377 = vunpack.c.l.bf16 %v345
      %v378 = vunpack.c.l.bf16 %v346
      %v379 = vunpack.c.l.bf16 %v347
      %v380 = vunpack.c.l.bf16 %v348
      %v381 = vunpack.c.l.bf16 %v349
      %v382 = vunpack.c.l.bf16 %v350
      %v383 = vunpack.c.l.bf16 %v351
      %v384 = vunpack.c.l.bf16 %v352
      %v385 = vunpack.c.l.bf16 %v353
      %v386 = vunpack.c.l.bf16 %v354
      %v387 = vunpack.c.l.bf16 %v355
      %v388 = vadd.f32 %v292, %v356
      %v389 = vadd.f32 %v293, %v357
      %v390 = vadd.f32 %v294, %v358
      %v391 = vadd.f32 %v295, %v359
      %v392 = vadd.f32 %v296, %v360
      %v393 = vadd.f32 %v297, %v361
      %v394 = vadd.f32 %v298, %v362
      %v395 = vadd.f32 %v299, %v363
      %v396 = vadd.f32 %v300, %v364
      %v397 = vadd.f32 %v301, %v365
      %v398 = vadd.f32 %v302, %v366
      %v399 = vadd.f32 %v303, %v367
      %v400 = vadd.f32 %v304, %v368
      %v401 = vadd.f32 %v305, %v369
      %v402 = vadd.f32 %v306, %v370
      %v403 = vadd.f32 %v307, %v371
      %v404 = vadd.f32 %v308, %v372
      %v405 = vadd.f32 %v309, %v373
      %v406 = vadd.f32 %v310, %v374
      %v407 = vadd.f32 %v311, %v375
      %v408 = vadd.f32 %v312, %v376
      %v409 = vadd.f32 %v313, %v377
      %v410 = vadd.f32 %v314, %v378
      %v411 = vadd.f32 %v315, %v379
      %v412 = vadd.f32 %v316, %v380
      %v413 = vadd.f32 %v317, %v381
      %v414 = vadd.f32 %v318, %v382
      %v415 = vadd.f32 %v319, %v383
      %v416 = vadd.f32 %v320, %v384
      %v417 = vadd.f32 %v321, %v385
      %v418 = vadd.f32 %v322, %v386
      %v419 = vadd.f32 %v323, %v387
      %v420 = vpack.c.bf16 %v389, %v388
      %v421 = vpack.c.bf16 %v391, %v390
      %v422 = vpack.c.bf16 %v393, %v392
      %v423 = vpack.c.bf16 %v395, %v394
      %v424 = vpack.c.bf16 %v397, %v396
      %v425 = vpack.c.bf16 %v399, %v398
      %v426 = vpack.c.bf16 %v401, %v400
      %v427 = vpack.c.bf16 %v403, %v402
      %v428 = vpack.c.bf16 %v405, %v404
      %v429 = vpack.c.bf16 %v407, %v406
      %v430 = vpack.c.bf16 %v409, %v408
      %v431 = vpack.c.bf16 %v411, %v410
      %v432 = vpack.c.bf16 %v413, %v412
      %v433 = vpack.c.bf16 %v415, %v414
      %v434 = vpack.c.bf16 %v417, %v416
      %v435 = vpack.c.bf16 %v419, %v418
      %v436 = vld [vmem:[%s2] sm:$0xf]
      %v437 = vld [vmem:[%s2 + $0x4] sm:$0xf]
      %v438 = vld [vmem:[%s2 + $0x8] sm:$0xf]
      %v439 = vld [vmem:[%s2 + $0xc] sm:$0xf]
      %v440 = vld [vmem:[%s3] sm:$0x1]
      %v442 = vperm.slane %v440, 0
      %v448 = vunpack.c.l.b16 %v436
      %v449 = vunpack.c.l.b16 %v437
      %v450 = vunpack.c.l.b16 %v438
      %v451 = vunpack.c.l.b16 %v439
      %v452 = vpack.c.b16 %v449, %v448
      %v453 = vpack.c.b16 %v451, %v450
      %vm456 = vcmask 261120
      %v458 = vsel %vm456, %v420, 0
      %v461 = vsel %vm456, %v421, 0
      %v464 = vsel %vm456, %v422, 0
      %v467 = vsel %vm456, %v423, 0
      %v470 = vsel %vm456, %v424, 0
      %v473 = vsel %vm456, %v425, 0
      %v476 = vsel %vm456, %v426, 0
      %v479 = vsel %vm456, %v427, 0
      %v482 = vsel %vm456, %v428, 0
      %v485 = vsel %vm456, %v429, 0
      %v488 = vsel %vm456, %v430, 0
      %v491 = vsel %vm456, %v431, 0
      %v494 = vsel %vm456, %v432, 0
      %v497 = vsel %vm456, %v433, 0
      %v500 = vsel %vm456, %v434, 0
      %v503 = vsel %vm456, %v435, 0
      %505 = vmatpush.bf16.msra.mxu0 0
      %506 = vmatpush.bf16.msra.mxu0 0
      %507 = vmatpush.bf16.msra.mxu0 0
      %508 = vmatpush.bf16.msra.mxu0 0
      %509 = vmatpush.bf16.msra.mxu0 0
      %510 = vmatpush.bf16.msra.mxu0 0
      %511 = vmatpush.bf16.msra.mxu0 %v453
      %512 = vmatpush.bf16.msra.mxu0 %v452
      %513 = vmatmul.bf16.gmra.mxu0 %v458
      %v514 = vpop.f32.mrf.mxu0
      %v515 = vadd.f32 %v442, %v514
      %v516 = vpop.f32.mrf.mxu0
      %v517 = vadd.f32 %v442, %v516
      %518 = vmatmul.bf16.gmra.mxu0 %v461
      %v519 = vpop.f32.mrf.mxu0
      %v520 = vadd.f32 %v442, %v519
      %v521 = vpop.f32.mrf.mxu0
      %v522 = vadd.f32 %v442, %v521
      %523 = vmatmul.bf16.gmra.mxu0 %v464
      %v524 = vpop.f32.mrf.mxu0
      %v525 = vadd.f32 %v442, %v524
      %v526 = vpop.f32.mrf.mxu0
      %v527 = vadd.f32 %v442, %v526
      %528 = vmatmul.bf16.gmra.mxu0 %v467
      %v529 = vpop.f32.mrf.mxu0
      %v530 = vadd.f32 %v442, %v529
      %v531 = vpop.f32.mrf.mxu0
      %v532 = vadd.f32 %v442, %v531
      %533 = vmatmul.bf16.gmra.mxu0 %v470
      %v534 = vpop.f32.mrf.mxu0
      %v535 = vadd.f32 %v442, %v534
      %v536 = vpop.f32.mrf.mxu0
      %v537 = vadd.f32 %v442, %v536
      %538 = vmatmul.bf16.gmra.mxu0 %v473
      %v539 = vpop.f32.mrf.mxu0
      %v540 = vadd.f32 %v442, %v539
      %v541 = vpop.f32.mrf.mxu0
      %v542 = vadd.f32 %v442, %v541
      %543 = vmatmul.bf16.gmra.mxu0 %v476
      %v544 = vpop.f32.mrf.mxu0
      %v545 = vadd.f32 %v442, %v544
      %v546 = vpop.f32.mrf.mxu0
      %v547 = vadd.f32 %v442, %v546
      %548 = vmatmul.bf16.gmra.mxu0 %v479
      %v549 = vpop.f32.mrf.mxu0
      %v550 = vadd.f32 %v442, %v549
      %v551 = vpop.f32.mrf.mxu0
      %v552 = vadd.f32 %v442, %v551
      %553 = vmatmul.bf16.gmra.mxu0 %v482
      %v554 = vpop.f32.mrf.mxu0
      %v555 = vadd.f32 %v442, %v554
      %v556 = vpop.f32.mrf.mxu0
      %v557 = vadd.f32 %v442, %v556
      %558 = vmatmul.bf16.gmra.mxu0 %v485
      %v559 = vpop.f32.mrf.mxu0
      %v560 = vadd.f32 %v442, %v559
      %v561 = vpop.f32.mrf.mxu0
      %v562 = vadd.f32 %v442, %v561
      %563 = vmatmul.bf16.gmra.mxu0 %v488
      %v564 = vpop.f32.mrf.mxu0
      %v565 = vadd.f32 %v442, %v564
      %v566 = vpop.f32.mrf.mxu0
      %v567 = vadd.f32 %v442, %v566
      %568 = vmatmul.bf16.gmra.mxu0 %v491
      %v569 = vpop.f32.mrf.mxu0
      %v570 = vadd.f32 %v442, %v569
      %v571 = vpop.f32.mrf.mxu0
      %v572 = vadd.f32 %v442, %v571
      %573 = vmatmul.bf16.gmra.mxu0 %v494
      %v574 = vpop.f32.mrf.mxu0
      %v575 = vadd.f32 %v442, %v574
      %v576 = vpop.f32.mrf.mxu0
      %v577 = vadd.f32 %v442, %v576
      %578 = vmatmul.bf16.gmra.mxu0 %v497
      %v579 = vpop.f32.mrf.mxu0
      %v580 = vadd.f32 %v442, %v579
      %v581 = vpop.f32.mrf.mxu0
      %v582 = vadd.f32 %v442, %v581
      %583 = vmatmul.bf16.gmra.mxu0 %v500
      %v584 = vpop.f32.mrf.mxu0
      %v585 = vadd.f32 %v442, %v584
      %v586 = vpop.f32.mrf.mxu0
      %v587 = vadd.f32 %v442, %v586
      %588 = vmatmul.bf16.gmra.mxu0 %v503
      %v589 = vpop.f32.mrf.mxu0
      %v590 = vadd.f32 %v442, %v589
      %v591 = vpop.f32.mrf.mxu0
      %v592 = vadd.f32 %v442, %v591
      %593 = vdwg.mxu0
      %v594 = vpack.c.bf16 %v515, %v515
      %v595 = vpack.c.bf16 %v517, %v517
      %v596 = vpack.c.bf16 %v520, %v520
      %v597 = vpack.c.bf16 %v522, %v522
      %v598 = vpack.c.bf16 %v525, %v525
      %v599 = vpack.c.bf16 %v527, %v527
      %v600 = vpack.c.bf16 %v530, %v530
      %v601 = vpack.c.bf16 %v532, %v532
      %v602 = vpack.c.bf16 %v535, %v535
      %v603 = vpack.c.bf16 %v537, %v537
      %v604 = vpack.c.bf16 %v540, %v540
      %v605 = vpack.c.bf16 %v542, %v542
      %v606 = vpack.c.bf16 %v545, %v545
      %v607 = vpack.c.bf16 %v547, %v547
      %v608 = vpack.c.bf16 %v550, %v550
      %v609 = vpack.c.bf16 %v552, %v552
      %v610 = vpack.c.bf16 %v555, %v555
      %v611 = vpack.c.bf16 %v557, %v557
      %v612 = vpack.c.bf16 %v560, %v560
      %v613 = vpack.c.bf16 %v562, %v562
      %v614 = vpack.c.bf16 %v565, %v565
      %v615 = vpack.c.bf16 %v567, %v567
      %v616 = vpack.c.bf16 %v570, %v570
      %v617 = vpack.c.bf16 %v572, %v572
      %v618 = vpack.c.bf16 %v575, %v575
      %v619 = vpack.c.bf16 %v577, %v577
      %v620 = vpack.c.bf16 %v580, %v580
      %v621 = vpack.c.bf16 %v582, %v582
      %v622 = vpack.c.bf16 %v585, %v585
      %v623 = vpack.c.bf16 %v587, %v587
      %v624 = vpack.c.bf16 %v590, %v590
      %v625 = vpack.c.bf16 %v592, %v592
      %vm626 = vcmask 257024
      %627 = vst.msk [vmem:[%s257] sm:$0xf] %vm626, %v594
      %628 = vst.msk [vmem:[%s257 + $0x4] sm:$0xf] %vm626, %v595
      %629 = vst.msk [vmem:[%s257 + $0x8] sm:$0xf] %vm626, %v596
      %630 = vst.msk [vmem:[%s257 + $0xc] sm:$0xf] %vm626, %v597
      %631 = vst.msk [vmem:[%s257 + $0x10] sm:$0xf] %vm626, %v598
      %632 = vst.msk [vmem:[%s257 + $0x14] sm:$0xf] %vm626, %v599
      %633 = vst.msk [vmem:[%s257 + $0x18] sm:$0xf] %vm626, %v600
      %634 = vst.msk [vmem:[%s257 + $0x1c] sm:$0xf] %vm626, %v601
      %635 = vst.msk [vmem:[%s257 + $0x20] sm:$0xf] %vm626, %v602
      %636 = vst.msk [vmem:[%s257 + $0x24] sm:$0xf] %vm626, %v603
      %637 = vst.msk [vmem:[%s257 + $0x28] sm:$0xf] %vm626, %v604
      %638 = vst.msk [vmem:[%s257 + $0x2c] sm:$0xf] %vm626, %v605
      %639 = vst.msk [vmem:[%s257 + $0x30] sm:$0xf] %vm626, %v606
      %640 = vst.msk [vmem:[%s257 + $0x34] sm:$0xf] %vm626, %v607
      %641 = vst.msk [vmem:[%s257 + $0x38] sm:$0xf] %vm626, %v608
      %642 = vst.msk [vmem:[%s257 + $0x3c] sm:$0xf] %vm626, %v609
      %643 = vst.msk [vmem:[%s257 + $0x40] sm:$0xf] %vm626, %v610
      %644 = vst.msk [vmem:[%s257 + $0x44] sm:$0xf] %vm626, %v611
      %645 = vst.msk [vmem:[%s257 + $0x48] sm:$0xf] %vm626, %v612
      %646 = vst.msk [vmem:[%s257 + $0x4c] sm:$0xf] %vm626, %v613
      %647 = vst.msk [vmem:[%s257 + $0x50] sm:$0xf] %vm626, %v614
      %648 = vst.msk [vmem:[%s257 + $0x54] sm:$0xf] %vm626, %v615
      %649 = vst.msk [vmem:[%s257 + $0x58] sm:$0xf] %vm626, %v616
      %650 = vst.msk [vmem:[%s257 + $0x5c] sm:$0xf] %vm626, %v617
      %651 = vst.msk [vmem:[%s257 + $0x60] sm:$0xf] %vm626, %v618
      %652 = vst.msk [vmem:[%s257 + $0x64] sm:$0xf] %vm626, %v619
      %653 = vst.msk [vmem:[%s257 + $0x68] sm:$0xf] %vm626, %v620
      %654 = vst.msk [vmem:[%s257 + $0x6c] sm:$0xf] %vm626, %v621
      %655 = vst.msk [vmem:[%s257 + $0x70] sm:$0xf] %vm626, %v622
      %656 = vst.msk [vmem:[%s257 + $0x74] sm:$0xf] %vm626, %v623
      %657 = vst.msk [vmem:[%s257 + $0x78] sm:$0xf] %vm626, %v624
      %658 = vst.msk [vmem:[%s257 + $0x7c] sm:$0xf] %vm626, %v625
      %s659 = smul.u32 32, %s20
      %p660 = scmp.lt.s32.totalorder %s19, 1
      %s661 = scalar_select %p660, %s19, 1
      %p662 = scmp.lt.s32.totalorder %s659, 31
      %s663 = scalar_select %p662, %s659, 31
      %s664 = smul.addr %s661, 32
      %s665 = sadd.s32 %s663, %s664
      %s666 = smul.addr %s665, 4
      %s667 = scalar_lea.vmem %s4, %s666
      // Predicated region
      $region37: #{net_forward.16} parent=35 // pred_check
        %p668 = pneg %p143
      $region38: #{net_forward.16} parent=35 // pred_check_branch
        %670 = sbr.rel (%p668) target = $region40
      $region39: #{net_forward.16} parent=35 // pred_region
        %s671 = smul.u32 32, %s20
      $region40: #{net_forward.16} parent=35 // pred_fallthru
        _
    $region36: #{net_forward.16} parent=5 // pred_fallthru
      _
    %p672 = scmp.le.s32.totalorder 2, %s10
    // Predicated region
    $region41: #{net_forward.16} parent=5 // pred_check
      %p673 = pneg %p672
    $region42: #{net_forward.16} parent=5 // pred_check_branch
      %675 = sbr.rel (%p673) target = $region44
    $region43: #{net_forward.16} parent=5 // pred_region
      %s676 = ssub.s32 %s10, 2
      // Predicated region
      $region45: #{net_forward.16} parent=43 // pred_check
        %p677 = pneg %p149
      $region46: #{net_forward.16} parent=43 // pred_check_branch
        %679 = sbr.rel (%p677) target = $region48
      $region47: #{net_forward.16} parent=43 // pred_region
        %s680 = smul.u32 32, %s22
        %p681 = scmp.lt.s32.totalorder %s21, 1
        %s682 = scalar_select %p681, %s21, 1
        %p683 = scmp.lt.s32.totalorder %s680, 31
        %s684 = scalar_select %p683, %s680, 31
        %s685 = smul.addr %s682, 32
        %s686 = sadd.s32 %s684, %s685
        %s687 = smul.addr %s686, 4
        %s688 = scalar_lea.vmem %s4, %s687
      $region48: #{net_forward.16} parent=43 // pred_fallthru
        _
    $region44: #{net_forward.16} parent=5 // pred_fallthru
      _
  $region6: #{net_forward.16} parent=0 // loop_footer
    %s14 = sadd.s32 1, %s10
  $region7: #{net_forward.16} parent=0 // loop_footer_branch
    %9 = sbr.rel target = $region3
  $region8: #{net_forward.16} parent=0 // loop_exit
    _

// kernel: net_forward.22
$region0: #{net_forward.22}
  #allocation0 [shape = 'u32[]', space=smem, size = 0x4, offset = 0x4, fixed_abs, tag = 'smem constant byte address 0x4 - core index']
  #allocation1 [shape = 'u32[72,128]{1,0:T(1,128)}', space=vmem, size = 0x9000, scoped, tag = 'internal scratch']
  %s0 = inlined_call_operand.vmem [shape: bf16[2,256,32], index: 0, kind: input, shape index: {}]
  %s1 = inlined_call_operand.vmem [shape: bf16[2,256,32], index: 1, kind: input, shape index: {}]
  %s2 = inlined_call_operand.vmem [shape: bf16[2,256,32], index: 2, kind: input, shape index: {}]
  %s3 = inlined_call_operand.vmem [shape: bf16[32,21], index: 3, kind: input, shape index: {}]
  %s4 = inlined_call_operand.vmem [shape: f32[1,21], index: 4, kind: input, shape index: {}]
  %s5 = inlined_call_operand.vmem [shape: f32[2,256,21], index: 5, kind: output, shape index: {}]
  %s6 = sld [smem:[#allocation0]]
  $region53: #{net_forward.22} parent=0
    _
  %s8 = ssub.s32 1, %s6
  %s9 = scalar_select 0, %s8, %s6
  loop: start=0, step=1, limit=4
  $region2: #{net_forward.22} parent=0 // loop_pre_header
    _
  $region3: #{net_forward.22} parent=0 // loop_header
    %s11 = sphi 0, %s15
    %p12 = scmp.ge.s32.totalorder %s11, 4
    %s18 = sphi 0, %s30
    %s19 = sphi 0, %s26
    %s20 = sphi 0, %s18
    %s21 = sphi 0, %s19
    %s22 = sphi 0, %s20
    %s23 = sphi 0, %s21
    %s35 = sphi 0, %s37
    %s38 = sphi 0, %s35
    %s39 = sphi 0, %s38
    %s55 = sphi 0, %s39
    %s63 = sphi 0, %s65
    %s66 = sphi 0, %s63
    %s67 = sphi 0, %s66
    %s83 = sphi 0, %s67
    %s91 = sphi 0, %s93
    %s94 = sphi 0, %s91
    %s95 = sphi 0, %s94
    %s111 = sphi 0, %s95
    %s115 = sphi 0, %s115
    %s117 = sphi 0, %s115
    %s118 = sphi 0, %s117
    %s132 = sphi 0, %s118
    %s136 = sphi 0, %s136
    %s138 = sphi 0, %s136
    %s139 = sphi 0, %s138
    %s153 = sphi 0, %s139
    %s161 = sphi 0, %s163
    %s164 = sphi 0, %s161
    %s165 = sphi 0, %s164
    %s181 = sphi 0, %s165
  $region4: #{net_forward.22} parent=0 // loop_header_branch
    %14 = sbr.rel (%p12) target = $region8
  $region5: #{net_forward.22} parent=0 // loop_body
    %s16 = ssub.s32 %s11, 1
    %s17 = ssub.s32 %s11, 2
    %s24 = sadd.s32 1, %s19
    %p25 = scmp.ge.s32.totalorder %s24, 1
    %s26 = scalar_select %p25, 0, %s24
    %s27 = sadd.s32 1, %s18
    %s28 = scalar_select %p25, %s27, %s18
    %p29 = scmp.ge.s32.totalorder %s28, 2
    %s30 = scalar_select %p29, 0, %s28
    %s31 = ssub.s32 %s18, %s30
    %s32 = ssub.s32 %s19, %s26
    %s33 = sor.u32 %s31, %s32
    %p34 = scmp.eq.s32.totalorder %s33, 0
    %s36 = sadd.s32 %s35, 1
    %s37 = scalar_select %p34, %s35, %s36
    %p40 = pneg %p34
    %p41 = scmp.eq.s32.totalorder %s11, 1
    %p42 = por %p40, %p41
    %p43 = scmp.ne.s32.totalorder %s35, %s38
    %p44 = scmp.eq.s32.totalorder %s11, 0
    %p45 = por %p43, %p44
    %p46 = scmp.ne.s32.totalorder %s35, %s38
    %p47 = scmp.eq.s32.totalorder %s16, 1
    %p48 = por %p46, %p47
    %p49 = scmp.ne.s32.totalorder %s38, %s39
    %p50 = scmp.eq.s32.totalorder %s16, 0
    %p51 = por %p49, %p50
    %p52 = scmp.ne.s32.totalorder %s38, %s39
    %p53 = scmp.eq.s32.totalorder %s17, 1
    %p54 = por %p52, %p53
    %p56 = scmp.ne.s32.totalorder %s39, %s55
    %p57 = scmp.eq.s32.totalorder %s17, 0
    %p58 = por %p56, %p57
    %s59 = ssub.s32 %s18, %s30
    %s60 = ssub.s32 %s19, %s26
    %s61 = sor.u32 %s59, %s60
    %p62 = scmp.eq.s32.totalorder %s61, 0
    %s64 = sadd.s32 %s63, 1
    %s65 = scalar_select %p62, %s63, %s64
    %p68 = pneg %p62
    %p69 = scmp.eq.s32.totalorder %s11, 1
    %p70 = por %p68, %p69
    %p71 = scmp.ne.s32.totalorder %s63, %s66
    %p72 = scmp.eq.s32.totalorder %s11, 0
    %p73 = por %p71, %p72
    %p74 = scmp.ne.s32.totalorder %s63, %s66
    %p75 = scmp.eq.s32.totalorder %s16, 1
    %p76 = por %p74, %p75
    %p77 = scmp.ne.s32.totalorder %s66, %s67
    %p78 = scmp.eq.s32.totalorder %s16, 0
    %p79 = por %p77, %p78
    %p80 = scmp.ne.s32.totalorder %s66, %s67
    %p81 = scmp.eq.s32.totalorder %s17, 1
    %p82 = por %p80, %p81
    %p84 = scmp.ne.s32.totalorder %s67, %s83
    %p85 = scmp.eq.s32.totalorder %s17, 0
    %p86 = por %p84, %p85
    %s87 = ssub.s32 %s18, %s30
    %s88 = ssub.s32 %s19, %s26
    %s89 = sor.u32 %s87, %s88
    %p90 = scmp.eq.s32.totalorder %s89, 0
    %s92 = sadd.s32 %s91, 1
    %s93 = scalar_select %p90, %s91, %s92
    %p96 = pneg %p90
    %p97 = scmp.eq.s32.totalorder %s11, 1
    %p98 = por %p96, %p97
    %p99 = scmp.ne.s32.totalorder %s91, %s94
    %p100 = scmp.eq.s32.totalorder %s11, 0
    %p101 = por %p99, %p100
    %p102 = scmp.ne.s32.totalorder %s91, %s94
    %p103 = scmp.eq.s32.totalorder %s16, 1
    %p104 = por %p102, %p103
    %p105 = scmp.ne.s32.totalorder %s94, %s95
    %p106 = scmp.eq.s32.totalorder %s16, 0
    %p107 = por %p105, %p106
    %p108 = scmp.ne.s32.totalorder %s94, %s95
    %p109 = scmp.eq.s32.totalorder %s17, 1
    %p110 = por %p108, %p109
    %p112 = scmp.ne.s32.totalorder %s95, %s111
    %p113 = scmp.eq.s32.totalorder %s17, 0
    %p114 = por %p112, %p113
    %s116 = sadd.s32 %s115, 1
    %p119 = scmp.eq.s32.totalorder %s11, 1
    %p120 = scmp.ne.s32.totalorder %s115, %s117
    %p121 = scmp.eq.s32.totalorder %s11, 0
    %p122 = por %p120, %p121
    %p123 = scmp.ne.s32.totalorder %s115, %s117
    %p124 = scmp.eq.s32.totalorder %s16, 1
    %p125 = por %p123, %p124
    %p126 = scmp.ne.s32.totalorder %s117, %s118
    %p127 = scmp.eq.s32.totalorder %s16, 0
    %p128 = por %p126, %p127
    %p129 = scmp.ne.s32.totalorder %s117, %s118
    %p130 = scmp.eq.s32.totalorder %s17, 1
    %p131 = por %p129, %p130
    %p133 = scmp.ne.s32.totalorder %s118, %s132
    %p134 = scmp.eq.s32.totalorder %s17, 0
    %p135 = por %p133, %p134
    %s137 = sadd.s32 %s136, 1
    %p140 = scmp.eq.s32.totalorder %s11, 1
    %p141 = scmp.ne.s32.totalorder %s136, %s138
    %p142 = scmp.eq.s32.totalorder %s11, 0
    %p143 = por %p141, %p142
    %p144 = scmp.ne.s32.totalorder %s136, %s138
    %p145 = scmp.eq.s32.totalorder %s16, 1
    %p146 = por %p144, %p145
    %p147 = scmp.ne.s32.totalorder %s138, %s139
    %p148 = scmp.eq.s32.totalorder %s16, 0
    %p149 = por %p147, %p148
    %p150 = scmp.ne.s32.totalorder %s138, %s139
    %p151 = scmp.eq.s32.totalorder %s17, 1
    %p152 = por %p150, %p151
    %p154 = scmp.ne.s32.totalorder %s139, %s153
    %p155 = scmp.eq.s32.totalorder %s17, 0
    %p156 = por %p154, %p155
    %s157 = ssub.s32 %s18, %s30
    %s158 = ssub.s32 %s19, %s26
    %s159 = sor.u32 %s157, %s158
    %p160 = scmp.eq.s32.totalorder %s159, 0
    %s162 = sadd.s32 %s161, 1
    %s163 = scalar_select %p160, %s161, %s162
    %p166 = pneg %p160
    %p167 = scmp.eq.s32.totalorder %s11, 1
    %p168 = por %p166, %p167
    %p169 = scmp.ne.s32.totalorder %s161, %s164
    %p170 = scmp.eq.s32.totalorder %s11, 0
    %p171 = por %p169, %p170
    %p172 = scmp.ne.s32.totalorder %s161, %s164
    %p173 = scmp.eq.s32.totalorder %s16, 1
    %p174 = por %p172, %p173
    %p175 = scmp.ne.s32.totalorder %s164, %s165
    %p176 = scmp.eq.s32.totalorder %s16, 0
    %p177 = por %p175, %p176
    %p178 = scmp.ne.s32.totalorder %s164, %s165
    %p179 = scmp.eq.s32.totalorder %s17, 1
    %p180 = por %p178, %p179
    %p182 = scmp.ne.s32.totalorder %s165, %s181
    %p183 = scmp.eq.s32.totalorder %s17, 0
    %p184 = por %p182, %p183
    %p185 = scmp.le.s32.totalorder 1, %s11
    %p186 = scmp.lt.s32.totalorder %s11, 3
    %p187 = pnand %p185, %p186
    %p188 = pneg %p187
    // Predicated region
    $region9: #{net_forward.22} parent=5 // pred_check
      _
    $region10: #{net_forward.22} parent=5 // pred_check_branch
      %190 = sbr.rel (%p187) target = $region12
    $region11: #{net_forward.22} parent=5 // pred_region
      %s191 = ssub.s32 %s11, 1
      // Predicated region
      $region13: #{net_forward.22} parent=11 // pred_check
        %p192 = pneg %p128
      $region14: #{net_forward.22} parent=11 // pred_check_branch
        %194 = sbr.rel (%p192) target = $region16
      $region15: #{net_forward.22} parent=11 // pred_region
        _
      $region16: #{net_forward.22} parent=11 // pred_fallthru
        _
      // Predicated region
      $region17: #{net_forward.22} parent=11 // pred_check
        %p195 = pneg %p149
      $region18: #{net_forward.22} parent=11 // pred_check_branch
        %197 = sbr.rel (%p195) target = $region20
      $region19: #{net_forward.22} parent=11 // pred_region
        _
      $region20: #{net_forward.22} parent=11 // pred_fallthru
        _
    $region12: #{net_forward.22} parent=5 // pred_fallthru
      _
    %p198 = scmp.lt.s32.totalorder %s11, 2
    // Predicated region
    $region21: #{net_forward.22} parent=5 // pred_check
      %p199 = pneg %p198
    $region22: #{net_forward.22} parent=5 // pred_check_branch
      %201 = sbr.rel (%p199) target = $region24
    $region23: #{net_forward.22} parent=5 // pred_region
      // Predicated region
      $region25: #{net_forward.22} parent=23 // pred_check
        %p202 = pneg %p45
      $region26: #{net_forward.22} parent=23 // pred_check_branch
        %204 = sbr.rel (%p202) target = $region28
      $region27: #{net_forward.22} parent=23 // pred_region
        %s205 = smul.u32 32, %s19
        %p206 = scmp.lt.s32.totalorder %s18, 1
        %s207 = scalar_select %p206, %s18, 1
        %p208 = scmp.lt.s32.totalorder %s205, 31
        %s209 = scalar_select %p208, %s205, 31
        %s210 = smul.addr %s207, 32
        %s211 = sadd.s32 %s209, %s210
        %s212 = smul.addr %s211, 4
        %s213 = scalar_lea.vmem %s0, %s212
        %s214 = smul.u32 32, %s19
      $region28: #{net_forward.22} parent=23 // pred_fallthru
        _
      // Predicated region
      $region29: #{net_forward.22} parent=23 // pred_check
        %p215 = pneg %p73
      $region30: #{net_forward.22} parent=23 // pred_check_branch
        %217 = sbr.rel (%p215) target = $region32
      $region31: #{net_forward.22} parent=23 // pred_region
        %s218 = smul.u32 32, %s19
        %p219 = scmp.lt.s32.totalorder %s18, 1
        %s220 = scalar_select %p219, %s18, 1
        %p221 = scmp.lt.s32.totalorder %s218, 31
        %s222 = scalar_select %p221, %s218, 31
        %s223 = smul.addr %s220, 32
        %s224 = sadd.s32 %s222, %s223
        %s225 = smul.addr %s224, 4
        %s226 = scalar_lea.vmem %s1, %s225
        %s227 = smul.u32 32, %s19
      $region32: #{net_forward.22} parent=23 // pred_fallthru
        _
      // Predicated region
      $region33: #{net_forward.22} parent=23 // pred_check
        %p228 = pneg %p101
      $region34: #{net_forward.22} parent=23 // pred_check_branch
        %230 = sbr.rel (%p228) target = $region36
      $region35: #{net_forward.22} parent=23 // pred_region
        %s231 = smul.u32 32, %s19
        %p232 = scmp.lt.s32.totalorder %s18, 1
        %s233 = scalar_select %p232, %s18, 1
        %p234 = scmp.lt.s32.totalorder %s231, 31
        %s235 = scalar_select %p234, %s231, 31
        %s236 = smul.addr %s233, 32
        %s237 = sadd.s32 %s235, %s236
        %s238 = smul.addr %s237, 4
        %s239 = scalar_lea.vmem %s2, %s238
        %s240 = smul.u32 32, %s19
      $region36: #{net_forward.22} parent=23 // pred_fallthru
        _
    $region24: #{net_forward.22} parent=5 // pred_fallthru
      _
    %p241 = scmp.le.s32.totalorder 1, %s11
    %p242 = scmp.lt.s32.totalorder %s11, 3
    %p243 = pnand %p241, %p242
    %p244 = pneg %p243
    // Predicated region
    $region37: #{net_forward.22} parent=5 // pred_check
      _
    $region38: #{net_forward.22} parent=5 // pred_check_branch
      %246 = sbr.rel (%p243) target = $region40
    $region39: #{net_forward.22} parent=5 // pred_region
      %s247 = ssub.s32 %s11, 1
      %s248 = smul.u32 32, %s21
      %p249 = scmp.lt.s32.totalorder %s20, 1
      %s250 = scalar_select %p249, %s20, 1
      %p251 = scmp.lt.s32.totalorder %s248, 31
      %s252 = scalar_select %p251, %s248, 31
      %s253 = smul.addr %s250, 32
      %s254 = sadd.s32 %s252, %s253
      %s255 = smul.addr %s254, 4
      %s256 = scalar_lea.vmem %s0, %s255
      %p257 = pneg %p51
      %p258 = pneg %p48
      %s259 = smul.u32 32, %s21
      %p260 = scmp.lt.s32.totalorder %s20, 1
      %s261 = scalar_select %p260, %s20, 1
      %p262 = scmp.lt.s32.totalorder %s259, 31
      %s263 = scalar_select %p262, %s259, 31
      %s264 = smul.addr %s261, 32
      %s265 = sadd.s32 %s263, %s264
      %s266 = smul.addr %s265, 4
      %s267 = scalar_lea.vmem %s1, %s266
      %p268 = pneg %p79
      %p269 = pneg %p76
      %s270 = smul.u32 32, %s21
      %p271 = scmp.lt.s32.totalorder %s20, 1
      %s272 = scalar_select %p271, %s20, 1
      %p273 = scmp.lt.s32.totalorder %s270, 31
      %s274 = scalar_select %p273, %s270, 31
      %s275 = smul.addr %s272, 32
      %s276 = sadd.s32 %s274, %s275
      %s277 = smul.addr %s276, 4
      %s278 = scalar_lea.vmem %s2, %s277
      %p279 = pneg %p107
      %p280 = pneg %p104
      %p281 = pneg %p128
      %p282 = pneg %p125
      %p283 = pneg %p149
      %p284 = pneg %p146
      %p285 = pneg %p177
      %p286 = pneg %p174
      %s287 = smul.u32 32, %s21
      %p288 = scmp.lt.s32.totalorder %s20, 1
      %s289 = scalar_select %p288, %s20, 1
      %p290 = scmp.lt.s32.totalorder %s287, 31
      %s291 = scalar_select %p290, %s287, 31
      %s292 = smul.addr %s289, 32
      %s293 = sadd.s32 %s291, %s292
      %s294 = smul.addr %s293, 8
      %s295 = scalar_lea.vmem %s5, %s294
      %s296 = smul.u32 32, %s21
      %p297 = scmp.lt.s32.totalorder %s20, 1
      %s298 = scalar_select %p297, %s20, 1
      %p299 = scmp.lt.s32.totalorder %s296, 31
      %s300 = scalar_select %p299, %s296, 31
      %s301 = smul.addr %s298, 32
      %s302 = sadd.s32 %s300, %s301
      %s303 = smul.addr %s302, 4
      %s304 = scalar_lea.vmem %s0, %s303
      %s305 = smul.u32 32, %s21
      %s306 = smul.u32 32, %s21
      %p307 = scmp.lt.s32.totalorder %s20, 1
      %s308 = scalar_select %p307, %s20, 1
      %p309 = scmp.lt.s32.totalorder %s306, 31
      %s310 = scalar_select %p309, %s306, 31
      %s311 = smul.addr %s308, 32
      %s312 = sadd.s32 %s310, %s311
      %s313 = smul.addr %s312, 4
      %s314 = scalar_lea.vmem %s1, %s313
      %s315 = smul.u32 32, %s21
      %s316 = smul.u32 32, %s21
      %p317 = scmp.lt.s32.totalorder %s20, 1
      %s318 = scalar_select %p317, %s20, 1
      %p319 = scmp.lt.s32.totalorder %s316, 31
      %s320 = scalar_select %p319, %s316, 31
      %s321 = smul.addr %s318, 32
      %s322 = sadd.s32 %s320, %s321
      %s323 = smul.addr %s322, 4
      %s324 = scalar_lea.vmem %s2, %s323
      %s325 = smul.u32 32, %s21
      %s326 = smul.u32 32, %s21
      %p327 = scmp.lt.s32.totalorder %s20, 1
      %s328 = scalar_select %p327, %s20, 1
      %p329 = scmp.lt.s32.totalorder %s326, 31
      %s330 = scalar_select %p329, %s326, 31
      %s331 = smul.addr %s328, 32
      %s332 = sadd.s32 %s330, %s331
      %s333 = smul.addr %s332, 8
      %s334 = scalar_lea.vmem %s5, %s333
      %s335 = smul.u32 32, %s21
      %v337 = vld [vmem:[%s304] sm:$0xf]
      %v338 = vld [vmem:[%s304 + $0x4] sm:$0xf]
      %v339 = vld [vmem:[%s304 + $0x8] sm:$0xf]
      %v340 = vld [vmem:[%s304 + $0xc] sm:$0xf]
      %v341 = vld [vmem:[%s304 + $0x10] sm:$0xf]
      %v342 = vld [vmem:[%s304 + $0x14] sm:$0xf]
      %v343 = vld [vmem:[%s304 + $0x18] sm:$0xf]
      %v344 = vld [vmem:[%s304 + $0x1c] sm:$0xf]
      %v345 = vld [vmem:[%s304 + $0x20] sm:$0xf]
      %v346 = vld [vmem:[%s304 + $0x24] sm:$0xf]
      %v347 = vld [vmem:[%s304 + $0x28] sm:$0xf]
      %v348 = vld [vmem:[%s304 + $0x2c] sm:$0xf]
      %v349 = vld [vmem:[%s304 + $0x30] sm:$0xf]
      %v350 = vld [vmem:[%s304 + $0x34] sm:$0xf]
      %v351 = vld [vmem:[%s304 + $0x38] sm:$0xf]
      %v352 = vld [vmem:[%s304 + $0x3c] sm:$0xf]
      %v353 = vld [vmem:[%s304 + $0x40] sm:$0xf]
      %v354 = vld [vmem:[%s304 + $0x44] sm:$0xf]
      %v355 = vld [vmem:[%s304 + $0x48] sm:$0xf]
      %v356 = vld [vmem:[%s304 + $0x4c] sm:$0xf]
      %v357 = vld [vmem:[%s304 + $0x50] sm:$0xf]
      %v358 = vld [vmem:[%s304 + $0x54] sm:$0xf]
      %v359 = vld [vmem:[%s304 + $0x58] sm:$0xf]
      %v360 = vld [vmem:[%s304 + $0x5c] sm:$0xf]
      %v361 = vld [vmem:[%s304 + $0x60] sm:$0xf]
      %v362 = vld [vmem:[%s304 + $0x64] sm:$0xf]
      %v363 = vld [vmem:[%s304 + $0x68] sm:$0xf]
      %v364 = vld [vmem:[%s304 + $0x6c] sm:$0xf]
      %v365 = vld [vmem:[%s304 + $0x70] sm:$0xf]
      %v366 = vld [vmem:[%s304 + $0x74] sm:$0xf]
      %v367 = vld [vmem:[%s304 + $0x78] sm:$0xf]
      %v368 = vld [vmem:[%s304 + $0x7c] sm:$0xf]
      %v369 = vunpack.c.l.bf16 %v337
      %v370 = vunpack.c.l.bf16 %v338
      %v371 = vunpack.c.l.bf16 %v339
      %v372 = vunpack.c.l.bf16 %v340
      %v373 = vunpack.c.l.bf16 %v341
      %v374 = vunpack.c.l.bf16 %v342
      %v375 = vunpack.c.l.bf16 %v343
      %v376 = vunpack.c.l.bf16 %v344
      %v377 = vunpack.c.l.bf16 %v345
      %v378 = vunpack.c.l.bf16 %v346
      %v379 = vunpack.c.l.bf16 %v347
      %v380 = vunpack.c.l.bf16 %v348
      %v381 = vunpack.c.l.bf16 %v349
      %v382 = vunpack.c.l.bf16 %v350
      %v383 = vunpack.c.l.bf16 %v351
      %v384 = vunpack.c.l.bf16 %v352
      %v385 = vunpack.c.l.bf16 %v353
      %v386 = vunpack.c.l.bf16 %v354
      %v387 = vunpack.c.l.bf16 %v355
      %v388 = vunpack.c.l.bf16 %v356
      %v389 = vunpack.c.l.bf16 %v357
      %v390 = vunpack.c.l.bf16 %v358
      %v391 = vunpack.c.l.bf16 %v359
      %v392 = vunpack.c.l.bf16 %v360
      %v393 = vunpack.c.l.bf16 %v361
      %v394 = vunpack.c.l.bf16 %v362
      %v395 = vunpack.c.l.bf16 %v363
      %v396 = vunpack.c.l.bf16 %v364
      %v397 = vunpack.c.l.bf16 %v365
      %v398 = vunpack.c.l.bf16 %v366
      %v399 = vunpack.c.l.bf16 %v367
      %v400 = vunpack.c.l.bf16 %v368
      %v401 = vld [vmem:[%s314] sm:$0xf]
      %v402 = vld [vmem:[%s314 + $0x4] sm:$0xf]
      %v403 = vld [vmem:[%s314 + $0x8] sm:$0xf]
      %v404 = vld [vmem:[%s314 + $0xc] sm:$0xf]
      %v405 = vld [vmem:[%s314 + $0x10] sm:$0xf]
      %v406 = vld [vmem:[%s314 + $0x14] sm:$0xf]
      %v407 = vld [vmem:[%s314 + $0x18] sm:$0xf]
      %v408 = vld [vmem:[%s314 + $0x1c] sm:$0xf]
      %v409 = vld [vmem:[%s314 + $0x20] sm:$0xf]
      %v410 = vld [vmem:[%s314 + $0x24] sm:$0xf]
      %v411 = vld [vmem:[%s314 + $0x28] sm:$0xf]
      %v412 = vld [vmem:[%s314 + $0x2c] sm:$0xf]
      %v413 = vld [vmem:[%s314 + $0x30] sm:$0xf]
      %v414 = vld [vmem:[%s314 + $0x34] sm:$0xf]
      %v415 = vld [vmem:[%s314 + $0x38] sm:$0xf]
      %v416 = vld [vmem:[%s314 + $0x3c] sm:$0xf]
      %v417 = vld [vmem:[%s314 + $0x40] sm:$0xf]
      %v418 = vld [vmem:[%s314 + $0x44] sm:$0xf]
      %v419 = vld [vmem:[%s314 + $0x48] sm:$0xf]
      %v420 = vld [vmem:[%s314 + $0x4c] sm:$0xf]
      %v421 = vld [vmem:[%s314 + $0x50] sm:$0xf]
      %v422 = vld [vmem:[%s314 + $0x54] sm:$0xf]
      %v423 = vld [vmem:[%s314 + $0x58] sm:$0xf]
      %v424 = vld [vmem:[%s314 + $0x5c] sm:$0xf]
      %v425 = vld [vmem:[%s314 + $0x60] sm:$0xf]
      %v426 = vld [vmem:[%s314 + $0x64] sm:$0xf]
      %v427 = vld [vmem:[%s314 + $0x68] sm:$0xf]
      %v428 = vld [vmem:[%s314 + $0x6c] sm:$0xf]
      %v429 = vld [vmem:[%s314 + $0x70] sm:$0xf]
      %v430 = vld [vmem:[%s314 + $0x74] sm:$0xf]
      %v431 = vld [vmem:[%s314 + $0x78] sm:$0xf]
      %v432 = vld [vmem:[%s314 + $0x7c] sm:$0xf]
      %v433 = vunpack.c.l.bf16 %v401
      %v434 = vunpack.c.l.bf16 %v402
      %v435 = vunpack.c.l.bf16 %v403
      %v436 = vunpack.c.l.bf16 %v404
      %v437 = vunpack.c.l.bf16 %v405
      %v438 = vunpack.c.l.bf16 %v406
      %v439 = vunpack.c.l.bf16 %v407
      %v440 = vunpack.c.l.bf16 %v408
      %v441 = vunpack.c.l.bf16 %v409
      %v442 = vunpack.c.l.bf16 %v410
      %v443 = vunpack.c.l.bf16 %v411
      %v444 = vunpack.c.l.bf16 %v412
      %v445 = vunpack.c.l.bf16 %v413
      %v446 = vunpack.c.l.bf16 %v414
      %v447 = vunpack.c.l.bf16 %v415
      %v448 = vunpack.c.l.bf16 %v416
      %v449 = vunpack.c.l.bf16 %v417
      %v450 = vunpack.c.l.bf16 %v418
      %v451 = vunpack.c.l.bf16 %v419
      %v452 = vunpack.c.l.bf16 %v420
      %v453 = vunpack.c.l.bf16 %v421
      %v454 = vunpack.c.l.bf16 %v422
      %v455 = vunpack.c.l.bf16 %v423
      %v456 = vunpack.c.l.bf16 %v424
      %v457 = vunpack.c.l.bf16 %v425
      %v458 = vunpack.c.l.bf16 %v426
      %v459 = vunpack.c.l.bf16 %v427
      %v460 = vunpack.c.l.bf16 %v428
      %v461 = vunpack.c.l.bf16 %v429
      %v462 = vunpack.c.l.bf16 %v430
      %v463 = vunpack.c.l.bf16 %v431
      %v464 = vunpack.c.l.bf16 %v432
      %v465 = vadd.f32 %v369, %v433
      %v466 = vadd.f32 %v370, %v434
      %v467 = vadd.f32 %v371, %v435
      %v468 = vadd.f32 %v372, %v436
      %v469 = vadd.f32 %v373, %v437
      %v470 = vadd.f32 %v374, %v438
      %v471 = vadd.f32 %v375, %v439
      %v472 = vadd.f32 %v376, %v440
      %v473 = vadd.f32 %v377, %v441
      %v474 = vadd.f32 %v378, %v442
      %v475 = vadd.f32 %v379, %v443
      %v476 = vadd.f32 %v380, %v444
      %v477 = vadd.f32 %v381, %v445
      %v478 = vadd.f32 %v382, %v446
      %v479 = vadd.f32 %v383, %v447
      %v480 = vadd.f32 %v384, %v448
      %v481 = vadd.f32 %v385, %v449
      %v482 = vadd.f32 %v386, %v450
      %v483 = vadd.f32 %v387, %v451
      %v484 = vadd.f32 %v388, %v452
      %v485 = vadd.f32 %v389, %v453
      %v486 = vadd.f32 %v390, %v454
      %v487 = vadd.f32 %v391, %v455
      %v488 = vadd.f32 %v392, %v456
      %v489 = vadd.f32 %v393, %v457
      %v490 = vadd.f32 %v394, %v458
      %v491 = vadd.f32 %v395, %v459
      %v492 = vadd.f32 %v396, %v460
      %v493 = vadd.f32 %v397, %v461
      %v494 = vadd.f32 %v398, %v462
      %v495 = vadd.f32 %v399, %v463
      %v496 = vadd.f32 %v400, %v464
      %v497 = vld [vmem:[%s324] sm:$0xf]
      %v498 = vld [vmem:[%s324 + $0x4] sm:$0xf]
      %v499 = vld [vmem:[%s324 + $0x8] sm:$0xf]
      %v500 = vld [vmem:[%s324 + $0xc] sm:$0xf]
      %v501 = vld [vmem:[%s324 + $0x10] sm:$0xf]
      %v502 = vld [vmem:[%s324 + $0x14] sm:$0xf]
      %v503 = vld [vmem:[%s324 + $0x18] sm:$0xf]
      %v504 = vld [vmem:[%s324 + $0x1c] sm:$0xf]
      %v505 = vld [vmem:[%s324 + $0x20] sm:$0xf]
      %v506 = vld [vmem:[%s324 + $0x24] sm:$0xf]
      %v507 = vld [vmem:[%s324 + $0x28] sm:$0xf]
      %v508 = vld [vmem:[%s324 + $0x2c] sm:$0xf]
      %v509 = vld [vmem:[%s324 + $0x30] sm:$0xf]
      %v510 = vld [vmem:[%s324 + $0x34] sm:$0xf]
      %v511 = vld [vmem:[%s324 + $0x38] sm:$0xf]
      %v512 = vld [vmem:[%s324 + $0x3c] sm:$0xf]
      %v513 = vld [vmem:[%s324 + $0x40] sm:$0xf]
      %v514 = vld [vmem:[%s324 + $0x44] sm:$0xf]
      %v515 = vld [vmem:[%s324 + $0x48] sm:$0xf]
      %v516 = vld [vmem:[%s324 + $0x4c] sm:$0xf]
      %v517 = vld [vmem:[%s324 + $0x50] sm:$0xf]
      %v518 = vld [vmem:[%s324 + $0x54] sm:$0xf]
      %v519 = vld [vmem:[%s324 + $0x58] sm:$0xf]
      %v520 = vld [vmem:[%s324 + $0x5c] sm:$0xf]
      %v521 = vld [vmem:[%s324 + $0x60] sm:$0xf]
      %v522 = vld [vmem:[%s324 + $0x64] sm:$0xf]
      %v523 = vld [vmem:[%s324 + $0x68] sm:$0xf]
      %v524 = vld [vmem:[%s324 + $0x6c] sm:$0xf]
      %v525 = vld [vmem:[%s324 + $0x70] sm:$0xf]
      %v526 = vld [vmem:[%s324 + $0x74] sm:$0xf]
      %v527 = vld [vmem:[%s324 + $0x78] sm:$0xf]
      %v528 = vld [vmem:[%s324 + $0x7c] sm:$0xf]
      %v529 = vunpack.c.l.bf16 %v497
      %v530 = vunpack.c.l.bf16 %v498
      %v531 = vunpack.c.l.bf16 %v499
      %v532 = vunpack.c.l.bf16 %v500
      %v533 = vunpack.c.l.bf16 %v501
      %v534 = vunpack.c.l.bf16 %v502
      %v535 = vunpack.c.l.bf16 %v503
      %v536 = vunpack.c.l.bf16 %v504
      %v537 = vunpack.c.l.bf16 %v505
      %v538 = vunpack.c.l.bf16 %v506
      %v539 = vunpack.c.l.bf16 %v507
      %v540 = vunpack.c.l.bf16 %v508
      %v541 = vunpack.c.l.bf16 %v509
      %v542 = vunpack.c.l.bf16 %v510
      %v543 = vunpack.c.l.bf16 %v511
      %v544 = vunpack.c.l.bf16 %v512
      %v545 = vunpack.c.l.bf16 %v513
      %v546 = vunpack.c.l.bf16 %v514
      %v547 = vunpack.c.l.bf16 %v515
      %v548 = vunpack.c.l.bf16 %v516
      %v549 = vunpack.c.l.bf16 %v517
      %v550 = vunpack.c.l.bf16 %v518
      %v551 = vunpack.c.l.bf16 %v519
      %v552 = vunpack.c.l.bf16 %v520
      %v553 = vunpack.c.l.bf16 %v521
      %v554 = vunpack.c.l.bf16 %v522
      %v555 = vunpack.c.l.bf16 %v523
      %v556 = vunpack.c.l.bf16 %v524
      %v557 = vunpack.c.l.bf16 %v525
      %v558 = vunpack.c.l.bf16 %v526
      %v559 = vunpack.c.l.bf16 %v527
      %v560 = vunpack.c.l.bf16 %v528
      %v561 = vadd.f32 %v465, %v529
      %v562 = vadd.f32 %v466, %v530
      %v563 = vadd.f32 %v467, %v531
      %v564 = vadd.f32 %v468, %v532
      %v565 = vadd.f32 %v469, %v533
      %v566 = vadd.f32 %v470, %v534
      %v567 = vadd.f32 %v471, %v535
      %v568 = vadd.f32 %v472, %v536
      %v569 = vadd.f32 %v473, %v537
      %v570 = vadd.f32 %v474, %v538
      %v571 = vadd.f32 %v475, %v539
      %v572 = vadd.f32 %v476, %v540
      %v573 = vadd.f32 %v477, %v541
      %v574 = vadd.f32 %v478, %v542
      %v575 = vadd.f32 %v479, %v543
      %v576 = vadd.f32 %v480, %v544
      %v577 = vadd.f32 %v481, %v545
      %v578 = vadd.f32 %v482, %v546
      %v579 = vadd.f32 %v483, %v547
      %v580 = vadd.f32 %v484, %v548
      %v581 = vadd.f32 %v485, %v549
      %v582 = vadd.f32 %v486, %v550
      %v583 = vadd.f32 %v487, %v551
      %v584 = vadd.f32 %v488, %v552
      %v585 = vadd.f32 %v489, %v553
      %v586 = vadd.f32 %v490, %v554
      %v587 = vadd.f32 %v491, %v555
      %v588 = vadd.f32 %v492, %v556
      %v589 = vadd.f32 %v493, %v557
      %v590 = vadd.f32 %v494, %v558
      %v591 = vadd.f32 %v495, %v559
      %v592 = vadd.f32 %v496, %v560
      %v593 = vpack.c.bf16 %v562, %v561
      %v594 = vpack.c.bf16 %v564, %v563
      %v595 = vpack.c.bf16 %v566, %v565
      %v596 = vpack.c.bf16 %v568, %v567
      %v597 = vpack.c.bf16 %v570, %v569
      %v598 = vpack.c.bf16 %v572, %v571
      %v599 = vpack.c.bf16 %v574, %v573
      %v600 = vpack.c.bf16 %v576, %v575
      %v601 = vpack.c.bf16 %v578, %v577
      %v602 = vpack.c.bf16 %v580, %v579
      %v603 = vpack.c.bf16 %v582, %v581
      %v604 = vpack.c.bf16 %v584, %v583
      %v605 = vpack.c.bf16 %v586, %v585
      %v606 = vpack.c.bf16 %v588, %v587
      %v607 = vpack.c.bf16 %v590, %v589
      %v608 = vpack.c.bf16 %v592, %v591
      %v609 = vld [vmem:[%s3] sm:$0xf]
      %v610 = vld [vmem:[%s3 + $0x4] sm:$0xf]
      %v611 = vld [vmem:[%s3 + $0x8] sm:$0xf]
      %v612 = vld [vmem:[%s3 + $0xc] sm:$0xf]
      %v613 = vld [vmem:[%s4] sm:$0x1]
      %v615 = vperm.slane %v613, 0
      %v621 = vunpack.c.l.b16 %v609
      %v622 = vunpack.c.l.b16 %v610
      %v623 = vunpack.c.l.b16 %v611
      %v624 = vunpack.c.l.b16 %v612
      %v625 = vpack.c.b16 %v622, %v621
      %v626 = vpack.c.b16 %v624, %v623
      %vm629 = vcmask 261120
      %v631 = vsel %vm629, %v593, 0
      %v634 = vsel %vm629, %v594, 0
      %v637 = vsel %vm629, %v595, 0
      %v640 = vsel %vm629, %v596, 0
      %v643 = vsel %vm629, %v597, 0
      %v646 = vsel %vm629, %v598, 0
      %v649 = vsel %vm629, %v599, 0
      %v652 = vsel %vm629, %v600, 0
      %v655 = vsel %vm629, %v601, 0
      %v658 = vsel %vm629, %v602, 0
      %v661 = vsel %vm629, %v603, 0
      %v664 = vsel %vm629, %v604, 0
      %v667 = vsel %vm629, %v605, 0
      %v670 = vsel %vm629, %v606, 0
      %v673 = vsel %vm629, %v607, 0
      %v676 = vsel %vm629, %v608, 0
      %678 = vmatpush.bf16.msra.mxu0 0
      %679 = vmatpush.bf16.msra.mxu0 0
      %680 = vmatpush.bf16.msra.mxu0 0
      %681 = vmatpush.bf16.msra.mxu0 0
      %682 = vmatpush.bf16.msra.mxu0 0
      %683 = vmatpush.bf16.msra.mxu0 0
      %684 = vmatpush.bf16.msra.mxu0 %v626
      %685 = vmatpush.bf16.msra.mxu0 %v625
      %686 = vmatmul.bf16.gmra.mxu0 %v631
      %v687 = vpop.f32.mrf.mxu0
      %v688 = vadd.f32 %v615, %v687
      %v689 = vpop.f32.mrf.mxu0
      %v690 = vadd.f32 %v615, %v689
      %691 = vmatmul.bf16.gmra.mxu0 %v634
      %v692 = vpop.f32.mrf.mxu0
      %v693 = vadd.f32 %v615, %v692
      %v694 = vpop.f32.mrf.mxu0
      %v695 = vadd.f32 %v615, %v694
      %696 = vmatmul.bf16.gmra.mxu0 %v637
      %v697 = vpop.f32.mrf.mxu0
      %v698 = vadd.f32 %v615, %v697
      %v699 = vpop.f32.mrf.mxu0
      %v700 = vadd.f32 %v615, %v699
      %701 = vmatmul.bf16.gmra.mxu0 %v640
      %v702 = vpop.f32.mrf.mxu0
      %v703 = vadd.f32 %v615, %v702
      %v704 = vpop.f32.mrf.mxu0
      %v705 = vadd.f32 %v615, %v704
      %706 = vmatmul.bf16.gmra.mxu0 %v643
      %v707 = vpop.f32.mrf.mxu0
      %v708 = vadd.f32 %v615, %v707
      %v709 = vpop.f32.mrf.mxu0
      %v710 = vadd.f32 %v615, %v709
      %711 = vmatmul.bf16.gmra.mxu0 %v646
      %v712 = vpop.f32.mrf.mxu0
      %v713 = vadd.f32 %v615, %v712
      %v714 = vpop.f32.mrf.mxu0
      %v715 = vadd.f32 %v615, %v714
      %716 = vmatmul.bf16.gmra.mxu0 %v649
      %v717 = vpop.f32.mrf.mxu0
      %v718 = vadd.f32 %v615, %v717
      %v719 = vpop.f32.mrf.mxu0
      %v720 = vadd.f32 %v615, %v719
      %721 = vmatmul.bf16.gmra.mxu0 %v652
      %v722 = vpop.f32.mrf.mxu0
      %v723 = vadd.f32 %v615, %v722
      %v724 = vpop.f32.mrf.mxu0
      %v725 = vadd.f32 %v615, %v724
      %726 = vmatmul.bf16.gmra.mxu0 %v655
      %v727 = vpop.f32.mrf.mxu0
      %v728 = vadd.f32 %v615, %v727
      %v729 = vpop.f32.mrf.mxu0
      %v730 = vadd.f32 %v615, %v729
      %731 = vmatmul.bf16.gmra.mxu0 %v658
      %v732 = vpop.f32.mrf.mxu0
      %v733 = vadd.f32 %v615, %v732
      %v734 = vpop.f32.mrf.mxu0
      %v735 = vadd.f32 %v615, %v734
      %736 = vmatmul.bf16.gmra.mxu0 %v661
      %v737 = vpop.f32.mrf.mxu0
      %v738 = vadd.f32 %v615, %v737
      %v739 = vpop.f32.mrf.mxu0
      %v740 = vadd.f32 %v615, %v739
      %741 = vmatmul.bf16.gmra.mxu0 %v664
      %v742 = vpop.f32.mrf.mxu0
      %v743 = vadd.f32 %v615, %v742
      %v744 = vpop.f32.mrf.mxu0
      %v745 = vadd.f32 %v615, %v744
      %746 = vmatmul.bf16.gmra.mxu0 %v667
      %v747 = vpop.f32.mrf.mxu0
      %v748 = vadd.f32 %v615, %v747
      %v749 = vpop.f32.mrf.mxu0
      %v750 = vadd.f32 %v615, %v749
      %751 = vmatmul.bf16.gmra.mxu0 %v670
      %v752 = vpop.f32.mrf.mxu0
      %v753 = vadd.f32 %v615, %v752
      %v754 = vpop.f32.mrf.mxu0
      %v755 = vadd.f32 %v615, %v754
      %756 = vmatmul.bf16.gmra.mxu0 %v673
      %v757 = vpop.f32.mrf.mxu0
      %v758 = vadd.f32 %v615, %v757
      %v759 = vpop.f32.mrf.mxu0
      %v760 = vadd.f32 %v615, %v759
      %761 = vmatmul.bf16.gmra.mxu0 %v676
      %v762 = vpop.f32.mrf.mxu0
      %v763 = vadd.f32 %v615, %v762
      %v764 = vpop.f32.mrf.mxu0
      %v765 = vadd.f32 %v615, %v764
      %766 = vdwg.mxu0
      %vm767 = vcmask 171008
      %768 = vst.msk [vmem:[%s334] sm:$0xff] %vm767, %v688
      %769 = vst.msk [vmem:[%s334 + $0x8] sm:$0xff] %vm767, %v690
      %770 = vst.msk [vmem:[%s334 + $0x10] sm:$0xff] %vm767, %v693
      %771 = vst.msk [vmem:[%s334 + $0x18] sm:$0xff] %vm767, %v695
      %772 = vst.msk [vmem:[%s334 + $0x20] sm:$0xff] %vm767, %v698
      %773 = vst.msk [vmem:[%s334 + $0x28] sm:$0xff] %vm767, %v700
      %774 = vst.msk [vmem:[%s334 + $0x30] sm:$0xff] %vm767, %v703
      %775 = vst.msk [vmem:[%s334 + $0x38] sm:$0xff] %vm767, %v705
      %776 = vst.msk [vmem:[%s334 + $0x40] sm:$0xff] %vm767, %v708
      %777 = vst.msk [vmem:[%s334 + $0x48] sm:$0xff] %vm767, %v710
      %778 = vst.msk [vmem:[%s334 + $0x50] sm:$0xff] %vm767, %v713
      %779 = vst.msk [vmem:[%s334 + $0x58] sm:$0xff] %vm767, %v715
      %780 = vst.msk [vmem:[%s334 + $0x60] sm:$0xff] %vm767, %v718
      %781 = vst.msk [vmem:[%s334 + $0x68] sm:$0xff] %vm767, %v720
      %782 = vst.msk [vmem:[%s334 + $0x70] sm:$0xff] %vm767, %v723
      %783 = vst.msk [vmem:[%s334 + $0x78] sm:$0xff] %vm767, %v725
      %784 = vst.msk [vmem:[%s334 + $0x80] sm:$0xff] %vm767, %v728
      %785 = vst.msk [vmem:[%s334 + $0x88] sm:$0xff] %vm767, %v730
      %786 = vst.msk [vmem:[%s334 + $0x90] sm:$0xff] %vm767, %v733
      %787 = vst.msk [vmem:[%s334 + $0x98] sm:$0xff] %vm767, %v735
      %788 = vst.msk [vmem:[%s334 + $0xa0] sm:$0xff] %vm767, %v738
      %789 = vst.msk [vmem:[%s334 + $0xa8] sm:$0xff] %vm767, %v740
      %790 = vst.msk [vmem:[%s334 + $0xb0] sm:$0xff] %vm767, %v743
      %791 = vst.msk [vmem:[%s334 + $0xb8] sm:$0xff] %vm767, %v745
      %792 = vst.msk [vmem:[%s334 + $0xc0] sm:$0xff] %vm767, %v748
      %793 = vst.msk [vmem:[%s334 + $0xc8] sm:$0xff] %vm767, %v750
      %794 = vst.msk [vmem:[%s334 + $0xd0] sm:$0xff] %vm767, %v753
      %795 = vst.msk [vmem:[%s334 + $0xd8] sm:$0xff] %vm767, %v755
      %796 = vst.msk [vmem:[%s334 + $0xe0] sm:$0xff] %vm767, %v758
      %797 = vst.msk [vmem:[%s334 + $0xe8] sm:$0xff] %vm767, %v760
      %798 = vst.msk [vmem:[%s334 + $0xf0] sm:$0xff] %vm767, %v763
      %799 = vst.msk [vmem:[%s334 + $0xf8] sm:$0xff] %vm767, %v765
      %s800 = smul.u32 32, %s21
      %p801 = scmp.lt.s32.totalorder %s20, 1
      %s802 = scalar_select %p801, %s20, 1
      %p803 = scmp.lt.s32.totalorder %s800, 31
      %s804 = scalar_select %p803, %s800, 31
      %s805 = smul.addr %s802, 32
      %s806 = sadd.s32 %s804, %s805
      %s807 = smul.addr %s806, 8
      %s808 = scalar_lea.vmem %s5, %s807
      // Predicated region
      $region41: #{net_forward.22} parent=39 // pred_check
        %p809 = pneg %p174
      $region42: #{net_forward.22} parent=39 // pred_check_branch
        %811 = sbr.rel (%p809) target = $region44
      $region43: #{net_forward.22} parent=39 // pred_region
        %s812 = smul.u32 32, %s21
      $region44: #{net_forward.22} parent=39 // pred_fallthru
        _
    $region40: #{net_forward.22} parent=5 // pred_fallthru
      _
    %p813 = scmp.le.s32.totalorder 2, %s11
    // Predicated region
    $region45: #{net_forward.22} parent=5 // pred_check
      %p814 = pneg %p813
    $region46: #{net_forward.22} parent=5 // pred_check_branch
      %816 = sbr.rel (%p814) target = $region48
    $region47: #{net_forward.22} parent=5 // pred_region
      %s817 = ssub.s32 %s11, 2
      // Predicated region
      $region49: #{net_forward.22} parent=47 // pred_check
        %p818 = pneg %p180
      $region50: #{net_forward.22} parent=47 // pred_check_branch
        %820 = sbr.rel (%p818) target = $region52
      $region51: #{net_forward.22} parent=47 // pred_region
        %s821 = smul.u32 32, %s23
        %p822 = scmp.lt.s32.totalorder %s22, 1
        %s823 = scalar_select %p822, %s22, 1
        %p824 = scmp.lt.s32.totalorder %s821, 31
        %s825 = scalar_select %p824, %s821, 31
        %s826 = smul.addr %s823, 32
        %s827 = sadd.s32 %s825, %s826
        %s828 = smul.addr %s827, 8
        %s829 = scalar_lea.vmem %s5, %s828
      $region52: #{net_forward.22} parent=47 // pred_fallthru
        _
    $region48: #{net_forward.22} parent=5 // pred_fallthru
      _
  $region6: #{net_forward.22} parent=0 // loop_footer
    %s15 = sadd.s32 1, %s11
  $region7: #{net_forward.22} parent=0 // loop_footer_branch
    %10 = sbr.rel target = $region3
  $region8: #{net_forward.22} parent=0 // loop_exit
    _

// kernel: net_forward.23
$region0: #{net_forward.23}
  #allocation0 [shape = 'u32[]', space=smem, size = 0x4, offset = 0x4, fixed_abs, tag = 'smem constant byte address 0x4 - core index']
  #allocation1 [shape = 'u32[72,128]{1,0:T(1,128)}', space=vmem, size = 0x9000, scoped, tag = 'internal scratch']
  #allocation2 [shape = 'f32[336,64]{1,0:T(8,128)}', space=vmem, size = 0x2a000, scoped, tag = 'scratch operand']
  %s0 = inlined_call_operand.vmem [shape: f32[2,336,16], index: 0, kind: input, shape index: {}]
  %s1 = inlined_call_operand.vmem [shape: f32[64,16], index: 1, kind: input, shape index: {}]
  %s2 = inlined_call_operand.vmem [shape: f32[16,64], index: 2, kind: input, shape index: {}]
  %s3 = inlined_call_operand.hbm [shape: f32[2,21,64,64], index: 3, kind: output, shape index: {}]
  %s4 = sld [smem:[#allocation0]]
  $region49: #{net_forward.23} parent=0
    _
  %s6 = ssub.s32 1, %s4
  %s7 = scalar_select 0, %s6, %s4
  $region1: #{net_forward.23} parent=0
    #allocation3 [shape = 'u8[1376256]{0}', space=vmem, size = 0x150000, scoped, tag = 'output window, operand 0']
    #allocation4 [shape = 's32[2]{0}', space=sflag, size = 0x8, scoped, tag = 'scoped memory for net_forward.23']
    %8 = vsyncpa [#allocation4], 0
    %s9 = scalar_lea.sflag [#allocation4], 1
    %10 = vsyncpa %s9, 0
    loop: start=0, step=1, limit=4
    $region2: #{net_forward.23} parent=1 // loop_pre_header
      _
    $region3: #{net_forward.23} parent=1 // loop_header
      %s12 = sphi 0, %s16
      %p13 = scmp.ge.s32.totalorder %s12, 4
      %s19 = sphi 0, %s31
      %s20 = sphi 0, %s27
      %s21 = sphi 0, %s19
      %s22 = sphi 0, %s20
      %s23 = sphi 0, %s21
      %s24 = sphi 0, %s22
      %s34 = sphi 0, %s36
      %s37 = sphi 0, %s34
      %s38 = sphi 0, %s37
      %s54 = sphi 0, %s38
      %s60 = sphi 0, %s62
      %s63 = sphi 0, %s60
      %s64 = sphi 0, %s63
      %s80 = sphi 0, %s64
      %s84 = sphi 0, %s84
      %s86 = sphi 0, %s84
      %s87 = sphi 0, %s86
      %s101 = sphi 0, %s87
      %s109 = sphi 0, %s111
      %s112 = sphi 0, %s109
      %s113 = sphi 0, %s112
      %s129 = sphi 0, %s113
    $region4: #{net_forward.23} parent=1 // loop_header_branch
      %15 = sbr.rel (%p13) target = $region8
    $region5: #{net_forward.23} parent=1 // loop_body
      %s17 = ssub.s32 %s12, 1
      %s18 = ssub.s32 %s12, 2
      %s25 = sadd.s32 1, %s20
      %p26 = scmp.ge.s32.totalorder %s25, 1
      %s27 = scalar_select %p26, 0, %s25
      %s28 = sadd.s32 1, %s19
      %s29 = scalar_select %p26, %s28, %s19
      %p30 = scmp.ge.s32.totalorder %s29, 2
      %s31 = scalar_select %p30, 0, %s29
      %s32 = ssub.s32 %s19, %s31
      %p33 = scmp.eq.s32.totalorder %s32, 0
      %s35 = sadd.s32 %s34, 1
      %s36 = scalar_select %p33, %s34, %s35
      %p39 = pneg %p33
      %p40 = scmp.eq.s32.totalorder %s12, 1
      %p41 = por %p39, %p40
      %p42 = scmp.ne.s32.totalorder %s34, %s37
      %p43 = scmp.eq.s32.totalorder %s12, 0
      %p44 = por %p42, %p43
      %p45 = scmp.ne.s32.totalorder %s34, %s37
      %p46 = scmp.eq.s32.totalorder %s17, 1
      %p47 = por %p45, %p46
      %p48 = scmp.ne.s32.totalorder %s37, %s38
      %p49 = scmp.eq.s32.totalorder %s17, 0
      %p50 = por %p48, %p49
      %p51 = scmp.ne.s32.totalorder %s37, %s38
      %p52 = scmp.eq.s32.totalorder %s18, 1
      %p53 = por %p51, %p52
      %p55 = scmp.ne.s32.totalorder %s38, %s54
      %p56 = scmp.eq.s32.totalorder %s18, 0
      %p57 = por %p55, %p56
      %s58 = ssub.s32 %s20, %s27
      %p59 = scmp.eq.s32.totalorder %s58, 0
      %s61 = sadd.s32 %s60, 1
      %s62 = scalar_select %p59, %s60, %s61
      %p65 = pneg %p59
      %p66 = scmp.eq.s32.totalorder %s12, 1
      %p67 = por %p65, %p66
      %p68 = scmp.ne.s32.totalorder %s60, %s63
      %p69 = scmp.eq.s32.totalorder %s12, 0
      %p70 = por %p68, %p69
      %p71 = scmp.ne.s32.totalorder %s60, %s63
      %p72 = scmp.eq.s32.totalorder %s17, 1
      %p73 = por %p71, %p72
      %p74 = scmp.ne.s32.totalorder %s63, %s64
      %p75 = scmp.eq.s32.totalorder %s17, 0
      %p76 = por %p74, %p75
      %p77 = scmp.ne.s32.totalorder %s63, %s64
      %p78 = scmp.eq.s32.totalorder %s18, 1
      %p79 = por %p77, %p78
      %p81 = scmp.ne.s32.totalorder %s64, %s80
      %p82 = scmp.eq.s32.totalorder %s18, 0
      %p83 = por %p81, %p82
      %s85 = sadd.s32 %s84, 1
      %p88 = scmp.eq.s32.totalorder %s12, 1
      %p89 = scmp.ne.s32.totalorder %s84, %s86
      %p90 = scmp.eq.s32.totalorder %s12, 0
      %p91 = por %p89, %p90
      %p92 = scmp.ne.s32.totalorder %s84, %s86
      %p93 = scmp.eq.s32.totalorder %s17, 1
      %p94 = por %p92, %p93
      %p95 = scmp.ne.s32.totalorder %s86, %s87
      %p96 = scmp.eq.s32.totalorder %s17, 0
      %p97 = por %p95, %p96
      %p98 = scmp.ne.s32.totalorder %s86, %s87
      %p99 = scmp.eq.s32.totalorder %s18, 1
      %p100 = por %p98, %p99
      %p102 = scmp.ne.s32.totalorder %s87, %s101
      %p103 = scmp.eq.s32.totalorder %s18, 0
      %p104 = por %p102, %p103
      %s105 = ssub.s32 %s19, %s31
      %s106 = ssub.s32 %s20, %s27
      %s107 = sor.u32 %s105, %s106
      %p108 = scmp.eq.s32.totalorder %s107, 0
      %s110 = sadd.s32 %s109, 1
      %s111 = scalar_select %p108, %s109, %s110
      %p114 = pneg %p108
      %p115 = scmp.eq.s32.totalorder %s12, 1
      %p116 = por %p114, %p115
      %p117 = scmp.ne.s32.totalorder %s109, %s112
      %p118 = scmp.eq.s32.totalorder %s12, 0
      %p119 = por %p117, %p118
      %p120 = scmp.ne.s32.totalorder %s109, %s112
      %p121 = scmp.eq.s32.totalorder %s17, 1
      %p122 = por %p120, %p121
      %p123 = scmp.ne.s32.totalorder %s112, %s113
      %p124 = scmp.eq.s32.totalorder %s17, 0
      %p125 = por %p123, %p124
      %p126 = scmp.ne.s32.totalorder %s112, %s113
      %p127 = scmp.eq.s32.totalorder %s18, 1
      %p128 = por %p126, %p127
      %p130 = scmp.ne.s32.totalorder %s113, %s129
      %p131 = scmp.eq.s32.totalorder %s18, 0
      %p132 = por %p130, %p131
      %p133 = scmp.le.s32.totalorder 1, %s12
      %p134 = scmp.lt.s32.totalorder %s12, 3
      %p135 = pnand %p133, %p134
      %p136 = pneg %p135
      // Predicated region
      $region9: #{net_forward.23} parent=5 // pred_check
        _
      $region10: #{net_forward.23} parent=5 // pred_check_branch
        %138 = sbr.rel (%p135) target = $region12
      $region11: #{net_forward.23} parent=5 // pred_region
        %s139 = ssub.s32 %s12, 1
        // Predicated region
        $region13: #{net_forward.23} parent=11 // pred_check
          %p140 = pneg %p76
        $region14: #{net_forward.23} parent=11 // pred_check_branch
          %142 = sbr.rel (%p140) target = $region16
        $region15: #{net_forward.23} parent=11 // pred_region
          %s143 = smul.u32 8, %s22
          %p144 = scmp.lt.s32.totalorder %s143, 7
          %s145 = scalar_select %p144, %s143, 7
          %s146 = smul.addr %s145, 8
          %s147 = scalar_lea.vmem %s1, %s146
          %s148 = smul.u32 8, %s22
        $region16: #{net_forward.23} parent=11 // pred_fallthru
          _
        // Predicated region
        $region17: #{net_forward.23} parent=11 // pred_check
          %p149 = pneg %p97
        $region18: #{net_forward.23} parent=11 // pred_check_branch
          %151 = sbr.rel (%p149) target = $region20
        $region19: #{net_forward.23} parent=11 // pred_region
          _
        $region20: #{net_forward.23} parent=11 // pred_fallthru
          _
      $region12: #{net_forward.23} parent=5 // pred_fallthru
        _
      %p152 = scmp.lt.s32.totalorder %s12, 2
      // Predicated region
      $region21: #{net_forward.23} parent=5 // pred_check
        %p153 = pneg %p152
      $region22: #{net_forward.23} parent=5 // pred_check_branch
        %155 = sbr.rel (%p153) target = $region24
      $region23: #{net_forward.23} parent=5 // pred_region
        // Predicated region
        $region25: #{net_forward.23} parent=23 // pred_check
          %p156 = pneg %p44
        $region26: #{net_forward.23} parent=23 // pred_check_branch
          %158 = sbr.rel (%p156) target = $region28
        $region27: #{net_forward.23} parent=23 // pred_region
          %p159 = scmp.lt.s32.totalorder %s19, 1
          %s160 = scalar_select %p159, %s19, 1
          %s161 = smul.addr %s160, 42
          %s162 = smul.addr %s161, 8
          %s163 = scalar_lea.vmem %s0, %s162
        $region28: #{net_forward.23} parent=23 // pred_fallthru
          _
      $region24: #{net_forward.23} parent=5 // pred_fallthru
        _
      %p164 = scmp.le.s32.totalorder 1, %s12
      %p165 = scmp.lt.s32.totalorder %s12, 3
      %p166 = pnand %p164, %p165
      %p167 = pneg %p166
      // Predicated region
      $region29: #{net_forward.23} parent=5 // pred_check
        _
      $region30: #{net_forward.23} parent=5 // pred_check_branch
        %169 = sbr.rel (%p166) target = $region32
      $region31: #{net_forward.23} parent=5 // pred_region
        %s170 = ssub.s32 %s12, 1
        %p171 = scmp.lt.s32.totalorder %s21, 1
        %s172 = scalar_select %p171, %s21, 1
        %s173 = smul.addr %s172, 42
        %s174 = smul.addr %s173, 8
        %s175 = scalar_lea.vmem %s0, %s174
        %p176 = pneg %p50
        %p177 = pneg %p47
        %s178 = smul.u32 8, %s22
        %p179 = scmp.lt.s32.totalorder %s178, 7
        %s180 = scalar_select %p179, %s178, 7
        %s181 = smul.addr %s180, 8
        %s182 = scalar_lea.vmem %s1, %s181
        %p183 = pneg %p76
        %p184 = pneg %p73
        %p185 = pneg %p97
        %p186 = pneg %p94
        %p187 = pneg %p125
        %p188 = pneg %p122
        %s189 = sand.u32 %s112, 1
        %s190 = scalar_lea.sflag [#allocation4], %s189
        %s191 = sand.u32 %s112, 1
        %s192 = smul.addr %s191, 1344
        %s193 = scalar_lea.vmem [#allocation3], %s192
        %p194 = scmp.lt.s32.totalorder %s21, 1
        %s195 = scalar_select %p194, %s21, 1
        %s196 = smul.addr %s195, 42
        %s197 = smul.addr %s196, 8
        %s198 = scalar_lea.vmem %s0, %s197
        %s199 = smul.u32 8, %s22
        %p200 = scmp.lt.s32.totalorder %s199, 7
        %s201 = scalar_select %p200, %s199, 7
        %s202 = smul.addr %s201, 8
        %s203 = scalar_lea.vmem %s1, %s202
        %s204 = smul.u32 8, %s22
        %s205 = smul.u32 8, %s22
        %p206 = scmp.eq.s32.totalorder %s22, 0
        // Predicated region
        $region33: #{net_forward.23} parent=31 // pred_check
          %p207 = pneg %p206
        $region34: #{net_forward.23} parent=31 // pred_check_branch
          %209 = sbr.rel (%p207) target = $region36
        $region35: #{net_forward.23} parent=31 // pred_region
          %v210 = vld [vmem:[%s198] sm:$0xff]
          %v211 = vld [vmem:[%s198 + $0x8] sm:$0xff]
          %v212 = vld [vmem:[%s198 + $0x10] sm:$0xff]
          %v213 = vld [vmem:[%s198 + $0x18] sm:$0xff]
          %v214 = vld [vmem:[%s198 + $0x20] sm:$0xff]
          %v215 = vld [vmem:[%s198 + $0x28] sm:$0xff]
          %v216 = vld [vmem:[%s198 + $0x30] sm:$0xff]
          %v217 = vld [vmem:[%s198 + $0x38] sm:$0xff]
          %v218 = vld [vmem:[%s198 + $0x40] sm:$0xff]
          %v219 = vld [vmem:[%s198 + $0x48] sm:$0xff]
          %v220 = vld [vmem:[%s198 + $0x50] sm:$0xff]
          %v221 = vld [vmem:[%s198 + $0x58] sm:$0xff]
          %v222 = vld [vmem:[%s198 + $0x60] sm:$0xff]
          %v223 = vld [vmem:[%s198 + $0x68] sm:$0xff]
          %v224 = vld [vmem:[%s198 + $0x70] sm:$0xff]
          %v225 = vld [vmem:[%s198 + $0x78] sm:$0xff]
          %v226 = vld [vmem:[%s198 + $0x80] sm:$0xff]
          %v227 = vld [vmem:[%s198 + $0x88] sm:$0xff]
          %v228 = vld [vmem:[%s198 + $0x90] sm:$0xff]
          %v229 = vld [vmem:[%s198 + $0x98] sm:$0xff]
          %v230 = vld [vmem:[%s198 + $0xa0] sm:$0xff]
          %v231 = vld [vmem:[%s198 + $0xa8] sm:$0xff]
          %v232 = vld [vmem:[%s198 + $0xb0] sm:$0xff]
          %v233 = vld [vmem:[%s198 + $0xb8] sm:$0xff]
          %v234 = vld [vmem:[%s198 + $0xc0] sm:$0xff]
          %v235 = vld [vmem:[%s198 + $0xc8] sm:$0xff]
          %v236 = vld [vmem:[%s198 + $0xd0] sm:$0xff]
          %v237 = vld [vmem:[%s198 + $0xd8] sm:$0xff]
          %v238 = vld [vmem:[%s198 + $0xe0] sm:$0xff]
          %v239 = vld [vmem:[%s198 + $0xe8] sm:$0xff]
          %v240 = vld [vmem:[%s198 + $0xf0] sm:$0xff]
          %v241 = vld [vmem:[%s198 + $0xf8] sm:$0xff]
          %v242 = vld [vmem:[%s198 + $0x100] sm:$0xff]
          %v243 = vld [vmem:[%s198 + $0x108] sm:$0xff]
          %v244 = vld [vmem:[%s198 + $0x110] sm:$0xff]
          %v245 = vld [vmem:[%s198 + $0x118] sm:$0xff]
          %v246 = vld [vmem:[%s198 + $0x120] sm:$0xff]
          %v247 = vld [vmem:[%s198 + $0x128] sm:$0xff]
          %v248 = vld [vmem:[%s198 + $0x130] sm:$0xff]
          %v249 = vld [vmem:[%s198 + $0x138] sm:$0xff]
          %v250 = vld [vmem:[%s198 + $0x140] sm:$0xff]
          %v251 = vld [vmem:[%s198 + $0x148] sm:$0xff]
          %v252 = vld [vmem:[%s2] sm:$0xff]
          %v253 = vld [vmem:[%s2 + $0x8] sm:$0xff]
          %vm254 = vcmask 130048
          %v256 = vsel %vm254, %v210, 0
          %v259 = vsel %vm254, %v211, 0
          %v262 = vsel %vm254, %v212, 0
          %v265 = vsel %vm254, %v213, 0
          %v268 = vsel %vm254, %v214, 0
          %v271 = vsel %vm254, %v215, 0
          %v274 = vsel %vm254, %v216, 0
          %v277 = vsel %vm254, %v217, 0
          %v280 = vsel %vm254, %v218, 0
          %v283 = vsel %vm254, %v219, 0
          %v286 = vsel %vm254, %v220, 0
          %v289 = vsel %vm254, %v221, 0
          %v292 = vsel %vm254, %v222, 0
          %v295 = vsel %vm254, %v223, 0
          %v298 = vsel %vm254, %v224, 0
          %v301 = vsel %vm254, %v225, 0
          %v304 = vsel %vm254, %v226, 0
          %v307 = vsel %vm254, %v227, 0
          %v310 = vsel %vm254, %v228, 0
          %v313 = vsel %vm254, %v229, 0
          %v316 = vsel %vm254, %v230, 0
          %v319 = vsel %vm254, %v231, 0
          %v322 = vsel %vm254, %v232, 0
          %v325 = vsel %vm254, %v233, 0
          %v328 = vsel %vm254, %v234, 0
          %v331 = vsel %vm254, %v235, 0
          %v334 = vsel %vm254, %v236, 0
          %v337 = vsel %vm254, %v237, 0
          %v340 = vsel %vm254, %v238, 0
          %v343 = vsel %vm254, %v239, 0
          %v346 = vsel %vm254, %v240, 0
          %v349 = vsel %vm254, %v241, 0
          %v352 = vsel %vm254, %v242, 0
          %v355 = vsel %vm254, %v243, 0
          %v358 = vsel %vm254, %v244, 0
          %v361 = vsel %vm254, %v245, 0
          %v364 = vsel %vm254, %v246, 0
          %v367 = vsel %vm254, %v247, 0
          %v370 = vsel %vm254, %v248, 0
          %v373 = vsel %vm254, %v249, 0
          %v376 = vsel %vm254, %v250, 0
          %v379 = vsel %vm254, %v251, 0
          %381 = vmatpush.msra.mxu0 0.0
          %382 = vmatpush.msra.mxu0 0.0
          %383 = vmatpush.msra.mxu0 0.0
          %384 = vmatpush.msra.mxu0 0.0
          %385 = vmatpush.msra.mxu0 0.0
          %386 = vmatpush.msra.mxu0 0.0
          %387 = vmatpush.msra.mxu0 0.0
          %388 = vmatpush.msra.mxu0 0.0
          %389 = vmatpush.msra.mxu0 0.0
          %390 = vmatpush.msra.mxu0 0.0
          %391 = vmatpush.msra.mxu0 0.0
          %392 = vmatpush.msra.mxu0 0.0
          %393 = vmatpush.msra.mxu0 0.0
          %394 = vmatpush.msra.mxu0 0.0
          %395 = vmatpush.msra.mxu0 %v253
          %396 = vmatpush.msra.mxu0 %v252
          %397 = vmatmul.f32.gmra.mxu0 %v256
          %v398 = vpop.f32.mrf.mxu0
          %v399 = vadd.f32 0.0, %v398
          %400 = vmatmul.f32.gmra.mxu0 %v259
          %v401 = vpop.f32.mrf.mxu0
          %v402 = vadd.f32 0.0, %v401
          %403 = vmatmul.f32.gmra.mxu0 %v262
          %v404 = vpop.f32.mrf.mxu0
          %v405 = vadd.f32 0.0, %v404
          %406 = vmatmul.f32.gmra.mxu0 %v265
          %v407 = vpop.f32.mrf.mxu0
          %v408 = vadd.f32 0.0, %v407
          %409 = vmatmul.f32.gmra.mxu0 %v268
          %v410 = vpop.f32.mrf.mxu0
          %v411 = vadd.f32 0.0, %v410
          %412 = vmatmul.f32.gmra.mxu0 %v271
          %v413 = vpop.f32.mrf.mxu0
          %v414 = vadd.f32 0.0, %v413
          %415 = vmatmul.f32.gmra.mxu0 %v274
          %v416 = vpop.f32.mrf.mxu0
          %v417 = vadd.f32 0.0, %v416
          %418 = vmatmul.f32.gmra.mxu0 %v277
          %v419 = vpop.f32.mrf.mxu0
          %v420 = vadd.f32 0.0, %v419
          %421 = vmatmul.f32.gmra.mxu0 %v280
          %v422 = vpop.f32.mrf.mxu0
          %v423 = vadd.f32 0.0, %v422
          %424 = vmatmul.f32.gmra.mxu0 %v283
          %v425 = vpop.f32.mrf.mxu0
          %v426 = vadd.f32 0.0, %v425
          %427 = vmatmul.f32.gmra.mxu0 %v286
          %v428 = vpop.f32.mrf.mxu0
          %v429 = vadd.f32 0.0, %v428
          %430 = vmatmul.f32.gmra.mxu0 %v289
          %v431 = vpop.f32.mrf.mxu0
          %v432 = vadd.f32 0.0, %v431
          %433 = vmatmul.f32.gmra.mxu0 %v292
          %v434 = vpop.f32.mrf.mxu0
          %v435 = vadd.f32 0.0, %v434
          %436 = vmatmul.f32.gmra.mxu0 %v295
          %v437 = vpop.f32.mrf.mxu0
          %v438 = vadd.f32 0.0, %v437
          %439 = vmatmul.f32.gmra.mxu0 %v298
          %v440 = vpop.f32.mrf.mxu0
          %v441 = vadd.f32 0.0, %v440
          %442 = vmatmul.f32.gmra.mxu0 %v301
          %v443 = vpop.f32.mrf.mxu0
          %v444 = vadd.f32 0.0, %v443
          %445 = vmatmul.f32.gmra.mxu0 %v304
          %v446 = vpop.f32.mrf.mxu0
          %v447 = vadd.f32 0.0, %v446
          %448 = vmatmul.f32.gmra.mxu0 %v307
          %v449 = vpop.f32.mrf.mxu0
          %v450 = vadd.f32 0.0, %v449
          %451 = vmatmul.f32.gmra.mxu0 %v310
          %v452 = vpop.f32.mrf.mxu0
          %v453 = vadd.f32 0.0, %v452
          %454 = vmatmul.f32.gmra.mxu0 %v313
          %v455 = vpop.f32.mrf.mxu0
          %v456 = vadd.f32 0.0, %v455
          %457 = vmatmul.f32.gmra.mxu0 %v316
          %v458 = vpop.f32.mrf.mxu0
          %v459 = vadd.f32 0.0, %v458
          %460 = vmatmul.f32.gmra.mxu0 %v319
          %v461 = vpop.f32.mrf.mxu0
          %v462 = vadd.f32 0.0, %v461
          %463 = vmatmul.f32.gmra.mxu0 %v322
          %v464 = vpop.f32.mrf.mxu0
          %v465 = vadd.f32 0.0, %v464
          %466 = vmatmul.f32.gmra.mxu0 %v325
          %v467 = vpop.f32.mrf.mxu0
          %v468 = vadd.f32 0.0, %v467
          %469 = vmatmul.f32.gmra.mxu0 %v328
          %v470 = vpop.f32.mrf.mxu0
          %v471 = vadd.f32 0.0, %v470
          %472 = vmatmul.f32.gmra.mxu0 %v331
          %v473 = vpop.f32.mrf.mxu0
          %v474 = vadd.f32 0.0, %v473
          %475 = vmatmul.f32.gmra.mxu0 %v334
          %v476 = vpop.f32.mrf.mxu0
          %v477 = vadd.f32 0.0, %v476
          %478 = vmatmul.f32.gmra.mxu0 %v337
          %v479 = vpop.f32.mrf.mxu0
          %v480 = vadd.f32 0.0, %v479
          %481 = vmatmul.f32.gmra.mxu0 %v340
          %v482 = vpop.f32.mrf.mxu0
          %v483 = vadd.f32 0.0, %v482
          %484 = vmatmul.f32.gmra.mxu0 %v343
          %v485 = vpop.f32.mrf.mxu0
          %v486 = vadd.f32 0.0, %v485
          %487 = vmatmul.f32.gmra.mxu0 %v346
          %v488 = vpop.f32.mrf.mxu0
          %v489 = vadd.f32 0.0, %v488
          %490 = vmatmul.f32.gmra.mxu0 %v349
          %v491 = vpop.f32.mrf.mxu0
          %v492 = vadd.f32 0.0, %v491
          %493 = vmatmul.f32.gmra.mxu0 %v352
          %v494 = vpop.f32.mrf.mxu0
          %v495 = vadd.f32 0.0, %v494
          %496 = vmatmul.f32.gmra.mxu0 %v355
          %v497 = vpop.f32.mrf.mxu0
          %v498 = vadd.f32 0.0, %v497
          %499 = vmatmul.f32.gmra.mxu0 %v358
          %v500 = vpop.f32.mrf.mxu0
          %v501 = vadd.f32 0.0, %v500
          %502 = vmatmul.f32.gmra.mxu0 %v361
          %v503 = vpop.f32.mrf.mxu0
          %v504 = vadd.f32 0.0, %v503
          %505 = vmatmul.f32.gmra.mxu0 %v364
          %v506 = vpop.f32.mrf.mxu0
          %v507 = vadd.f32 0.0, %v506
          %508 = vmatmul.f32.gmra.mxu0 %v367
          %v509 = vpop.f32.mrf.mxu0
          %v510 = vadd.f32 0.0, %v509
          %511 = vmatmul.f32.gmra.mxu0 %v370
          %v512 = vpop.f32.mrf.mxu0
          %v513 = vadd.f32 0.0, %v512
          %514 = vmatmul.f32.gmra.mxu0 %v373
          %v515 = vpop.f32.mrf.mxu0
          %v516 = vadd.f32 0.0, %v515
          %517 = vmatmul.f32.gmra.mxu0 %v376
          %v518 = vpop.f32.mrf.mxu0
          %v519 = vadd.f32 0.0, %v518
          %520 = vmatmul.f32.gmra.mxu0 %v379
          %v521 = vpop.f32.mrf.mxu0
          %v522 = vadd.f32 0.0, %v521
          %523 = vdwg.mxu0
          %vm524 = vcmask 523264
          %525 = vst.msk [vmem:[#allocation2] sm:$0xff] %vm524, %v399
          %526 = vst.msk [vmem:[#allocation2 + $0x8] sm:$0xff] %vm524, %v402
          %527 = vst.msk [vmem:[#allocation2 + $0x10] sm:$0xff] %vm524, %v405
          %528 = vst.msk [vmem:[#allocation2 + $0x18] sm:$0xff] %vm524, %v408
          %529 = vst.msk [vmem:[#allocation2 + $0x20] sm:$0xff] %vm524, %v411
          %530 = vst.msk [vmem:[#allocation2 + $0x28] sm:$0xff] %vm524, %v414
          %531 = vst.msk [vmem:[#allocation2 + $0x30] sm:$0xff] %vm524, %v417
          %532 = vst.msk [vmem:[#allocation2 + $0x38] sm:$0xff] %vm524, %v420
          %533 = vst.msk [vmem:[#allocation2 + $0x40] sm:$0xff] %vm524, %v423
          %534 = vst.msk [vmem:[#allocation2 + $0x48] sm:$0xff] %vm524, %v426
          %535 = vst.msk [vmem:[#allocation2 + $0x50] sm:$0xff] %vm524, %v429
          %536 = vst.msk [vmem:[#allocation2 + $0x58] sm:$0xff] %vm524, %v432
          %537 = vst.msk [vmem:[#allocation2 + $0x60] sm:$0xff] %vm524, %v435
          %538 = vst.msk [vmem:[#allocation2 + $0x68] sm:$0xff] %vm524, %v438
          %539 = vst.msk [vmem:[#allocation2 + $0x70] sm:$0xff] %vm524, %v441
          %540 = vst.msk [vmem:[#allocation2 + $0x78] sm:$0xff] %vm524, %v444
          %541 = vst.msk [vmem:[#allocation2 + $0x80] sm:$0xff] %vm524, %v447
          %542 = vst.msk [vmem:[#allocation2 + $0x88] sm:$0xff] %vm524, %v450
          %543 = vst.msk [vmem:[#allocation2 + $0x90] sm:$0xff] %vm524, %v453
          %544 = vst.msk [vmem:[#allocation2 + $0x98] sm:$0xff] %vm524, %v456
          %545 = vst.msk [vmem:[#allocation2 + $0xa0] sm:$0xff] %vm524, %v459
          %546 = vst.msk [vmem:[#allocation2 + $0xa8] sm:$0xff] %vm524, %v462
          %547 = vst.msk [vmem:[#allocation2 + $0xb0] sm:$0xff] %vm524, %v465
          %548 = vst.msk [vmem:[#allocation2 + $0xb8] sm:$0xff] %vm524, %v468
          %549 = vst.msk [vmem:[#allocation2 + $0xc0] sm:$0xff] %vm524, %v471
          %550 = vst.msk [vmem:[#allocation2 + $0xc8] sm:$0xff] %vm524, %v474
          %551 = vst.msk [vmem:[#allocation2 + $0xd0] sm:$0xff] %vm524, %v477
          %552 = vst.msk [vmem:[#allocation2 + $0xd8] sm:$0xff] %vm524, %v480
          %553 = vst.msk [vmem:[#allocation2 + $0xe0] sm:$0xff] %vm524, %v483
          %554 = vst.msk [vmem:[#allocation2 + $0xe8] sm:$0xff] %vm524, %v486
          %555 = vst.msk [vmem:[#allocation2 + $0xf0] sm:$0xff] %vm524, %v489
          %556 = vst.msk [vmem:[#allocation2 + $0xf8] sm:$0xff] %vm524, %v492
          %557 = vst.msk [vmem:[#allocation2 + $0x100] sm:$0xff] %vm524, %v495
          %558 = vst.msk [vmem:[#allocation2 + $0x108] sm:$0xff] %vm524, %v498
          %559 = vst.msk [vmem:[#allocation2 + $0x110] sm:$0xff] %vm524, %v501
          %560 = vst.msk [vmem:[#allocation2 + $0x118] sm:$0xff] %vm524, %v504
          %561 = vst.msk [vmem:[#allocation2 + $0x120] sm:$0xff] %vm524, %v507
          %562 = vst.msk [vmem:[#allocation2 + $0x128] sm:$0xff] %vm524, %v510
          %563 = vst.msk [vmem:[#allocation2 + $0x130] sm:$0xff] %vm524, %v513
          %564 = vst.msk [vmem:[#allocation2 + $0x138] sm:$0xff] %vm524, %v516
          %565 = vst.msk [vmem:[#allocation2 + $0x140] sm:$0xff] %vm524, %v519
          %566 = vst.msk [vmem:[#allocation2 + $0x148] sm:$0xff] %vm524, %v522
        $region36: #{net_forward.23} parent=31 // pred_fallthru
          _
        %v567 = vld [vmem:[%s203] sm:$0xff]
        %v568 = vld [vmem:[%s203 + $0x8] sm:$0xff]
        %v569 = vld [vmem:[%s203 + $0x10] sm:$0xff]
        %v570 = vld [vmem:[%s203 + $0x18] sm:$0xff]
        %v571 = vld [vmem:[%s203 + $0x20] sm:$0xff]
        %v572 = vld [vmem:[%s203 + $0x28] sm:$0xff]
        %v573 = vld [vmem:[%s203 + $0x30] sm:$0xff]
        %v574 = vld [vmem:[%s203 + $0x38] sm:$0xff]
        %v575 = vld [vmem:[#allocation2] sm:$0xff]
        %v576 = vld [vmem:[#allocation2 + $0x8] sm:$0xff]
        %vm577 = vcmask 130048
        %v579 = vsel %vm577, %v567, 0
        %v582 = vsel %vm577, %v568, 0
        %v585 = vsel %vm577, %v569, 0
        %v588 = vsel %vm577, %v570, 0
        %v591 = vsel %vm577, %v571, 0
        %v594 = vsel %vm577, %v572, 0
        %v597 = vsel %vm577, %v573, 0
        %v600 = vsel %vm577, %v574, 0
        %602 = vmatpush.msra.mxu0 0.0
        %603 = vmatpush.msra.mxu0 0.0
        %604 = vmatpush.msra.mxu0 0.0
        %605 = vmatpush.msra.mxu0 0.0
        %606 = vmatpush.msra.mxu0 0.0
        %607 = vmatpush.msra.mxu0 0.0
        %608 = vmatpush.msra.mxu0 0.0
        %609 = vmatpush.msra.mxu0 0.0
        %610 = vmatpush.msra.mxu0 0.0
        %611 = vmatpush.msra.mxu0 0.0
        %612 = vmatpush.msra.mxu0 0.0
        %613 = vmatpush.msra.mxu0 0.0
        %614 = vmatpush.msra.mxu0 0.0
        %615 = vmatpush.msra.mxu0 0.0
        %616 = vmatpush.msra.mxu0 %v576
        %617 = vmatpush.msra.mxu0 %v575
        %618 = vmatmul.f32.gmra.mxu0 %v579
        %v619 = vpop.f32.mrf.mxu0
        %v620 = vadd.f32 0.0, %v619
        %621 = vmatmul.f32.gmra.mxu0 %v582
        %v622 = vpop.f32.mrf.mxu0
        %v623 = vadd.f32 0.0, %v622
        %624 = vmatmul.f32.gmra.mxu0 %v585
        %v625 = vpop.f32.mrf.mxu0
        %v626 = vadd.f32 0.0, %v625
        %627 = vmatmul.f32.gmra.mxu0 %v588
        %v628 = vpop.f32.mrf.mxu0
        %v629 = vadd.f32 0.0, %v628
        %630 = vmatmul.f32.gmra.mxu0 %v591
        %v631 = vpop.f32.mrf.mxu0
        %v632 = vadd.f32 0.0, %v631
        %633 = vmatmul.f32.gmra.mxu0 %v594
        %v634 = vpop.f32.mrf.mxu0
        %v635 = vadd.f32 0.0, %v634
        %636 = vmatmul.f32.gmra.mxu0 %v597
        %v637 = vpop.f32.mrf.mxu0
        %v638 = vadd.f32 0.0, %v637
        %639 = vmatmul.f32.gmra.mxu0 %v600
        %v640 = vpop.f32.mrf.mxu0
        %v641 = vadd.f32 0.0, %v640
        %642 = vdwg.mxu0
        %v643 = vld [vmem:[#allocation2 + $0x10] sm:$0xff]
        %v644 = vld [vmem:[#allocation2 + $0x18] sm:$0xff]
        %645 = vmatpush.msra.mxu0 0.0
        %646 = vmatpush.msra.mxu0 0.0
        %647 = vmatpush.msra.mxu0 0.0
        %648 = vmatpush.msra.mxu0 0.0
        %649 = vmatpush.msra.mxu0 0.0
        %650 = vmatpush.msra.mxu0 0.0
        %651 = vmatpush.msra.mxu0 0.0
        %652 = vmatpush.msra.mxu0 0.0
        %653 = vmatpush.msra.mxu0 0.0
        %654 = vmatpush.msra.mxu0 0.0
        %655 = vmatpush.msra.mxu0 0.0
        %656 = vmatpush.msra.mxu0 0.0
        %657 = vmatpush.msra.mxu0 0.0
        %658 = vmatpush.msra.mxu0 0.0
        %659 = vmatpush.msra.mxu0 %v644
        %660 = vmatpush.msra.mxu0 %v643
        %661 = vmatmul.f32.gmra.mxu0 %v579
        %v662 = vpop.f32.mrf.mxu0
        %v663 = vadd.f32 0.0, %v662
        %664 = vmatmul.f32.gmra.mxu0 %v582
        %v665 = vpop.f32.mrf.mxu0
        %v666 = vadd.f32 0.0, %v665
        %667 = vmatmul.f32.gmra.mxu0 %v585
        %v668 = vpop.f32.mrf.mxu0
        %v669 = vadd.f32 0.0, %v668
        %670 = vmatmul.f32.gmra.mxu0 %v588
        %v671 = vpop.f32.mrf.mxu0
        %v672 = vadd.f32 0.0, %v671
        %673 = vmatmul.f32.gmra.mxu0 %v591
        %v674 = vpop.f32.mrf.mxu0
        %v675 = vadd.f32 0.0, %v674
        %676 = vmatmul.f32.gmra.mxu0 %v594
        %v677 = vpop.f32.mrf.mxu0
        %v678 = vadd.f32 0.0, %v677
        %679 = vmatmul.f32.gmra.mxu0 %v597
        %v680 = vpop.f32.mrf.mxu0
        %v681 = vadd.f32 0.0, %v680
        %682 = vmatmul.f32.gmra.mxu0 %v600
        %v683 = vpop.f32.mrf.mxu0
        %v684 = vadd.f32 0.0, %v683
        %685 = vdwg.mxu0
        %v686 = vld [vmem:[#allocation2 + $0x20] sm:$0xff]
        %v687 = vld [vmem:[#allocation2 + $0x28] sm:$0xff]
        %688 = vmatpush.msra.mxu0 0.0
        %689 = vmatpush.msra.mxu0 0.0
        %690 = vmatpush.msra.mxu0 0.0
        %691 = vmatpush.msra.mxu0 0.0
        %692 = vmatpush.msra.mxu0 0.0
        %693 = vmatpush.msra.mxu0 0.0
        %694 = vmatpush.msra.mxu0 0.0
        %695 = vmatpush.msra.mxu0 0.0
        %696 = vmatpush.msra.mxu0 0.0
        %697 = vmatpush.msra.mxu0 0.0
        %698 = vmatpush.msra.mxu0 0.0
        %699 = vmatpush.msra.mxu0 0.0
        %700 = vmatpush.msra.mxu0 0.0
        %701 = vmatpush.msra.mxu0 0.0
        %702 = vmatpush.msra.mxu0 %v687
        %703 = vmatpush.msra.mxu0 %v686
        %704 = vmatmul.f32.gmra.mxu0 %v579
        %v705 = vpop.f32.mrf.mxu0
        %v706 = vadd.f32 0.0, %v705
        %707 = vmatmul.f32.gmra.mxu0 %v582
        %v708 = vpop.f32.mrf.mxu0
        %v709 = vadd.f32 0.0, %v708
        %710 = vmatmul.f32.gmra.mxu0 %v585
        %v711 = vpop.f32.mrf.mxu0
        %v712 = vadd.f32 0.0, %v711
        %713 = vmatmul.f32.gmra.mxu0 %v588
        %v714 = vpop.f32.mrf.mxu0
        %v715 = vadd.f32 0.0, %v714
        %716 = vmatmul.f32.gmra.mxu0 %v591
        %v717 = vpop.f32.mrf.mxu0
        %v718 = vadd.f32 0.0, %v717
        %719 = vmatmul.f32.gmra.mxu0 %v594
        %v720 = vpop.f32.mrf.mxu0
        %v721 = vadd.f32 0.0, %v720
        %722 = vmatmul.f32.gmra.mxu0 %v597
        %v723 = vpop.f32.mrf.mxu0
        %v724 = vadd.f32 0.0, %v723
        %725 = vmatmul.f32.gmra.mxu0 %v600
        %v726 = vpop.f32.mrf.mxu0
        %v727 = vadd.f32 0.0, %v726
        %728 = vdwg.mxu0
        %v729 = vld [vmem:[#allocation2 + $0x30] sm:$0xff]
        %v730 = vld [vmem:[#allocation2 + $0x38] sm:$0xff]
        %731 = vmatpush.msra.mxu0 0.0
        %732 = vmatpush.msra.mxu0 0.0
        %733 = vmatpush.msra.mxu0 0.0
        %734 = vmatpush.msra.mxu0 0.0
        %735 = vmatpush.msra.mxu0 0.0
        %736 = vmatpush.msra.mxu0 0.0
        %737 = vmatpush.msra.mxu0 0.0
        %738 = vmatpush.msra.mxu0 0.0
        %739 = vmatpush.msra.mxu0 0.0
        %740 = vmatpush.msra.mxu0 0.0
        %741 = vmatpush.msra.mxu0 0.0
        %742 = vmatpush.msra.mxu0 0.0
        %743 = vmatpush.msra.mxu0 0.0
        %744 = vmatpush.msra.mxu0 0.0
        %745 = vmatpush.msra.mxu0 %v730
        %746 = vmatpush.msra.mxu0 %v729
        %747 = vmatmul.f32.gmra.mxu0 %v579
        %v748 = vpop.f32.mrf.mxu0
        %v749 = vadd.f32 0.0, %v748
        %750 = vmatmul.f32.gmra.mxu0 %v582
        %v751 = vpop.f32.mrf.mxu0
        %v752 = vadd.f32 0.0, %v751
        %753 = vmatmul.f32.gmra.mxu0 %v585
        %v754 = vpop.f32.mrf.mxu0
        %v755 = vadd.f32 0.0, %v754
        %756 = vmatmul.f32.gmra.mxu0 %v588
        %v757 = vpop.f32.mrf.mxu0
        %v758 = vadd.f32 0.0, %v757
        %759 = vmatmul.f32.gmra.mxu0 %v591
        %v760 = vpop.f32.mrf.mxu0
        %v761 = vadd.f32 0.0, %v760
        %762 = vmatmul.f32.gmra.mxu0 %v594
        %v763 = vpop.f32.mrf.mxu0
        %v764 = vadd.f32 0.0, %v763
        %765 = vmatmul.f32.gmra.mxu0 %v597
        %v766 = vpop.f32.mrf.mxu0
        %v767 = vadd.f32 0.0, %v766
        %768 = vmatmul.f32.gmra.mxu0 %v600
        %v769 = vpop.f32.mrf.mxu0
        %v770 = vadd.f32 0.0, %v769
        %771 = vdwg.mxu0
        %v772 = vld [vmem:[#allocation2 + $0x40] sm:$0xff]
        %v773 = vld [vmem:[#allocation2 + $0x48] sm:$0xff]
        %774 = vmatpush.msra.mxu0 0.0
        %775 = vmatpush.msra.mxu0 0.0
        %776 = vmatpush.msra.mxu0 0.0
        %777 = vmatpush.msra.mxu0 0.0
        %778 = vmatpush.msra.mxu0 0.0
        %779 = vmatpush.msra.mxu0 0.0
        %780 = vmatpush.msra.mxu0 0.0
        %781 = vmatpush.msra.mxu0 0.0
        %782 = vmatpush.msra.mxu0 0.0
        %783 = vmatpush.msra.mxu0 0.0
        %784 = vmatpush.msra.mxu0 0.0
        %785 = vmatpush.msra.mxu0 0.0
        %786 = vmatpush.msra.mxu0 0.0
        %787 = vmatpush.msra.mxu0 0.0
        %788 = vmatpush.msra.mxu0 %v773
        %789 = vmatpush.msra.mxu0 %v772
        %790 = vmatmul.f32.gmra.mxu0 %v579
        %v791 = vpop.f32.mrf.mxu0
        %v792 = vadd.f32 0.0, %v791
        %793 = vmatmul.f32.gmra.mxu0 %v582
        %v794 = vpop.f32.mrf.mxu0
        %v795 = vadd.f32 0.0, %v794
        %796 = vmatmul.f32.gmra.mxu0 %v585
        %v797 = vpop.f32.mrf.mxu0
        %v798 = vadd.f32 0.0, %v797
        %799 = vmatmul.f32.gmra.mxu0 %v588
        %v800 = vpop.f32.mrf.mxu0
        %v801 = vadd.f32 0.0, %v800
        %802 = vmatmul.f32.gmra.mxu0 %v591
        %v803 = vpop.f32.mrf.mxu0
        %v804 = vadd.f32 0.0, %v803
        %805 = vmatmul.f32.gmra.mxu0 %v594
        %v806 = vpop.f32.mrf.mxu0
        %v807 = vadd.f32 0.0, %v806
        %808 = vmatmul.f32.gmra.mxu0 %v597
        %v809 = vpop.f32.mrf.mxu0
        %v810 = vadd.f32 0.0, %v809
        %811 = vmatmul.f32.gmra.mxu0 %v600
        %v812 = vpop.f32.mrf.mxu0
        %v813 = vadd.f32 0.0, %v812
        %814 = vdwg.mxu0
        %v815 = vld [vmem:[#allocation2 + $0x50] sm:$0xff]
        %v816 = vld [vmem:[#allocation2 + $0x58] sm:$0xff]
        %817 = vmatpush.msra.mxu0 0.0
        %818 = vmatpush.msra.mxu0 0.0
        %819 = vmatpush.msra.mxu0 0.0
        %820 = vmatpush.msra.mxu0 0.0
        %821 = vmatpush.msra.mxu0 0.0
        %822 = vmatpush.msra.mxu0 0.0
        %823 = vmatpush.msra.mxu0 0.0
        %824 = vmatpush.msra.mxu0 0.0
        %825 = vmatpush.msra.mxu0 0.0
        %826 = vmatpush.msra.mxu0 0.0
        %827 = vmatpush.msra.mxu0 0.0
        %828 = vmatpush.msra.mxu0 0.0
        %829 = vmatpush.msra.mxu0 0.0
        %830 = vmatpush.msra.mxu0 0.0
        %831 = vmatpush.msra.mxu0 %v816
        %832 = vmatpush.msra.mxu0 %v815
        %833 = vmatmul.f32.gmra.mxu0 %v579
        %v834 = vpop.f32.mrf.mxu0
        %v835 = vadd.f32 0.0, %v834
        %836 = vmatmul.f32.gmra.mxu0 %v582
        %v837 = vpop.f32.mrf.mxu0
        %v838 = vadd.f32 0.0, %v837
        %839 = vmatmul.f32.gmra.mxu0 %v585
        %v840 = vpop.f32.mrf.mxu0
        %v841 = vadd.f32 0.0, %v840
        %842 = vmatmul.f32.gmra.mxu0 %v588
        %v843 = vpop.f32.mrf.mxu0
        %v844 = vadd.f32 0.0, %v843
        %845 = vmatmul.f32.gmra.mxu0 %v591
        %v846 = vpop.f32.mrf.mxu0
        %v847 = vadd.f32 0.0, %v846
        %848 = vmatmul.f32.gmra.mxu0 %v594
        %v849 = vpop.f32.mrf.mxu0
        %v850 = vadd.f32 0.0, %v849
        %851 = vmatmul.f32.gmra.mxu0 %v597
        %v852 = vpop.f32.mrf.mxu0
        %v853 = vadd.f32 0.0, %v852
        %854 = vmatmul.f32.gmra.mxu0 %v600
        %v855 = vpop.f32.mrf.mxu0
        %v856 = vadd.f32 0.0, %v855
        %857 = vdwg.mxu0
        %v858 = vld [vmem:[#allocation2 + $0x60] sm:$0xff]
        %v859 = vld [vmem:[#allocation2 + $0x68] sm:$0xff]
        %860 = vmatpush.msra.mxu0 0.0
        %861 = vmatpush.msra.mxu0 0.0
        %862 = vmatpush.msra.mxu0 0.0
        %863 = vmatpush.msra.mxu0 0.0
        %864 = vmatpush.msra.mxu0 0.0
        %865 = vmatpush.msra.mxu0 0.0
        %866 = vmatpush.msra.mxu0 0.0
        %867 = vmatpush.msra.mxu0 0.0
        %868 = vmatpush.msra.mxu0 0.0
        %869 = vmatpush.msra.mxu0 0.0
        %870 = vmatpush.msra.mxu0 0.0
        %871 = vmatpush.msra.mxu0 0.0
        %872 = vmatpush.msra.mxu0 0.0
        %873 = vmatpush.msra.mxu0 0.0
        %874 = vmatpush.msra.mxu0 %v859
        %875 = vmatpush.msra.mxu0 %v858
        %876 = vmatmul.f32.gmra.mxu0 %v579
        %v877 = vpop.f32.mrf.mxu0
        %v878 = vadd.f32 0.0, %v877
        %879 = vmatmul.f32.gmra.mxu0 %v582
        %v880 = vpop.f32.mrf.mxu0
        %v881 = vadd.f32 0.0, %v880
        %882 = vmatmul.f32.gmra.mxu0 %v585
        %v883 = vpop.f32.mrf.mxu0
        %v884 = vadd.f32 0.0, %v883
        %885 = vmatmul.f32.gmra.mxu0 %v588
        %v886 = vpop.f32.mrf.mxu0
        %v887 = vadd.f32 0.0, %v886
        %888 = vmatmul.f32.gmra.mxu0 %v591
        %v889 = vpop.f32.mrf.mxu0
        %v890 = vadd.f32 0.0, %v889
        %891 = vmatmul.f32.gmra.mxu0 %v594
        %v892 = vpop.f32.mrf.mxu0
        %v893 = vadd.f32 0.0, %v892
        %894 = vmatmul.f32.gmra.mxu0 %v597
        %v895 = vpop.f32.mrf.mxu0
        %v896 = vadd.f32 0.0, %v895
        %897 = vmatmul.f32.gmra.mxu0 %v600
        %v898 = vpop.f32.mrf.mxu0
        %v899 = vadd.f32 0.0, %v898
        %900 = vdwg.mxu0
        %v901 = vld [vmem:[#allocation2 + $0x70] sm:$0xff]
        %v902 = vld [vmem:[#allocation2 + $0x78] sm:$0xff]
        %903 = vmatpush.msra.mxu0 0.0
        %904 = vmatpush.msra.mxu0 0.0
        %905 = vmatpush.msra.mxu0 0.0
        %906 = vmatpush.msra.mxu0 0.0
        %907 = vmatpush.msra.mxu0 0.0
        %908 = vmatpush.msra.mxu0 0.0
        %909 = vmatpush.msra.mxu0 0.0
        %910 = vmatpush.msra.mxu0 0.0
        %911 = vmatpush.msra.mxu0 0.0
        %912 = vmatpush.msra.mxu0 0.0
        %913 = vmatpush.msra.mxu0 0.0
        %914 = vmatpush.msra.mxu0 0.0
        %915 = vmatpush.msra.mxu0 0.0
        %916 = vmatpush.msra.mxu0 0.0
        %917 = vmatpush.msra.mxu0 %v902
        %918 = vmatpush.msra.mxu0 %v901
        %919 = vmatmul.f32.gmra.mxu0 %v579
        %v920 = vpop.f32.mrf.mxu0
        %v921 = vadd.f32 0.0, %v920
        %922 = vmatmul.f32.gmra.mxu0 %v582
        %v923 = vpop.f32.mrf.mxu0
        %v924 = vadd.f32 0.0, %v923
        %925 = vmatmul.f32.gmra.mxu0 %v585
        %v926 = vpop.f32.mrf.mxu0
        %v927 = vadd.f32 0.0, %v926
        %928 = vmatmul.f32.gmra.mxu0 %v588
        %v929 = vpop.f32.mrf.mxu0
        %v930 = vadd.f32 0.0, %v929
        %931 = vmatmul.f32.gmra.mxu0 %v591
        %v932 = vpop.f32.mrf.mxu0
        %v933 = vadd.f32 0.0, %v932
        %934 = vmatmul.f32.gmra.mxu0 %v594
        %v935 = vpop.f32.mrf.mxu0
        %v936 = vadd.f32 0.0, %v935
        %937 = vmatmul.f32.gmra.mxu0 %v597
        %v938 = vpop.f32.mrf.mxu0
        %v939 = vadd.f32 0.0, %v938
        %940 = vmatmul.f32.gmra.mxu0 %v600
        %v941 = vpop.f32.mrf.mxu0
        %v942 = vadd.f32 0.0, %v941
        %943 = vdwg.mxu0
        %v944 = vld [vmem:[#allocation2 + $0x80] sm:$0xff]
        %v945 = vld [vmem:[#allocation2 + $0x88] sm:$0xff]
        %946 = vmatpush.msra.mxu0 0.0
        %947 = vmatpush.msra.mxu0 0.0
        %948 = vmatpush.msra.mxu0 0.0
        %949 = vmatpush.msra.mxu0 0.0
        %950 = vmatpush.msra.mxu0 0.0
        %951 = vmatpush.msra.mxu0 0.0
        %952 = vmatpush.msra.mxu0 0.0
        %953 = vmatpush.msra.mxu0 0.0
        %954 = vmatpush.msra.mxu0 0.0
        %955 = vmatpush.msra.mxu0 0.0
        %956 = vmatpush.msra.mxu0 0.0
        %957 = vmatpush.msra.mxu0 0.0
        %958 = vmatpush.msra.mxu0 0.0
        %959 = vmatpush.msra.mxu0 0.0
        %960 = vmatpush.msra.mxu0 %v945
        %961 = vmatpush.msra.mxu0 %v944
        %962 = vmatmul.f32.gmra.mxu0 %v579
        %v963 = vpop.f32.mrf.mxu0
        %v964 = vadd.f32 0.0, %v963
        %965 = vmatmul.f32.gmra.mxu0 %v582
        %v966 = vpop.f32.mrf.mxu0
        %v967 = vadd.f32 0.0, %v966
        %968 = vmatmul.f32.gmra.mxu0 %v585
        %v969 = vpop.f32.mrf.mxu0
        %v970 = vadd.f32 0.0, %v969
        %971 = vmatmul.f32.gmra.mxu0 %v588
        %v972 = vpop.f32.mrf.mxu0
        %v973 = vadd.f32 0.0, %v972
        %974 = vmatmul.f32.gmra.mxu0 %v591
        %v975 = vpop.f32.mrf.mxu0
        %v976 = vadd.f32 0.0, %v975
        %977 = vmatmul.f32.gmra.mxu0 %v594
        %v978 = vpop.f32.mrf.mxu0
        %v979 = vadd.f32 0.0, %v978
        %980 = vmatmul.f32.gmra.mxu0 %v597
        %v981 = vpop.f32.mrf.mxu0
        %v982 = vadd.f32 0.0, %v981
        %983 = vmatmul.f32.gmra.mxu0 %v600
        %v984 = vpop.f32.mrf.mxu0
        %v985 = vadd.f32 0.0, %v984
        %986 = vdwg.mxu0
        %v987 = vld [vmem:[#allocation2 + $0x90] sm:$0xff]
        %v988 = vld [vmem:[#allocation2 + $0x98] sm:$0xff]
        %989 = vmatpush.msra.mxu0 0.0
        %990 = vmatpush.msra.mxu0 0.0
        %991 = vmatpush.msra.mxu0 0.0
        %992 = vmatpush.msra.mxu0 0.0
        %993 = vmatpush.msra.mxu0 0.0
        %994 = vmatpush.msra.mxu0 0.0
        %995 = vmatpush.msra.mxu0 0.0
        %996 = vmatpush.msra.mxu0 0.0
        %997 = vmatpush.msra.mxu0 0.0
        %998 = vmatpush.msra.mxu0 0.0
        %999 = vmatpush.msra.mxu0 0.0
        %1000 = vmatpush.msra.mxu0 0.0
        %1001 = vmatpush.msra.mxu0 0.0
        %1002 = vmatpush.msra.mxu0 0.0
        %1003 = vmatpush.msra.mxu0 %v988
        %1004 = vmatpush.msra.mxu0 %v987
        %1005 = vmatmul.f32.gmra.mxu0 %v579
        %v1006 = vpop.f32.mrf.mxu0
        %v1007 = vadd.f32 0.0, %v1006
        %1008 = vmatmul.f32.gmra.mxu0 %v582
        %v1009 = vpop.f32.mrf.mxu0
        %v1010 = vadd.f32 0.0, %v1009
        %1011 = vmatmul.f32.gmra.mxu0 %v585
        %v1012 = vpop.f32.mrf.mxu0
        %v1013 = vadd.f32 0.0, %v1012
        %1014 = vmatmul.f32.gmra.mxu0 %v588
        %v1015 = vpop.f32.mrf.mxu0
        %v1016 = vadd.f32 0.0, %v1015
        %1017 = vmatmul.f32.gmra.mxu0 %v591
        %v1018 = vpop.f32.mrf.mxu0
        %v1019 = vadd.f32 0.0, %v1018
        %1020 = vmatmul.f32.gmra.mxu0 %v594
        %v1021 = vpop.f32.mrf.mxu0
        %v1022 = vadd.f32 0.0, %v1021
        %1023 = vmatmul.f32.gmra.mxu0 %v597
        %v1024 = vpop.f32.mrf.mxu0
        %v1025 = vadd.f32 0.0, %v1024
        %1026 = vmatmul.f32.gmra.mxu0 %v600
        %v1027 = vpop.f32.mrf.mxu0
        %v1028 = vadd.f32 0.0, %v1027
        %1029 = vdwg.mxu0
        %v1030 = vld [vmem:[#allocation2 + $0xa0] sm:$0xff]
        %v1031 = vld [vmem:[#allocation2 + $0xa8] sm:$0xff]
        %1032 = vmatpush.msra.mxu0 0.0
        %1033 = vmatpush.msra.mxu0 0.0
        %1034 = vmatpush.msra.mxu0 0.0
        %1035 = vmatpush.msra.mxu0 0.0
        %1036 = vmatpush.msra.mxu0 0.0
        %1037 = vmatpush.msra.mxu0 0.0
        %1038 = vmatpush.msra.mxu0 0.0
        %1039 = vmatpush.msra.mxu0 0.0
        %1040 = vmatpush.msra.mxu0 0.0
        %1041 = vmatpush.msra.mxu0 0.0
        %1042 = vmatpush.msra.mxu0 0.0
        %1043 = vmatpush.msra.mxu0 0.0
        %1044 = vmatpush.msra.mxu0 0.0
        %1045 = vmatpush.msra.mxu0 0.0
        %1046 = vmatpush.msra.mxu0 %v1031
        %1047 = vmatpush.msra.mxu0 %v1030
        %1048 = vmatmul.f32.gmra.mxu0 %v579
        %v1049 = vpop.f32.mrf.mxu0
        %v1050 = vadd.f32 0.0, %v1049
        %1051 = vmatmul.f32.gmra.mxu0 %v582
        %v1052 = vpop.f32.mrf.mxu0
        %v1053 = vadd.f32 0.0, %v1052
        %1054 = vmatmul.f32.gmra.mxu0 %v585
        %v1055 = vpop.f32.mrf.mxu0
        %v1056 = vadd.f32 0.0, %v1055
        %1057 = vmatmul.f32.gmra.mxu0 %v588
        %v1058 = vpop.f32.mrf.mxu0
        %v1059 = vadd.f32 0.0, %v1058
        %1060 = vmatmul.f32.gmra.mxu0 %v591
        %v1061 = vpop.f32.mrf.mxu0
        %v1062 = vadd.f32 0.0, %v1061
        %1063 = vmatmul.f32.gmra.mxu0 %v594
        %v1064 = vpop.f32.mrf.mxu0
        %v1065 = vadd.f32 0.0, %v1064
        %1066 = vmatmul.f32.gmra.mxu0 %v597
        %v1067 = vpop.f32.mrf.mxu0
        %v1068 = vadd.f32 0.0, %v1067
        %1069 = vmatmul.f32.gmra.mxu0 %v600
        %v1070 = vpop.f32.mrf.mxu0
        %v1071 = vadd.f32 0.0, %v1070
        %1072 = vdwg.mxu0
        %v1073 = vld [vmem:[#allocation2 + $0xb0] sm:$0xff]
        %v1074 = vld [vmem:[#allocation2 + $0xb8] sm:$0xff]
        %1075 = vmatpush.msra.mxu0 0.0
        %1076 = vmatpush.msra.mxu0 0.0
        %1077 = vmatpush.msra.mxu0 0.0
        %1078 = vmatpush.msra.mxu0 0.0
        %1079 = vmatpush.msra.mxu0 0.0
        %1080 = vmatpush.msra.mxu0 0.0
        %1081 = vmatpush.msra.mxu0 0.0
        %1082 = vmatpush.msra.mxu0 0.0
        %1083 = vmatpush.msra.mxu0 0.0
        %1084 = vmatpush.msra.mxu0 0.0
        %1085 = vmatpush.msra.mxu0 0.0
        %1086 = vmatpush.msra.mxu0 0.0
        %1087 = vmatpush.msra.mxu0 0.0
        %1088 = vmatpush.msra.mxu0 0.0
        %1089 = vmatpush.msra.mxu0 %v1074
        %1090 = vmatpush.msra.mxu0 %v1073
        %1091 = vmatmul.f32.gmra.mxu0 %v579
        %v1092 = vpop.f32.mrf.mxu0
        %v1093 = vadd.f32 0.0, %v1092
        %1094 = vmatmul.f32.gmra.mxu0 %v582
        %v1095 = vpop.f32.mrf.mxu0
        %v1096 = vadd.f32 0.0, %v1095
        %1097 = vmatmul.f32.gmra.mxu0 %v585
        %v1098 = vpop.f32.mrf.mxu0
        %v1099 = vadd.f32 0.0, %v1098
        %1100 = vmatmul.f32.gmra.mxu0 %v588
        %v1101 = vpop.f32.mrf.mxu0
        %v1102 = vadd.f32 0.0, %v1101
        %1103 = vmatmul.f32.gmra.mxu0 %v591
        %v1104 = vpop.f32.mrf.mxu0
        %v1105 = vadd.f32 0.0, %v1104
        %1106 = vmatmul.f32.gmra.mxu0 %v594
        %v1107 = vpop.f32.mrf.mxu0
        %v1108 = vadd.f32 0.0, %v1107
        %1109 = vmatmul.f32.gmra.mxu0 %v597
        %v1110 = vpop.f32.mrf.mxu0
        %v1111 = vadd.f32 0.0, %v1110
        %1112 = vmatmul.f32.gmra.mxu0 %v600
        %v1113 = vpop.f32.mrf.mxu0
        %v1114 = vadd.f32 0.0, %v1113
        %1115 = vdwg.mxu0
        %v1116 = vld [vmem:[#allocation2 + $0xc0] sm:$0xff]
        %v1117 = vld [vmem:[#allocation2 + $0xc8] sm:$0xff]
        %1118 = vmatpush.msra.mxu0 0.0
        %1119 = vmatpush.msra.mxu0 0.0
        %1120 = vmatpush.msra.mxu0 0.0
        %1121 = vmatpush.msra.mxu0 0.0
        %1122 = vmatpush.msra.mxu0 0.0
        %1123 = vmatpush.msra.mxu0 0.0
        %1124 = vmatpush.msra.mxu0 0.0
        %1125 = vmatpush.msra.mxu0 0.0
        %1126 = vmatpush.msra.mxu0 0.0
        %1127 = vmatpush.msra.mxu0 0.0
        %1128 = vmatpush.msra.mxu0 0.0
        %1129 = vmatpush.msra.mxu0 0.0
        %1130 = vmatpush.msra.mxu0 0.0
        %1131 = vmatpush.msra.mxu0 0.0
        %1132 = vmatpush.msra.mxu0 %v1117
        %1133 = vmatpush.msra.mxu0 %v1116
        %1134 = vmatmul.f32.gmra.mxu0 %v579
        %v1135 = vpop.f32.mrf.mxu0
        %v1136 = vadd.f32 0.0, %v1135
        %1137 = vmatmul.f32.gmra.mxu0 %v582
        %v1138 = vpop.f32.mrf.mxu0
        %v1139 = vadd.f32 0.0, %v1138
        %1140 = vmatmul.f32.gmra.mxu0 %v585
        %v1141 = vpop.f32.mrf.mxu0
        %v1142 = vadd.f32 0.0, %v1141
        %1143 = vmatmul.f32.gmra.mxu0 %v588
        %v1144 = vpop.f32.mrf.mxu0
        %v1145 = vadd.f32 0.0, %v1144
        %1146 = vmatmul.f32.gmra.mxu0 %v591
        %v1147 = vpop.f32.mrf.mxu0
        %v1148 = vadd.f32 0.0, %v1147
        %1149 = vmatmul.f32.gmra.mxu0 %v594
        %v1150 = vpop.f32.mrf.mxu0
        %v1151 = vadd.f32 0.0, %v1150
        %1152 = vmatmul.f32.gmra.mxu0 %v597
        %v1153 = vpop.f32.mrf.mxu0
        %v1154 = vadd.f32 0.0, %v1153
        %1155 = vmatmul.f32.gmra.mxu0 %v600
        %v1156 = vpop.f32.mrf.mxu0
        %v1157 = vadd.f32 0.0, %v1156
        %1158 = vdwg.mxu0
        %v1159 = vld [vmem:[#allocation2 + $0xd0] sm:$0xff]
        %v1160 = vld [vmem:[#allocation2 + $0xd8] sm:$0xff]
        %1161 = vmatpush.msra.mxu0 0.0
        %1162 = vmatpush.msra.mxu0 0.0
        %1163 = vmatpush.msra.mxu0 0.0
        %1164 = vmatpush.msra.mxu0 0.0
        %1165 = vmatpush.msra.mxu0 0.0
        %1166 = vmatpush.msra.mxu0 0.0
        %1167 = vmatpush.msra.mxu0 0.0
        %1168 = vmatpush.msra.mxu0 0.0
        %1169 = vmatpush.msra.mxu0 0.0
        %1170 = vmatpush.msra.mxu0 0.0
        %1171 = vmatpush.msra.mxu0 0.0
        %1172 = vmatpush.msra.mxu0 0.0
        %1173 = vmatpush.msra.mxu0 0.0
        %1174 = vmatpush.msra.mxu0 0.0
        %1175 = vmatpush.msra.mxu0 %v1160
        %1176 = vmatpush.msra.mxu0 %v1159
        %1177 = vmatmul.f32.gmra.mxu0 %v579
        %v1178 = vpop.f32.mrf.mxu0
        %v1179 = vadd.f32 0.0, %v1178
        %1180 = vmatmul.f32.gmra.mxu0 %v582
        %v1181 = vpop.f32.mrf.mxu0
        %v1182 = vadd.f32 0.0, %v1181
        %1183 = vmatmul.f32.gmra.mxu0 %v585
        %v1184 = vpop.f32.mrf.mxu0
        %v1185 = vadd.f32 0.0, %v1184
        %1186 = vmatmul.f32.gmra.mxu0 %v588
        %v1187 = vpop.f32.mrf.mxu0
        %v1188 = vadd.f32 0.0, %v1187
        %1189 = vmatmul.f32.gmra.mxu0 %v591
        %v1190 = vpop.f32.mrf.mxu0
        %v1191 = vadd.f32 0.0, %v1190
        %1192 = vmatmul.f32.gmra.mxu0 %v594
        %v1193 = vpop.f32.mrf.mxu0
        %v1194 = vadd.f32 0.0, %v1193
        %1195 = vmatmul.f32.gmra.mxu0 %v597
        %v1196 = vpop.f32.mrf.mxu0
        %v1197 = vadd.f32 0.0, %v1196
        %1198 = vmatmul.f32.gmra.mxu0 %v600
        %v1199 = vpop.f32.mrf.mxu0
        %v1200 = vadd.f32 0.0, %v1199
        %1201 = vdwg.mxu0
        %v1202 = vld [vmem:[#allocation2 + $0xe0] sm:$0xff]
        %v1203 = vld [vmem:[#allocation2 + $0xe8] sm:$0xff]
        %1204 = vmatpush.msra.mxu0 0.0
        %1205 = vmatpush.msra.mxu0 0.0
        %1206 = vmatpush.msra.mxu0 0.0
        %1207 = vmatpush.msra.mxu0 0.0
        %1208 = vmatpush.msra.mxu0 0.0
        %1209 = vmatpush.msra.mxu0 0.0
        %1210 = vmatpush.msra.mxu0 0.0
        %1211 = vmatpush.msra.mxu0 0.0
        %1212 = vmatpush.msra.mxu0 0.0
        %1213 = vmatpush.msra.mxu0 0.0
        %1214 = vmatpush.msra.mxu0 0.0
        %1215 = vmatpush.msra.mxu0 0.0
        %1216 = vmatpush.msra.mxu0 0.0
        %1217 = vmatpush.msra.mxu0 0.0
        %1218 = vmatpush.msra.mxu0 %v1203
        %1219 = vmatpush.msra.mxu0 %v1202
        %1220 = vmatmul.f32.gmra.mxu0 %v579
        %v1221 = vpop.f32.mrf.mxu0
        %v1222 = vadd.f32 0.0, %v1221
        %1223 = vmatmul.f32.gmra.mxu0 %v582
        %v1224 = vpop.f32.mrf.mxu0
        %v1225 = vadd.f32 0.0, %v1224
        %1226 = vmatmul.f32.gmra.mxu0 %v585
        %v1227 = vpop.f32.mrf.mxu0
        %v1228 = vadd.f32 0.0, %v1227
        %1229 = vmatmul.f32.gmra.mxu0 %v588
        %v1230 = vpop.f32.mrf.mxu0
        %v1231 = vadd.f32 0.0, %v1230
        %1232 = vmatmul.f32.gmra.mxu0 %v591
        %v1233 = vpop.f32.mrf.mxu0
        %v1234 = vadd.f32 0.0, %v1233
        %1235 = vmatmul.f32.gmra.mxu0 %v594
        %v1236 = vpop.f32.mrf.mxu0
        %v1237 = vadd.f32 0.0, %v1236
        %1238 = vmatmul.f32.gmra.mxu0 %v597
        %v1239 = vpop.f32.mrf.mxu0
        %v1240 = vadd.f32 0.0, %v1239
        %1241 = vmatmul.f32.gmra.mxu0 %v600
        %v1242 = vpop.f32.mrf.mxu0
        %v1243 = vadd.f32 0.0, %v1242
        %1244 = vdwg.mxu0
        %v1245 = vld [vmem:[#allocation2 + $0xf0] sm:$0xff]
        %v1246 = vld [vmem:[#allocation2 + $0xf8] sm:$0xff]
        %1247 = vmatpush.msra.mxu0 0.0
        %1248 = vmatpush.msra.mxu0 0.0
        %1249 = vmatpush.msra.mxu0 0.0
        %1250 = vmatpush.msra.mxu0 0.0
        %1251 = vmatpush.msra.mxu0 0.0
        %1252 = vmatpush.msra.mxu0 0.0
        %1253 = vmatpush.msra.mxu0 0.0
        %1254 = vmatpush.msra.mxu0 0.0
        %1255 = vmatpush.msra.mxu0 0.0
        %1256 = vmatpush.msra.mxu0 0.0
        %1257 = vmatpush.msra.mxu0 0.0
        %1258 = vmatpush.msra.mxu0 0.0
        %1259 = vmatpush.msra.mxu0 0.0
        %1260 = vmatpush.msra.mxu0 0.0
        %1261 = vmatpush.msra.mxu0 %v1246
        %1262 = vmatpush.msra.mxu0 %v1245
        %1263 = vmatmul.f32.gmra.mxu0 %v579
        %v1264 = vpop.f32.mrf.mxu0
        %v1265 = vadd.f32 0.0, %v1264
        %1266 = vmatmul.f32.gmra.mxu0 %v582
        %v1267 = vpop.f32.mrf.mxu0
        %v1268 = vadd.f32 0.0, %v1267
        %1269 = vmatmul.f32.gmra.mxu0 %v585
        %v1270 = vpop.f32.mrf.mxu0
        %v1271 = vadd.f32 0.0, %v1270
        %1272 = vmatmul.f32.gmra.mxu0 %v588
        %v1273 = vpop.f32.mrf.mxu0
        %v1274 = vadd.f32 0.0, %v1273
        %1275 = vmatmul.f32.gmra.mxu0 %v591
        %v1276 = vpop.f32.mrf.mxu0
        %v1277 = vadd.f32 0.0, %v1276
        %1278 = vmatmul.f32.gmra.mxu0 %v594
        %v1279 = vpop.f32.mrf.mxu0
        %v1280 = vadd.f32 0.0, %v1279
        %1281 = vmatmul.f32.gmra.mxu0 %v597
        %v1282 = vpop.f32.mrf.mxu0
        %v1283 = vadd.f32 0.0, %v1282
        %1284 = vmatmul.f32.gmra.mxu0 %v600
        %v1285 = vpop.f32.mrf.mxu0
        %v1286 = vadd.f32 0.0, %v1285
        %1287 = vdwg.mxu0
        %v1288 = vld [vmem:[#allocation2 + $0x100] sm:$0xff]
        %v1289 = vld [vmem:[#allocation2 + $0x108] sm:$0xff]
        %1290 = vmatpush.msra.mxu0 0.0
        %1291 = vmatpush.msra.mxu0 0.0
        %1292 = vmatpush.msra.mxu0 0.0
        %1293 = vmatpush.msra.mxu0 0.0
        %1294 = vmatpush.msra.mxu0 0.0
        %1295 = vmatpush.msra.mxu0 0.0
        %1296 = vmatpush.msra.mxu0 0.0
        %1297 = vmatpush.msra.mxu0 0.0
        %1298 = vmatpush.msra.mxu0 0.0
        %1299 = vmatpush.msra.mxu0 0.0
        %1300 = vmatpush.msra.mxu0 0.0
        %1301 = vmatpush.msra.mxu0 0.0
        %1302 = vmatpush.msra.mxu0 0.0
        %1303 = vmatpush.msra.mxu0 0.0
        %1304 = vmatpush.msra.mxu0 %v1289
        %1305 = vmatpush.msra.mxu0 %v1288
        %1306 = vmatmul.f32.gmra.mxu0 %v579
        %v1307 = vpop.f32.mrf.mxu0
        %v1308 = vadd.f32 0.0, %v1307
        %1309 = vmatmul.f32.gmra.mxu0 %v582
        %v1310 = vpop.f32.mrf.mxu0
        %v1311 = vadd.f32 0.0, %v1310
        %1312 = vmatmul.f32.gmra.mxu0 %v585
        %v1313 = vpop.f32.mrf.mxu0
        %v1314 = vadd.f32 0.0, %v1313
        %1315 = vmatmul.f32.gmra.mxu0 %v588
        %v1316 = vpop.f32.mrf.mxu0
        %v1317 = vadd.f32 0.0, %v1316
        %1318 = vmatmul.f32.gmra.mxu0 %v591
        %v1319 = vpop.f32.mrf.mxu0
        %v1320 = vadd.f32 0.0, %v1319
        %1321 = vmatmul.f32.gmra.mxu0 %v594
        %v1322 = vpop.f32.mrf.mxu0
        %v1323 = vadd.f32 0.0, %v1322
        %1324 = vmatmul.f32.gmra.mxu0 %v597
        %v1325 = vpop.f32.mrf.mxu0
        %v1326 = vadd.f32 0.0, %v1325
        %1327 = vmatmul.f32.gmra.mxu0 %v600
        %v1328 = vpop.f32.mrf.mxu0
        %v1329 = vadd.f32 0.0, %v1328
        %1330 = vdwg.mxu0
        %v1331 = vld [vmem:[#allocation2 + $0x110] sm:$0xff]
        %v1332 = vld [vmem:[#allocation2 + $0x118] sm:$0xff]
        %1333 = vmatpush.msra.mxu0 0.0
        %1334 = vmatpush.msra.mxu0 0.0
        %1335 = vmatpush.msra.mxu0 0.0
        %1336 = vmatpush.msra.mxu0 0.0
        %1337 = vmatpush.msra.mxu0 0.0
        %1338 = vmatpush.msra.mxu0 0.0
        %1339 = vmatpush.msra.mxu0 0.0
        %1340 = vmatpush.msra.mxu0 0.0
        %1341 = vmatpush.msra.mxu0 0.0
        %1342 = vmatpush.msra.mxu0 0.0
        %1343 = vmatpush.msra.mxu0 0.0
        %1344 = vmatpush.msra.mxu0 0.0
        %1345 = vmatpush.msra.mxu0 0.0
        %1346 = vmatpush.msra.mxu0 0.0
        %1347 = vmatpush.msra.mxu0 %v1332
        %1348 = vmatpush.msra.mxu0 %v1331
        %1349 = vmatmul.f32.gmra.mxu0 %v579
        %v1350 = vpop.f32.mrf.mxu0
        %v1351 = vadd.f32 0.0, %v1350
        %1352 = vmatmul.f32.gmra.mxu0 %v582
        %v1353 = vpop.f32.mrf.mxu0
        %v1354 = vadd.f32 0.0, %v1353
        %1355 = vmatmul.f32.gmra.mxu0 %v585
        %v1356 = vpop.f32.mrf.mxu0
        %v1357 = vadd.f32 0.0, %v1356
        %1358 = vmatmul.f32.gmra.mxu0 %v588
        %v1359 = vpop.f32.mrf.mxu0
        %v1360 = vadd.f32 0.0, %v1359
        %1361 = vmatmul.f32.gmra.mxu0 %v591
        %v1362 = vpop.f32.mrf.mxu0
        %v1363 = vadd.f32 0.0, %v1362
        %1364 = vmatmul.f32.gmra.mxu0 %v594
        %v1365 = vpop.f32.mrf.mxu0
        %v1366 = vadd.f32 0.0, %v1365
        %1367 = vmatmul.f32.gmra.mxu0 %v597
        %v1368 = vpop.f32.mrf.mxu0
        %v1369 = vadd.f32 0.0, %v1368
        %1370 = vmatmul.f32.gmra.mxu0 %v600
        %v1371 = vpop.f32.mrf.mxu0
        %v1372 = vadd.f32 0.0, %v1371
        %1373 = vdwg.mxu0
        %v1374 = vld [vmem:[#allocation2 + $0x120] sm:$0xff]
        %v1375 = vld [vmem:[#allocation2 + $0x128] sm:$0xff]
        %1376 = vmatpush.msra.mxu0 0.0
        %1377 = vmatpush.msra.mxu0 0.0
        %1378 = vmatpush.msra.mxu0 0.0
        %1379 = vmatpush.msra.mxu0 0.0
        %1380 = vmatpush.msra.mxu0 0.0
        %1381 = vmatpush.msra.mxu0 0.0
        %1382 = vmatpush.msra.mxu0 0.0
        %1383 = vmatpush.msra.mxu0 0.0
        %1384 = vmatpush.msra.mxu0 0.0
        %1385 = vmatpush.msra.mxu0 0.0
        %1386 = vmatpush.msra.mxu0 0.0
        %1387 = vmatpush.msra.mxu0 0.0
        %1388 = vmatpush.msra.mxu0 0.0
        %1389 = vmatpush.msra.mxu0 0.0
        %1390 = vmatpush.msra.mxu0 %v1375
        %1391 = vmatpush.msra.mxu0 %v1374
        %1392 = vmatmul.f32.gmra.mxu0 %v579
        %v1393 = vpop.f32.mrf.mxu0
        %v1394 = vadd.f32 0.0, %v1393
        %1395 = vmatmul.f32.gmra.mxu0 %v582
        %v1396 = vpop.f32.mrf.mxu0
        %v1397 = vadd.f32 0.0, %v1396
        %1398 = vmatmul.f32.gmra.mxu0 %v585
        %v1399 = vpop.f32.mrf.mxu0
        %v1400 = vadd.f32 0.0, %v1399
        %1401 = vmatmul.f32.gmra.mxu0 %v588
        %v1402 = vpop.f32.mrf.mxu0
        %v1403 = vadd.f32 0.0, %v1402
        %1404 = vmatmul.f32.gmra.mxu0 %v591
        %v1405 = vpop.f32.mrf.mxu0
        %v1406 = vadd.f32 0.0, %v1405
        %1407 = vmatmul.f32.gmra.mxu0 %v594
        %v1408 = vpop.f32.mrf.mxu0
        %v1409 = vadd.f32 0.0, %v1408
        %1410 = vmatmul.f32.gmra.mxu0 %v597
        %v1411 = vpop.f32.mrf.mxu0
        %v1412 = vadd.f32 0.0, %v1411
        %1413 = vmatmul.f32.gmra.mxu0 %v600
        %v1414 = vpop.f32.mrf.mxu0
        %v1415 = vadd.f32 0.0, %v1414
        %1416 = vdwg.mxu0
        %v1417 = vld [vmem:[#allocation2 + $0x130] sm:$0xff]
        %v1418 = vld [vmem:[#allocation2 + $0x138] sm:$0xff]
        %1419 = vmatpush.msra.mxu0 0.0
        %1420 = vmatpush.msra.mxu0 0.0
        %1421 = vmatpush.msra.mxu0 0.0
        %1422 = vmatpush.msra.mxu0 0.0
        %1423 = vmatpush.msra.mxu0 0.0
        %1424 = vmatpush.msra.mxu0 0.0
        %1425 = vmatpush.msra.mxu0 0.0
        %1426 = vmatpush.msra.mxu0 0.0
        %1427 = vmatpush.msra.mxu0 0.0
        %1428 = vmatpush.msra.mxu0 0.0
        %1429 = vmatpush.msra.mxu0 0.0
        %1430 = vmatpush.msra.mxu0 0.0
        %1431 = vmatpush.msra.mxu0 0.0
        %1432 = vmatpush.msra.mxu0 0.0
        %1433 = vmatpush.msra.mxu0 %v1418
        %1434 = vmatpush.msra.mxu0 %v1417
        %1435 = vmatmul.f32.gmra.mxu0 %v579
        %v1436 = vpop.f32.mrf.mxu0
        %v1437 = vadd.f32 0.0, %v1436
        %1438 = vmatmul.f32.gmra.mxu0 %v582
        %v1439 = vpop.f32.mrf.mxu0
        %v1440 = vadd.f32 0.0, %v1439
        %1441 = vmatmul.f32.gmra.mxu0 %v585
        %v1442 = vpop.f32.mrf.mxu0
        %v1443 = vadd.f32 0.0, %v1442
        %1444 = vmatmul.f32.gmra.mxu0 %v588
        %v1445 = vpop.f32.mrf.mxu0
        %v1446 = vadd.f32 0.0, %v1445
        %1447 = vmatmul.f32.gmra.mxu0 %v591
        %v1448 = vpop.f32.mrf.mxu0
        %v1449 = vadd.f32 0.0, %v1448
        %1450 = vmatmul.f32.gmra.mxu0 %v594
        %v1451 = vpop.f32.mrf.mxu0
        %v1452 = vadd.f32 0.0, %v1451
        %1453 = vmatmul.f32.gmra.mxu0 %v597
        %v1454 = vpop.f32.mrf.mxu0
        %v1455 = vadd.f32 0.0, %v1454
        %1456 = vmatmul.f32.gmra.mxu0 %v600
        %v1457 = vpop.f32.mrf.mxu0
        %v1458 = vadd.f32 0.0, %v1457
        %1459 = vdwg.mxu0
        %v1460 = vld [vmem:[#allocation2 + $0x140] sm:$0xff]
        %v1461 = vld [vmem:[#allocation2 + $0x148] sm:$0xff]
        %1462 = vmatpush.msra.mxu0 0.0
        %1463 = vmatpush.msra.mxu0 0.0
        %1464 = vmatpush.msra.mxu0 0.0
        %1465 = vmatpush.msra.mxu0 0.0
        %1466 = vmatpush.msra.mxu0 0.0
        %1467 = vmatpush.msra.mxu0 0.0
        %1468 = vmatpush.msra.mxu0 0.0
        %1469 = vmatpush.msra.mxu0 0.0
        %1470 = vmatpush.msra.mxu0 0.0
        %1471 = vmatpush.msra.mxu0 0.0
        %1472 = vmatpush.msra.mxu0 0.0
        %1473 = vmatpush.msra.mxu0 0.0
        %1474 = vmatpush.msra.mxu0 0.0
        %1475 = vmatpush.msra.mxu0 0.0
        %1476 = vmatpush.msra.mxu0 %v1461
        %1477 = vmatpush.msra.mxu0 %v1460
        %1478 = vmatmul.f32.gmra.mxu0 %v579
        %v1479 = vpop.f32.mrf.mxu0
        %v1480 = vadd.f32 0.0, %v1479
        %1481 = vmatmul.f32.gmra.mxu0 %v582
        %v1482 = vpop.f32.mrf.mxu0
        %v1483 = vadd.f32 0.0, %v1482
        %1484 = vmatmul.f32.gmra.mxu0 %v585
        %v1485 = vpop.f32.mrf.mxu0
        %v1486 = vadd.f32 0.0, %v1485
        %1487 = vmatmul.f32.gmra.mxu0 %v588
        %v1488 = vpop.f32.mrf.mxu0
        %v1489 = vadd.f32 0.0, %v1488
        %1490 = vmatmul.f32.gmra.mxu0 %v591
        %v1491 = vpop.f32.mrf.mxu0
        %v1492 = vadd.f32 0.0, %v1491
        %1493 = vmatmul.f32.gmra.mxu0 %v594
        %v1494 = vpop.f32.mrf.mxu0
        %v1495 = vadd.f32 0.0, %v1494
        %1496 = vmatmul.f32.gmra.mxu0 %v597
        %v1497 = vpop.f32.mrf.mxu0
        %v1498 = vadd.f32 0.0, %v1497
        %1499 = vmatmul.f32.gmra.mxu0 %v600
        %v1500 = vpop.f32.mrf.mxu0
        %v1501 = vadd.f32 0.0, %v1500
        %1502 = vdwg.mxu0
        %v1503 = vmax.f32 %v620, %v663
        %v1504 = vmax.f32 %v623, %v666
        %v1505 = vmax.f32 %v626, %v669
        %v1506 = vmax.f32 %v629, %v672
        %v1507 = vmax.f32 %v632, %v675
        %v1508 = vmax.f32 %v635, %v678
        %v1509 = vmax.f32 %v638, %v681
        %v1510 = vmax.f32 %v641, %v684
        %v1511 = vmax.f32 %v1503, %v706
        %v1512 = vmax.f32 %v1504, %v709
        %v1513 = vmax.f32 %v1505, %v712
        %v1514 = vmax.f32 %v1506, %v715
        %v1515 = vmax.f32 %v1507, %v718
        %v1516 = vmax.f32 %v1508, %v721
        %v1517 = vmax.f32 %v1509, %v724
        %v1518 = vmax.f32 %v1510, %v727
        %v1519 = vmax.f32 %v1511, %v749
        %v1520 = vmax.f32 %v1512, %v752
        %v1521 = vmax.f32 %v1513, %v755
        %v1522 = vmax.f32 %v1514, %v758
        %v1523 = vmax.f32 %v1515, %v761
        %v1524 = vmax.f32 %v1516, %v764
        %v1525 = vmax.f32 %v1517, %v767
        %v1526 = vmax.f32 %v1518, %v770
        %v1527 = vmax.f32 %v1519, %v792
        %v1528 = vmax.f32 %v1520, %v795
        %v1529 = vmax.f32 %v1521, %v798
        %v1530 = vmax.f32 %v1522, %v801
        %v1531 = vmax.f32 %v1523, %v804
        %v1532 = vmax.f32 %v1524, %v807
        %v1533 = vmax.f32 %v1525, %v810
        %v1534 = vmax.f32 %v1526, %v813
        %v1535 = vmax.f32 %v1527, %v835
        %v1536 = vmax.f32 %v1528, %v838
        %v1537 = vmax.f32 %v1529, %v841
        %v1538 = vmax.f32 %v1530, %v844
        %v1539 = vmax.f32 %v1531, %v847
        %v1540 = vmax.f32 %v1532, %v850
        %v1541 = vmax.f32 %v1533, %v853
        %v1542 = vmax.f32 %v1534, %v856
        %v1543 = vmax.f32 %v1535, %v878
        %v1544 = vmax.f32 %v1536, %v881
        %v1545 = vmax.f32 %v1537, %v884
        %v1546 = vmax.f32 %v1538, %v887
        %v1547 = vmax.f32 %v1539, %v890
        %v1548 = vmax.f32 %v1540, %v893
        %v1549 = vmax.f32 %v1541, %v896
        %v1550 = vmax.f32 %v1542, %v899
        %v1551 = vmax.f32 %v1543, %v921
        %v1552 = vmax.f32 %v1544, %v924
        %v1553 = vmax.f32 %v1545, %v927
        %v1554 = vmax.f32 %v1546, %v930
        %v1555 = vmax.f32 %v1547, %v933
        %v1556 = vmax.f32 %v1548, %v936
        %v1557 = vmax.f32 %v1549, %v939
        %v1558 = vmax.f32 %v1550, %v942
        %v1559 = vmax.f32 %v1551, %v964
        %v1560 = vmax.f32 %v1552, %v967
        %v1561 = vmax.f32 %v1553, %v970
        %v1562 = vmax.f32 %v1554, %v973
        %v1563 = vmax.f32 %v1555, %v976
        %v1564 = vmax.f32 %v1556, %v979
        %v1565 = vmax.f32 %v1557, %v982
        %v1566 = vmax.f32 %v1558, %v985
        %v1567 = vmax.f32 %v1559, %v1007
        %v1568 = vmax.f32 %v1560, %v1010
        %v1569 = vmax.f32 %v1561, %v1013
        %v1570 = vmax.f32 %v1562, %v1016
        %v1571 = vmax.f32 %v1563, %v1019
        %v1572 = vmax.f32 %v1564, %v1022
        %v1573 = vmax.f32 %v1565, %v1025
        %v1574 = vmax.f32 %v1566, %v1028
        %v1575 = vmax.f32 %v1567, %v1050
        %v1576 = vmax.f32 %v1568, %v1053
        %v1577 = vmax.f32 %v1569, %v1056
        %v1578 = vmax.f32 %v1570, %v1059
        %v1579 = vmax.f32 %v1571, %v1062
        %v1580 = vmax.f32 %v1572, %v1065
        %v1581 = vmax.f32 %v1573, %v1068
        %v1582 = vmax.f32 %v1574, %v1071
        %v1583 = vmax.f32 %v1575, %v1093
        %v1584 = vmax.f32 %v1576, %v1096
        %v1585 = vmax.f32 %v1577, %v1099
        %v1586 = vmax.f32 %v1578, %v1102
        %v1587 = vmax.f32 %v1579, %v1105
        %v1588 = vmax.f32 %v1580, %v1108
        %v1589 = vmax.f32 %v1581, %v1111
        %v1590 = vmax.f32 %v1582, %v1114
        %v1591 = vmax.f32 %v1583, %v1136
        %v1592 = vmax.f32 %v1584, %v1139
        %v1593 = vmax.f32 %v1585, %v1142
        %v1594 = vmax.f32 %v1586, %v1145
        %v1595 = vmax.f32 %v1587, %v1148
        %v1596 = vmax.f32 %v1588, %v1151
        %v1597 = vmax.f32 %v1589, %v1154
        %v1598 = vmax.f32 %v1590, %v1157
        %v1599 = vmax.f32 %v1591, %v1179
        %v1600 = vmax.f32 %v1592, %v1182
        %v1601 = vmax.f32 %v1593, %v1185
        %v1602 = vmax.f32 %v1594, %v1188
        %v1603 = vmax.f32 %v1595, %v1191
        %v1604 = vmax.f32 %v1596, %v1194
        %v1605 = vmax.f32 %v1597, %v1197
        %v1606 = vmax.f32 %v1598, %v1200
        %v1607 = vmax.f32 %v1599, %v1222
        %v1608 = vmax.f32 %v1600, %v1225
        %v1609 = vmax.f32 %v1601, %v1228
        %v1610 = vmax.f32 %v1602, %v1231
        %v1611 = vmax.f32 %v1603, %v1234
        %v1612 = vmax.f32 %v1604, %v1237
        %v1613 = vmax.f32 %v1605, %v1240
        %v1614 = vmax.f32 %v1606, %v1243
        %v1615 = vmax.f32 %v1607, %v1265
        %v1616 = vmax.f32 %v1608, %v1268
        %v1617 = vmax.f32 %v1609, %v1271
        %v1618 = vmax.f32 %v1610, %v1274
        %v1619 = vmax.f32 %v1611, %v1277
        %v1620 = vmax.f32 %v1612, %v1280
        %v1621 = vmax.f32 %v1613, %v1283
        %v1622 = vmax.f32 %v1614, %v1286
        %v1623 = vmax.f32 %v1615, %v1308
        %v1624 = vmax.f32 %v1616, %v1311
        %v1625 = vmax.f32 %v1617, %v1314
        %v1626 = vmax.f32 %v1618, %v1317
        %v1627 = vmax.f32 %v1619, %v1320
        %v1628 = vmax.f32 %v1620, %v1323
        %v1629 = vmax.f32 %v1621, %v1326
        %v1630 = vmax.f32 %v1622, %v1329
        %v1631 = vmax.f32 %v1623, %v1351
        %v1632 = vmax.f32 %v1624, %v1354
        %v1633 = vmax.f32 %v1625, %v1357
        %v1634 = vmax.f32 %v1626, %v1360
        %v1635 = vmax.f32 %v1627, %v1363
        %v1636 = vmax.f32 %v1628, %v1366
        %v1637 = vmax.f32 %v1629, %v1369
        %v1638 = vmax.f32 %v1630, %v1372
        %v1639 = vmax.f32 %v1631, %v1394
        %v1640 = vmax.f32 %v1632, %v1397
        %v1641 = vmax.f32 %v1633, %v1400
        %v1642 = vmax.f32 %v1634, %v1403
        %v1643 = vmax.f32 %v1635, %v1406
        %v1644 = vmax.f32 %v1636, %v1409
        %v1645 = vmax.f32 %v1637, %v1412
        %v1646 = vmax.f32 %v1638, %v1415
        %v1647 = vmax.f32 %v1639, %v1437
        %v1648 = vmax.f32 %v1640, %v1440
        %v1649 = vmax.f32 %v1641, %v1443
        %v1650 = vmax.f32 %v1642, %v1446
        %v1651 = vmax.f32 %v1643, %v1449
        %v1652 = vmax.f32 %v1644, %v1452
        %v1653 = vmax.f32 %v1645, %v1455
        %v1654 = vmax.f32 %v1646, %v1458
        %v1655 = vmax.f32 %v1647, %v1480
        %v1656 = vmax.f32 %v1648, %v1483
        %v1657 = vmax.f32 %v1649, %v1486
        %v1658 = vmax.f32 %v1650, %v1489
        %v1659 = vmax.f32 %v1651, %v1492
        %v1660 = vmax.f32 %v1652, %v1495
        %v1661 = vmax.f32 %v1653, %v1498
        %v1662 = vmax.f32 %v1654, %v1501
        %v1663 = vsub.f32 %v620, %v1655
        %v1664 = vsub.f32 %v623, %v1656
        %v1665 = vsub.f32 %v626, %v1657
        %v1666 = vsub.f32 %v629, %v1658
        %v1667 = vsub.f32 %v632, %v1659
        %v1668 = vsub.f32 %v635, %v1660
        %v1669 = vsub.f32 %v638, %v1661
        %v1670 = vsub.f32 %v641, %v1662
        %v1671 = vmul.f32 %v1663, 1.442695
        %v1672 = vpow.pop %v1671
        %v1673 = vmul.f32 %v1664, 1.442695
        %v1674 = vpow.pop %v1673
        %v1675 = vmul.f32 %v1665, 1.442695
        %v1676 = vpow.pop %v1675
        %v1677 = vmul.f32 %v1666, 1.442695
        %v1678 = vpow.pop %v1677
        %v1679 = vmul.f32 %v1667, 1.442695
        %v1680 = vpow.pop %v1679
        %v1681 = vmul.f32 %v1668, 1.442695
        %v1682 = vpow.pop %v1681
        %v1683 = vmul.f32 %v1669, 1.442695
        %v1684 = vpow.pop %v1683
        %v1685 = vmul.f32 %v1670, 1.442695
        %v1686 = vpow.pop %v1685
        %v1687 = vsub.f32 %v663, %v1655
        %v1688 = vsub.f32 %v666, %v1656
        %v1689 = vsub.f32 %v669, %v1657
        %v1690 = vsub.f32 %v672, %v1658
        %v1691 = vsub.f32 %v675, %v1659
        %v1692 = vsub.f32 %v678, %v1660
        %v1693 = vsub.f32 %v681, %v1661
        %v1694 = vsub.f32 %v684, %v1662
        %v1695 = vmul.f32 %v1687, 1.442695
        %v1696 = vpow.pop %v1695
        %v1697 = vmul.f32 %v1688, 1.442695
        %v1698 = vpow.pop %v1697
        %v1699 = vmul.f32 %v1689, 1.442695
        %v1700 = vpow.pop %v1699
        %v1701 = vmul.f32 %v1690, 1.442695
        %v1702 = vpow.pop %v1701
        %v1703 = vmul.f32 %v1691, 1.442695
        %v1704 = vpow.pop %v1703
        %v1705 = vmul.f32 %v1692, 1.442695
        %v1706 = vpow.pop %v1705
        %v1707 = vmul.f32 %v1693, 1.442695
        %v1708 = vpow.pop %v1707
        %v1709 = vmul.f32 %v1694, 1.442695
        %v1710 = vpow.pop %v1709
        %v1711 = vsub.f32 %v706, %v1655
        %v1712 = vsub.f32 %v709, %v1656
        %v1713 = vsub.f32 %v712, %v1657
        %v1714 = vsub.f32 %v715, %v1658
        %v1715 = vsub.f32 %v718, %v1659
        %v1716 = vsub.f32 %v721, %v1660
        %v1717 = vsub.f32 %v724, %v1661
        %v1718 = vsub.f32 %v727, %v1662
        %v1719 = vmul.f32 %v1711, 1.442695
        %v1720 = vpow.pop %v1719
        %v1721 = vmul.f32 %v1712, 1.442695
        %v1722 = vpow.pop %v1721
        %v1723 = vmul.f32 %v1713, 1.442695
        %v1724 = vpow.pop %v1723
        %v1725 = vmul.f32 %v1714, 1.442695
        %v1726 = vpow.pop %v1725
        %v1727 = vmul.f32 %v1715, 1.442695
        %v1728 = vpow.pop %v1727
        %v1729 = vmul.f32 %v1716, 1.442695
        %v1730 = vpow.pop %v1729
        %v1731 = vmul.f32 %v1717, 1.442695
        %v1732 = vpow.pop %v1731
        %v1733 = vmul.f32 %v1718, 1.442695
        %v1734 = vpow.pop %v1733
        %v1735 = vsub.f32 %v749, %v1655
        %v1736 = vsub.f32 %v752, %v1656
        %v1737 = vsub.f32 %v755, %v1657
        %v1738 = vsub.f32 %v758, %v1658
        %v1739 = vsub.f32 %v761, %v1659
        %v1740 = vsub.f32 %v764, %v1660
        %v1741 = vsub.f32 %v767, %v1661
        %v1742 = vsub.f32 %v770, %v1662
        %v1743 = vmul.f32 %v1735, 1.442695
        %v1744 = vpow.pop %v1743
        %v1745 = vmul.f32 %v1736, 1.442695
        %v1746 = vpow.pop %v1745
        %v1747 = vmul.f32 %v1737, 1.442695
        %v1748 = vpow.pop %v1747
        %v1749 = vmul.f32 %v1738, 1.442695
        %v1750 = vpow.pop %v1749
        %v1751 = vmul.f32 %v1739, 1.442695
        %v1752 = vpow.pop %v1751
        %v1753 = vmul.f32 %v1740, 1.442695
        %v1754 = vpow.pop %v1753
        %v1755 = vmul.f32 %v1741, 1.442695
        %v1756 = vpow.pop %v1755
        %v1757 = vmul.f32 %v1742, 1.442695
        %v1758 = vpow.pop %v1757
        %v1759 = vsub.f32 %v792, %v1655
        %v1760 = vsub.f32 %v795, %v1656
        %v1761 = vsub.f32 %v798, %v1657
        %v1762 = vsub.f32 %v801, %v1658
        %v1763 = vsub.f32 %v804, %v1659
        %v1764 = vsub.f32 %v807, %v1660
        %v1765 = vsub.f32 %v810, %v1661
        %v1766 = vsub.f32 %v813, %v1662
        %v1767 = vmul.f32 %v1759, 1.442695
        %v1768 = vpow.pop %v1767
        %v1769 = vmul.f32 %v1760, 1.442695
        %v1770 = vpow.pop %v1769
        %v1771 = vmul.f32 %v1761, 1.442695
        %v1772 = vpow.pop %v1771
        %v1773 = vmul.f32 %v1762, 1.442695
        %v1774 = vpow.pop %v1773
        %v1775 = vmul.f32 %v1763, 1.442695
        %v1776 = vpow.pop %v1775
        %v1777 = vmul.f32 %v1764, 1.442695
        %v1778 = vpow.pop %v1777
        %v1779 = vmul.f32 %v1765, 1.442695
        %v1780 = vpow.pop %v1779
        %v1781 = vmul.f32 %v1766, 1.442695
        %v1782 = vpow.pop %v1781
        %v1783 = vsub.f32 %v835, %v1655
        %v1784 = vsub.f32 %v838, %v1656
        %v1785 = vsub.f32 %v841, %v1657
        %v1786 = vsub.f32 %v844, %v1658
        %v1787 = vsub.f32 %v847, %v1659
        %v1788 = vsub.f32 %v850, %v1660
        %v1789 = vsub.f32 %v853, %v1661
        %v1790 = vsub.f32 %v856, %v1662
        %v1791 = vmul.f32 %v1783, 1.442695
        %v1792 = vpow.pop %v1791
        %v1793 = vmul.f32 %v1784, 1.442695
        %v1794 = vpow.pop %v1793
        %v1795 = vmul.f32 %v1785, 1.442695
        %v1796 = vpow.pop %v1795
        %v1797 = vmul.f32 %v1786, 1.442695
        %v1798 = vpow.pop %v1797
        %v1799 = vmul.f32 %v1787, 1.442695
        %v1800 = vpow.pop %v1799
        %v1801 = vmul.f32 %v1788, 1.442695
        %v1802 = vpow.pop %v1801
        %v1803 = vmul.f32 %v1789, 1.442695
        %v1804 = vpow.pop %v1803
        %v1805 = vmul.f32 %v1790, 1.442695
        %v1806 = vpow.pop %v1805
        %v1807 = vsub.f32 %v878, %v1655
        %v1808 = vsub.f32 %v881, %v1656
        %v1809 = vsub.f32 %v884, %v1657
        %v1810 = vsub.f32 %v887, %v1658
        %v1811 = vsub.f32 %v890, %v1659
        %v1812 = vsub.f32 %v893, %v1660
        %v1813 = vsub.f32 %v896, %v1661
        %v1814 = vsub.f32 %v899, %v1662
        %v1815 = vmul.f32 %v1807, 1.442695
        %v1816 = vpow.pop %v1815
        %v1817 = vmul.f32 %v1808, 1.442695
        %v1818 = vpow.pop %v1817
        %v1819 = vmul.f32 %v1809, 1.442695
        %v1820 = vpow.pop %v1819
        %v1821 = vmul.f32 %v1810, 1.442695
        %v1822 = vpow.pop %v1821
        %v1823 = vmul.f32 %v1811, 1.442695
        %v1824 = vpow.pop %v1823
        %v1825 = vmul.f32 %v1812, 1.442695
        %v1826 = vpow.pop %v1825
        %v1827 = vmul.f32 %v1813, 1.442695
        %v1828 = vpow.pop %v1827
        %v1829 = vmul.f32 %v1814, 1.442695
        %v1830 = vpow.pop %v1829
        %v1831 = vsub.f32 %v921, %v1655
        %v1832 = vsub.f32 %v924, %v1656
        %v1833 = vsub.f32 %v927, %v1657
        %v1834 = vsub.f32 %v930, %v1658
        %v1835 = vsub.f32 %v933, %v1659
        %v1836 = vsub.f32 %v936, %v1660
        %v1837 = vsub.f32 %v939, %v1661
        %v1838 = vsub.f32 %v942, %v1662
        %v1839 = vmul.f32 %v1831, 1.442695
        %v1840 = vpow.pop %v1839
        %v1841 = vmul.f32 %v1832, 1.442695
        %v1842 = vpow.pop %v1841
        %v1843 = vmul.f32 %v1833, 1.442695
        %v1844 = vpow.pop %v1843
        %v1845 = vmul.f32 %v1834, 1.442695
        %v1846 = vpow.pop %v1845
        %v1847 = vmul.f32 %v1835, 1.442695
        %v1848 = vpow.pop %v1847
        %v1849 = vmul.f32 %v1836, 1.442695
        %v1850 = vpow.pop %v1849
        %v1851 = vmul.f32 %v1837, 1.442695
        %v1852 = vpow.pop %v1851
        %v1853 = vmul.f32 %v1838, 1.442695
        %v1854 = vpow.pop %v1853
        %v1855 = vsub.f32 %v964, %v1655
        %v1856 = vsub.f32 %v967, %v1656
        %v1857 = vsub.f32 %v970, %v1657
        %v1858 = vsub.f32 %v973, %v1658
        %v1859 = vsub.f32 %v976, %v1659
        %v1860 = vsub.f32 %v979, %v1660
        %v1861 = vsub.f32 %v982, %v1661
        %v1862 = vsub.f32 %v985, %v1662
        %v1863 = vmul.f32 %v1855, 1.442695
        %v1864 = vpow.pop %v1863
        %v1865 = vmul.f32 %v1856, 1.442695
        %v1866 = vpow.pop %v1865
        %v1867 = vmul.f32 %v1857, 1.442695
        %v1868 = vpow.pop %v1867
        %v1869 = vmul.f32 %v1858, 1.442695
        %v1870 = vpow.pop %v1869
        %v1871 = vmul.f32 %v1859, 1.442695
        %v1872 = vpow.pop %v1871
        %v1873 = vmul.f32 %v1860, 1.442695
        %v1874 = vpow.pop %v1873
        %v1875 = vmul.f32 %v1861, 1.442695
        %v1876 = vpow.pop %v1875
        %v1877 = vmul.f32 %v1862, 1.442695
        %v1878 = vpow.pop %v1877
        %v1879 = vsub.f32 %v1007, %v1655
        %v1880 = vsub.f32 %v1010, %v1656
        %v1881 = vsub.f32 %v1013, %v1657
        %v1882 = vsub.f32 %v1016, %v1658
        %v1883 = vsub.f32 %v1019, %v1659
        %v1884 = vsub.f32 %v1022, %v1660
        %v1885 = vsub.f32 %v1025, %v1661
        %v1886 = vsub.f32 %v1028, %v1662
        %v1887 = vmul.f32 %v1879, 1.442695
        %v1888 = vpow.pop %v1887
        %v1889 = vmul.f32 %v1880, 1.442695
        %v1890 = vpow.pop %v1889
        %v1891 = vmul.f32 %v1881, 1.442695
        %v1892 = vpow.pop %v1891
        %v1893 = vmul.f32 %v1882, 1.442695
        %v1894 = vpow.pop %v1893
        %v1895 = vmul.f32 %v1883, 1.442695
        %v1896 = vpow.pop %v1895
        %v1897 = vmul.f32 %v1884, 1.442695
        %v1898 = vpow.pop %v1897
        %v1899 = vmul.f32 %v1885, 1.442695
        %v1900 = vpow.pop %v1899
        %v1901 = vmul.f32 %v1886, 1.442695
        %v1902 = vpow.pop %v1901
        %v1903 = vsub.f32 %v1050, %v1655
        %v1904 = vsub.f32 %v1053, %v1656
        %v1905 = vsub.f32 %v1056, %v1657
        %v1906 = vsub.f32 %v1059, %v1658
        %v1907 = vsub.f32 %v1062, %v1659
        %v1908 = vsub.f32 %v1065, %v1660
        %v1909 = vsub.f32 %v1068, %v1661
        %v1910 = vsub.f32 %v1071, %v1662
        %v1911 = vmul.f32 %v1903, 1.442695
        %v1912 = vpow.pop %v1911
        %v1913 = vmul.f32 %v1904, 1.442695
        %v1914 = vpow.pop %v1913
        %v1915 = vmul.f32 %v1905, 1.442695
        %v1916 = vpow.pop %v1915
        %v1917 = vmul.f32 %v1906, 1.442695
        %v1918 = vpow.pop %v1917
        %v1919 = vmul.f32 %v1907, 1.442695
        %v1920 = vpow.pop %v1919
        %v1921 = vmul.f32 %v1908, 1.442695
        %v1922 = vpow.pop %v1921
        %v1923 = vmul.f32 %v1909, 1.442695
        %v1924 = vpow.pop %v1923
        %v1925 = vmul.f32 %v1910, 1.442695
        %v1926 = vpow.pop %v1925
        %v1927 = vsub.f32 %v1093, %v1655
        %v1928 = vsub.f32 %v1096, %v1656
        %v1929 = vsub.f32 %v1099, %v1657
        %v1930 = vsub.f32 %v1102, %v1658
        %v1931 = vsub.f32 %v1105, %v1659
        %v1932 = vsub.f32 %v1108, %v1660
        %v1933 = vsub.f32 %v1111, %v1661
        %v1934 = vsub.f32 %v1114, %v1662
        %v1935 = vmul.f32 %v1927, 1.442695
        %v1936 = vpow.pop %v1935
        %v1937 = vmul.f32 %v1928, 1.442695
        %v1938 = vpow.pop %v1937
        %v1939 = vmul.f32 %v1929, 1.442695
        %v1940 = vpow.pop %v1939
        %v1941 = vmul.f32 %v1930, 1.442695
        %v1942 = vpow.pop %v1941
        %v1943 = vmul.f32 %v1931, 1.442695
        %v1944 = vpow.pop %v1943
        %v1945 = vmul.f32 %v1932, 1.442695
        %v1946 = vpow.pop %v1945
        %v1947 = vmul.f32 %v1933, 1.442695
        %v1948 = vpow.pop %v1947
        %v1949 = vmul.f32 %v1934, 1.442695
        %v1950 = vpow.pop %v1949
        %v1951 = vsub.f32 %v1136, %v1655
        %v1952 = vsub.f32 %v1139, %v1656
        %v1953 = vsub.f32 %v1142, %v1657
        %v1954 = vsub.f32 %v1145, %v1658
        %v1955 = vsub.f32 %v1148, %v1659
        %v1956 = vsub.f32 %v1151, %v1660
        %v1957 = vsub.f32 %v1154, %v1661
        %v1958 = vsub.f32 %v1157, %v1662
        %v1959 = vmul.f32 %v1951, 1.442695
        %v1960 = vpow.pop %v1959
        %v1961 = vmul.f32 %v1952, 1.442695
        %v1962 = vpow.pop %v1961
        %v1963 = vmul.f32 %v1953, 1.442695
        %v1964 = vpow.pop %v1963
        %v1965 = vmul.f32 %v1954, 1.442695
        %v1966 = vpow.pop %v1965
        %v1967 = vmul.f32 %v1955, 1.442695
        %v1968 = vpow.pop %v1967
        %v1969 = vmul.f32 %v1956, 1.442695
        %v1970 = vpow.pop %v1969
        %v1971 = vmul.f32 %v1957, 1.442695
        %v1972 = vpow.pop %v1971
        %v1973 = vmul.f32 %v1958, 1.442695
        %v1974 = vpow.pop %v1973
        %v1975 = vsub.f32 %v1179, %v1655
        %v1976 = vsub.f32 %v1182, %v1656
        %v1977 = vsub.f32 %v1185, %v1657
        %v1978 = vsub.f32 %v1188, %v1658
        %v1979 = vsub.f32 %v1191, %v1659
        %v1980 = vsub.f32 %v1194, %v1660
        %v1981 = vsub.f32 %v1197, %v1661
        %v1982 = vsub.f32 %v1200, %v1662
        %v1983 = vmul.f32 %v1975, 1.442695
        %v1984 = vpow.pop %v1983
        %v1985 = vmul.f32 %v1976, 1.442695
        %v1986 = vpow.pop %v1985
        %v1987 = vmul.f32 %v1977, 1.442695
        %v1988 = vpow.pop %v1987
        %v1989 = vmul.f32 %v1978, 1.442695
        %v1990 = vpow.pop %v1989
        %v1991 = vmul.f32 %v1979, 1.442695
        %v1992 = vpow.pop %v1991
        %v1993 = vmul.f32 %v1980, 1.442695
        %v1994 = vpow.pop %v1993
        %v1995 = vmul.f32 %v1981, 1.442695
        %v1996 = vpow.pop %v1995
        %v1997 = vmul.f32 %v1982, 1.442695
        %v1998 = vpow.pop %v1997
        %v1999 = vsub.f32 %v1222, %v1655
        %v2000 = vsub.f32 %v1225, %v1656
        %v2001 = vsub.f32 %v1228, %v1657
        %v2002 = vsub.f32 %v1231, %v1658
        %v2003 = vsub.f32 %v1234, %v1659
        %v2004 = vsub.f32 %v1237, %v1660
        %v2005 = vsub.f32 %v1240, %v1661
        %v2006 = vsub.f32 %v1243, %v1662
        %v2007 = vmul.f32 %v1999, 1.442695
        %v2008 = vpow.pop %v2007
        %v2009 = vmul.f32 %v2000, 1.442695
        %v2010 = vpow.pop %v2009
        %v2011 = vmul.f32 %v2001, 1.442695
        %v2012 = vpow.pop %v2011
        %v2013 = vmul.f32 %v2002, 1.442695
        %v2014 = vpow.pop %v2013
        %v2015 = vmul.f32 %v2003, 1.442695
        %v2016 = vpow.pop %v2015
        %v2017 = vmul.f32 %v2004, 1.442695
        %v2018 = vpow.pop %v2017
        %v2019 = vmul.f32 %v2005, 1.442695
        %v2020 = vpow.pop %v2019
        %v2021 = vmul.f32 %v2006, 1.442695
        %v2022 = vpow.pop %v2021
        %v2023 = vsub.f32 %v1265, %v1655
        %v2024 = vsub.f32 %v1268, %v1656
        %v2025 = vsub.f32 %v1271, %v1657
        %v2026 = vsub.f32 %v1274, %v1658
        %v2027 = vsub.f32 %v1277, %v1659
        %v2028 = vsub.f32 %v1280, %v1660
        %v2029 = vsub.f32 %v1283, %v1661
        %v2030 = vsub.f32 %v1286, %v1662
        %v2031 = vmul.f32 %v2023, 1.442695
        %v2032 = vpow.pop %v2031
        %v2033 = vmul.f32 %v2024, 1.442695
        %v2034 = vpow.pop %v2033
        %v2035 = vmul.f32 %v2025, 1.442695
        %v2036 = vpow.pop %v2035
        %v2037 = vmul.f32 %v2026, 1.442695
        %v2038 = vpow.pop %v2037
        %v2039 = vmul.f32 %v2027, 1.442695
        %v2040 = vpow.pop %v2039
        %v2041 = vmul.f32 %v2028, 1.442695
        %v2042 = vpow.pop %v2041
        %v2043 = vmul.f32 %v2029, 1.442695
        %v2044 = vpow.pop %v2043
        %v2045 = vmul.f32 %v2030, 1.442695
        %v2046 = vpow.pop %v2045
        %v2047 = vsub.f32 %v1308, %v1655
        %v2048 = vsub.f32 %v1311, %v1656
        %v2049 = vsub.f32 %v1314, %v1657
        %v2050 = vsub.f32 %v1317, %v1658
        %v2051 = vsub.f32 %v1320, %v1659
        %v2052 = vsub.f32 %v1323, %v1660
        %v2053 = vsub.f32 %v1326, %v1661
        %v2054 = vsub.f32 %v1329, %v1662
        %v2055 = vmul.f32 %v2047, 1.442695
        %v2056 = vpow.pop %v2055
        %v2057 = vmul.f32 %v2048, 1.442695
        %v2058 = vpow.pop %v2057
        %v2059 = vmul.f32 %v2049, 1.442695
        %v2060 = vpow.pop %v2059
        %v2061 = vmul.f32 %v2050, 1.442695
        %v2062 = vpow.pop %v2061
        %v2063 = vmul.f32 %v2051, 1.442695
        %v2064 = vpow.pop %v2063
        %v2065 = vmul.f32 %v2052, 1.442695
        %v2066 = vpow.pop %v2065
        %v2067 = vmul.f32 %v2053, 1.442695
        %v2068 = vpow.pop %v2067
        %v2069 = vmul.f32 %v2054, 1.442695
        %v2070 = vpow.pop %v2069
        %v2071 = vsub.f32 %v1351, %v1655
        %v2072 = vsub.f32 %v1354, %v1656
        %v2073 = vsub.f32 %v1357, %v1657
        %v2074 = vsub.f32 %v1360, %v1658
        %v2075 = vsub.f32 %v1363, %v1659
        %v2076 = vsub.f32 %v1366, %v1660
        %v2077 = vsub.f32 %v1369, %v1661
        %v2078 = vsub.f32 %v1372, %v1662
        %v2079 = vmul.f32 %v2071, 1.442695
        %v2080 = vpow.pop %v2079
        %v2081 = vmul.f32 %v2072, 1.442695
        %v2082 = vpow.pop %v2081
        %v2083 = vmul.f32 %v2073, 1.442695
        %v2084 = vpow.pop %v2083
        %v2085 = vmul.f32 %v2074, 1.442695
        %v2086 = vpow.pop %v2085
        %v2087 = vmul.f32 %v2075, 1.442695
        %v2088 = vpow.pop %v2087
        %v2089 = vmul.f32 %v2076, 1.442695
        %v2090 = vpow.pop %v2089
        %v2091 = vmul.f32 %v2077, 1.442695
        %v2092 = vpow.pop %v2091
        %v2093 = vmul.f32 %v2078, 1.442695
        %v2094 = vpow.pop %v2093
        %v2095 = vsub.f32 %v1394, %v1655
        %v2096 = vsub.f32 %v1397, %v1656
        %v2097 = vsub.f32 %v1400, %v1657
        %v2098 = vsub.f32 %v1403, %v1658
        %v2099 = vsub.f32 %v1406, %v1659
        %v2100 = vsub.f32 %v1409, %v1660
        %v2101 = vsub.f32 %v1412, %v1661
        %v2102 = vsub.f32 %v1415, %v1662
        %v2103 = vmul.f32 %v2095, 1.442695
        %v2104 = vpow.pop %v2103
        %v2105 = vmul.f32 %v2096, 1.442695
        %v2106 = vpow.pop %v2105
        %v2107 = vmul.f32 %v2097, 1.442695
        %v2108 = vpow.pop %v2107
        %v2109 = vmul.f32 %v2098, 1.442695
        %v2110 = vpow.pop %v2109
        %v2111 = vmul.f32 %v2099, 1.442695
        %v2112 = vpow.pop %v2111
        %v2113 = vmul.f32 %v2100, 1.442695
        %v2114 = vpow.pop %v2113
        %v2115 = vmul.f32 %v2101, 1.442695
        %v2116 = vpow.pop %v2115
        %v2117 = vmul.f32 %v2102, 1.442695
        %v2118 = vpow.pop %v2117
        %v2119 = vsub.f32 %v1437, %v1655
        %v2120 = vsub.f32 %v1440, %v1656
        %v2121 = vsub.f32 %v1443, %v1657
        %v2122 = vsub.f32 %v1446, %v1658
        %v2123 = vsub.f32 %v1449, %v1659
        %v2124 = vsub.f32 %v1452, %v1660
        %v2125 = vsub.f32 %v1455, %v1661
        %v2126 = vsub.f32 %v1458, %v1662
        %v2127 = vmul.f32 %v2119, 1.442695
        %v2128 = vpow.pop %v2127
        %v2129 = vmul.f32 %v2120, 1.442695
        %v2130 = vpow.pop %v2129
        %v2131 = vmul.f32 %v2121, 1.442695
        %v2132 = vpow.pop %v2131
        %v2133 = vmul.f32 %v2122, 1.442695
        %v2134 = vpow.pop %v2133
        %v2135 = vmul.f32 %v2123, 1.442695
        %v2136 = vpow.pop %v2135
        %v2137 = vmul.f32 %v2124, 1.442695
        %v2138 = vpow.pop %v2137
        %v2139 = vmul.f32 %v2125, 1.442695
        %v2140 = vpow.pop %v2139
        %v2141 = vmul.f32 %v2126, 1.442695
        %v2142 = vpow.pop %v2141
        %v2143 = vsub.f32 %v1480, %v1655
        %v2144 = vsub.f32 %v1483, %v1656
        %v2145 = vsub.f32 %v1486, %v1657
        %v2146 = vsub.f32 %v1489, %v1658
        %v2147 = vsub.f32 %v1492, %v1659
        %v2148 = vsub.f32 %v1495, %v1660
        %v2149 = vsub.f32 %v1498, %v1661
        %v2150 = vsub.f32 %v1501, %v1662
        %v2151 = vmul.f32 %v2143, 1.442695
        %v2152 = vpow.pop %v2151
        %v2153 = vmul.f32 %v2144, 1.442695
        %v2154 = vpow.pop %v2153
        %v2155 = vmul.f32 %v2145, 1.442695
        %v2156 = vpow.pop %v2155
        %v2157 = vmul.f32 %v2146, 1.442695
        %v2158 = vpow.pop %v2157
        %v2159 = vmul.f32 %v2147, 1.442695
        %v2160 = vpow.pop %v2159
        %v2161 = vmul.f32 %v2148, 1.442695
        %v2162 = vpow.pop %v2161
        %v2163 = vmul.f32 %v2149, 1.442695
        %v2164 = vpow.pop %v2163
        %v2165 = vmul.f32 %v2150, 1.442695
        %v2166 = vpow.pop %v2165
        %v2167 = vadd.f32 %v1672, %v1696
        %v2168 = vadd.f32 %v1674, %v1698
        %v2169 = vadd.f32 %v1676, %v1700
        %v2170 = vadd.f32 %v1678, %v1702
        %v2171 = vadd.f32 %v1680, %v1704
        %v2172 = vadd.f32 %v1682, %v1706
        %v2173 = vadd.f32 %v1684, %v1708
        %v2174 = vadd.f32 %v1686, %v1710
        %v2175 = vadd.f32 %v2167, %v1720
        %v2176 = vadd.f32 %v2168, %v1722
        %v2177 = vadd.f32 %v2169, %v1724
        %v2178 = vadd.f32 %v2170, %v1726
        %v2179 = vadd.f32 %v2171, %v1728
        %v2180 = vadd.f32 %v2172, %v1730
        %v2181 = vadd.f32 %v2173, %v1732
        %v2182 = vadd.f32 %v2174, %v1734
        %v2183 = vadd.f32 %v2175, %v1744
        %v2184 = vadd.f32 %v2176, %v1746
        %v2185 = vadd.f32 %v2177, %v1748
        %v2186 = vadd.f32 %v2178, %v1750
        %v2187 = vadd.f32 %v2179, %v1752
        %v2188 = vadd.f32 %v2180, %v1754
        %v2189 = vadd.f32 %v2181, %v1756
        %v2190 = vadd.f32 %v2182, %v1758
        %v2191 = vadd.f32 %v2183, %v1768
        %v2192 = vadd.f32 %v2184, %v1770
        %v2193 = vadd.f32 %v2185, %v1772
        %v2194 = vadd.f32 %v2186, %v1774
        %v2195 = vadd.f32 %v2187, %v1776
        %v2196 = vadd.f32 %v2188, %v1778
        %v2197 = vadd.f32 %v2189, %v1780
        %v2198 = vadd.f32 %v2190, %v1782
        %v2199 = vadd.f32 %v2191, %v1792
        %v2200 = vadd.f32 %v2192, %v1794
        %v2201 = vadd.f32 %v2193, %v1796
        %v2202 = vadd.f32 %v2194, %v1798
        %v2203 = vadd.f32 %v2195, %v1800
        %v2204 = vadd.f32 %v2196, %v1802
        %v2205 = vadd.f32 %v2197, %v1804
        %v2206 = vadd.f32 %v2198, %v1806
        %v2207 = vadd.f32 %v2199, %v1816
        %v2208 = vadd.f32 %v2200, %v1818
        %v2209 = vadd.f32 %v2201, %v1820
        %v2210 = vadd.f32 %v2202, %v1822
        %v2211 = vadd.f32 %v2203, %v1824
        %v2212 = vadd.f32 %v2204, %v1826
        %v2213 = vadd.f32 %v2205, %v1828
        %v2214 = vadd.f32 %v2206, %v1830
        %v2215 = vadd.f32 %v2207, %v1840
        %v2216 = vadd.f32 %v2208, %v1842
        %v2217 = vadd.f32 %v2209, %v1844
        %v2218 = vadd.f32 %v2210, %v1846
        %v2219 = vadd.f32 %v2211, %v1848
        %v2220 = vadd.f32 %v2212, %v1850
        %v2221 = vadd.f32 %v2213, %v1852
        %v2222 = vadd.f32 %v2214, %v1854
        %v2223 = vadd.f32 %v2215, %v1864
        %v2224 = vadd.f32 %v2216, %v1866
        %v2225 = vadd.f32 %v2217, %v1868
        %v2226 = vadd.f32 %v2218, %v1870
        %v2227 = vadd.f32 %v2219, %v1872
        %v2228 = vadd.f32 %v2220, %v1874
        %v2229 = vadd.f32 %v2221, %v1876
        %v2230 = vadd.f32 %v2222, %v1878
        %v2231 = vadd.f32 %v2223, %v1888
        %v2232 = vadd.f32 %v2224, %v1890
        %v2233 = vadd.f32 %v2225, %v1892
        %v2234 = vadd.f32 %v2226, %v1894
        %v2235 = vadd.f32 %v2227, %v1896
        %v2236 = vadd.f32 %v2228, %v1898
        %v2237 = vadd.f32 %v2229, %v1900
        %v2238 = vadd.f32 %v2230, %v1902
        %v2239 = vadd.f32 %v2231, %v1912
        %v2240 = vadd.f32 %v2232, %v1914
        %v2241 = vadd.f32 %v2233, %v1916
        %v2242 = vadd.f32 %v2234, %v1918
        %v2243 = vadd.f32 %v2235, %v1920
        %v2244 = vadd.f32 %v2236, %v1922
        %v2245 = vadd.f32 %v2237, %v1924
        %v2246 = vadd.f32 %v2238, %v1926
        %v2247 = vadd.f32 %v2239, %v1936
        %v2248 = vadd.f32 %v2240, %v1938
        %v2249 = vadd.f32 %v2241, %v1940
        %v2250 = vadd.f32 %v2242, %v1942
        %v2251 = vadd.f32 %v2243, %v1944
        %v2252 = vadd.f32 %v2244, %v1946
        %v2253 = vadd.f32 %v2245, %v1948
        %v2254 = vadd.f32 %v2246, %v1950
        %v2255 = vadd.f32 %v2247, %v1960
        %v2256 = vadd.f32 %v2248, %v1962
        %v2257 = vadd.f32 %v2249, %v1964
        %v2258 = vadd.f32 %v2250, %v1966
        %v2259 = vadd.f32 %v2251, %v1968
        %v2260 = vadd.f32 %v2252, %v1970
        %v2261 = vadd.f32 %v2253, %v1972
        %v2262 = vadd.f32 %v2254, %v1974
        %v2263 = vadd.f32 %v2255, %v1984
        %v2264 = vadd.f32 %v2256, %v1986
        %v2265 = vadd.f32 %v2257, %v1988
        %v2266 = vadd.f32 %v2258, %v1990
        %v2267 = vadd.f32 %v2259, %v1992
        %v2268 = vadd.f32 %v2260, %v1994
        %v2269 = vadd.f32 %v2261, %v1996
        %v2270 = vadd.f32 %v2262, %v1998
        %v2271 = vadd.f32 %v2263, %v2008
        %v2272 = vadd.f32 %v2264, %v2010
        %v2273 = vadd.f32 %v2265, %v2012
        %v2274 = vadd.f32 %v2266, %v2014
        %v2275 = vadd.f32 %v2267, %v2016
        %v2276 = vadd.f32 %v2268, %v2018
        %v2277 = vadd.f32 %v2269, %v2020
        %v2278 = vadd.f32 %v2270, %v2022
        %v2279 = vadd.f32 %v2271, %v2032
        %v2280 = vadd.f32 %v2272, %v2034
        %v2281 = vadd.f32 %v2273, %v2036
        %v2282 = vadd.f32 %v2274, %v2038
        %v2283 = vadd.f32 %v2275, %v2040
        %v2284 = vadd.f32 %v2276, %v2042
        %v2285 = vadd.f32 %v2277, %v2044
        %v2286 = vadd.f32 %v2278, %v2046
        %v2287 = vadd.f32 %v2279, %v2056
        %v2288 = vadd.f32 %v2280, %v2058
        %v2289 = vadd.f32 %v2281, %v2060
        %v2290 = vadd.f32 %v2282, %v2062
        %v2291 = vadd.f32 %v2283, %v2064
        %v2292 = vadd.f32 %v2284, %v2066
        %v2293 = vadd.f32 %v2285, %v2068
        %v2294 = vadd.f32 %v2286, %v2070
        %v2295 = vadd.f32 %v2287, %v2080
        %v2296 = vadd.f32 %v2288, %v2082
        %v2297 = vadd.f32 %v2289, %v2084
        %v2298 = vadd.f32 %v2290, %v2086
        %v2299 = vadd.f32 %v2291, %v2088
        %v2300 = vadd.f32 %v2292, %v2090
        %v2301 = vadd.f32 %v2293, %v2092
        %v2302 = vadd.f32 %v2294, %v2094
        %v2303 = vadd.f32 %v2295, %v2104
        %v2304 = vadd.f32 %v2296, %v2106
        %v2305 = vadd.f32 %v2297, %v2108
        %v2306 = vadd.f32 %v2298, %v2110
        %v2307 = vadd.f32 %v2299, %v2112
        %v2308 = vadd.f32 %v2300, %v2114
        %v2309 = vadd.f32 %v2301, %v2116
        %v2310 = vadd.f32 %v2302, %v2118
        %v2311 = vadd.f32 %v2303, %v2128
        %v2312 = vadd.f32 %v2304, %v2130
        %v2313 = vadd.f32 %v2305, %v2132
        %v2314 = vadd.f32 %v2306, %v2134
        %v2315 = vadd.f32 %v2307, %v2136
        %v2316 = vadd.f32 %v2308, %v2138
        %v2317 = vadd.f32 %v2309, %v2140
        %v2318 = vadd.f32 %v2310, %v2142
        %v2319 = vadd.f32 %v2311, %v2152
        %v2320 = vadd.f32 %v2312, %v2154
        %v2321 = vadd.f32 %v2313, %v2156
        %v2322 = vadd.f32 %v2314, %v2158
        %v2323 = vadd.f32 %v2315, %v2160
        %v2324 = vadd.f32 %v2316, %v2162
        %v2325 = vadd.f32 %v2317, %v2164
        %v2326 = vadd.f32 %v2318, %v2166
        %v2327 = vrcp.pop %v2319
        %v2328 = vrcp.pop %v2320
        %v2329 = vrcp.pop %v2321
        %v2330 = vrcp.pop %v2322
        %v2331 = vrcp.pop %v2323
        %v2332 = vrcp.pop %v2324
        %v2333 = vrcp.pop %v2325
        %v2334 = vrcp.pop %v2326
        %v2335 = vmul.f32 %v2319, %v2327
        %v2336 = vmul.f32 %v2320, %v2328
        %v2337 = vmul.f32 %v2321, %v2329
        %v2338 = vmul.f32 %v2322, %v2330
        %v2339 = vmul.f32 %v2323, %v2331
        %v2340 = vmul.f32 %v2324, %v2332
        %v2341 = vmul.f32 %v2325, %v2333
        %v2342 = vmul.f32 %v2326, %v2334
        %v2343 = vsub.f32 2.0, %v2335
        %v2344 = vsub.f32 2.0, %v2336
        %v2345 = vsub.f32 2.0, %v2337
        %v2346 = vsub.f32 2.0, %v2338
        %v2347 = vsub.f32 2.0, %v2339
        %v2348 = vsub.f32 2.0, %v2340
        %v2349 = vsub.f32 2.0, %v2341
        %v2350 = vsub.f32 2.0, %v2342
        %v2351 = vmul.f32 %v2327, %v2343
        %v2352 = vmul.f32 %v2328, %v2344
        %v2353 = vmul.f32 %v2329, %v2345
        %v2354 = vmul.f32 %v2330, %v2346
        %v2355 = vmul.f32 %v2331, %v2347
        %v2356 = vmul.f32 %v2332, %v2348
        %v2357 = vmul.f32 %v2333, %v2349
        %v2358 = vmul.f32 %v2334, %v2350
        %v2359 = vmul.f32 %v1672, %v2351
        %v2360 = vmul.f32 %v1674, %v2352
        %v2361 = vmul.f32 %v1676, %v2353
        %v2362 = vmul.f32 %v1678, %v2354
        %v2363 = vmul.f32 %v1680, %v2355
        %v2364 = vmul.f32 %v1682, %v2356
        %v2365 = vmul.f32 %v1684, %v2357
        %v2366 = vmul.f32 %v1686, %v2358
        %vm2367 = vcmask 523264
        %2368 = vst.msk [vmem:[%s193] sm:$0xff] %vm2367, %v2359
        %2369 = vst.msk [vmem:[%s193 + $0x8] sm:$0xff] %vm2367, %v2360
        %2370 = vst.msk [vmem:[%s193 + $0x10] sm:$0xff] %vm2367, %v2361
        %2371 = vst.msk [vmem:[%s193 + $0x18] sm:$0xff] %vm2367, %v2362
        %2372 = vst.msk [vmem:[%s193 + $0x20] sm:$0xff] %vm2367, %v2363
        %2373 = vst.msk [vmem:[%s193 + $0x28] sm:$0xff] %vm2367, %v2364
        %2374 = vst.msk [vmem:[%s193 + $0x30] sm:$0xff] %vm2367, %v2365
        %2375 = vst.msk [vmem:[%s193 + $0x38] sm:$0xff] %vm2367, %v2366
        %v2376 = vmul.f32 %v1696, %v2351
        %v2377 = vmul.f32 %v1698, %v2352
        %v2378 = vmul.f32 %v1700, %v2353
        %v2379 = vmul.f32 %v1702, %v2354
        %v2380 = vmul.f32 %v1704, %v2355
        %v2381 = vmul.f32 %v1706, %v2356
        %v2382 = vmul.f32 %v1708, %v2357
        %v2383 = vmul.f32 %v1710, %v2358
        %s2384 = scalar_lea.vmem %s193, 64 [#allocation3]
        %2385 = vst.msk [vmem:[%s2384] sm:$0xff] %vm2367, %v2376
        %2386 = vst.msk [vmem:[%s2384 + $0x8] sm:$0xff] %vm2367, %v2377
        %2387 = vst.msk [vmem:[%s2384 + $0x10] sm:$0xff] %vm2367, %v2378
        %2388 = vst.msk [vmem:[%s2384 + $0x18] sm:$0xff] %vm2367, %v2379
        %2389 = vst.msk [vmem:[%s2384 + $0x20] sm:$0xff] %vm2367, %v2380
        %2390 = vst.msk [vmem:[%s2384 + $0x28] sm:$0xff] %vm2367, %v2381
        %2391 = vst.msk [vmem:[%s2384 + $0x30] sm:$0xff] %vm2367, %v2382
        %2392 = vst.msk [vmem:[%s2384 + $0x38] sm:$0xff] %vm2367, %v2383
        %v2393 = vmul.f32 %v1720, %v2351
        %v2394 = vmul.f32 %v1722, %v2352
        %v2395 = vmul.f32 %v1724, %v2353
        %v2396 = vmul.f32 %v1726, %v2354
        %v2397 = vmul.f32 %v1728, %v2355
        %v2398 = vmul.f32 %v1730, %v2356
        %v2399 = vmul.f32 %v1732, %v2357
        %v2400 = vmul.f32 %v1734, %v2358
        %s2401 = scalar_lea.vmem %s193, 128 [#allocation3]
        %2402 = vst.msk [vmem:[%s2401] sm:$0xff] %vm2367, %v2393
        %2403 = vst.msk [vmem:[%s2401 + $0x8] sm:$0xff] %vm2367, %v2394
        %2404 = vst.msk [vmem:[%s2401 + $0x10] sm:$0xff] %vm2367, %v2395
        %2405 = vst.msk [vmem:[%s2401 + $0x18] sm:$0xff] %vm2367, %v2396
        %2406 = vst.msk [vmem:[%s2401 + $0x20] sm:$0xff] %vm2367, %v2397
        %2407 = vst.msk [vmem:[%s2401 + $0x28] sm:$0xff] %vm2367, %v2398
        %2408 = vst.msk [vmem:[%s2401 + $0x30] sm:$0xff] %vm2367, %v2399
        %2409 = vst.msk [vmem:[%s2401 + $0x38] sm:$0xff] %vm2367, %v2400
        %v2410 = vmul.f32 %v1744, %v2351
        %v2411 = vmul.f32 %v1746, %v2352
        %v2412 = vmul.f32 %v1748, %v2353
        %v2413 = vmul.f32 %v1750, %v2354
        %v2414 = vmul.f32 %v1752, %v2355
        %v2415 = vmul.f32 %v1754, %v2356
        %v2416 = vmul.f32 %v1756, %v2357
        %v2417 = vmul.f32 %v1758, %v2358
        %s2418 = scalar_lea.vmem %s193, 192 [#allocation3]
        %2419 = vst.msk [vmem:[%s2418] sm:$0xff] %vm2367, %v2410
        %2420 = vst.msk [vmem:[%s2418 + $0x8] sm:$0xff] %vm2367, %v2411
        %2421 = vst.msk [vmem:[%s2418 + $0x10] sm:$0xff] %vm2367, %v2412
        %2422 = vst.msk [vmem:[%s2418 + $0x18] sm:$0xff] %vm2367, %v2413
        %2423 = vst.msk [vmem:[%s2418 + $0x20] sm:$0xff] %vm2367, %v2414
        %2424 = vst.msk [vmem:[%s2418 + $0x28] sm:$0xff] %vm2367, %v2415
        %2425 = vst.msk [vmem:[%s2418 + $0x30] sm:$0xff] %vm2367, %v2416
        %2426 = vst.msk [vmem:[%s2418 + $0x38] sm:$0xff] %vm2367, %v2417
        %v2427 = vmul.f32 %v1768, %v2351
        %v2428 = vmul.f32 %v1770, %v2352
        %v2429 = vmul.f32 %v1772, %v2353
        %v2430 = vmul.f32 %v1774, %v2354
        %v2431 = vmul.f32 %v1776, %v2355
        %v2432 = vmul.f32 %v1778, %v2356
        %v2433 = vmul.f32 %v1780, %v2357
        %v2434 = vmul.f32 %v1782, %v2358
        %s2435 = scalar_lea.vmem %s193, 256 [#allocation3]
        %2436 = vst.msk [vmem:[%s2435] sm:$0xff] %vm2367, %v2427
        %2437 = vst.msk [vmem:[%s2435 + $0x8] sm:$0xff] %vm2367, %v2428
        %2438 = vst.msk [vmem:[%s2435 + $0x10] sm:$0xff] %vm2367, %v2429
        %2439 = vst.msk [vmem:[%s2435 + $0x18] sm:$0xff] %vm2367, %v2430
        %2440 = vst.msk [vmem:[%s2435 + $0x20] sm:$0xff] %vm2367, %v2431
        %2441 = vst.msk [vmem:[%s2435 + $0x28] sm:$0xff] %vm2367, %v2432
        %2442 = vst.msk [vmem:[%s2435 + $0x30] sm:$0xff] %vm2367, %v2433
        %2443 = vst.msk [vmem:[%s2435 + $0x38] sm:$0xff] %vm2367, %v2434
        %v2444 = vmul.f32 %v1792, %v2351
        %v2445 = vmul.f32 %v1794, %v2352
        %v2446 = vmul.f32 %v1796, %v2353
        %v2447 = vmul.f32 %v1798, %v2354
        %v2448 = vmul.f32 %v1800, %v2355
        %v2449 = vmul.f32 %v1802, %v2356
        %v2450 = vmul.f32 %v1804, %v2357
        %v2451 = vmul.f32 %v1806, %v2358
        %s2452 = scalar_lea.vmem %s193, 320 [#allocation3]
        %2453 = vst.msk [vmem:[%s2452] sm:$0xff] %vm2367, %v2444
        %2454 = vst.msk [vmem:[%s2452 + $0x8] sm:$0xff] %vm2367, %v2445
        %2455 = vst.msk [vmem:[%s2452 + $0x10] sm:$0xff] %vm2367, %v2446
        %2456 = vst.msk [vmem:[%s2452 + $0x18] sm:$0xff] %vm2367, %v2447
        %2457 = vst.msk [vmem:[%s2452 + $0x20] sm:$0xff] %vm2367, %v2448
        %2458 = vst.msk [vmem:[%s2452 + $0x28] sm:$0xff] %vm2367, %v2449
        %2459 = vst.msk [vmem:[%s2452 + $0x30] sm:$0xff] %vm2367, %v2450
        %2460 = vst.msk [vmem:[%s2452 + $0x38] sm:$0xff] %vm2367, %v2451
        %v2461 = vmul.f32 %v1816, %v2351
        %v2462 = vmul.f32 %v1818, %v2352
        %v2463 = vmul.f32 %v1820, %v2353
        %v2464 = vmul.f32 %v1822, %v2354
        %v2465 = vmul.f32 %v1824, %v2355
        %v2466 = vmul.f32 %v1826, %v2356
        %v2467 = vmul.f32 %v1828, %v2357
        %v2468 = vmul.f32 %v1830, %v2358
        %s2469 = scalar_lea.vmem %s193, 384 [#allocation3]
        %2470 = vst.msk [vmem:[%s2469] sm:$0xff] %vm2367, %v2461
        %2471 = vst.msk [vmem:[%s2469 + $0x8] sm:$0xff] %vm2367, %v2462
        %2472 = vst.msk [vmem:[%s2469 + $0x10] sm:$0xff] %vm2367, %v2463
        %2473 = vst.msk [vmem:[%s2469 + $0x18] sm:$0xff] %vm2367, %v2464
        %2474 = vst.msk [vmem:[%s2469 + $0x20] sm:$0xff] %vm2367, %v2465
        %2475 = vst.msk [vmem:[%s2469 + $0x28] sm:$0xff] %vm2367, %v2466
        %2476 = vst.msk [vmem:[%s2469 + $0x30] sm:$0xff] %vm2367, %v2467
        %2477 = vst.msk [vmem:[%s2469 + $0x38] sm:$0xff] %vm2367, %v2468
        %v2478 = vmul.f32 %v1840, %v2351
        %v2479 = vmul.f32 %v1842, %v2352
        %v2480 = vmul.f32 %v1844, %v2353
        %v2481 = vmul.f32 %v1846, %v2354
        %v2482 = vmul.f32 %v1848, %v2355
        %v2483 = vmul.f32 %v1850, %v2356
        %v2484 = vmul.f32 %v1852, %v2357
        %v2485 = vmul.f32 %v1854, %v2358
        %s2486 = scalar_lea.vmem %s193, 448 [#allocation3]
        %2487 = vst.msk [vmem:[%s2486] sm:$0xff] %vm2367, %v2478
        %2488 = vst.msk [vmem:[%s2486 + $0x8] sm:$0xff] %vm2367, %v2479
        %2489 = vst.msk [vmem:[%s2486 + $0x10] sm:$0xff] %vm2367, %v2480
        %2490 = vst.msk [vmem:[%s2486 + $0x18] sm:$0xff] %vm2367, %v2481
        %2491 = vst.msk [vmem:[%s2486 + $0x20] sm:$0xff] %vm2367, %v2482
        %2492 = vst.msk [vmem:[%s2486 + $0x28] sm:$0xff] %vm2367, %v2483
        %2493 = vst.msk [vmem:[%s2486 + $0x30] sm:$0xff] %vm2367, %v2484
        %2494 = vst.msk [vmem:[%s2486 + $0x38] sm:$0xff] %vm2367, %v2485
        %v2495 = vmul.f32 %v1864, %v2351
        %v2496 = vmul.f32 %v1866, %v2352
        %v2497 = vmul.f32 %v1868, %v2353
        %v2498 = vmul.f32 %v1870, %v2354
        %v2499 = vmul.f32 %v1872, %v2355
        %v2500 = vmul.f32 %v1874, %v2356
        %v2501 = vmul.f32 %v1876, %v2357
        %v2502 = vmul.f32 %v1878, %v2358
        %s2503 = scalar_lea.vmem %s193, 512 [#allocation3]
        %2504 = vst.msk [vmem:[%s2503] sm:$0xff] %vm2367, %v2495
        %2505 = vst.msk [vmem:[%s2503 + $0x8] sm:$0xff] %vm2367, %v2496
        %2506 = vst.msk [vmem:[%s2503 + $0x10] sm:$0xff] %vm2367, %v2497
        %2507 = vst.msk [vmem:[%s2503 + $0x18] sm:$0xff] %vm2367, %v2498
        %2508 = vst.msk [vmem:[%s2503 + $0x20] sm:$0xff] %vm2367, %v2499
        %2509 = vst.msk [vmem:[%s2503 + $0x28] sm:$0xff] %vm2367, %v2500
        %2510 = vst.msk [vmem:[%s2503 + $0x30] sm:$0xff] %vm2367, %v2501
        %2511 = vst.msk [vmem:[%s2503 + $0x38] sm:$0xff] %vm2367, %v2502
        %v2512 = vmul.f32 %v1888, %v2351
        %v2513 = vmul.f32 %v1890, %v2352
        %v2514 = vmul.f32 %v1892, %v2353
        %v2515 = vmul.f32 %v1894, %v2354
        %v2516 = vmul.f32 %v1896, %v2355
        %v2517 = vmul.f32 %v1898, %v2356
        %v2518 = vmul.f32 %v1900, %v2357
        %v2519 = vmul.f32 %v1902, %v2358
        %s2520 = scalar_lea.vmem %s193, 576 [#allocation3]
        %2521 = vst.msk [vmem:[%s2520] sm:$0xff] %vm2367, %v2512
        %2522 = vst.msk [vmem:[%s2520 + $0x8] sm:$0xff] %vm2367, %v2513
        %2523 = vst.msk [vmem:[%s2520 + $0x10] sm:$0xff] %vm2367, %v2514
        %2524 = vst.msk [vmem:[%s2520 + $0x18] sm:$0xff] %vm2367, %v2515
        %2525 = vst.msk [vmem:[%s2520 + $0x20] sm:$0xff] %vm2367, %v2516
        %2526 = vst.msk [vmem:[%s2520 + $0x28] sm:$0xff] %vm2367, %v2517
        %2527 = vst.msk [vmem:[%s2520 + $0x30] sm:$0xff] %vm2367, %v2518
        %2528 = vst.msk [vmem:[%s2520 + $0x38] sm:$0xff] %vm2367, %v2519
        %v2529 = vmul.f32 %v1912, %v2351
        %v2530 = vmul.f32 %v1914, %v2352
        %v2531 = vmul.f32 %v1916, %v2353
        %v2532 = vmul.f32 %v1918, %v2354
        %v2533 = vmul.f32 %v1920, %v2355
        %v2534 = vmul.f32 %v1922, %v2356
        %v2535 = vmul.f32 %v1924, %v2357
        %v2536 = vmul.f32 %v1926, %v2358
        %s2537 = scalar_lea.vmem %s193, 640 [#allocation3]
        %2538 = vst.msk [vmem:[%s2537] sm:$0xff] %vm2367, %v2529
        %2539 = vst.msk [vmem:[%s2537 + $0x8] sm:$0xff] %vm2367, %v2530
        %2540 = vst.msk [vmem:[%s2537 + $0x10] sm:$0xff] %vm2367, %v2531
        %2541 = vst.msk [vmem:[%s2537 + $0x18] sm:$0xff] %vm2367, %v2532
        %2542 = vst.msk [vmem:[%s2537 + $0x20] sm:$0xff] %vm2367, %v2533
        %2543 = vst.msk [vmem:[%s2537 + $0x28] sm:$0xff] %vm2367, %v2534
        %2544 = vst.msk [vmem:[%s2537 + $0x30] sm:$0xff] %vm2367, %v2535
        %2545 = vst.msk [vmem:[%s2537 + $0x38] sm:$0xff] %vm2367, %v2536
        %v2546 = vmul.f32 %v1936, %v2351
        %v2547 = vmul.f32 %v1938, %v2352
        %v2548 = vmul.f32 %v1940, %v2353
        %v2549 = vmul.f32 %v1942, %v2354
        %v2550 = vmul.f32 %v1944, %v2355
        %v2551 = vmul.f32 %v1946, %v2356
        %v2552 = vmul.f32 %v1948, %v2357
        %v2553 = vmul.f32 %v1950, %v2358
        %s2554 = scalar_lea.vmem %s193, 704 [#allocation3]
        %2555 = vst.msk [vmem:[%s2554] sm:$0xff] %vm2367, %v2546
        %2556 = vst.msk [vmem:[%s2554 + $0x8] sm:$0xff] %vm2367, %v2547
        %2557 = vst.msk [vmem:[%s2554 + $0x10] sm:$0xff] %vm2367, %v2548
        %2558 = vst.msk [vmem:[%s2554 + $0x18] sm:$0xff] %vm2367, %v2549
        %2559 = vst.msk [vmem:[%s2554 + $0x20] sm:$0xff] %vm2367, %v2550
        %2560 = vst.msk [vmem:[%s2554 + $0x28] sm:$0xff] %vm2367, %v2551
        %2561 = vst.msk [vmem:[%s2554 + $0x30] sm:$0xff] %vm2367, %v2552
        %2562 = vst.msk [vmem:[%s2554 + $0x38] sm:$0xff] %vm2367, %v2553
        %v2563 = vmul.f32 %v1960, %v2351
        %v2564 = vmul.f32 %v1962, %v2352
        %v2565 = vmul.f32 %v1964, %v2353
        %v2566 = vmul.f32 %v1966, %v2354
        %v2567 = vmul.f32 %v1968, %v2355
        %v2568 = vmul.f32 %v1970, %v2356
        %v2569 = vmul.f32 %v1972, %v2357
        %v2570 = vmul.f32 %v1974, %v2358
        %s2571 = scalar_lea.vmem %s193, 768 [#allocation3]
        %2572 = vst.msk [vmem:[%s2571] sm:$0xff] %vm2367, %v2563
        %2573 = vst.msk [vmem:[%s2571 + $0x8] sm:$0xff] %vm2367, %v2564
        %2574 = vst.msk [vmem:[%s2571 + $0x10] sm:$0xff] %vm2367, %v2565
        %2575 = vst.msk [vmem:[%s2571 + $0x18] sm:$0xff] %vm2367, %v2566
        %2576 = vst.msk [vmem:[%s2571 + $0x20] sm:$0xff] %vm2367, %v2567
        %2577 = vst.msk [vmem:[%s2571 + $0x28] sm:$0xff] %vm2367, %v2568
        %2578 = vst.msk [vmem:[%s2571 + $0x30] sm:$0xff] %vm2367, %v2569
        %2579 = vst.msk [vmem:[%s2571 + $0x38] sm:$0xff] %vm2367, %v2570
        %v2580 = vmul.f32 %v1984, %v2351
        %v2581 = vmul.f32 %v1986, %v2352
        %v2582 = vmul.f32 %v1988, %v2353
        %v2583 = vmul.f32 %v1990, %v2354
        %v2584 = vmul.f32 %v1992, %v2355
        %v2585 = vmul.f32 %v1994, %v2356
        %v2586 = vmul.f32 %v1996, %v2357
        %v2587 = vmul.f32 %v1998, %v2358
        %s2588 = scalar_lea.vmem %s193, 832 [#allocation3]
        %2589 = vst.msk [vmem:[%s2588] sm:$0xff] %vm2367, %v2580
        %2590 = vst.msk [vmem:[%s2588 + $0x8] sm:$0xff] %vm2367, %v2581
        %2591 = vst.msk [vmem:[%s2588 + $0x10] sm:$0xff] %vm2367, %v2582
        %2592 = vst.msk [vmem:[%s2588 + $0x18] sm:$0xff] %vm2367, %v2583
        %2593 = vst.msk [vmem:[%s2588 + $0x20] sm:$0xff] %vm2367, %v2584
        %2594 = vst.msk [vmem:[%s2588 + $0x28] sm:$0xff] %vm2367, %v2585
        %2595 = vst.msk [vmem:[%s2588 + $0x30] sm:$0xff] %vm2367, %v2586
        %2596 = vst.msk [vmem:[%s2588 + $0x38] sm:$0xff] %vm2367, %v2587
        %v2597 = vmul.f32 %v2008, %v2351
        %v2598 = vmul.f32 %v2010, %v2352
        %v2599 = vmul.f32 %v2012, %v2353
        %v2600 = vmul.f32 %v2014, %v2354
        %v2601 = vmul.f32 %v2016, %v2355
        %v2602 = vmul.f32 %v2018, %v2356
        %v2603 = vmul.f32 %v2020, %v2357
        %v2604 = vmul.f32 %v2022, %v2358
        %s2605 = scalar_lea.vmem %s193, 896 [#allocation3]
        %2606 = vst.msk [vmem:[%s2605] sm:$0xff] %vm2367, %v2597
        %2607 = vst.msk [vmem:[%s2605 + $0x8] sm:$0xff] %vm2367, %v2598
        %2608 = vst.msk [vmem:[%s2605 + $0x10] sm:$0xff] %vm2367, %v2599
        %2609 = vst.msk [vmem:[%s2605 + $0x18] sm:$0xff] %vm2367, %v2600
        %2610 = vst.msk [vmem:[%s2605 + $0x20] sm:$0xff] %vm2367, %v2601
        %2611 = vst.msk [vmem:[%s2605 + $0x28] sm:$0xff] %vm2367, %v2602
        %2612 = vst.msk [vmem:[%s2605 + $0x30] sm:$0xff] %vm2367, %v2603
        %2613 = vst.msk [vmem:[%s2605 + $0x38] sm:$0xff] %vm2367, %v2604
        %v2614 = vmul.f32 %v2032, %v2351
        %v2615 = vmul.f32 %v2034, %v2352
        %v2616 = vmul.f32 %v2036, %v2353
        %v2617 = vmul.f32 %v2038, %v2354
        %v2618 = vmul.f32 %v2040, %v2355
        %v2619 = vmul.f32 %v2042, %v2356
        %v2620 = vmul.f32 %v2044, %v2357
        %v2621 = vmul.f32 %v2046, %v2358
        %s2622 = scalar_lea.vmem %s193, 960 [#allocation3]
        %2623 = vst.msk [vmem:[%s2622] sm:$0xff] %vm2367, %v2614
        %2624 = vst.msk [vmem:[%s2622 + $0x8] sm:$0xff] %vm2367, %v2615
        %2625 = vst.msk [vmem:[%s2622 + $0x10] sm:$0xff] %vm2367, %v2616
        %2626 = vst.msk [vmem:[%s2622 + $0x18] sm:$0xff] %vm2367, %v2617
        %2627 = vst.msk [vmem:[%s2622 + $0x20] sm:$0xff] %vm2367, %v2618
        %2628 = vst.msk [vmem:[%s2622 + $0x28] sm:$0xff] %vm2367, %v2619
        %2629 = vst.msk [vmem:[%s2622 + $0x30] sm:$0xff] %vm2367, %v2620
        %2630 = vst.msk [vmem:[%s2622 + $0x38] sm:$0xff] %vm2367, %v2621
        %v2631 = vmul.f32 %v2056, %v2351
        %v2632 = vmul.f32 %v2058, %v2352
        %v2633 = vmul.f32 %v2060, %v2353
        %v2634 = vmul.f32 %v2062, %v2354
        %v2635 = vmul.f32 %v2064, %v2355
        %v2636 = vmul.f32 %v2066, %v2356
        %v2637 = vmul.f32 %v2068, %v2357
        %v2638 = vmul.f32 %v2070, %v2358
        %s2639 = scalar_lea.vmem %s193, 1024 [#allocation3]
        %2640 = vst.msk [vmem:[%s2639] sm:$0xff] %vm2367, %v2631
        %2641 = vst.msk [vmem:[%s2639 + $0x8] sm:$0xff] %vm2367, %v2632
        %2642 = vst.msk [vmem:[%s2639 + $0x10] sm:$0xff] %vm2367, %v2633
        %2643 = vst.msk [vmem:[%s2639 + $0x18] sm:$0xff] %vm2367, %v2634
        %2644 = vst.msk [vmem:[%s2639 + $0x20] sm:$0xff] %vm2367, %v2635
        %2645 = vst.msk [vmem:[%s2639 + $0x28] sm:$0xff] %vm2367, %v2636
        %2646 = vst.msk [vmem:[%s2639 + $0x30] sm:$0xff] %vm2367, %v2637
        %2647 = vst.msk [vmem:[%s2639 + $0x38] sm:$0xff] %vm2367, %v2638
        %v2648 = vmul.f32 %v2080, %v2351
        %v2649 = vmul.f32 %v2082, %v2352
        %v2650 = vmul.f32 %v2084, %v2353
        %v2651 = vmul.f32 %v2086, %v2354
        %v2652 = vmul.f32 %v2088, %v2355
        %v2653 = vmul.f32 %v2090, %v2356
        %v2654 = vmul.f32 %v2092, %v2357
        %v2655 = vmul.f32 %v2094, %v2358
        %s2656 = scalar_lea.vmem %s193, 1088 [#allocation3]
        %2657 = vst.msk [vmem:[%s2656] sm:$0xff] %vm2367, %v2648
        %2658 = vst.msk [vmem:[%s2656 + $0x8] sm:$0xff] %vm2367, %v2649
        %2659 = vst.msk [vmem:[%s2656 + $0x10] sm:$0xff] %vm2367, %v2650
        %2660 = vst.msk [vmem:[%s2656 + $0x18] sm:$0xff] %vm2367, %v2651
        %2661 = vst.msk [vmem:[%s2656 + $0x20] sm:$0xff] %vm2367, %v2652
        %2662 = vst.msk [vmem:[%s2656 + $0x28] sm:$0xff] %vm2367, %v2653
        %2663 = vst.msk [vmem:[%s2656 + $0x30] sm:$0xff] %vm2367, %v2654
        %2664 = vst.msk [vmem:[%s2656 + $0x38] sm:$0xff] %vm2367, %v2655
        %v2665 = vmul.f32 %v2104, %v2351
        %v2666 = vmul.f32 %v2106, %v2352
        %v2667 = vmul.f32 %v2108, %v2353
        %v2668 = vmul.f32 %v2110, %v2354
        %v2669 = vmul.f32 %v2112, %v2355
        %v2670 = vmul.f32 %v2114, %v2356
        %v2671 = vmul.f32 %v2116, %v2357
        %v2672 = vmul.f32 %v2118, %v2358
        %s2673 = scalar_lea.vmem %s193, 1152 [#allocation3]
        %2674 = vst.msk [vmem:[%s2673] sm:$0xff] %vm2367, %v2665
        %2675 = vst.msk [vmem:[%s2673 + $0x8] sm:$0xff] %vm2367, %v2666
        %2676 = vst.msk [vmem:[%s2673 + $0x10] sm:$0xff] %vm2367, %v2667
        %2677 = vst.msk [vmem:[%s2673 + $0x18] sm:$0xff] %vm2367, %v2668
        %2678 = vst.msk [vmem:[%s2673 + $0x20] sm:$0xff] %vm2367, %v2669
        %2679 = vst.msk [vmem:[%s2673 + $0x28] sm:$0xff] %vm2367, %v2670
        %2680 = vst.msk [vmem:[%s2673 + $0x30] sm:$0xff] %vm2367, %v2671
        %2681 = vst.msk [vmem:[%s2673 + $0x38] sm:$0xff] %vm2367, %v2672
        %v2682 = vmul.f32 %v2128, %v2351
        %v2683 = vmul.f32 %v2130, %v2352
        %v2684 = vmul.f32 %v2132, %v2353
        %v2685 = vmul.f32 %v2134, %v2354
        %v2686 = vmul.f32 %v2136, %v2355
        %v2687 = vmul.f32 %v2138, %v2356
        %v2688 = vmul.f32 %v2140, %v2357
        %v2689 = vmul.f32 %v2142, %v2358
        %s2690 = scalar_lea.vmem %s193, 1216 [#allocation3]
        %2691 = vst.msk [vmem:[%s2690] sm:$0xff] %vm2367, %v2682
        %2692 = vst.msk [vmem:[%s2690 + $0x8] sm:$0xff] %vm2367, %v2683
        %2693 = vst.msk [vmem:[%s2690 + $0x10] sm:$0xff] %vm2367, %v2684
        %2694 = vst.msk [vmem:[%s2690 + $0x18] sm:$0xff] %vm2367, %v2685
        %2695 = vst.msk [vmem:[%s2690 + $0x20] sm:$0xff] %vm2367, %v2686
        %2696 = vst.msk [vmem:[%s2690 + $0x28] sm:$0xff] %vm2367, %v2687
        %2697 = vst.msk [vmem:[%s2690 + $0x30] sm:$0xff] %vm2367, %v2688
        %2698 = vst.msk [vmem:[%s2690 + $0x38] sm:$0xff] %vm2367, %v2689
        %v2699 = vmul.f32 %v2152, %v2351
        %v2700 = vmul.f32 %v2154, %v2352
        %v2701 = vmul.f32 %v2156, %v2353
        %v2702 = vmul.f32 %v2158, %v2354
        %v2703 = vmul.f32 %v2160, %v2355
        %v2704 = vmul.f32 %v2162, %v2356
        %v2705 = vmul.f32 %v2164, %v2357
        %v2706 = vmul.f32 %v2166, %v2358
        %s2707 = scalar_lea.vmem %s193, 1280 [#allocation3]
        %2708 = vst.msk [vmem:[%s2707] sm:$0xff] %vm2367, %v2699
        %2709 = vst.msk [vmem:[%s2707 + $0x8] sm:$0xff] %vm2367, %v2700
        %2710 = vst.msk [vmem:[%s2707 + $0x10] sm:$0xff] %vm2367, %v2701
        %2711 = vst.msk [vmem:[%s2707 + $0x18] sm:$0xff] %vm2367, %v2702
        %2712 = vst.msk [vmem:[%s2707 + $0x20] sm:$0xff] %vm2367, %v2703
        %2713 = vst.msk [vmem:[%s2707 + $0x28] sm:$0xff] %vm2367, %v2704
        %2714 = vst.msk [vmem:[%s2707 + $0x30] sm:$0xff] %vm2367, %v2705
        %2715 = vst.msk [vmem:[%s2707 + $0x38] sm:$0xff] %vm2367, %v2706
        %s2716 = sand.u32 %s112, 1
        %s2717 = scalar_lea.sflag [#allocation4], %s2716
        %s2718 = sand.u32 %s112, 1
        %s2719 = smul.addr %s2718, 1344
        %s2720 = scalar_lea.vmem [#allocation3], %s2719
        // Predicated region
        $region37: #{net_forward.23} parent=31 // pred_check
          %p2721 = pneg %p122
        $region38: #{net_forward.23} parent=31 // pred_check_branch
          %2723 = sbr.rel (%p2721) target = $region40
        $region39: #{net_forward.23} parent=31 // pred_region
          %s2724 = smul.u32 8, %s22
          %2726 = vsyncadd %s2717, 0
          %s2727 = smul.addr %s21, 168
          %s2728 = sadd.s32 %s2724, %s2727
          %s2729 = smul.addr %s2728, 8
          %s2730 = scalar_lea.hbm %s3, %s2729
          %s2731 = sshll.u32 %s2720, 4
          %s2732 = int_to_ptr.vmem [resolvable:$true] %s2731
          %s2733 = sshll.u32 %s2730, 4
          %s2734 = int_to_ptr.hbm [resolvable:$true] %s2733
          %2739 = dma.vmem_to_hbm [thread:$0]  %s2732, 21504, %s2734, %s2717, 128, 128, 8
        $region40: #{net_forward.23} parent=31 // pred_fallthru
          _
      $region32: #{net_forward.23} parent=5 // pred_fallthru
        _
      %p2740 = scmp.le.s32.totalorder 2, %s12
      // Predicated region
      $region41: #{net_forward.23} parent=5 // pred_check
        %p2741 = pneg %p2740
      $region42: #{net_forward.23} parent=5 // pred_check_branch
        %2743 = sbr.rel (%p2741) target = $region44
      $region43: #{net_forward.23} parent=5 // pred_region
        %s2744 = ssub.s32 %s12, 2
        // Predicated region
        $region45: #{net_forward.23} parent=43 // pred_check
          %p2745 = pneg %p128
        $region46: #{net_forward.23} parent=43 // pred_check_branch
          %2747 = sbr.rel (%p2745) target = $region48
        $region47: #{net_forward.23} parent=43 // pred_region
          %s2748 = sand.u32 %s113, 1
          %s2749 = scalar_lea.sflag [#allocation4], %s2748
          %s2750 = sand.u32 %s113, 1
          %s2751 = smul.addr %s2750, 1344
          %s2752 = scalar_lea.vmem [#allocation3], %s2751
          %2754 = dma.done %s2749, 21504
        $region48: #{net_forward.23} parent=43 // pred_fallthru
          _
      $region44: #{net_forward.23} parent=5 // pred_fallthru
        _
    $region6: #{net_forward.23} parent=1 // loop_footer
      %s16 = sadd.s32 1, %s12
    $region7: #{net_forward.23} parent=1 // loop_footer_branch
      %11 = sbr.rel target = $region3
    $region8: #{net_forward.23} parent=1 // loop_exit
      _
    %2755 = vsyncpa [#allocation4], 1
    %s2756 = scalar_lea.sflag [#allocation4], 1
    %2757 = vsyncpa %s2756, 1

</llo_original>
